<compile_context>
chip_gen: v7x
topology: tpu7x:2x2x1
jax: 0.10.0
libtpu: 0.0.40
codegen_flags: <defaults>
</compile_context>

<pallas_src>
import functools
import math

import jax
import jax.numpy as jnp
from jax.experimental import pallas as pl
from jax.experimental.pallas import tpu as pltpu

F32 = jnp.float32
MXU_DT = jnp.bfloat16          # MXU operand dtype (accumulation stays f32)
EPS_LN = 1e-5
NEG_INF = -1e9
MAX_ROW_TILE = 256             # v5e-safe row tile for flattened (B*T, .) kernels
VMEM_LIMIT = 64 * 1024 * 1024  # explicit scoped-VMEM cap (v7x has 64 MiB physical)


def _round_up(x, m):
    return ((x + m - 1) // m) * m


def _row_tile(m):
    # Largest <=256-row tile (multiple of 8 sublanes) that still leaves >=2 grid
    # steps when possible, so v7x's two TensorCores both get work.
    return max(8, min(MAX_ROW_TILE, _round_up(pl.cdiv(m, 2), 8)))


def _cparams(*sem):
    return pltpu.CompilerParams(dimension_semantics=sem,
                                vmem_limit_bytes=VMEM_LIMIT)


def _mm(a, b):
    """MXU matmul: bf16 operands, f32 accumulation."""
    return jnp.dot(a.astype(MXU_DT), b.astype(MXU_DT),
                   preferred_element_type=jnp.float32)


def _ln(x, g, b):
    mean = jnp.mean(x, axis=-1, keepdims=True)
    var = jnp.mean((x - mean) ** 2, axis=-1, keepdims=True)
    return (x - mean) * jax.lax.rsqrt(var + EPS_LN) * g + b


# ----------------------------------------------------------------------------
# Kernel 1: per-(batch, feature) normalization over time (torch mean/std(dim=1),
# unbiased std).  Grid over batch; two-pass statistics, exact division.
# ----------------------------------------------------------------------------
def _time_norm_kernel(x_ref, o_ref):
    x = x_ref[0]                                   # (T, F)
    t = x.shape[0]
    mean = jnp.sum(x, axis=0, keepdims=True) * (1.0 / t)
    d = x - mean
    var = jnp.sum(d * d, axis=0, keepdims=True) * (1.0 / max(t - 1, 1))  # unbiased
    std = jnp.sqrt(var)
    o_ref[0] = d * (1.0 / (std + 1e-5))


def time_normalize(x):
    B, T, Fd = x.shape
    return pl.pallas_call(
        _time_norm_kernel,
        out_shape=jax.ShapeDtypeStruct((B, T, Fd), F32),
        grid=(B,),
        in_specs=[pl.BlockSpec((1, T, Fd), lambda b: (b, 0, 0))],
        out_specs=pl.BlockSpec((1, T, Fd), lambda b: (b, 0, 0)),
        compiler_params=_cparams("parallel"),
    )(x)


# ----------------------------------------------------------------------------
# Kernel 2: row-tiled linear (matmul + bias, optional ReLU).  Used for the
# subsampling convolutions (as im2col matmuls), the subsampling projection and fc.
# ----------------------------------------------------------------------------
def _linear_kernel(x_ref, w_ref, b_ref, o_ref, *, activation):
    y = _mm(x_ref[...], w_ref[...]) + b_ref[...]
    if activation == "relu":
        y = jnp.maximum(y, 0.0)
    o_ref[...] = y.astype(o_ref.dtype)


def pallas_linear(x, w, b, activation=None):
    orig = x.shape
    K = orig[-1]
    x2 = x.reshape(-1, K)
    M, N = x2.shape[0], w.shape[1]
    tm = _row_tile(M)
    out = pl.pallas_call(
        functools.partial(_linear_kernel, activation=activation),
        out_shape=jax.ShapeDtypeStruct((M, N), F32),
        grid=(pl.cdiv(M, tm),),
        in_specs=[pl.BlockSpec((tm, K), lambda i: (i, 0)),
                  pl.BlockSpec((K, N), lambda i: (0, 0)),
                  pl.BlockSpec((1, N), lambda i: (0, 0))],
        out_specs=pl.BlockSpec((tm, N), lambda i: (i, 0)),
        compiler_params=_cparams("parallel"),
    )(x2, w, b.reshape(1, N))
    return out.reshape(orig[:-1] + (N,))


# ----------------------------------------------------------------------------
# Kernel 3: fused feed-forward module.
#   y = x + 0.5 * W2(SiLU(W1(LN(x))))   [+ optional trailing LayerNorm]
# ----------------------------------------------------------------------------
def _ff_kernel(x_ref, g_ref, b_ref, w1_ref, b1_ref, w2_ref, b2_ref,
               fg_ref, fb_ref, o_ref, *, with_final_ln):
    x = x_ref[...]
    h = _ln(x, g_ref[...], b_ref[...])
    h = _mm(h, w1_ref[...]) + b1_ref[...]
    h = h * jax.nn.sigmoid(h)                       # SiLU
    h = _mm(h, w2_ref[...]) + b2_ref[...]
    y = x + 0.5 * h                                 # half-step residual (fused)
    if with_final_ln:
        y = _ln(y, fg_ref[...], fb_ref[...])
    o_ref[...] = y


def pallas_ff_module(x, g, b, w1, b1, w2, b2, final_g=None, final_b=None):
    B, T, D = x.shape
    M = B * T
    FF = w1.shape[1]
    tm = _row_tile(M)
    with_final = final_g is not None
    if not with_final:                              # dummies, unused in the kernel
        final_g = jnp.ones((D,), F32)
        final_b = jnp.zeros((D,), F32)
    const = lambda i: (0, 0)
    out = pl.pallas_call(
        functools.partial(_ff_kernel, with_final_ln=with_final),
        out_shape=jax.ShapeDtypeStruct((M, D), F32),
        grid=(pl.cdiv(M, tm),),
        in_specs=[pl.BlockSpec((tm, D), lambda i: (i, 0)),
                  pl.BlockSpec((1, D), const), pl.BlockSpec((1, D), const),
                  pl.BlockSpec((D, FF), const), pl.BlockSpec((1, FF), const),
                  pl.BlockSpec((FF, D), const), pl.BlockSpec((1, D), const),
                  pl.BlockSpec((1, D), const), pl.BlockSpec((1, D), const)],
        out_specs=pl.BlockSpec((tm, D), lambda i: (i, 0)),
        compiler_params=_cparams("parallel"),
    )(x.reshape(M, D), g.reshape(1, D), b.reshape(1, D),
      w1, b1.reshape(1, FF), w2, b2.reshape(1, D),
      final_g.reshape(1, D), final_b.reshape(1, D))
    return out.reshape(B, T, D)


# ----------------------------------------------------------------------------
# Kernel 4: band-limited causal MHSA, fully fused:
#   LN -> Q/K/V projections (head-major, Q pre-scaled) -> banded-causal masked
#   softmax over the [q0-hist, q0+tq) KV window -> per-head output projection
#   -> residual add.  Grid (batch, query-tile); mask built from iota + scalar-
#   prefetched lengths, never touching HBM.
# TODO(synk): no relative positional encoding (plain dot-product attention).
# ----------------------------------------------------------------------------
def _attn_kernel(len_ref, xq_ref, xp_ref, g_ref, b_ref,
                 wq_ref, wk_ref, wv_ref, bq_ref, bk_ref, bv_ref,
                 wo_ref, bo_ref, o_ref, *, tq, hist, nheads, dh, npf):
    bb = pl.program_id(0)
    qi = pl.program_id(1)
    seq_len = len_ref[bb]
    q0 = qi * tq

    H = nheads
    D = nheads * dh

    xq = xq_ref[0]                                  # (tq, D) f32 (also residual)
    g = g_ref[...]
    beta = b_ref[...]
    lnq = _ln(xq, g, beta).astype(MXU_DT)
    xp_tail = xp_ref[0][tq - hist:, :]              # last `hist` rows of prev tile
    lnp = _ln(xp_tail, g, beta).astype(MXU_DT)

    lnq_b = jnp.broadcast_to(lnq[None], (H, tq, D))
    lnp_b = jnp.broadcast_to(lnp[None], (H, hist, D))

    q = jnp.einsum('htd,hdf->htf', lnq_b, wq_ref[...],
                   preferred_element_type=jnp.float32) + bq_ref[...]
    kc = jnp.einsum('htd,hdf->htf', lnq_b, wk_ref[...],
                    preferred_element_type=jnp.float32) + bk_ref[...]
    vc = jnp.einsum('htd,hdf->htf', lnq_b, wv_ref[...],
                    preferred_element_type=jnp.float32) + bv_ref[...]
    kp = jnp.einsum('htd,hdf->htf', lnp_b, wk_ref[...],
                    preferred_element_type=jnp.float32) + bk_ref[...]
    vp = jnp.einsum('htd,hdf->htf', lnp_b, wv_ref[...],
                    preferred_element_type=jnp.float32) + bv_ref[...]
    k = jnp.concatenate([kp, kc], axis=1)           # (H, hist+tq, dh)
    v = jnp.concatenate([vp, vc], axis=1)

    W = hist + tq
    s = jnp.einsum('htf,hsf->hts', q.astype(MXU_DT), k.astype(MXU_DT),
                   preferred_element_type=jnp.float32)          # (H, tq, W)
    rows = q0 + jax.lax.broadcasted_iota(jnp.int32, (tq, W), 0)
    cols = (q0 - hist) + jax.lax.broadcasted_iota(jnp.int32, (tq, W), 1)
    valid = (cols >= 0) & (cols <= rows) & (cols >= rows - npf) & (cols < seq_len)
    s = s + jnp.where(valid, 0.0, NEG_INF)[None, :, :]
    s = s - jnp.max(s, axis=-1, keepdims=True)
    p = jnp.exp(s)
    p = p * (1.0 / jnp.sum(p, axis=-1, keepdims=True))
    o = jnp.einsum('hts,hsf->htf', p.astype(MXU_DT), v.astype(MXU_DT),
                   preferred_element_type=jnp.float32)          # (H, tq, dh)
    yh = jnp.einsum('htf,hfd->htd', o.astype(MXU_DT), wo_ref[...],
                    preferred_element_type=jnp.float32)         # (H, tq, D)
    y = jnp.sum(yh, axis=0) + bo_ref[...]
    # padded query rows: drop the attention contribution (keeps output finite)
    row_ok = (q0 + jax.lax.broadcasted_iota(jnp.int32, (tq, 1), 0)) < seq_len
    y = jnp.where(row_ok, y, 0.0)
    o_ref[0] = xq + y                               # residual fused


def pallas_mhsa(x, sub_lengths, bp, nheads, npf, t_tile):
    B, Tp, D = x.shape
    dh = D // nheads
    nq = Tp // t_tile
    hist = min(_round_up(max(npf, 1), 8), t_tile)

    qmap = lambda bb, qi, lens: (bb, qi, 0)
    pmap = lambda bb, qi, lens: (bb, jnp.maximum(qi - 1, 0), 0)
    c2 = lambda bb, qi, lens: (0, 0)
    c3 = lambda bb, qi, lens: (0, 0, 0)

    kern = functools.partial(_attn_kernel, tq=t_tile, hist=hist,
                             nheads=nheads, dh=dh, npf=npf)
    return pl.pallas_call(
        kern,
        out_shape=jax.ShapeDtypeStruct((B, Tp, D), F32),
        grid_spec=pltpu.PrefetchScalarGridSpec(
            num_scalar_prefetch=1,
            grid=(B, nq),
            in_specs=[pl.BlockSpec((1, t_tile, D), qmap),
                      pl.BlockSpec((1, t_tile, D), pmap),
                      pl.BlockSpec((1, D), c2), pl.BlockSpec((1, D), c2),
                      pl.BlockSpec((nheads, D, dh), c3),
                      pl.BlockSpec((nheads, D, dh), c3),
                      pl.BlockSpec((nheads, D, dh), c3),
                      pl.BlockSpec((nheads, 1, dh), c3),
                      pl.BlockSpec((nheads, 1, dh), c3),
                      pl.BlockSpec((nheads, 1, dh), c3),
                      pl.BlockSpec((nheads, dh, D), c3),
                      pl.BlockSpec((1, D), c2)],
            out_specs=pl.BlockSpec((1, t_tile, D), qmap),
        ),
        compiler_params=_cparams("parallel", "parallel"),
    )(sub_lengths, x, x,
      bp["mha_ln_g"].reshape(1, D), bp["mha_ln_b"].reshape(1, D),
      bp["wq"], bp["wk"], bp["wv"],
      bp["bq"], bp["bk"], bp["bv"],
      bp["wo"], bp["bo"].reshape(1, D))


# ----------------------------------------------------------------------------
# Kernel 5: fused, time-tiled convolution module.
#   y = x + pw2(SiLU(BN(dwconv_causal(GLU(pw1(LN(x)))))))
# BatchNorm (eval: running_mean=0, running_var=1) is folded into the depthwise
# weights/bias at trace time.  A (hist, ch) GLU-output history slab is carried
# in VMEM scratch across the sequential time axis; taps use pltpu.roll.
# ----------------------------------------------------------------------------
def _conv_module_kernel(x_ref, g_ref, b_ref, w1a_ref, b1a_ref, w1g_ref, b1g_ref,
                        wdw_ref, bdw_ref, w2_ref, b2_ref, o_ref, abuf,
                        *, ksize, ch, tt, hp):
    ti = pl.program_id(1)
    x = x_ref[0]                                     # (tt, D)
    h = _ln(x, g_ref[...], b_ref[...]).astype(MXU_DT)
    a_lin = jnp.dot(h, w1a_ref[...], preferred_element_type=jnp.float32) + b1a_ref[...]
    a_gate = jnp.dot(h, w1g_ref[...], preferred_element_type=jnp.float32) + b1g_ref[...]
    a = a_lin * jax.nn.sigmoid(a_gate)               # GLU -> (tt, ch)

    if hp > 0:
        @pl.when(ti == 0)
        def _():                                     # new batch: zero history
            abuf[0:hp, :] = jnp.zeros((hp, ch), jnp.float32)
        abuf[hp:, :] = a
        A = abuf[...]                                # (hp + tt, ch)
        L = hp + tt
    else:
        A = a
        L = tt

    wdw = wdw_ref[...]                               # (K, ch), BN pre-folded
    acc = jnp.zeros((tt, ch), jnp.float32)
    for kk in range(ksize):
        d = hp - (ksize - 1) + kk                    # static per-tap offset
        shifted = A if d == 0 else pltpu.roll(A, shift=L - d, axis=0)
        acc = acc + wdw[kk:kk + 1, :] * shifted[0:tt, :]
    acc = acc + bdw_ref[...]                         # BN shift pre-folded
    acc = acc * jax.nn.sigmoid(acc)                  # SiLU
    y = jnp.dot(acc.astype(MXU_DT), w2_ref[...],
                preferred_element_type=jnp.float32) + b2_ref[...]
    o_ref[0] = x + y                                 # residual fused

    if hp > 0:                                       # carry history for next tile
        abuf[0:hp, :] = abuf[tt:, :]


def pallas_conv_module(x, bp, t_tile):
    B, Tp, D = x.shape
    ch = bp["pw2_w"].shape[0]
    K = bp["dw_w"].shape[0]
    nt = Tp // t_tile
    hp = _round_up(K - 1, 8) if K > 1 else 0
    # TODO(synk): BatchNorm uses eval-mode init statistics (mean=0, var=1); trained
    # running statistics would be folded in here in exactly the same way.
    bn_scale = bp["bn_g"] / math.sqrt(1.0 + 1e-5)
    wdw = (bp["dw_w"] * bn_scale[None, :]).astype(F32)
    bdw = (bp["dw_b"] * bn_scale + bp["bn_b"]).astype(F32)

    c2 = lambda bb, ti: (0, 0)
    kern = functools.partial(_conv_module_kernel, ksize=K, ch=ch, tt=t_tile, hp=hp)
    return pl.pallas_call(
        kern,
        out_shape=jax.ShapeDtypeStruct((B, Tp, D), F32),
        grid=(B, nt),
        in_specs=[pl.BlockSpec((1, t_tile, D), lambda bb, ti: (bb, ti, 0)),
                  pl.BlockSpec((1, D), c2), pl.BlockSpec((1, D), c2),
                  pl.BlockSpec((D, ch), c2), pl.BlockSpec((1, ch), c2),
                  pl.BlockSpec((D, ch), c2), pl.BlockSpec((1, ch), c2),
                  pl.BlockSpec((K, ch), c2), pl.BlockSpec((1, ch), c2),
                  pl.BlockSpec((ch, D), c2), pl.BlockSpec((1, D), c2)],
        out_specs=pl.BlockSpec((1, t_tile, D), lambda bb, ti: (bb, ti, 0)),
        scratch_shapes=[pltpu.VMEM((hp + t_tile, ch), jnp.float32)],
        compiler_params=_cparams("parallel", "arbitrary"),
    )(x, bp["conv_ln_g"].reshape(1, D), bp["conv_ln_b"].reshape(1, D),
      bp["pw1a_w"], bp["pw1a_b"].reshape(1, ch),
      bp["pw1g_w"], bp["pw1g_b"].reshape(1, ch),
      wdw, bdw.reshape(1, ch),
      bp["pw2_w"], bp["pw2_b"].reshape(1, D))


# ----------------------------------------------------------------------------
# Subsampling glue: channels-last im2col (no NCHW transposes) + Pallas matmuls.
# ----------------------------------------------------------------------------
def _im2col_nhwc(x, k, s):
    # TODO(synk): patch extraction stays as plain-JAX glue; it could be folded into
    # the matmul kernel via an (Ho, Wo)-tiled BlockSpec index_map to avoid the
    # patch-tensor materialization in HBM.
    B, H, W, C = x.shape
    Ho = (H - k) // s + 1
    Wo = (W - k) // s + 1
    cols = []
    for i in range(k):
        for j in range(k):
            cols.append(x[:, i:i + s * (Ho - 1) + 1:s, j:j + s * (Wo - 1) + 1:s, :])
    patches = jnp.concatenate(cols, axis=-1)          # (B, Ho, Wo, k*k*C)
    return patches, Ho, Wo


def conv2d_subsampling(p, x, lengths, cfg):
    B = x.shape[0]
    k1, s1, k2, s2 = cfg["k1"], cfg["s1"], cfg["k2"], cfg["s2"]
    x4 = x[..., None]                                             # (B, T, F, 1)
    p1, T1, F1 = _im2col_nhwc(x4, k1, s1)
    h1 = pallas_linear(p1, p["conv1_w"], p["conv1_b"], activation="relu")
    p2, T2, F2 = _im2col_nhwc(h1, k2, s2)
    h2 = pallas_linear(p2, p["conv2_w"], p["conv2_b"], activation="relu")
    d = h2.shape[-1]
    h2 = h2.reshape(B, T2, F2 * d)
    out = pallas_linear(h2, p["proj_w"], p["proj_b"])             # (B, T2, d)
    l1 = (lengths - k1) // s1 + 1
    l2 = (l1 - k2) // s2 + 1
    return out, l2


# ----------------------------------------------------------------------------
# Causal conformer block (FF/2 -> MHSA -> Conv -> FF/2 -> LN), 4 fused kernels
# per block.
# ----------------------------------------------------------------------------
def conformer_block(bp, x, lengths, cfg, t_tile):
    # Feed-forward module 1 (half-step residual), fully fused.
    x = pallas_ff_module(x, bp["ff1_ln_g"], bp["ff1_ln_b"],
                         bp["ff1_w1"], bp["ff1_b1"], bp["ff1_w2"], bp["ff1_b2"])

    # Band-limited causal MHSA (num_previous_frames lookback), fully fused.
    x = pallas_mhsa(x, lengths, bp, cfg["mha_num_heads"],
                    cfg["num_previous_frames"], t_tile)

    # Convolution module, fully fused, time-tiled with carried history.
    x = pallas_conv_module(x, bp, t_tile)

    # Feed-forward module 2 + final LayerNorm, fully fused.
    # TODO(synk): is_timewise_ln=True (time-axis LayerNorm) variant not implemented.
    x = pallas_ff_module(x, bp["ff2_ln_g"], bp["ff2_ln_b"],
                         bp["ff2_w1"], bp["ff2_b1"], bp["ff2_w2"], bp["ff2_b2"],
                         final_g=bp["final_ln_g"], final_b=bp["final_ln_b"])
    return x


def causal_conformer_encoder(params, padded_input, input_lengths, cfg):
    x = time_normalize(padded_input)
    x, sub_lengths = conv2d_subsampling(params["subsampling"], x, input_lengths, cfg)
    x = pallas_linear(x, params["fc_w"], params["fc_b"])
    # dropout: identity (eval mode)

    B, T2, D = x.shape
    npf = cfg["num_previous_frames"]
    K = cfg["conv_kernel_size"]
    terms = [min(_round_up(T2, 8), 128)]
    if npf > 0:
        terms.append(_round_up(npf, 8))
    if K > 1:
        terms.append(_round_up(K - 1, 8))
    t_tile = max(terms)                       # time tile shared by MHSA / conv
    Tp = _round_up(T2, t_tile)
    if Tp != T2:                              # pad once; padded rows are masked as
        x = jnp.pad(x, ((0, 0), (0, Tp - T2), (0, 0)))   # keys and sliced off below

    for bp in params["blocks"]:
        x = conformer_block(bp, x, sub_lengths, cfg, t_tile)

    if Tp != T2:
        x = x[:, :T2, :]
    return x, sub_lengths


# ----------------------------------------------------------------------------
# Deterministic synthetic parameters (shapes follow the module __init__); matmul
# weights are stored bf16 (pre-cast once), heads head-major, Q pre-scaled.
# ----------------------------------------------------------------------------
def init_params(key, cfg):
    d = cfg["subsampled_input_size"]
    ff = cfg["ff_hidden_size"]
    ch = cfg["conv_hidden_size"]
    ck = cfg["conv_kernel_size"]
    Fd = cfg["input_size"]
    H = cfg["mha_num_heads"]
    dh = d // H
    k1, s1, k2, s2 = cfg["k1"], cfg["s1"], cfg["k2"], cfg["s2"]
    F1 = (Fd - k1) // s1 + 1
    F2 = (F1 - k2) // s2 + 1

    keys = iter(jax.random.split(key, 4096))

    def wf(shape, scale=0.05):               # f32 params (biases, norms, dw conv)
        return (scale * jax.random.normal(next(keys), shape)).astype(F32)

    def wm(shape, scale=0.05):               # bf16 matmul weights (pre-cast once)
        return (scale * jax.random.normal(next(keys), shape)).astype(MXU_DT)

    zeros = lambda s: jnp.zeros(s, F32)
    ones = lambda s: jnp.ones(s, F32)

    sub = dict(
        conv1_w=wm((k1 * k1 * 1, d)), conv1_b=wf((d,)),
        conv2_w=wm((k2 * k2 * d, d)), conv2_b=wf((d,)),
        proj_w=wm((F2 * d, d)), proj_b=wf((d,)),
    )
    scale_q = 1.0 / math.sqrt(dh)
    blocks = []
    for _ in range(cfg["num_conformer_blocks"]):
        blocks.append(dict(
            ff1_ln_g=ones((d,)), ff1_ln_b=zeros((d,)),
            ff1_w1=wm((d, ff)), ff1_b1=wf((ff,)),
            ff1_w2=wm((ff, d)), ff1_b2=wf((d,)),
            mha_ln_g=ones((d,)), mha_ln_b=zeros((d,)),
            # head-major Q/K/V weights; 1/sqrt(dh) folded into Q weight + bias.
            wq=(wf((H, d, dh)) * scale_q).astype(MXU_DT),
            bq=(wf((H, 1, dh)) * scale_q).astype(F32),
            wk=wm((H, d, dh)), bk=wf((H, 1, dh)),
            wv=wm((H, d, dh)), bv=wf((H, 1, dh)),
            wo=wm((H, dh, d)), bo=wf((d,)),
            conv_ln_g=ones((d,)), conv_ln_b=zeros((d,)),
            pw1a_w=wm((d, ch)), pw1a_b=wf((ch,)),      # GLU linear half
            pw1g_w=wm((d, ch)), pw1g_b=wf((ch,)),      # GLU gate half
            dw_w=wf((ck, ch)), dw_b=wf((ch,)),
            bn_g=ones((ch,)), bn_b=zeros((ch,)),
            pw2_w=wm((ch, d)), pw2_b=wf((d,)),
            ff2_ln_g=ones((d,)), ff2_ln_b=zeros((d,)),
            ff2_w1=wm((d, ff)), ff2_b1=wf((ff,)),
            ff2_w2=wm((ff, d)), ff2_b2=wf((d,)),
            final_ln_g=ones((d,)), final_ln_b=zeros((d,)),
        ))
    return dict(subsampling=sub, fc_w=wm((d, d)), fc_b=wf((d,)), blocks=blocks)


if __name__ == "__main__":
    cfg = dict(
        input_size=16,
        subsampled_input_size=16,
        num_conformer_blocks=2,
        ff_hidden_size=32,
        conv_hidden_size=16,
        conv_kernel_size=3,
        mha_num_heads=2,
        dropout=0.1,                       # identity (eval mode)
        k1=3, s1=2, k2=3, s2=2,            # subsampling kernels / strides
        num_previous_frames=4,
        is_timewise_ln=False,
    )
    key = jax.random.PRNGKey(0)
    pkey, xkey = jax.random.split(key)
    params = init_params(pkey, cfg)

    B, T, Fd = 2, 32, cfg["input_size"]
    x = jax.random.normal(xkey, (B, T, Fd), dtype=F32)
    input_lengths = jnp.array([32, 27], dtype=jnp.int32)

    fwd = jax.jit(functools.partial(causal_conformer_encoder, cfg=cfg))
    out, sub_lengths = fwd(params, x, input_lengths)
    out = jax.block_until_ready(out)
    sub_lengths = jax.block_until_ready(sub_lengths)

    T1 = (T - cfg["k1"]) // cfg["s1"] + 1
    T2 = (T1 - cfg["k2"]) // cfg["s2"] + 1
    assert out.shape == (B, T2, cfg["subsampled_input_size"]), out.shape
    assert sub_lengths.shape == (B,), sub_lengths.shape
    assert bool(jnp.all(jnp.isfinite(out))), "non-finite output"
    print("KERNEL_OK")
</pallas_src>

<mosaic_0001>
module attributes {stable_mosaic.version = 11 : i64} {
  func.func @_time_norm_kernel(%arg0: i32, %arg1: memref<1x32x16xf32, #tpu.memory_space<vmem>>, %arg2: memref<1x32x16xf32, #tpu.memory_space<vmem>>) attributes {dimension_semantics = [#tpu.dimension_semantics<parallel>], iteration_bounds = array<i64: 2>, scalar_prefetch = 0 : i64, scratch_operands = 0 : i64, tpu.core_type = #tpu.core_type<tc>, window_params = [{transform_indices = @transform_0, window_bounds = array<i64: 1, 32, 16>}, {transform_indices = @transform_1, window_bounds = array<i64: 1, 32, 16>}]} {
    %c0 = arith.constant 0 : index
    %c0_0 = arith.constant 0 : index
    %c0_1 = arith.constant 0 : index
    %0 = vector.load %arg1[%c0, %c0_0, %c0_1] : memref<1x32x16xf32, #tpu.memory_space<vmem>>, vector<1x32x16xf32>
    %1 = vector.shape_cast %0 : vector<1x32x16xf32> to vector<32x16xf32>
    %cst = arith.constant dense<0.000000e+00> : vector<16xf32>
    %2 = vector.multi_reduction <add>, %1, %cst [0] : vector<32x16xf32> to vector<16xf32>
    %3 = vector.shape_cast %2 : vector<16xf32> to vector<1x16xf32>
    %cst_2 = arith.constant 3.125000e-02 : f32
    %4 = vector.broadcast %cst_2 : f32 to vector<1x16xf32>
    %5 = arith.mulf %3, %4 : vector<1x16xf32>
    %6 = vector.broadcast %5 : vector<1x16xf32> to vector<32x16xf32>
    %7 = arith.subf %1, %6 : vector<32x16xf32>
    %8 = arith.mulf %7, %7 : vector<32x16xf32>
    %cst_3 = arith.constant dense<0.000000e+00> : vector<16xf32>
    %9 = vector.multi_reduction <add>, %8, %cst_3 [0] : vector<32x16xf32> to vector<16xf32>
    %10 = vector.shape_cast %9 : vector<16xf32> to vector<1x16xf32>
    %cst_4 = arith.constant 0.0322580636 : f32
    %11 = vector.broadcast %cst_4 : f32 to vector<1x16xf32>
    %12 = arith.mulf %10, %11 : vector<1x16xf32>
    %13 = math.sqrt %12 : vector<1x16xf32>
    %cst_5 = arith.constant 9.99999974E-6 : f32
    %14 = vector.broadcast %cst_5 : f32 to vector<1x16xf32>
    %15 = arith.addf %13, %14 : vector<1x16xf32>
    %cst_6 = arith.constant 1.000000e+00 : f32
    %16 = vector.broadcast %cst_6 : f32 to vector<1x16xf32>
    %17 = arith.divf %16, %15 : vector<1x16xf32>
    %18 = vector.broadcast %17 : vector<1x16xf32> to vector<32x16xf32>
    %19 = arith.mulf %7, %18 : vector<32x16xf32>
    %c0_7 = arith.constant 0 : index
    %c0_8 = arith.constant 0 : index
    %c0_9 = arith.constant 0 : index
    %20 = vector.load %arg2[%c0_7, %c0_8, %c0_9] : memref<1x32x16xf32, #tpu.memory_space<vmem>>, vector<1x32x16xf32>
    %21 = vector.shape_cast %20 : vector<1x32x16xf32> to vector<32x16xf32>
    %22 = vector.shape_cast %19 : vector<32x16xf32> to vector<1x32x16xf32>
    tpu.vector_store %arg2[%c0_7, %c0_8, %c0_9], %22 {strides = array<i32>} : memref<1x32x16xf32, #tpu.memory_space<vmem>>, vector<1x32x16xf32>,
    return
  }
  func.func @transform_0(%arg0: i32) -> (i32, i32, i32) {
    %c0_i32 = arith.constant 0 : i32
    %c0_i32_0 = arith.constant 0 : i32
    %c0_i32_1 = arith.constant 0 : i32
    return %arg0, %c0_i32, %c0_i32_0 : i32, i32, i32
  }
  func.func @transform_1(%arg0: i32) -> (i32, i32, i32) {
    %c0_i32 = arith.constant 0 : i32
    %c0_i32_0 = arith.constant 0 : i32
    %c0_i32_1 = arith.constant 0 : i32
    return %arg0, %c0_i32, %c0_i32_0 : i32, i32, i32
  }
}

module attributes {stable_mosaic.version = 11 : i64} {
  func.func @_linear_kernel(%arg0: i32, %arg1: memref<112x9xf32, #tpu.memory_space<vmem>>, %arg2: memref<9x16xbf16, #tpu.memory_space<vmem>>, %arg3: memref<1x16xf32, #tpu.memory_space<vmem>>, %arg4: memref<112x16xf32, #tpu.memory_space<vmem>>) attributes {dimension_semantics = [#tpu.dimension_semantics<parallel>], iteration_bounds = array<i64: 2>, scalar_prefetch = 0 : i64, scratch_operands = 0 : i64, tpu.core_type = #tpu.core_type<tc>, window_params = [{transform_indices = @transform_0, window_bounds = array<i64: 112, 9>}, {pipeline_mode = #tpu.pipeline_mode<synchronous>, transform_indices = @transform_1, window_bounds = array<i64: 9, 16>}, {pipeline_mode = #tpu.pipeline_mode<synchronous>, transform_indices = @transform_2, window_bounds = array<i64: 1, 16>}, {transform_indices = @transform_3, window_bounds = array<i64: 112, 16>}]} {
    %c0 = arith.constant 0 : index
    %c0_0 = arith.constant 0 : index
    %0 = vector.load %arg1[%c0, %c0_0] : memref<112x9xf32, #tpu.memory_space<vmem>>, vector<112x9xf32>
    %c0_1 = arith.constant 0 : index
    %c0_2 = arith.constant 0 : index
    %1 = vector.load %arg2[%c0_1, %c0_2] : memref<9x16xbf16, #tpu.memory_space<vmem>>, vector<9x16xbf16>
    %2 = arith.truncf %0 : vector<112x9xf32> to vector<112x9xbf16>
    %cst = arith.constant dense<0.000000e+00> : vector<112x16xf32>
    %3 = tpu.matmul %2, %1, %cst {dimension_numbers = #tpu.dot_dimension_numbers<[1], [0], [0], [1], [0, 0, 1, 1], [], []>} : vector<112x9xbf16>, vector<9x16xbf16>, vector<112x16xf32> -> vector<112x16xf32>
    %c0_3 = arith.constant 0 : index
    %c0_4 = arith.constant 0 : index
    %4 = vector.load %arg3[%c0_3, %c0_4] : memref<1x16xf32, #tpu.memory_space<vmem>>, vector<1x16xf32>
    %5 = vector.broadcast %4 : vector<1x16xf32> to vector<112x16xf32>
    %6 = arith.addf %3, %5 : vector<112x16xf32>
    %cst_5 = arith.constant 0.000000e+00 : f32
    %7 = vector.broadcast %cst_5 : f32 to vector<112x16xf32>
    %8 = arith.maximumf %6, %7 : vector<112x16xf32>
    %c0_6 = arith.constant 0 : index
    %c0_7 = arith.constant 0 : index
    %9 = vector.load %arg4[%c0_6, %c0_7] : memref<112x16xf32, #tpu.memory_space<vmem>>, vector<112x16xf32>
    tpu.vector_store %arg4[%c0_6, %c0_7], %8 {strides = array<i32>} : memref<112x16xf32, #tpu.memory_space<vmem>>, vector<112x16xf32>,
    return
  }
  func.func @transform_0(%arg0: i32) -> (i32, i32) {
    %c0_i32 = arith.constant 0 : i32
    %c0_i32_0 = arith.constant 0 : i32
    return %arg0, %c0_i32 : i32, i32
  }
  func.func @transform_1(%arg0: i32) -> (i32, i32) {
    %c0_i32 = arith.constant 0 : i32
    %c0_i32_0 = arith.constant 0 : i32
    %c0_i32_1 = arith.constant 0 : i32
    return %c0_i32, %c0_i32_0 : i32, i32
  }
  func.func @transform_2(%arg0: i32) -> (i32, i32) {
    %c0_i32 = arith.constant 0 : i32
    %c0_i32_0 = arith.constant 0 : i32
    %c0_i32_1 = arith.constant 0 : i32
    return %c0_i32, %c0_i32_0 : i32, i32
  }
  func.func @transform_3(%arg0: i32) -> (i32, i32) {
    %c0_i32 = arith.constant 0 : i32
    %c0_i32_0 = arith.constant 0 : i32
    return %arg0, %c0_i32 : i32, i32
  }
}

module attributes {stable_mosaic.version = 11 : i64} {
  func.func @_linear_kernel(%arg0: i32, %arg1: memref<24x144xf32, #tpu.memory_space<vmem>>, %arg2: memref<144x16xbf16, #tpu.memory_space<vmem>>, %arg3: memref<1x16xf32, #tpu.memory_space<vmem>>, %arg4: memref<24x16xf32, #tpu.memory_space<vmem>>) attributes {dimension_semantics = [#tpu.dimension_semantics<parallel>], iteration_bounds = array<i64: 2>, scalar_prefetch = 0 : i64, scratch_operands = 0 : i64, tpu.core_type = #tpu.core_type<tc>, window_params = [{transform_indices = @transform_0, window_bounds = array<i64: 24, 144>}, {pipeline_mode = #tpu.pipeline_mode<synchronous>, transform_indices = @transform_1, window_bounds = array<i64: 144, 16>}, {pipeline_mode = #tpu.pipeline_mode<synchronous>, transform_indices = @transform_2, window_bounds = array<i64: 1, 16>}, {transform_indices = @transform_3, window_bounds = array<i64: 24, 16>}]} {
    %c0 = arith.constant 0 : index
    %c0_0 = arith.constant 0 : index
    %0 = vector.load %arg1[%c0, %c0_0] : memref<24x144xf32, #tpu.memory_space<vmem>>, vector<24x144xf32>
    %c0_1 = arith.constant 0 : index
    %c0_2 = arith.constant 0 : index
    %1 = vector.load %arg2[%c0_1, %c0_2] : memref<144x16xbf16, #tpu.memory_space<vmem>>, vector<144x16xbf16>
    %2 = arith.truncf %0 : vector<24x144xf32> to vector<24x144xbf16>
    %cst = arith.constant dense<0.000000e+00> : vector<24x16xf32>
    %3 = tpu.matmul %2, %1, %cst {dimension_numbers = #tpu.dot_dimension_numbers<[1], [0], [0], [1], [0, 0, 1, 1], [], []>} : vector<24x144xbf16>, vector<144x16xbf16>, vector<24x16xf32> -> vector<24x16xf32>
    %c0_3 = arith.constant 0 : index
    %c0_4 = arith.constant 0 : index
    %4 = vector.load %arg3[%c0_3, %c0_4] : memref<1x16xf32, #tpu.memory_space<vmem>>, vector<1x16xf32>
    %5 = vector.broadcast %4 : vector<1x16xf32> to vector<24x16xf32>
    %6 = arith.addf %3, %5 : vector<24x16xf32>
    %cst_5 = arith.constant 0.000000e+00 : f32
    %7 = vector.broadcast %cst_5 : f32 to vector<24x16xf32>
    %8 = arith.maximumf %6, %7 : vector<24x16xf32>
    %c0_6 = arith.constant 0 : index
    %c0_7 = arith.constant 0 : index
    %9 = vector.load %arg4[%c0_6, %c0_7] : memref<24x16xf32, #tpu.memory_space<vmem>>, vector<24x16xf32>
    tpu.vector_store %arg4[%c0_6, %c0_7], %8 {strides = array<i32>} : memref<24x16xf32, #tpu.memory_space<vmem>>, vector<24x16xf32>,
    return
  }
  func.func @transform_0(%arg0: i32) -> (i32, i32) {
    %c0_i32 = arith.constant 0 : i32
    %c0_i32_0 = arith.constant 0 : i32
    return %arg0, %c0_i32 : i32, i32
  }
  func.func @transform_1(%arg0: i32) -> (i32, i32) {
    %c0_i32 = arith.constant 0 : i32
    %c0_i32_0 = arith.constant 0 : i32
    %c0_i32_1 = arith.constant 0 : i32
    return %c0_i32, %c0_i32_0 : i32, i32
  }
  func.func @transform_2(%arg0: i32) -> (i32, i32) {
    %c0_i32 = arith.constant 0 : i32
    %c0_i32_0 = arith.constant 0 : i32
    %c0_i32_1 = arith.constant 0 : i32
    return %c0_i32, %c0_i32_0 : i32, i32
  }
  func.func @transform_3(%arg0: i32) -> (i32, i32) {
    %c0_i32 = arith.constant 0 : i32
    %c0_i32_0 = arith.constant 0 : i32
    return %arg0, %c0_i32 : i32, i32
  }
}

module attributes {stable_mosaic.version = 11 : i64} {
  func.func @_linear_kernel(%arg0: i32, %arg1: memref<8x16xf32, #tpu.memory_space<vmem>>, %arg2: memref<16x16xbf16, #tpu.memory_space<vmem>>, %arg3: memref<1x16xf32, #tpu.memory_space<vmem>>, %arg4: memref<8x16xf32, #tpu.memory_space<vmem>>) attributes {dimension_semantics = [#tpu.dimension_semantics<parallel>], iteration_bounds = array<i64: 2>, scalar_prefetch = 0 : i64, scratch_operands = 0 : i64, tpu.core_type = #tpu.core_type<tc>, window_params = [{transform_indices = @transform_0, window_bounds = array<i64: 8, 16>}, {pipeline_mode = #tpu.pipeline_mode<synchronous>, transform_indices = @transform_1, window_bounds = array<i64: 16, 16>}, {pipeline_mode = #tpu.pipeline_mode<synchronous>, transform_indices = @transform_2, window_bounds = array<i64: 1, 16>}, {transform_indices = @transform_3, window_bounds = array<i64: 8, 16>}]} {
    %c0 = arith.constant 0 : index
    %c0_0 = arith.constant 0 : index
    %0 = vector.load %arg1[%c0, %c0_0] : memref<8x16xf32, #tpu.memory_space<vmem>>, vector<8x16xf32>
    %c0_1 = arith.constant 0 : index
    %c0_2 = arith.constant 0 : index
    %1 = vector.load %arg2[%c0_1, %c0_2] : memref<16x16xbf16, #tpu.memory_space<vmem>>, vector<16x16xbf16>
    %2 = arith.truncf %0 : vector<8x16xf32> to vector<8x16xbf16>
    %cst = arith.constant dense<0.000000e+00> : vector<8x16xf32>
    %3 = tpu.matmul %2, %1, %cst {dimension_numbers = #tpu.dot_dimension_numbers<[1], [0], [0], [1], [0, 0, 1, 1], [], []>} : vector<8x16xbf16>, vector<16x16xbf16>, vector<8x16xf32> -> vector<8x16xf32>
    %c0_3 = arith.constant 0 : index
    %c0_4 = arith.constant 0 : index
    %4 = vector.load %arg3[%c0_3, %c0_4] : memref<1x16xf32, #tpu.memory_space<vmem>>, vector<1x16xf32>
    %5 = vector.broadcast %4 : vector<1x16xf32> to vector<8x16xf32>
    %6 = arith.addf %3, %5 : vector<8x16xf32>
    %c0_5 = arith.constant 0 : index
    %c0_6 = arith.constant 0 : index
    %7 = vector.load %arg4[%c0_5, %c0_6] : memref<8x16xf32, #tpu.memory_space<vmem>>, vector<8x16xf32>
    tpu.vector_store %arg4[%c0_5, %c0_6], %6 {strides = array<i32>} : memref<8x16xf32, #tpu.memory_space<vmem>>, vector<8x16xf32>,
    return
  }
  func.func @transform_0(%arg0: i32) -> (i32, i32) {
    %c0_i32 = arith.constant 0 : i32
    %c0_i32_0 = arith.constant 0 : i32
    return %arg0, %c0_i32 : i32, i32
  }
  func.func @transform_1(%arg0: i32) -> (i32, i32) {
    %c0_i32 = arith.constant 0 : i32
    %c0_i32_0 = arith.constant 0 : i32
    %c0_i32_1 = arith.constant 0 : i32
    return %c0_i32, %c0_i32_0 : i32, i32
  }
  func.func @transform_2(%arg0: i32) -> (i32, i32) {
    %c0_i32 = arith.constant 0 : i32
    %c0_i32_0 = arith.constant 0 : i32
    %c0_i32_1 = arith.constant 0 : i32
    return %c0_i32, %c0_i32_0 : i32, i32
  }
  func.func @transform_3(%arg0: i32) -> (i32, i32) {
    %c0_i32 = arith.constant 0 : i32
    %c0_i32_0 = arith.constant 0 : i32
    return %arg0, %c0_i32 : i32, i32
  }
}

module attributes {stable_mosaic.version = 11 : i64} {
  func.func @_linear_kernel(%arg0: i32, %arg1: memref<8x48xf32, #tpu.memory_space<vmem>>, %arg2: memref<48x16xbf16, #tpu.memory_space<vmem>>, %arg3: memref<1x16xf32, #tpu.memory_space<vmem>>, %arg4: memref<8x16xf32, #tpu.memory_space<vmem>>) attributes {dimension_semantics = [#tpu.dimension_semantics<parallel>], iteration_bounds = array<i64: 2>, scalar_prefetch = 0 : i64, scratch_operands = 0 : i64, tpu.core_type = #tpu.core_type<tc>, window_params = [{transform_indices = @transform_0, window_bounds = array<i64: 8, 48>}, {pipeline_mode = #tpu.pipeline_mode<synchronous>, transform_indices = @transform_1, window_bounds = array<i64: 48, 16>}, {pipeline_mode = #tpu.pipeline_mode<synchronous>, transform_indices = @transform_2, window_bounds = array<i64: 1, 16>}, {transform_indices = @transform_3, window_bounds = array<i64: 8, 16>}]} {
    %c0 = arith.constant 0 : index
    %c0_0 = arith.constant 0 : index
    %0 = vector.load %arg1[%c0, %c0_0] : memref<8x48xf32, #tpu.memory_space<vmem>>, vector<8x48xf32>
    %c0_1 = arith.constant 0 : index
    %c0_2 = arith.constant 0 : index
    %1 = vector.load %arg2[%c0_1, %c0_2] : memref<48x16xbf16, #tpu.memory_space<vmem>>, vector<48x16xbf16>
    %2 = arith.truncf %0 : vector<8x48xf32> to vector<8x48xbf16>
    %cst = arith.constant dense<0.000000e+00> : vector<8x16xf32>
    %3 = tpu.matmul %2, %1, %cst {dimension_numbers = #tpu.dot_dimension_numbers<[1], [0], [0], [1], [0, 0, 1, 1], [], []>} : vector<8x48xbf16>, vector<48x16xbf16>, vector<8x16xf32> -> vector<8x16xf32>
    %c0_3 = arith.constant 0 : index
    %c0_4 = arith.constant 0 : index
    %4 = vector.load %arg3[%c0_3, %c0_4] : memref<1x16xf32, #tpu.memory_space<vmem>>, vector<1x16xf32>
    %5 = vector.broadcast %4 : vector<1x16xf32> to vector<8x16xf32>
    %6 = arith.addf %3, %5 : vector<8x16xf32>
    %c0_5 = arith.constant 0 : index
    %c0_6 = arith.constant 0 : index
    %7 = vector.load %arg4[%c0_5, %c0_6] : memref<8x16xf32, #tpu.memory_space<vmem>>, vector<8x16xf32>
    tpu.vector_store %arg4[%c0_5, %c0_6], %6 {strides = array<i32>} : memref<8x16xf32, #tpu.memory_space<vmem>>, vector<8x16xf32>,
    return
  }
  func.func @transform_0(%arg0: i32) -> (i32, i32) {
    %c0_i32 = arith.constant 0 : i32
    %c0_i32_0 = arith.constant 0 : i32
    return %arg0, %c0_i32 : i32, i32
  }
  func.func @transform_1(%arg0: i32) -> (i32, i32) {
    %c0_i32 = arith.constant 0 : i32
    %c0_i32_0 = arith.constant 0 : i32
    %c0_i32_1 = arith.constant 0 : i32
    return %c0_i32, %c0_i32_0 : i32, i32
  }
  func.func @transform_2(%arg0: i32) -> (i32, i32) {
    %c0_i32 = arith.constant 0 : i32
    %c0_i32_0 = arith.constant 0 : i32
    %c0_i32_1 = arith.constant 0 : i32
    return %c0_i32, %c0_i32_0 : i32, i32
  }
  func.func @transform_3(%arg0: i32) -> (i32, i32) {
    %c0_i32 = arith.constant 0 : i32
    %c0_i32_0 = arith.constant 0 : i32
    return %arg0, %c0_i32 : i32, i32
  }
}

module attributes {stable_mosaic.version = 11 : i64} {
  func.func @_ff_kernel(%arg0: i32, %arg1: memref<8x16xf32, #tpu.memory_space<vmem>>, %arg2: memref<1x16xf32, #tpu.memory_space<vmem>>, %arg3: memref<1x16xf32, #tpu.memory_space<vmem>>, %arg4: memref<16x32xbf16, #tpu.memory_space<vmem>>, %arg5: memref<1x32xf32, #tpu.memory_space<vmem>>, %arg6: memref<32x16xbf16, #tpu.memory_space<vmem>>, %arg7: memref<1x16xf32, #tpu.memory_space<vmem>>, %arg8: memref<1x16xf32, #tpu.memory_space<vmem>>, %arg9: memref<1x16xf32, #tpu.memory_space<vmem>>, %arg10: memref<8x16xf32, #tpu.memory_space<vmem>>) attributes {dimension_semantics = [#tpu.dimension_semantics<parallel>], iteration_bounds = array<i64: 2>, scalar_prefetch = 0 : i64, scratch_operands = 0 : i64, tpu.core_type = #tpu.core_type<tc>, window_params = [{transform_indices = @transform_0, window_bounds = array<i64: 8, 16>}, {pipeline_mode = #tpu.pipeline_mode<synchronous>, transform_indices = @transform_1, window_bounds = array<i64: 1, 16>}, {pipeline_mode = #tpu.pipeline_mode<synchronous>, transform_indices = @transform_2, window_bounds = array<i64: 1, 16>}, {pipeline_mode = #tpu.pipeline_mode<synchronous>, transform_indices = @transform_3, window_bounds = array<i64: 16, 32>}, {pipeline_mode = #tpu.pipeline_mode<synchronous>, transform_indices = @transform_4, window_bounds = array<i64: 1, 32>}, {pipeline_mode = #tpu.pipeline_mode<synchronous>, transform_indices = @transform_5, window_bounds = array<i64: 32, 16>}, {pipeline_mode = #tpu.pipeline_mode<synchronous>, transform_indices = @transform_6, window_bounds = array<i64: 1, 16>}, {pipeline_mode = #tpu.pipeline_mode<synchronous>, transform_indices = @transform_7, window_bounds = array<i64: 1, 16>}, {pipeline_mode = #tpu.pipeline_mode<synchronous>, transform_indices = @transform_8, window_bounds = array<i64: 1, 16>}, {transform_indices = @transform_9, window_bounds = array<i64: 8, 16>}]} {
    %c0 = arith.constant 0 : index
    %c0_0 = arith.constant 0 : index
    %0 = vector.load %arg1[%c0, %c0_0] : memref<8x16xf32, #tpu.memory_space<vmem>>, vector<8x16xf32>
    %c0_1 = arith.constant 0 : index
    %c0_2 = arith.constant 0 : index
    %1 = vector.load %arg2[%c0_1, %c0_2] : memref<1x16xf32, #tpu.memory_space<vmem>>, vector<1x16xf32>
    %c0_3 = arith.constant 0 : index
    %c0_4 = arith.constant 0 : index
    %2 = vector.load %arg3[%c0_3, %c0_4] : memref<1x16xf32, #tpu.memory_space<vmem>>, vector<1x16xf32>
    %cst = arith.constant dense<0.000000e+00> : vector<8xf32>
    %3 = vector.multi_reduction <add>, %0, %cst [1] : vector<8x16xf32> to vector<8xf32>
    %4 = vector.shape_cast %3 : vector<8xf32> to vector<8x1xf32>
    %cst_5 = arith.constant 1.600000e+01 : f32
    %5 = vector.broadcast %cst_5 : f32 to vector<8x1xf32>
    %6 = arith.divf %4, %5 : vector<8x1xf32>
    %7 = vector.broadcast %6 : vector<8x1xf32> to vector<8x16xf32>
    %8 = arith.subf %0, %7 : vector<8x16xf32>
    %9 = arith.mulf %8, %8 : vector<8x16xf32>
    %cst_6 = arith.constant dense<0.000000e+00> : vector<8xf32>
    %10 = vector.multi_reduction <add>, %9, %cst_6 [1] : vector<8x16xf32> to vector<8xf32>
    %11 = vector.shape_cast %10 : vector<8xf32> to vector<8x1xf32>
    %cst_7 = arith.constant 1.600000e+01 : f32
    %12 = vector.broadcast %cst_7 : f32 to vector<8x1xf32>
    %13 = arith.divf %11, %12 : vector<8x1xf32>
    %14 = vector.broadcast %6 : vector<8x1xf32> to vector<8x16xf32>
    %15 = arith.subf %0, %14 : vector<8x16xf32>
    %cst_8 = arith.constant 9.99999974E-6 : f32
    %16 = vector.broadcast %cst_8 : f32 to vector<8x1xf32>
    %17 = arith.addf %13, %16 : vector<8x1xf32>
    %18 = math.rsqrt %17 : vector<8x1xf32>
    %19 = vector.broadcast %18 : vector<8x1xf32> to vector<8x16xf32>
    %20 = arith.mulf %15, %19 : vector<8x16xf32>
    %21 = vector.broadcast %1 : vector<1x16xf32> to vector<8x16xf32>
    %22 = arith.mulf %20, %21 : vector<8x16xf32>
    %23 = vector.broadcast %2 : vector<1x16xf32> to vector<8x16xf32>
    %24 = arith.addf %22, %23 : vector<8x16xf32>
    %c0_9 = arith.constant 0 : index
    %c0_10 = arith.constant 0 : index
    %25 = vector.load %arg4[%c0_9, %c0_10] : memref<16x32xbf16, #tpu.memory_space<vmem>>, vector<16x32xbf16>
    %26 = arith.truncf %24 : vector<8x16xf32> to vector<8x16xbf16>
    %cst_11 = arith.constant dense<0.000000e+00> : vector<8x32xf32>
    %27 = tpu.matmul %26, %25, %cst_11 {dimension_numbers = #tpu.dot_dimension_numbers<[1], [0], [0], [1], [0, 0, 1, 1], [], []>} : vector<8x16xbf16>, vector<16x32xbf16>, vector<8x32xf32> -> vector<8x32xf32>
    %c0_12 = arith.constant 0 : index
    %c0_13 = arith.constant 0 : index
    %28 = vector.load %arg5[%c0_12, %c0_13] : memref<1x32xf32, #tpu.memory_space<vmem>>, vector<1x32xf32>
    %29 = vector.broadcast %28 : vector<1x32xf32> to vector<8x32xf32>
    %30 = arith.addf %27, %29 : vector<8x32xf32>
    %31 = arith.negf %30 : vector<8x32xf32>
    %32 = math.exp %31 : vector<8x32xf32>
    %cst_14 = arith.constant 1.000000e+00 : f32
    %33 = vector.broadcast %cst_14 : f32 to vector<8x32xf32>
    %34 = arith.addf %33, %32 : vector<8x32xf32>
    %35 = arith.divf %33, %34 : vector<8x32xf32>
    %36 = arith.mulf %30, %35 : vector<8x32xf32>
    %c0_15 = arith.constant 0 : index
    %c0_16 = arith.constant 0 : index
    %37 = vector.load %arg6[%c0_15, %c0_16] : memref<32x16xbf16, #tpu.memory_space<vmem>>, vector<32x16xbf16>
    %38 = arith.truncf %36 : vector<8x32xf32> to vector<8x32xbf16>
    %cst_17 = arith.constant dense<0.000000e+00> : vector<8x16xf32>
    %39 = tpu.matmul %38, %37, %cst_17 {dimension_numbers = #tpu.dot_dimension_numbers<[1], [0], [0], [1], [0, 0, 1, 1], [], []>} : vector<8x32xbf16>, vector<32x16xbf16>, vector<8x16xf32> -> vector<8x16xf32>
    %c0_18 = arith.constant 0 : index
    %c0_19 = arith.constant 0 : index
    %40 = vector.load %arg7[%c0_18, %c0_19] : memref<1x16xf32, #tpu.memory_space<vmem>>, vector<1x16xf32>
    %41 = vector.broadcast %40 : vector<1x16xf32> to vector<8x16xf32>
    %42 = arith.addf %39, %41 : vector<8x16xf32>
    %cst_20 = arith.constant 5.000000e-01 : f32
    %43 = vector.broadcast %cst_20 : f32 to vector<8x16xf32>
    %44 = arith.mulf %43, %42 : vector<8x16xf32>
    %45 = arith.addf %0, %44 : vector<8x16xf32>
    %c0_21 = arith.constant 0 : index
    %c0_22 = arith.constant 0 : index
    %46 = vector.load %arg10[%c0_21, %c0_22] : memref<8x16xf32, #tpu.memory_space<vmem>>, vector<8x16xf32>
    tpu.vector_store %arg10[%c0_21, %c0_22], %45 {strides = array<i32>} : memref<8x16xf32, #tpu.memory_space<vmem>>, vector<8x16xf32>,
    return
  }
  func.func @transform_0(%arg0: i32) -> (i32, i32) {
    %c0_i32 = arith.constant 0 : i32
    %c0_i32_0 = arith.constant 0 : i32
    return %arg0, %c0_i32 : i32, i32
  }
  func.func @transform_1(%arg0: i32) -> (i32, i32) {
    %c0_i32 = arith.constant 0 : i32
    %c0_i32_0 = arith.constant 0 : i32
    %c0_i32_1 = arith.constant 0 : i32
    return %c0_i32, %c0_i32_0 : i32, i32
  }
  func.func @transform_2(%arg0: i32) -> (i32, i32) {
    %c0_i32 = arith.constant 0 : i32
    %c0_i32_0 = arith.constant 0 : i32
    %c0_i32_1 = arith.constant 0 : i32
    return %c0_i32, %c0_i32_0 : i32, i32
  }
  func.func @transform_3(%arg0: i32) -> (i32, i32) {
    %c0_i32 = arith.constant 0 : i32
    %c0_i32_0 = arith.constant 0 : i32
    %c0_i32_1 = arith.constant 0 : i32
    return %c0_i32, %c0_i32_0 : i32, i32
  }
  func.func @transform_4(%arg0: i32) -> (i32, i32) {
    %c0_i32 = arith.constant 0 : i32
    %c0_i32_0 = arith.constant 0 : i32
    %c0_i32_1 = arith.constant 0 : i32
    return %c0_i32, %c0_i32_0 : i32, i32
  }
  func.func @transform_5(%arg0: i32) -> (i32, i32) {
    %c0_i32 = arith.constant 0 : i32
    %c0_i32_0 = arith.constant 0 : i32
    %c0_i32_1 = arith.constant 0 : i32
    return %c0_i32, %c0_i32_0 : i32, i32
  }
  func.func @transform_6(%arg0: i32) -> (i32, i32) {
    %c0_i32 = arith.constant 0 : i32
    %c0_i32_0 = arith.constant 0 : i32
    %c0_i32_1 = arith.constant 0 : i32
    return %c0_i32, %c0_i32_0 : i32, i32
  }
  func.func @transform_7(%arg0: i32) -> (i32, i32) {
    %c0_i32 = arith.constant 0 : i32
    %c0_i32_0 = arith.constant 0 : i32
    %c0_i32_1 = arith.constant 0 : i32
    return %c0_i32, %c0_i32_0 : i32, i32
  }
  func.func @transform_8(%arg0: i32) -> (i32, i32) {
    %c0_i32 = arith.constant 0 : i32
    %c0_i32_0 = arith.constant 0 : i32
    %c0_i32_1 = arith.constant 0 : i32
    return %c0_i32, %c0_i32_0 : i32, i32
  }
  func.func @transform_9(%arg0: i32) -> (i32, i32) {
    %c0_i32 = arith.constant 0 : i32
    %c0_i32_0 = arith.constant 0 : i32
    return %arg0, %c0_i32 : i32, i32
  }
}

module attributes {stable_mosaic.version = 11 : i64} {
  func.func @_conv_module_kernel(%arg0: i32, %arg1: i32, %arg2: memref<1x8x16xf32, #tpu.memory_space<vmem>>, %arg3: memref<1x16xf32, #tpu.memory_space<vmem>>, %arg4: memref<1x16xf32, #tpu.memory_space<vmem>>, %arg5: memref<16x16xbf16, #tpu.memory_space<vmem>>, %arg6: memref<1x16xf32, #tpu.memory_space<vmem>>, %arg7: memref<16x16xbf16, #tpu.memory_space<vmem>>, %arg8: memref<1x16xf32, #tpu.memory_space<vmem>>, %arg9: memref<3x16xf32, #tpu.memory_space<vmem>>, %arg10: memref<1x16xf32, #tpu.memory_space<vmem>>, %arg11: memref<16x16xbf16, #tpu.memory_space<vmem>>, %arg12: memref<1x16xf32, #tpu.memory_space<vmem>>, %arg13: memref<1x8x16xf32, #tpu.memory_space<vmem>>, %arg14: memref<16x16xf32, #tpu.memory_space<vmem>>) attributes {dimension_semantics = [#tpu.dimension_semantics<parallel>, #tpu.dimension_semantics<arbitrary>], iteration_bounds = array<i64: 2, 1>, scalar_prefetch = 0 : i64, scratch_operands = 1 : i64, tpu.core_type = #tpu.core_type<tc>, window_params = [{transform_indices = @transform_0, window_bounds = array<i64: 1, 8, 16>}, {pipeline_mode = #tpu.pipeline_mode<synchronous>, transform_indices = @transform_1, window_bounds = array<i64: 1, 16>}, {pipeline_mode = #tpu.pipeline_mode<synchronous>, transform_indices = @transform_2, window_bounds = array<i64: 1, 16>}, {pipeline_mode = #tpu.pipeline_mode<synchronous>, transform_indices = @transform_3, window_bounds = array<i64: 16, 16>}, {pipeline_mode = #tpu.pipeline_mode<synchronous>, transform_indices = @transform_4, window_bounds = array<i64: 1, 16>}, {pipeline_mode = #tpu.pipeline_mode<synchronous>, transform_indices = @transform_5, window_bounds = array<i64: 16, 16>}, {pipeline_mode = #tpu.pipeline_mode<synchronous>, transform_indices = @transform_6, window_bounds = array<i64: 1, 16>}, {pipeline_mode = #tpu.pipeline_mode<synchronous>, transform_indices = @transform_7, window_bounds = array<i64: 3, 16>}, {pipeline_mode = #tpu.pipeline_mode<synchronous>, transform_indices = @transform_8, window_bounds = array<i64: 1, 16>}, {pipeline_mode = #tpu.pipeline_mode<synchronous>, transform_indices = @transform_9, window_bounds = array<i64: 16, 16>}, {pipeline_mode = #tpu.pipeline_mode<synchronous>, transform_indices = @transform_10, window_bounds = array<i64: 1, 16>}, {transform_indices = @transform_11, window_bounds = array<i64: 1, 8, 16>}]} {
    %c0 = arith.constant 0 : index
    %c0_0 = arith.constant 0 : index
    %c0_1 = arith.constant 0 : index
    %0 = vector.load %arg2[%c0, %c0_0, %c0_1] : memref<1x8x16xf32, #tpu.memory_space<vmem>>, vector<1x8x16xf32>
    %1 = vector.shape_cast %0 : vector<1x8x16xf32> to vector<8x16xf32>
    %c0_2 = arith.constant 0 : index
    %c0_3 = arith.constant 0 : index
    %2 = vector.load %arg3[%c0_2, %c0_3] : memref<1x16xf32, #tpu.memory_space<vmem>>, vector<1x16xf32>
    %c0_4 = arith.constant 0 : index
    %c0_5 = arith.constant 0 : index
    %3 = vector.load %arg4[%c0_4, %c0_5] : memref<1x16xf32, #tpu.memory_space<vmem>>, vector<1x16xf32>
    %cst = arith.constant dense<0.000000e+00> : vector<8xf32>
    %4 = vector.multi_reduction <add>, %1, %cst [1] : vector<8x16xf32> to vector<8xf32>
    %5 = vector.shape_cast %4 : vector<8xf32> to vector<8x1xf32>
    %cst_6 = arith.constant 1.600000e+01 : f32
    %6 = vector.broadcast %cst_6 : f32 to vector<8x1xf32>
    %7 = arith.divf %5, %6 : vector<8x1xf32>
    %8 = vector.broadcast %7 : vector<8x1xf32> to vector<8x16xf32>
    %9 = arith.subf %1, %8 : vector<8x16xf32>
    %10 = arith.mulf %9, %9 : vector<8x16xf32>
    %cst_7 = arith.constant dense<0.000000e+00> : vector<8xf32>
    %11 = vector.multi_reduction <add>, %10, %cst_7 [1] : vector<8x16xf32> to vector<8xf32>
    %12 = vector.shape_cast %11 : vector<8xf32> to vector<8x1xf32>
    %cst_8 = arith.constant 1.600000e+01 : f32
    %13 = vector.broadcast %cst_8 : f32 to vector<8x1xf32>
    %14 = arith.divf %12, %13 : vector<8x1xf32>
    %15 = vector.broadcast %7 : vector<8x1xf32> to vector<8x16xf32>
    %16 = arith.subf %1, %15 : vector<8x16xf32>
    %cst_9 = arith.constant 9.99999974E-6 : f32
    %17 = vector.broadcast %cst_9 : f32 to vector<8x1xf32>
    %18 = arith.addf %14, %17 : vector<8x1xf32>
    %19 = math.rsqrt %18 : vector<8x1xf32>
    %20 = vector.broadcast %19 : vector<8x1xf32> to vector<8x16xf32>
    %21 = arith.mulf %16, %20 : vector<8x16xf32>
    %22 = vector.broadcast %2 : vector<1x16xf32> to vector<8x16xf32>
    %23 = arith.mulf %21, %22 : vector<8x16xf32>
    %24 = vector.broadcast %3 : vector<1x16xf32> to vector<8x16xf32>
    %25 = arith.addf %23, %24 : vector<8x16xf32>
    %26 = arith.truncf %25 : vector<8x16xf32> to vector<8x16xbf16>
    %c0_10 = arith.constant 0 : index
    %c0_11 = arith.constant 0 : index
    %27 = vector.load %arg5[%c0_10, %c0_11] : memref<16x16xbf16, #tpu.memory_space<vmem>>, vector<16x16xbf16>
    %cst_12 = arith.constant dense<0.000000e+00> : vector<8x16xf32>
    %28 = tpu.matmul %26, %27, %cst_12 {dimension_numbers = #tpu.dot_dimension_numbers<[1], [0], [0], [1], [0, 0, 1, 1], [], []>} : vector<8x16xbf16>, vector<16x16xbf16>, vector<8x16xf32> -> vector<8x16xf32>
    %c0_13 = arith.constant 0 : index
    %c0_14 = arith.constant 0 : index
    %29 = vector.load %arg6[%c0_13, %c0_14] : memref<1x16xf32, #tpu.memory_space<vmem>>, vector<1x16xf32>
    %30 = vector.broadcast %29 : vector<1x16xf32> to vector<8x16xf32>
    %31 = arith.addf %28, %30 : vector<8x16xf32>
    %c0_15 = arith.constant 0 : index
    %c0_16 = arith.constant 0 : index
    %32 = vector.load %arg7[%c0_15, %c0_16] : memref<16x16xbf16, #tpu.memory_space<vmem>>, vector<16x16xbf16>
    %cst_17 = arith.constant dense<0.000000e+00> : vector<8x16xf32>
    %33 = tpu.matmul %26, %32, %cst_17 {dimension_numbers = #tpu.dot_dimension_numbers<[1], [0], [0], [1], [0, 0, 1, 1], [], []>} : vector<8x16xbf16>, vector<16x16xbf16>, vector<8x16xf32> -> vector<8x16xf32>
    %c0_18 = arith.constant 0 : index
    %c0_19 = arith.constant 0 : index
    %34 = vector.load %arg8[%c0_18, %c0_19] : memref<1x16xf32, #tpu.memory_space<vmem>>, vector<1x16xf32>
    %35 = vector.broadcast %34 : vector<1x16xf32> to vector<8x16xf32>
    %36 = arith.addf %33, %35 : vector<8x16xf32>
    %37 = arith.negf %36 : vector<8x16xf32>
    %38 = math.exp %37 : vector<8x16xf32>
    %cst_20 = arith.constant 1.000000e+00 : f32
    %39 = vector.broadcast %cst_20 : f32 to vector<8x16xf32>
    %40 = arith.addf %39, %38 : vector<8x16xf32>
    %41 = arith.divf %39, %40 : vector<8x16xf32>
    %42 = arith.mulf %31, %41 : vector<8x16xf32>
    %c0_i32 = arith.constant 0 : i32
    %43 = arith.cmpi eq, %arg1, %c0_i32 : i32
    %44 = arith.extui %43 : i1 to i32
    %c0_i32_21 = arith.constant 0 : i32
    %45 = arith.cmpi ne, %44, %c0_i32_21 : i32
    scf.if %45 {
      %cst_43 = arith.constant 0.000000e+00 : f32
      %89 = vector.broadcast %cst_43 : f32 to vector<8x16xf32>
      %c0_44 = arith.constant 0 : index
      %c0_45 = arith.constant 0 : index
      %90 = vector.load %arg14[%c0_44, %c0_45] : memref<16x16xf32, #tpu.memory_space<vmem>>, vector<8x16xf32>
      tpu.vector_store %arg14[%c0_44, %c0_45], %89 {strides = array<i32>} : memref<16x16xf32, #tpu.memory_space<vmem>>, vector<8x16xf32>,
    } else {
    }
    %c8 = arith.constant 8 : index
    %c0_22 = arith.constant 0 : index
    %46 = vector.load %arg14[%c8, %c0_22] : memref<16x16xf32, #tpu.memory_space<vmem>>, vector<8x16xf32>
    tpu.vector_store %arg14[%c8, %c0_22], %42 {strides = array<i32>} : memref<16x16xf32, #tpu.memory_space<vmem>>, vector<8x16xf32>,
    %c0_23 = arith.constant 0 : index
    %c0_24 = arith.constant 0 : index
    %47 = vector.load %arg14[%c0_23, %c0_24] : memref<16x16xf32, #tpu.memory_space<vmem>>, vector<16x16xf32>
    %c0_25 = arith.constant 0 : index
    %c0_26 = arith.constant 0 : index
    %48 = vector.load %arg9[%c0_25, %c0_26] : memref<3x16xf32, #tpu.memory_space<vmem>>, vector<3x16xf32>
    %cst_27 = arith.constant 0.000000e+00 : f32
    %49 = vector.broadcast %cst_27 : f32 to vector<8x16xf32>
    %c10_i32 = arith.constant 10 : i32
    %50 = tpu.dynamic_rotate %47 by %c10_i32 dim 0 : vector<16x16xf32>, i32 -> vector<16x16xf32>
    %51 = vector.extract_strided_slice %48 {offsets = [0, 0], sizes = [1, 16], strides = [1, 1]} : vector<3x16xf32> to vector<1x16xf32>
    %52 = vector.extract_strided_slice %50 {offsets = [0, 0], sizes = [8, 16], strides = [1, 1]} : vector<16x16xf32> to vector<8x16xf32>
    %53 = vector.broadcast %51 : vector<1x16xf32> to vector<8x16xf32>
    %54 = arith.mulf %53, %52 : vector<8x16xf32>
    %55 = arith.addf %49, %54 : vector<8x16xf32>
    %c9_i32 = arith.constant 9 : i32
    %56 = tpu.dynamic_rotate %47 by %c9_i32 dim 0 : vector<16x16xf32>, i32 -> vector<16x16xf32>
    %57 = vector.extract_strided_slice %48 {offsets = [1, 0], sizes = [1, 16], strides = [1, 1]} : vector<3x16xf32> to vector<1x16xf32>
    %58 = vector.extract_strided_slice %56 {offsets = [0, 0], sizes = [8, 16], strides = [1, 1]} : vector<16x16xf32> to vector<8x16xf32>
    %59 = vector.broadcast %57 : vector<1x16xf32> to vector<8x16xf32>
    %60 = arith.mulf %59, %58 : vector<8x16xf32>
    %61 = arith.addf %55, %60 : vector<8x16xf32>
    %c8_i32 = arith.constant 8 : i32
    %62 = tpu.dynamic_rotate %47 by %c8_i32 dim 0 : vector<16x16xf32>, i32 -> vector<16x16xf32>
    %63 = vector.extract_strided_slice %48 {offsets = [2, 0], sizes = [1, 16], strides = [1, 1]} : vector<3x16xf32> to vector<1x16xf32>
    %64 = vector.extract_strided_slice %62 {offsets = [0, 0], sizes = [8, 16], strides = [1, 1]} : vector<16x16xf32> to vector<8x16xf32>
    %65 = vector.broadcast %63 : vector<1x16xf32> to vector<8x16xf32>
    %66 = arith.mulf %65, %64 : vector<8x16xf32>
    %67 = arith.addf %61, %66 : vector<8x16xf32>
    %c0_28 = arith.constant 0 : index
    %c0_29 = arith.constant 0 : index
    %68 = vector.load %arg10[%c0_28, %c0_29] : memref<1x16xf32, #tpu.memory_space<vmem>>, vector<1x16xf32>
    %69 = vector.broadcast %68 : vector<1x16xf32> to vector<8x16xf32>
    %70 = arith.addf %67, %69 : vector<8x16xf32>
    %71 = arith.negf %70 : vector<8x16xf32>
    %72 = math.exp %71 : vector<8x16xf32>
    %cst_30 = arith.constant 1.000000e+00 : f32
    %73 = vector.broadcast %cst_30 : f32 to vector<8x16xf32>
    %74 = arith.addf %73, %72 : vector<8x16xf32>
    %75 = arith.divf %73, %74 : vector<8x16xf32>
    %76 = arith.mulf %70, %75 : vector<8x16xf32>
    %77 = arith.truncf %76 : vector<8x16xf32> to vector<8x16xbf16>
    %c0_31 = arith.constant 0 : index
    %c0_32 = arith.constant 0 : index
    %78 = vector.load %arg11[%c0_31, %c0_32] : memref<16x16xbf16, #tpu.memory_space<vmem>>, vector<16x16xbf16>
    %cst_33 = arith.constant dense<0.000000e+00> : vector<8x16xf32>
    %79 = tpu.matmul %77, %78, %cst_33 {dimension_numbers = #tpu.dot_dimension_numbers<[1], [0], [0], [1], [0, 0, 1, 1], [], []>} : vector<8x16xbf16>, vector<16x16xbf16>, vector<8x16xf32> -> vector<8x16xf32>
    %c0_34 = arith.constant 0 : index
    %c0_35 = arith.constant 0 : index
    %80 = vector.load %arg12[%c0_34, %c0_35] : memref<1x16xf32, #tpu.memory_space<vmem>>, vector<1x16xf32>
    %81 = vector.broadcast %80 : vector<1x16xf32> to vector<8x16xf32>
    %82 = arith.addf %79, %81 : vector<8x16xf32>
    %83 = arith.addf %1, %82 : vector<8x16xf32>
    %c0_36 = arith.constant 0 : index
    %c0_37 = arith.constant 0 : index
    %c0_38 = arith.constant 0 : index
    %84 = vector.load %arg13[%c0_36, %c0_37, %c0_38] : memref<1x8x16xf32, #tpu.memory_space<vmem>>, vector<1x8x16xf32>
    %85 = vector.shape_cast %84 : vector<1x8x16xf32> to vector<8x16xf32>
    %86 = vector.shape_cast %83 : vector<8x16xf32> to vector<1x8x16xf32>
    tpu.vector_store %arg13[%c0_36, %c0_37, %c0_38], %86 {strides = array<i32>} : memref<1x8x16xf32, #tpu.memory_space<vmem>>, vector<1x8x16xf32>,
    %c8_39 = arith.constant 8 : index
    %c0_40 = arith.constant 0 : index
    %87 = vector.load %arg14[%c8_39, %c0_40] : memref<16x16xf32, #tpu.memory_space<vmem>>, vector<8x16xf32>
    %c0_41 = arith.constant 0 : index
    %c0_42 = arith.constant 0 : index
    %88 = vector.load %arg14[%c0_41, %c0_42] : memref<16x16xf32, #tpu.memory_space<vmem>>, vector<8x16xf32>
    tpu.vector_store %arg14[%c0_41, %c0_42], %87 {strides = array<i32>} : memref<16x16xf32, #tpu.memory_space<vmem>>, vector<8x16xf32>,
    return
  }
  func.func @transform_0(%arg0: i32, %arg1: i32) -> (i32, i32, i32) {
    %c0_i32 = arith.constant 0 : i32
    %c0_i32_0 = arith.constant 0 : i32
    return %arg0, %arg1, %c0_i32 : i32, i32, i32
  }
  func.func @transform_1(%arg0: i32, %arg1: i32) -> (i32, i32) {
    %c0_i32 = arith.constant 0 : i32
    %c0_i32_0 = arith.constant 0 : i32
    %c0_i32_1 = arith.constant 0 : i32
    return %c0_i32, %c0_i32_0 : i32, i32
  }
  func.func @transform_2(%arg0: i32, %arg1: i32) -> (i32, i32) {
    %c0_i32 = arith.constant 0 : i32
    %c0_i32_0 = arith.constant 0 : i32
    %c0_i32_1 = arith.constant 0 : i32
    return %c0_i32, %c0_i32_0 : i32, i32
  }
  func.func @transform_3(%arg0: i32, %arg1: i32) -> (i32, i32) {
    %c0_i32 = arith.constant 0 : i32
    %c0_i32_0 = arith.constant 0 : i32
    %c0_i32_1 = arith.constant 0 : i32
    return %c0_i32, %c0_i32_0 : i32, i32
  }
  func.func @transform_4(%arg0: i32, %arg1: i32) -> (i32, i32) {
    %c0_i32 = arith.constant 0 : i32
    %c0_i32_0 = arith.constant 0 : i32
    %c0_i32_1 = arith.constant 0 : i32
    return %c0_i32, %c0_i32_0 : i32, i32
  }
  func.func @transform_5(%arg0: i32, %arg1: i32) -> (i32, i32) {
    %c0_i32 = arith.constant 0 : i32
    %c0_i32_0 = arith.constant 0 : i32
    %c0_i32_1 = arith.constant 0 : i32
    return %c0_i32, %c0_i32_0 : i32, i32
  }
  func.func @transform_6(%arg0: i32, %arg1: i32) -> (i32, i32) {
    %c0_i32 = arith.constant 0 : i32
    %c0_i32_0 = arith.constant 0 : i32
    %c0_i32_1 = arith.constant 0 : i32
    return %c0_i32, %c0_i32_0 : i32, i32
  }
  func.func @transform_7(%arg0: i32, %arg1: i32) -> (i32, i32) {
    %c0_i32 = arith.constant 0 : i32
    %c0_i32_0 = arith.constant 0 : i32
    %c0_i32_1 = arith.constant 0 : i32
    return %c0_i32, %c0_i32_0 : i32, i32
  }
  func.func @transform_8(%arg0: i32, %arg1: i32) -> (i32, i32) {
    %c0_i32 = arith.constant 0 : i32
    %c0_i32_0 = arith.constant 0 : i32
    %c0_i32_1 = arith.constant 0 : i32
    return %c0_i32, %c0_i32_0 : i32, i32
  }
  func.func @transform_9(%arg0: i32, %arg1: i32) -> (i32, i32) {
    %c0_i32 = arith.constant 0 : i32
    %c0_i32_0 = arith.constant 0 : i32
    %c0_i32_1 = arith.constant 0 : i32
    return %c0_i32, %c0_i32_0 : i32, i32
  }
  func.func @transform_10(%arg0: i32, %arg1: i32) -> (i32, i32) {
    %c0_i32 = arith.constant 0 : i32
    %c0_i32_0 = arith.constant 0 : i32
    %c0_i32_1 = arith.constant 0 : i32
    return %c0_i32, %c0_i32_0 : i32, i32
  }
  func.func @transform_11(%arg0: i32, %arg1: i32) -> (i32, i32, i32) {
    %c0_i32 = arith.constant 0 : i32
    %c0_i32_0 = arith.constant 0 : i32
    return %arg0, %arg1, %c0_i32 : i32, i32, i32
  }
}

module attributes {stable_mosaic.version = 11 : i64} {
  func.func @_attn_kernel(%arg0: i32, %arg1: i32, %arg2: memref<2xi32, #tpu.memory_space<smem>>, %arg3: memref<1x8x16xf32, #tpu.memory_space<vmem>>, %arg4: memref<1x8x16xf32, #tpu.memory_space<vmem>>, %arg5: memref<1x16xf32, #tpu.memory_space<vmem>>, %arg6: memref<1x16xf32, #tpu.memory_space<vmem>>, %arg7: memref<2x16x8xbf16, #tpu.memory_space<vmem>>, %arg8: memref<2x16x8xbf16, #tpu.memory_space<vmem>>, %arg9: memref<2x16x8xbf16, #tpu.memory_space<vmem>>, %arg10: memref<2x1x8xf32, #tpu.memory_space<vmem>>, %arg11: memref<2x1x8xf32, #tpu.memory_space<vmem>>, %arg12: memref<2x1x8xf32, #tpu.memory_space<vmem>>, %arg13: memref<2x8x16xbf16, #tpu.memory_space<vmem>>, %arg14: memref<1x16xf32, #tpu.memory_space<vmem>>, %arg15: memref<1x8x16xf32, #tpu.memory_space<vmem>>) attributes {dimension_semantics = [#tpu.dimension_semantics<parallel>, #tpu.dimension_semantics<parallel>], iteration_bounds = array<i64: 2, 1>, scalar_prefetch = 1 : i64, scratch_operands = 0 : i64, tpu.core_type = #tpu.core_type<tc>, window_params = [{transform_indices = @transform_0, window_bounds = array<i64: 1, 8, 16>}, {transform_indices = @transform_1, window_bounds = array<i64: 1, 8, 16>}, {pipeline_mode = #tpu.pipeline_mode<synchronous>, transform_indices = @transform_2, window_bounds = array<i64: 1, 16>}, {pipeline_mode = #tpu.pipeline_mode<synchronous>, transform_indices = @transform_3, window_bounds = array<i64: 1, 16>}, {pipeline_mode = #tpu.pipeline_mode<synchronous>, transform_indices = @transform_4, window_bounds = array<i64: 2, 16, 8>}, {pipeline_mode = #tpu.pipeline_mode<synchronous>, transform_indices = @transform_5, window_bounds = array<i64: 2, 16, 8>}, {pipeline_mode = #tpu.pipeline_mode<synchronous>, transform_indices = @transform_6, window_bounds = array<i64: 2, 16, 8>}, {pipeline_mode = #tpu.pipeline_mode<synchronous>, transform_indices = @transform_7, window_bounds = array<i64: 2, 1, 8>}, {pipeline_mode = #tpu.pipeline_mode<synchronous>, transform_indices = @transform_8, window_bounds = array<i64: 2, 1, 8>}, {pipeline_mode = #tpu.pipeline_mode<synchronous>, transform_indices = @transform_9, window_bounds = array<i64: 2, 1, 8>}, {pipeline_mode = #tpu.pipeline_mode<synchronous>, transform_indices = @transform_10, window_bounds = array<i64: 2, 8, 16>}, {pipeline_mode = #tpu.pipeline_mode<synchronous>, transform_indices = @transform_11, window_bounds = array<i64: 1, 16>}, {transform_indices = @transform_12, window_bounds = array<i64: 1, 8, 16>}]} {
    %0 = arith.index_cast %arg0 : i32 to index
    %1 = memref.load %arg2[%0] : memref<2xi32, #tpu.memory_space<smem>>
    %c8_i32 = arith.constant 8 : i32
    %2 = arith.muli %arg1, %c8_i32 : i32
    %c0 = arith.constant 0 : index
    %c0_0 = arith.constant 0 : index
    %c0_1 = arith.constant 0 : index
    %3 = vector.load %arg3[%c0, %c0_0, %c0_1] : memref<1x8x16xf32, #tpu.memory_space<vmem>>, vector<1x8x16xf32>
    %4 = vector.shape_cast %3 : vector<1x8x16xf32> to vector<8x16xf32>
    %c0_2 = arith.constant 0 : index
    %c0_3 = arith.constant 0 : index
    %5 = vector.load %arg5[%c0_2, %c0_3] : memref<1x16xf32, #tpu.memory_space<vmem>>, vector<1x16xf32>
    %c0_4 = arith.constant 0 : index
    %c0_5 = arith.constant 0 : index
    %6 = vector.load %arg6[%c0_4, %c0_5] : memref<1x16xf32, #tpu.memory_space<vmem>>, vector<1x16xf32>
    %cst = arith.constant dense<0.000000e+00> : vector<8xf32>
    %7 = vector.multi_reduction <add>, %4, %cst [1] : vector<8x16xf32> to vector<8xf32>
    %8 = vector.shape_cast %7 : vector<8xf32> to vector<8x1xf32>
    %cst_6 = arith.constant 1.600000e+01 : f32
    %9 = vector.broadcast %cst_6 : f32 to vector<8x1xf32>
    %10 = arith.divf %8, %9 : vector<8x1xf32>
    %11 = vector.broadcast %10 : vector<8x1xf32> to vector<8x16xf32>
    %12 = arith.subf %4, %11 : vector<8x16xf32>
    %13 = arith.mulf %12, %12 : vector<8x16xf32>
    %cst_7 = arith.constant dense<0.000000e+00> : vector<8xf32>
    %14 = vector.multi_reduction <add>, %13, %cst_7 [1] : vector<8x16xf32> to vector<8xf32>
    %15 = vector.shape_cast %14 : vector<8xf32> to vector<8x1xf32>
    %cst_8 = arith.constant 1.600000e+01 : f32
    %16 = vector.broadcast %cst_8 : f32 to vector<8x1xf32>
    %17 = arith.divf %15, %16 : vector<8x1xf32>
    %18 = vector.broadcast %10 : vector<8x1xf32> to vector<8x16xf32>
    %19 = arith.subf %4, %18 : vector<8x16xf32>
    %cst_9 = arith.constant 9.99999974E-6 : f32
    %20 = vector.broadcast %cst_9 : f32 to vector<8x1xf32>
    %21 = arith.addf %17, %20 : vector<8x1xf32>
    %22 = math.rsqrt %21 : vector<8x1xf32>
    %23 = vector.broadcast %22 : vector<8x1xf32> to vector<8x16xf32>
    %24 = arith.mulf %19, %23 : vector<8x16xf32>
    %25 = vector.broadcast %5 : vector<1x16xf32> to vector<8x16xf32>
    %26 = arith.mulf %24, %25 : vector<8x16xf32>
    %27 = vector.broadcast %6 : vector<1x16xf32> to vector<8x16xf32>
    %28 = arith.addf %26, %27 : vector<8x16xf32>
    %29 = arith.truncf %28 : vector<8x16xf32> to vector<8x16xbf16>
    %c0_10 = arith.constant 0 : index
    %c0_11 = arith.constant 0 : index
    %c0_12 = arith.constant 0 : index
    %30 = vector.load %arg4[%c0_10, %c0_11, %c0_12] : memref<1x8x16xf32, #tpu.memory_space<vmem>>, vector<1x8x16xf32>
    %31 = vector.shape_cast %30 : vector<1x8x16xf32> to vector<8x16xf32>
    %cst_13 = arith.constant dense<0.000000e+00> : vector<8xf32>
    %32 = vector.multi_reduction <add>, %31, %cst_13 [1] : vector<8x16xf32> to vector<8xf32>
    %33 = vector.shape_cast %32 : vector<8xf32> to vector<8x1xf32>
    %cst_14 = arith.constant 1.600000e+01 : f32
    %34 = vector.broadcast %cst_14 : f32 to vector<8x1xf32>
    %35 = arith.divf %33, %34 : vector<8x1xf32>
    %36 = vector.broadcast %35 : vector<8x1xf32> to vector<8x16xf32>
    %37 = arith.subf %31, %36 : vector<8x16xf32>
    %38 = arith.mulf %37, %37 : vector<8x16xf32>
    %cst_15 = arith.constant dense<0.000000e+00> : vector<8xf32>
    %39 = vector.multi_reduction <add>, %38, %cst_15 [1] : vector<8x16xf32> to vector<8xf32>
    %40 = vector.shape_cast %39 : vector<8xf32> to vector<8x1xf32>
    %cst_16 = arith.constant 1.600000e+01 : f32
    %41 = vector.broadcast %cst_16 : f32 to vector<8x1xf32>
    %42 = arith.divf %40, %41 : vector<8x1xf32>
    %43 = vector.broadcast %35 : vector<8x1xf32> to vector<8x16xf32>
    %44 = arith.subf %31, %43 : vector<8x16xf32>
    %cst_17 = arith.constant 9.99999974E-6 : f32
    %45 = vector.broadcast %cst_17 : f32 to vector<8x1xf32>
    %46 = arith.addf %42, %45 : vector<8x1xf32>
    %47 = math.rsqrt %46 : vector<8x1xf32>
    %48 = vector.broadcast %47 : vector<8x1xf32> to vector<8x16xf32>
    %49 = arith.mulf %44, %48 : vector<8x16xf32>
    %50 = vector.broadcast %5 : vector<1x16xf32> to vector<8x16xf32>
    %51 = arith.mulf %49, %50 : vector<8x16xf32>
    %52 = vector.broadcast %6 : vector<1x16xf32> to vector<8x16xf32>
    %53 = arith.addf %51, %52 : vector<8x16xf32>
    %54 = arith.truncf %53 : vector<8x16xf32> to vector<8x16xbf16>
    %55 = vector.shape_cast %29 : vector<8x16xbf16> to vector<1x8x16xbf16>
    %56 = vector.shape_cast %55 : vector<1x8x16xbf16> to vector<1x8x16xbf16>
    %57 = vector.broadcast %56 : vector<1x8x16xbf16> to vector<2x8x16xbf16>
    %58 = vector.shape_cast %54 : vector<8x16xbf16> to vector<1x8x16xbf16>
    %59 = vector.shape_cast %58 : vector<1x8x16xbf16> to vector<1x8x16xbf16>
    %60 = vector.broadcast %59 : vector<1x8x16xbf16> to vector<2x8x16xbf16>
    %c0_18 = arith.constant 0 : index
    %c0_19 = arith.constant 0 : index
    %c0_20 = arith.constant 0 : index
    %61 = vector.load %arg7[%c0_18, %c0_19, %c0_20] : memref<2x16x8xbf16, #tpu.memory_space<vmem>>, vector<2x16x8xbf16>
    "tpu.trace_start"() <{level = 10 : i32, message = "htd,hdf->htf"}> : () -> ()
    %cst_21 = arith.constant dense<0.000000e+00> : vector<2x8x8xf32>
    %62 = tpu.matmul %57, %61, %cst_21 {dimension_numbers = #tpu.dot_dimension_numbers<[2], [1], [1], [2], [0, 0, 0, 1, 1, 2], [0], [0]>} : vector<2x8x16xbf16>, vector<2x16x8xbf16>, vector<2x8x8xf32> -> vector<2x8x8xf32>
    "tpu.trace_stop"() : () -> ()
    %c0_22 = arith.constant 0 : index
    %c0_23 = arith.constant 0 : index
    %c0_24 = arith.constant 0 : index
    %63 = vector.load %arg10[%c0_22, %c0_23, %c0_24] : memref<2x1x8xf32, #tpu.memory_space<vmem>>, vector<2x1x8xf32>
    %64 = vector.broadcast %63 : vector<2x1x8xf32> to vector<2x8x8xf32>
    %65 = arith.addf %62, %64 : vector<2x8x8xf32>
    %c0_25 = arith.constant 0 : index
    %c0_26 = arith.constant 0 : index
    %c0_27 = arith.constant 0 : index
    %66 = vector.load %arg8[%c0_25, %c0_26, %c0_27] : memref<2x16x8xbf16, #tpu.memory_space<vmem>>, vector<2x16x8xbf16>
    "tpu.trace_start"() <{level = 10 : i32, message = "htd,hdf->htf"}> : () -> ()
    %cst_28 = arith.constant dense<0.000000e+00> : vector<2x8x8xf32>
    %67 = tpu.matmul %57, %66, %cst_28 {dimension_numbers = #tpu.dot_dimension_numbers<[2], [1], [1], [2], [0, 0, 0, 1, 1, 2], [0], [0]>} : vector<2x8x16xbf16>, vector<2x16x8xbf16>, vector<2x8x8xf32> -> vector<2x8x8xf32>
    "tpu.trace_stop"() : () -> ()
    %c0_29 = arith.constant 0 : index
    %c0_30 = arith.constant 0 : index
    %c0_31 = arith.constant 0 : index
    %68 = vector.load %arg11[%c0_29, %c0_30, %c0_31] : memref<2x1x8xf32, #tpu.memory_space<vmem>>, vector<2x1x8xf32>
    %69 = vector.broadcast %68 : vector<2x1x8xf32> to vector<2x8x8xf32>
    %70 = arith.addf %67, %69 : vector<2x8x8xf32>
    %c0_32 = arith.constant 0 : index
    %c0_33 = arith.constant 0 : index
    %c0_34 = arith.constant 0 : index
    %71 = vector.load %arg9[%c0_32, %c0_33, %c0_34] : memref<2x16x8xbf16, #tpu.memory_space<vmem>>, vector<2x16x8xbf16>
    "tpu.trace_start"() <{level = 10 : i32, message = "htd,hdf->htf"}> : () -> ()
    %cst_35 = arith.constant dense<0.000000e+00> : vector<2x8x8xf32>
    %72 = tpu.matmul %57, %71, %cst_35 {dimension_numbers = #tpu.dot_dimension_numbers<[2], [1], [1], [2], [0, 0, 0, 1, 1, 2], [0], [0]>} : vector<2x8x16xbf16>, vector<2x16x8xbf16>, vector<2x8x8xf32> -> vector<2x8x8xf32>
    "tpu.trace_stop"() : () -> ()
    %c0_36 = arith.constant 0 : index
    %c0_37 = arith.constant 0 : index
    %c0_38 = arith.constant 0 : index
    %73 = vector.load %arg12[%c0_36, %c0_37, %c0_38] : memref<2x1x8xf32, #tpu.memory_space<vmem>>, vector<2x1x8xf32>
    %74 = vector.broadcast %73 : vector<2x1x8xf32> to vector<2x8x8xf32>
    %75 = arith.addf %72, %74 : vector<2x8x8xf32>
    %c0_39 = arith.constant 0 : index
    %c0_40 = arith.constant 0 : index
    %c0_41 = arith.constant 0 : index
    %76 = vector.load %arg8[%c0_39, %c0_40, %c0_41] : memref<2x16x8xbf16, #tpu.memory_space<vmem>>, vector<2x16x8xbf16>
    "tpu.trace_start"() <{level = 10 : i32, message = "htd,hdf->htf"}> : () -> ()
    %cst_42 = arith.constant dense<0.000000e+00> : vector<2x8x8xf32>
    %77 = tpu.matmul %60, %76, %cst_42 {dimension_numbers = #tpu.dot_dimension_numbers<[2], [1], [1], [2], [0, 0, 0, 1, 1, 2], [0], [0]>} : vector<2x8x16xbf16>, vector<2x16x8xbf16>, vector<2x8x8xf32> -> vector<2x8x8xf32>
    "tpu.trace_stop"() : () -> ()
    %c0_43 = arith.constant 0 : index
    %c0_44 = arith.constant 0 : index
    %c0_45 = arith.constant 0 : index
    %78 = vector.load %arg11[%c0_43, %c0_44, %c0_45] : memref<2x1x8xf32, #tpu.memory_space<vmem>>, vector<2x1x8xf32>
    %79 = vector.broadcast %78 : vector<2x1x8xf32> to vector<2x8x8xf32>
    %80 = arith.addf %77, %79 : vector<2x8x8xf32>
    %c0_46 = arith.constant 0 : index
    %c0_47 = arith.constant 0 : index
    %c0_48 = arith.constant 0 : index
    %81 = vector.load %arg9[%c0_46, %c0_47, %c0_48] : memref<2x16x8xbf16, #tpu.memory_space<vmem>>, vector<2x16x8xbf16>
    "tpu.trace_start"() <{level = 10 : i32, message = "htd,hdf->htf"}> : () -> ()
    %cst_49 = arith.constant dense<0.000000e+00> : vector<2x8x8xf32>
    %82 = tpu.matmul %60, %81, %cst_49 {dimension_numbers = #tpu.dot_dimension_numbers<[2], [1], [1], [2], [0, 0, 0, 1, 1, 2], [0], [0]>} : vector<2x8x16xbf16>, vector<2x16x8xbf16>, vector<2x8x8xf32> -> vector<2x8x8xf32>
    "tpu.trace_stop"() : () -> ()
    %c0_50 = arith.constant 0 : index
    %c0_51 = arith.constant 0 : index
    %c0_52 = arith.constant 0 : index
    %83 = vector.load %arg12[%c0_50, %c0_51, %c0_52] : memref<2x1x8xf32, #tpu.memory_space<vmem>>, vector<2x1x8xf32>
    %84 = vector.broadcast %83 : vector<2x1x8xf32> to vector<2x8x8xf32>
    %85 = arith.addf %82, %84 : vector<2x8x8xf32>
    %86 = tpu.concatenate %80, %70 in 1 : vector<2x8x8xf32>, vector<2x8x8xf32> -> vector<2x16x8xf32>
    %87 = tpu.concatenate %85, %75 in 1 : vector<2x8x8xf32>, vector<2x8x8xf32> -> vector<2x16x8xf32>
    %88 = arith.truncf %65 : vector<2x8x8xf32> to vector<2x8x8xbf16>
    %89 = arith.truncf %86 : vector<2x16x8xf32> to vector<2x16x8xbf16>
    "tpu.trace_start"() <{level = 10 : i32, message = "htf,hsf->hts"}> : () -> ()
    %cst_53 = arith.constant dense<0.000000e+00> : vector<2x8x16xf32>
    %90 = tpu.matmul %88, %89, %cst_53 {dimension_numbers = #tpu.dot_dimension_numbers<[2], [2], [1], [1], [0, 0, 0, 1, 1, 1], [0], [0]>} : vector<2x8x8xbf16>, vector<2x16x8xbf16>, vector<2x8x16xf32> -> vector<2x8x16xf32>
    "tpu.trace_stop"() : () -> ()
    %91 = tpu.iota {dimensions = array<i32: 0>} : vector<8x16xi32>
    %92 = vector.broadcast %2 : i32 to vector<8x16xi32>
    %93 = arith.addi %92, %91 : vector<8x16xi32>
    %c8_i32_54 = arith.constant 8 : i32
    %94 = arith.subi %2, %c8_i32_54 : i32
    %95 = tpu.iota {dimensions = array<i32: 1>} : vector<8x16xi32>
    %96 = vector.broadcast %94 : i32 to vector<8x16xi32>
    %97 = arith.addi %96, %95 : vector<8x16xi32>
    %c0_i32 = arith.constant 0 : i32
    %98 = vector.broadcast %c0_i32 : i32 to vector<8x16xi32>
    %99 = arith.cmpi sge, %97, %98 : vector<8x16xi32>
    %100 = arith.cmpi sle, %97, %93 : vector<8x16xi32>
    %101 = arith.andi %99, %100 : vector<8x16xi1>
    %c4_i32 = arith.constant 4 : i32
    %102 = vector.broadcast %c4_i32 : i32 to vector<8x16xi32>
    %103 = arith.subi %93, %102 : vector<8x16xi32>
    %104 = arith.cmpi sge, %97, %103 : vector<8x16xi32>
    %105 = arith.andi %101, %104 : vector<8x16xi1>
    %106 = vector.broadcast %1 : i32 to vector<8x16xi32>
    %107 = arith.cmpi slt, %97, %106 : vector<8x16xi32>
    %108 = arith.andi %105, %107 : vector<8x16xi1>
    %cst_55 = arith.constant 0.000000e+00 : f32
    %cst_56 = arith.constant -1.000000e+09 : f32
    %109 = vector.broadcast %cst_55 : f32 to vector<8x16xf32>
    %110 = vector.broadcast %cst_56 : f32 to vector<8x16xf32>
    %111 = arith.select %108, %109, %110 : vector<8x16xi1>, vector<8x16xf32>
    %112 = vector.shape_cast %111 : vector<8x16xf32> to vector<1x8x16xf32>
    %113 = vector.broadcast %112 : vector<1x8x16xf32> to vector<2x8x16xf32>
    %114 = arith.addf %90, %113 : vector<2x8x16xf32>
    %cst_57 = arith.constant dense<0xFF800000> : vector<2x8xf32>
    %115 = vector.multi_reduction <maximumf>, %114, %cst_57 [2] : vector<2x8x16xf32> to vector<2x8xf32>
    %116 = vector.shape_cast %115 : vector<2x8xf32> to vector<2x8x1xf32>
    %117 = vector.broadcast %116 : vector<2x8x1xf32> to vector<2x8x16xf32>
    %118 = arith.subf %114, %117 : vector<2x8x16xf32>
    %119 = math.exp %118 : vector<2x8x16xf32>
    %cst_58 = arith.constant dense<0.000000e+00> : vector<2x8xf32>
    %120 = vector.multi_reduction <add>, %119, %cst_58 [2] : vector<2x8x16xf32> to vector<2x8xf32>
    %121 = vector.shape_cast %120 : vector<2x8xf32> to vector<2x8x1xf32>
    %cst_59 = arith.constant 1.000000e+00 : f32
    %122 = vector.broadcast %cst_59 : f32 to vector<2x8x1xf32>
    %123 = arith.divf %122, %121 : vector<2x8x1xf32>
    %124 = vector.broadcast %123 : vector<2x8x1xf32> to vector<2x8x16xf32>
    %125 = arith.mulf %119, %124 : vector<2x8x16xf32>
    %126 = arith.truncf %125 : vector<2x8x16xf32> to vector<2x8x16xbf16>
    %127 = arith.truncf %87 : vector<2x16x8xf32> to vector<2x16x8xbf16>
    "tpu.trace_start"() <{level = 10 : i32, message = "hts,hsf->htf"}> : () -> ()
    %cst_60 = arith.constant dense<0.000000e+00> : vector<2x8x8xf32>
    %128 = tpu.matmul %126, %127, %cst_60 {dimension_numbers = #tpu.dot_dimension_numbers<[2], [1], [1], [2], [0, 0, 0, 1, 1, 2], [0], [0]>} : vector<2x8x16xbf16>, vector<2x16x8xbf16>, vector<2x8x8xf32> -> vector<2x8x8xf32>
    "tpu.trace_stop"() : () -> ()
    %129 = arith.truncf %128 : vector<2x8x8xf32> to vector<2x8x8xbf16>
    %c0_61 = arith.constant 0 : index
    %c0_62 = arith.constant 0 : index
    %c0_63 = arith.constant 0 : index
    %130 = vector.load %arg13[%c0_61, %c0_62, %c0_63] : memref<2x8x16xbf16, #tpu.memory_space<vmem>>, vector<2x8x16xbf16>
    "tpu.trace_start"() <{level = 10 : i32, message = "htf,hfd->htd"}> : () -> ()
    %cst_64 = arith.constant dense<0.000000e+00> : vector<2x8x16xf32>
    %131 = tpu.matmul %129, %130, %cst_64 {dimension_numbers = #tpu.dot_dimension_numbers<[2], [1], [1], [2], [0, 0, 0, 1, 1, 2], [0], [0]>} : vector<2x8x8xbf16>, vector<2x8x16xbf16>, vector<2x8x16xf32> -> vector<2x8x16xf32>
    "tpu.trace_stop"() : () -> ()
    %cst_65 = arith.constant dense<0.000000e+00> : vector<8x16xf32>
    %132 = vector.multi_reduction <add>, %131, %cst_65 [0] : vector<2x8x16xf32> to vector<8x16xf32>
    %c0_66 = arith.constant 0 : index
    %c0_67 = arith.constant 0 : index
    %133 = vector.load %arg14[%c0_66, %c0_67] : memref<1x16xf32, #tpu.memory_space<vmem>>, vector<1x16xf32>
    %134 = vector.broadcast %133 : vector<1x16xf32> to vector<8x16xf32>
    %135 = arith.addf %132, %134 : vector<8x16xf32>
    %136 = tpu.iota {dimensions = array<i32: 0>} : vector<8x1xi32>
    %137 = vector.broadcast %2 : i32 to vector<8x1xi32>
    %138 = arith.addi %137, %136 : vector<8x1xi32>
    %139 = vector.broadcast %1 : i32 to vector<8x1xi32>
    %140 = arith.cmpi slt, %138, %139 : vector<8x1xi32>
    %cst_68 = arith.constant 0.000000e+00 : f32
    %141 = vector.shape_cast %140 : vector<8x1xi1> to vector<8x1xi1>
    %142 = vector.broadcast %141 : vector<8x1xi1> to vector<8x16xi1>
    %143 = vector.broadcast %cst_68 : f32 to vector<8x16xf32>
    %144 = arith.select %142, %135, %143 : vector<8x16xi1>, vector<8x16xf32>
    %145 = arith.addf %4, %144 : vector<8x16xf32>
    %c0_69 = arith.constant 0 : index
    %c0_70 = arith.constant 0 : index
    %c0_71 = arith.constant 0 : index
    %146 = vector.load %arg15[%c0_69, %c0_70, %c0_71] : memref<1x8x16xf32, #tpu.memory_space<vmem>>, vector<1x8x16xf32>
    %147 = vector.shape_cast %146 : vector<1x8x16xf32> to vector<8x16xf32>
    %148 = vector.shape_cast %145 : vector<8x16xf32> to vector<1x8x16xf32>
    tpu.vector_store %arg15[%c0_69, %c0_70, %c0_71], %148 {strides = array<i32>} : memref<1x8x16xf32, #tpu.memory_space<vmem>>, vector<1x8x16xf32>,
    return
  }
  func.func @transform_0(%arg0: i32, %arg1: i32, %arg2: memref<2xi32, #tpu.memory_space<smem>>) -> (i32, i32, i32) {
    %c0_i32 = arith.constant 0 : i32
    %c0_i32_0 = arith.constant 0 : i32
    return %arg0, %arg1, %c0_i32 : i32, i32, i32
  }
  func.func @transform_1(%arg0: i32, %arg1: i32, %arg2: memref<2xi32, #tpu.memory_space<smem>>) -> (i32, i32, i32) {
    %c1_i32 = arith.constant 1 : i32
    %0 = arith.subi %arg1, %c1_i32 : i32
    %c0_i32 = arith.constant 0 : i32
    %1 = arith.maxsi %0, %c0_i32 : i32
    %c0_i32_0 = arith.constant 0 : i32
    %c0_i32_1 = arith.constant 0 : i32
    return %arg0, %1, %c0_i32_0 : i32, i32, i32
  }
  func.func @transform_2(%arg0: i32, %arg1: i32, %arg2: memref<2xi32, #tpu.memory_space<smem>>) -> (i32, i32) {
    %c0_i32 = arith.constant 0 : i32
    %c0_i32_0 = arith.constant 0 : i32
    %c0_i32_1 = arith.constant 0 : i32
    return %c0_i32, %c0_i32_0 : i32, i32
  }
  func.func @transform_3(%arg0: i32, %arg1: i32, %arg2: memref<2xi32, #tpu.memory_space<smem>>) -> (i32, i32) {
    %c0_i32 = arith.constant 0 : i32
    %c0_i32_0 = arith.constant 0 : i32
    %c0_i32_1 = arith.constant 0 : i32
    return %c0_i32, %c0_i32_0 : i32, i32
  }
  func.func @transform_4(%arg0: i32, %arg1: i32, %arg2: memref<2xi32, #tpu.memory_space<smem>>) -> (i32, i32, i32) {
    %c0_i32 = arith.constant 0 : i32
    %c0_i32_0 = arith.constant 0 : i32
    %c0_i32_1 = arith.constant 0 : i32
    %c0_i32_2 = arith.constant 0 : i32
    return %c0_i32, %c0_i32_0, %c0_i32_1 : i32, i32, i32
  }
  func.func @transform_5(%arg0: i32, %arg1: i32, %arg2: memref<2xi32, #tpu.memory_space<smem>>) -> (i32, i32, i32) {
    %c0_i32 = arith.constant 0 : i32
    %c0_i32_0 = arith.constant 0 : i32
    %c0_i32_1 = arith.constant 0 : i32
    %c0_i32_2 = arith.constant 0 : i32
    return %c0_i32, %c0_i32_0, %c0_i32_1 : i32, i32, i32
  }
  func.func @transform_6(%arg0: i32, %arg1: i32, %arg2: memref<2xi32, #tpu.memory_space<smem>>) -> (i32, i32, i32) {
    %c0_i32 = arith.constant 0 : i32
    %c0_i32_0 = arith.constant 0 : i32
    %c0_i32_1 = arith.constant 0 : i32
    %c0_i32_2 = arith.constant 0 : i32
    return %c0_i32, %c0_i32_0, %c0_i32_1 : i32, i32, i32
  }
  func.func @transform_7(%arg0: i32, %arg1: i32, %arg2: memref<2xi32, #tpu.memory_space<smem>>) -> (i32, i32, i32) {
    %c0_i32 = arith.constant 0 : i32
    %c0_i32_0 = arith.constant 0 : i32
    %c0_i32_1 = arith.constant 0 : i32
    %c0_i32_2 = arith.constant 0 : i32
    return %c0_i32, %c0_i32_0, %c0_i32_1 : i32, i32, i32
  }
  func.func @transform_8(%arg0: i32, %arg1: i32, %arg2: memref<2xi32, #tpu.memory_space<smem>>) -> (i32, i32, i32) {
    %c0_i32 = arith.constant 0 : i32
    %c0_i32_0 = arith.constant 0 : i32
    %c0_i32_1 = arith.constant 0 : i32
    %c0_i32_2 = arith.constant 0 : i32
    return %c0_i32, %c0_i32_0, %c0_i32_1 : i32, i32, i32
  }
  func.func @transform_9(%arg0: i32, %arg1: i32, %arg2: memref<2xi32, #tpu.memory_space<smem>>) -> (i32, i32, i32) {
    %c0_i32 = arith.constant 0 : i32
    %c0_i32_0 = arith.constant 0 : i32
    %c0_i32_1 = arith.constant 0 : i32
    %c0_i32_2 = arith.constant 0 : i32
    return %c0_i32, %c0_i32_0, %c0_i32_1 : i32, i32, i32
  }
  func.func @transform_10(%arg0: i32, %arg1: i32, %arg2: memref<2xi32, #tpu.memory_space<smem>>) -> (i32, i32, i32) {
    %c0_i32 = arith.constant 0 : i32
    %c0_i32_0 = arith.constant 0 : i32
    %c0_i32_1 = arith.constant 0 : i32
    %c0_i32_2 = arith.constant 0 : i32
    return %c0_i32, %c0_i32_0, %c0_i32_1 : i32, i32, i32
  }
  func.func @transform_11(%arg0: i32, %arg1: i32, %arg2: memref<2xi32, #tpu.memory_space<smem>>) -> (i32, i32) {
    %c0_i32 = arith.constant 0 : i32
    %c0_i32_0 = arith.constant 0 : i32
    %c0_i32_1 = arith.constant 0 : i32
    return %c0_i32, %c0_i32_0 : i32, i32
  }
  func.func @transform_12(%arg0: i32, %arg1: i32, %arg2: memref<2xi32, #tpu.memory_space<smem>>) -> (i32, i32, i32) {
    %c0_i32 = arith.constant 0 : i32
    %c0_i32_0 = arith.constant 0 : i32
    return %arg0, %arg1, %c0_i32 : i32, i32, i32
  }
}

module attributes {stable_mosaic.version = 11 : i64} {
  func.func @_ff_kernel(%arg0: i32, %arg1: memref<8x16xf32, #tpu.memory_space<vmem>>, %arg2: memref<1x16xf32, #tpu.memory_space<vmem>>, %arg3: memref<1x16xf32, #tpu.memory_space<vmem>>, %arg4: memref<16x32xbf16, #tpu.memory_space<vmem>>, %arg5: memref<1x32xf32, #tpu.memory_space<vmem>>, %arg6: memref<32x16xbf16, #tpu.memory_space<vmem>>, %arg7: memref<1x16xf32, #tpu.memory_space<vmem>>, %arg8: memref<1x16xf32, #tpu.memory_space<vmem>>, %arg9: memref<1x16xf32, #tpu.memory_space<vmem>>, %arg10: memref<8x16xf32, #tpu.memory_space<vmem>>) attributes {dimension_semantics = [#tpu.dimension_semantics<parallel>], iteration_bounds = array<i64: 2>, scalar_prefetch = 0 : i64, scratch_operands = 0 : i64, tpu.core_type = #tpu.core_type<tc>, window_params = [{transform_indices = @transform_0, window_bounds = array<i64: 8, 16>}, {pipeline_mode = #tpu.pipeline_mode<synchronous>, transform_indices = @transform_1, window_bounds = array<i64: 1, 16>}, {pipeline_mode = #tpu.pipeline_mode<synchronous>, transform_indices = @transform_2, window_bounds = array<i64: 1, 16>}, {pipeline_mode = #tpu.pipeline_mode<synchronous>, transform_indices = @transform_3, window_bounds = array<i64: 16, 32>}, {pipeline_mode = #tpu.pipeline_mode<synchronous>, transform_indices = @transform_4, window_bounds = array<i64: 1, 32>}, {pipeline_mode = #tpu.pipeline_mode<synchronous>, transform_indices = @transform_5, window_bounds = array<i64: 32, 16>}, {pipeline_mode = #tpu.pipeline_mode<synchronous>, transform_indices = @transform_6, window_bounds = array<i64: 1, 16>}, {pipeline_mode = #tpu.pipeline_mode<synchronous>, transform_indices = @transform_7, window_bounds = array<i64: 1, 16>}, {pipeline_mode = #tpu.pipeline_mode<synchronous>, transform_indices = @transform_8, window_bounds = array<i64: 1, 16>}, {transform_indices = @transform_9, window_bounds = array<i64: 8, 16>}]} {
    %c0 = arith.constant 0 : index
    %c0_0 = arith.constant 0 : index
    %0 = vector.load %arg1[%c0, %c0_0] : memref<8x16xf32, #tpu.memory_space<vmem>>, vector<8x16xf32>
    %c0_1 = arith.constant 0 : index
    %c0_2 = arith.constant 0 : index
    %1 = vector.load %arg2[%c0_1, %c0_2] : memref<1x16xf32, #tpu.memory_space<vmem>>, vector<1x16xf32>
    %c0_3 = arith.constant 0 : index
    %c0_4 = arith.constant 0 : index
    %2 = vector.load %arg3[%c0_3, %c0_4] : memref<1x16xf32, #tpu.memory_space<vmem>>, vector<1x16xf32>
    %cst = arith.constant dense<0.000000e+00> : vector<8xf32>
    %3 = vector.multi_reduction <add>, %0, %cst [1] : vector<8x16xf32> to vector<8xf32>
    %4 = vector.shape_cast %3 : vector<8xf32> to vector<8x1xf32>
    %cst_5 = arith.constant 1.600000e+01 : f32
    %5 = vector.broadcast %cst_5 : f32 to vector<8x1xf32>
    %6 = arith.divf %4, %5 : vector<8x1xf32>
    %7 = vector.broadcast %6 : vector<8x1xf32> to vector<8x16xf32>
    %8 = arith.subf %0, %7 : vector<8x16xf32>
    %9 = arith.mulf %8, %8 : vector<8x16xf32>
    %cst_6 = arith.constant dense<0.000000e+00> : vector<8xf32>
    %10 = vector.multi_reduction <add>, %9, %cst_6 [1] : vector<8x16xf32> to vector<8xf32>
    %11 = vector.shape_cast %10 : vector<8xf32> to vector<8x1xf32>
    %cst_7 = arith.constant 1.600000e+01 : f32
    %12 = vector.broadcast %cst_7 : f32 to vector<8x1xf32>
    %13 = arith.divf %11, %12 : vector<8x1xf32>
    %14 = vector.broadcast %6 : vector<8x1xf32> to vector<8x16xf32>
    %15 = arith.subf %0, %14 : vector<8x16xf32>
    %cst_8 = arith.constant 9.99999974E-6 : f32
    %16 = vector.broadcast %cst_8 : f32 to vector<8x1xf32>
    %17 = arith.addf %13, %16 : vector<8x1xf32>
    %18 = math.rsqrt %17 : vector<8x1xf32>
    %19 = vector.broadcast %18 : vector<8x1xf32> to vector<8x16xf32>
    %20 = arith.mulf %15, %19 : vector<8x16xf32>
    %21 = vector.broadcast %1 : vector<1x16xf32> to vector<8x16xf32>
    %22 = arith.mulf %20, %21 : vector<8x16xf32>
    %23 = vector.broadcast %2 : vector<1x16xf32> to vector<8x16xf32>
    %24 = arith.addf %22, %23 : vector<8x16xf32>
    %c0_9 = arith.constant 0 : index
    %c0_10 = arith.constant 0 : index
    %25 = vector.load %arg4[%c0_9, %c0_10] : memref<16x32xbf16, #tpu.memory_space<vmem>>, vector<16x32xbf16>
    %26 = arith.truncf %24 : vector<8x16xf32> to vector<8x16xbf16>
    %cst_11 = arith.constant dense<0.000000e+00> : vector<8x32xf32>
    %27 = tpu.matmul %26, %25, %cst_11 {dimension_numbers = #tpu.dot_dimension_numbers<[1], [0], [0], [1], [0, 0, 1, 1], [], []>} : vector<8x16xbf16>, vector<16x32xbf16>, vector<8x32xf32> -> vector<8x32xf32>
    %c0_12 = arith.constant 0 : index
    %c0_13 = arith.constant 0 : index
    %28 = vector.load %arg5[%c0_12, %c0_13] : memref<1x32xf32, #tpu.memory_space<vmem>>, vector<1x32xf32>
    %29 = vector.broadcast %28 : vector<1x32xf32> to vector<8x32xf32>
    %30 = arith.addf %27, %29 : vector<8x32xf32>
    %31 = arith.negf %30 : vector<8x32xf32>
    %32 = math.exp %31 : vector<8x32xf32>
    %cst_14 = arith.constant 1.000000e+00 : f32
    %33 = vector.broadcast %cst_14 : f32 to vector<8x32xf32>
    %34 = arith.addf %33, %32 : vector<8x32xf32>
    %35 = arith.divf %33, %34 : vector<8x32xf32>
    %36 = arith.mulf %30, %35 : vector<8x32xf32>
    %c0_15 = arith.constant 0 : index
    %c0_16 = arith.constant 0 : index
    %37 = vector.load %arg6[%c0_15, %c0_16] : memref<32x16xbf16, #tpu.memory_space<vmem>>, vector<32x16xbf16>
    %38 = arith.truncf %36 : vector<8x32xf32> to vector<8x32xbf16>
    %cst_17 = arith.constant dense<0.000000e+00> : vector<8x16xf32>
    %39 = tpu.matmul %38, %37, %cst_17 {dimension_numbers = #tpu.dot_dimension_numbers<[1], [0], [0], [1], [0, 0, 1, 1], [], []>} : vector<8x32xbf16>, vector<32x16xbf16>, vector<8x16xf32> -> vector<8x16xf32>
    %c0_18 = arith.constant 0 : index
    %c0_19 = arith.constant 0 : index
    %40 = vector.load %arg7[%c0_18, %c0_19] : memref<1x16xf32, #tpu.memory_space<vmem>>, vector<1x16xf32>
    %41 = vector.broadcast %40 : vector<1x16xf32> to vector<8x16xf32>
    %42 = arith.addf %39, %41 : vector<8x16xf32>
    %cst_20 = arith.constant 5.000000e-01 : f32
    %43 = vector.broadcast %cst_20 : f32 to vector<8x16xf32>
    %44 = arith.mulf %43, %42 : vector<8x16xf32>
    %45 = arith.addf %0, %44 : vector<8x16xf32>
    %c0_21 = arith.constant 0 : index
    %c0_22 = arith.constant 0 : index
    %46 = vector.load %arg8[%c0_21, %c0_22] : memref<1x16xf32, #tpu.memory_space<vmem>>, vector<1x16xf32>
    %c0_23 = arith.constant 0 : index
    %c0_24 = arith.constant 0 : index
    %47 = vector.load %arg9[%c0_23, %c0_24] : memref<1x16xf32, #tpu.memory_space<vmem>>, vector<1x16xf32>
    %cst_25 = arith.constant dense<0.000000e+00> : vector<8xf32>
    %48 = vector.multi_reduction <add>, %45, %cst_25 [1] : vector<8x16xf32> to vector<8xf32>
    %49 = vector.shape_cast %48 : vector<8xf32> to vector<8x1xf32>
    %cst_26 = arith.constant 1.600000e+01 : f32
    %50 = vector.broadcast %cst_26 : f32 to vector<8x1xf32>
    %51 = arith.divf %49, %50 : vector<8x1xf32>
    %52 = vector.broadcast %51 : vector<8x1xf32> to vector<8x16xf32>
    %53 = arith.subf %45, %52 : vector<8x16xf32>
    %54 = arith.mulf %53, %53 : vector<8x16xf32>
    %cst_27 = arith.constant dense<0.000000e+00> : vector<8xf32>
    %55 = vector.multi_reduction <add>, %54, %cst_27 [1] : vector<8x16xf32> to vector<8xf32>
    %56 = vector.shape_cast %55 : vector<8xf32> to vector<8x1xf32>
    %cst_28 = arith.constant 1.600000e+01 : f32
    %57 = vector.broadcast %cst_28 : f32 to vector<8x1xf32>
    %58 = arith.divf %56, %57 : vector<8x1xf32>
    %59 = vector.broadcast %51 : vector<8x1xf32> to vector<8x16xf32>
    %60 = arith.subf %45, %59 : vector<8x16xf32>
    %cst_29 = arith.constant 9.99999974E-6 : f32
    %61 = vector.broadcast %cst_29 : f32 to vector<8x1xf32>
    %62 = arith.addf %58, %61 : vector<8x1xf32>
    %63 = math.rsqrt %62 : vector<8x1xf32>
    %64 = vector.broadcast %63 : vector<8x1xf32> to vector<8x16xf32>
    %65 = arith.mulf %60, %64 : vector<8x16xf32>
    %66 = vector.broadcast %46 : vector<1x16xf32> to vector<8x16xf32>
    %67 = arith.mulf %65, %66 : vector<8x16xf32>
    %68 = vector.broadcast %47 : vector<1x16xf32> to vector<8x16xf32>
    %69 = arith.addf %67, %68 : vector<8x16xf32>
    %c0_30 = arith.constant 0 : index
    %c0_31 = arith.constant 0 : index
    %70 = vector.load %arg10[%c0_30, %c0_31] : memref<8x16xf32, #tpu.memory_space<vmem>>, vector<8x16xf32>
    tpu.vector_store %arg10[%c0_30, %c0_31], %69 {strides = array<i32>} : memref<8x16xf32, #tpu.memory_space<vmem>>, vector<8x16xf32>,
    return
  }
  func.func @transform_0(%arg0: i32) -> (i32, i32) {
    %c0_i32 = arith.constant 0 : i32
    %c0_i32_0 = arith.constant 0 : i32
    return %arg0, %c0_i32 : i32, i32
  }
  func.func @transform_1(%arg0: i32) -> (i32, i32) {
    %c0_i32 = arith.constant 0 : i32
    %c0_i32_0 = arith.constant 0 : i32
    %c0_i32_1 = arith.constant 0 : i32
    return %c0_i32, %c0_i32_0 : i32, i32
  }
  func.func @transform_2(%arg0: i32) -> (i32, i32) {
    %c0_i32 = arith.constant 0 : i32
    %c0_i32_0 = arith.constant 0 : i32
    %c0_i32_1 = arith.constant 0 : i32
    return %c0_i32, %c0_i32_0 : i32, i32
  }
  func.func @transform_3(%arg0: i32) -> (i32, i32) {
    %c0_i32 = arith.constant 0 : i32
    %c0_i32_0 = arith.constant 0 : i32
    %c0_i32_1 = arith.constant 0 : i32
    return %c0_i32, %c0_i32_0 : i32, i32
  }
  func.func @transform_4(%arg0: i32) -> (i32, i32) {
    %c0_i32 = arith.constant 0 : i32
    %c0_i32_0 = arith.constant 0 : i32
    %c0_i32_1 = arith.constant 0 : i32
    return %c0_i32, %c0_i32_0 : i32, i32
  }
  func.func @transform_5(%arg0: i32) -> (i32, i32) {
    %c0_i32 = arith.constant 0 : i32
    %c0_i32_0 = arith.constant 0 : i32
    %c0_i32_1 = arith.constant 0 : i32
    return %c0_i32, %c0_i32_0 : i32, i32
  }
  func.func @transform_6(%arg0: i32) -> (i32, i32) {
    %c0_i32 = arith.constant 0 : i32
    %c0_i32_0 = arith.constant 0 : i32
    %c0_i32_1 = arith.constant 0 : i32
    return %c0_i32, %c0_i32_0 : i32, i32
  }
  func.func @transform_7(%arg0: i32) -> (i32, i32) {
    %c0_i32 = arith.constant 0 : i32
    %c0_i32_0 = arith.constant 0 : i32
    %c0_i32_1 = arith.constant 0 : i32
    return %c0_i32, %c0_i32_0 : i32, i32
  }
  func.func @transform_8(%arg0: i32) -> (i32, i32) {
    %c0_i32 = arith.constant 0 : i32
    %c0_i32_0 = arith.constant 0 : i32
    %c0_i32_1 = arith.constant 0 : i32
    return %c0_i32, %c0_i32_0 : i32, i32
  }
  func.func @transform_9(%arg0: i32) -> (i32, i32) {
    %c0_i32 = arith.constant 0 : i32
    %c0_i32_0 = arith.constant 0 : i32
    return %arg0, %c0_i32 : i32, i32
  }
}

</mosaic_0001>

<llo_original>
// kernel: causal_conformer_encoder.13
$region0: #{causal_conformer_encoder.13}
  #allocation0 [shape = 'u32[]', space=smem, size = 0x4, offset = 0x4, fixed_abs, tag = 'smem constant byte address 0x4 - core index']
  #allocation1 [shape = 'u32[144,128]{1,0:T(1,128)}', space=vmem, size = 0x12000, scoped, tag = 'internal scratch']
  %s0 = inlined_call_operand.hbm [shape: f32[2,32,16], index: 0, kind: input, shape index: {}]
  %s1 = inlined_call_operand.hbm [shape: f32[2,32,16], index: 1, kind: output, shape index: {}]
  %s2 = sld [smem:[#allocation0]]
  $region41: #{causal_conformer_encoder.13} parent=0
    _
  %s4 = ssub.s32 1, %s2
  %s5 = scalar_select 0, %s4, %s2
  $region1: #{causal_conformer_encoder.13} parent=0
    #allocation2 [shape = 'u8[32768]{0}', space=vmem, size = 0x8000, scoped, tag = 'input window, operand 0']
    #allocation3 [shape = 's32[2]{0}', space=sflag, size = 0x8, scoped, tag = 'scoped memory for causal_conformer_encoder.13']
    #allocation4 [shape = 's32[2]{0}', space=sflag, size = 0x8, scoped, tag = 'scoped memory for causal_conformer_encoder.13']
    #allocation5 [shape = 'u8[32768]{0}', space=vmem, size = 0x8000, scoped, tag = 'output window, operand 0']
    %6 = vsyncpa [#allocation3], 0
    %s7 = scalar_lea.sflag [#allocation3], 1
    %8 = vsyncpa %s7, 0
    %9 = vsyncpa [#allocation4], 0
    %s10 = scalar_lea.sflag [#allocation4], 1
    %11 = vsyncpa %s10, 0
    loop: start=0, step=1, limit=4
    $region2: #{causal_conformer_encoder.13} parent=1 // loop_pre_header
      _
    $region3: #{causal_conformer_encoder.13} parent=1 // loop_header
      %s13 = sphi 0, %s17
      %p14 = scmp.ge.s32.totalorder %s13, 4
      %s23 = sphi 0, %s25
      %s26 = sphi 0, %s23
      %s27 = sphi 0, %s26
      %s43 = sphi 0, %s27
      %s49 = sphi 0, %s51
      %s52 = sphi 0, %s49
      %s53 = sphi 0, %s52
      %s69 = sphi 0, %s53
    $region4: #{causal_conformer_encoder.13} parent=1 // loop_header_branch
      %16 = sbr.rel (%p14) target = $region8
    $region5: #{causal_conformer_encoder.13} parent=1 // loop_body
      %s18 = ssub.s32 %s13, 1
      %s19 = ssub.s32 %s13, 2
      %s20 = sadd.s32 %s13, 1
      %s21 = ssub.s32 %s13, %s20
      %p22 = scmp.eq.s32.totalorder %s21, 0
      %s24 = sadd.s32 %s23, 1
      %s25 = scalar_select %p22, %s23, %s24
      %p28 = pneg %p22
      %p29 = scmp.eq.s32.totalorder %s13, 1
      %p30 = por %p28, %p29
      %p31 = scmp.ne.s32.totalorder %s23, %s26
      %p32 = scmp.eq.s32.totalorder %s13, 0
      %p33 = por %p31, %p32
      %p34 = scmp.ne.s32.totalorder %s23, %s26
      %p35 = scmp.eq.s32.totalorder %s18, 1
      %p36 = por %p34, %p35
      %p37 = scmp.ne.s32.totalorder %s26, %s27
      %p38 = scmp.eq.s32.totalorder %s18, 0
      %p39 = por %p37, %p38
      %p40 = scmp.ne.s32.totalorder %s26, %s27
      %p41 = scmp.eq.s32.totalorder %s19, 1
      %p42 = por %p40, %p41
      %p44 = scmp.ne.s32.totalorder %s27, %s43
      %p45 = scmp.eq.s32.totalorder %s19, 0
      %p46 = por %p44, %p45
      %s47 = ssub.s32 %s13, %s20
      %p48 = scmp.eq.s32.totalorder %s47, 0
      %s50 = sadd.s32 %s49, 1
      %s51 = scalar_select %p48, %s49, %s50
      %p54 = pneg %p48
      %p55 = scmp.eq.s32.totalorder %s13, 1
      %p56 = por %p54, %p55
      %p57 = scmp.ne.s32.totalorder %s49, %s52
      %p58 = scmp.eq.s32.totalorder %s13, 0
      %p59 = por %p57, %p58
      %p60 = scmp.ne.s32.totalorder %s49, %s52
      %p61 = scmp.eq.s32.totalorder %s18, 1
      %p62 = por %p60, %p61
      %p63 = scmp.ne.s32.totalorder %s52, %s53
      %p64 = scmp.eq.s32.totalorder %s18, 0
      %p65 = por %p63, %p64
      %p66 = scmp.ne.s32.totalorder %s52, %s53
      %p67 = scmp.eq.s32.totalorder %s19, 1
      %p68 = por %p66, %p67
      %p70 = scmp.ne.s32.totalorder %s53, %s69
      %p71 = scmp.eq.s32.totalorder %s19, 0
      %p72 = por %p70, %p71
      %p73 = scmp.le.s32.totalorder 1, %s13
      %p74 = scmp.lt.s32.totalorder %s13, 3
      %p75 = pnand %p73, %p74
      %p76 = pneg %p75
      // Predicated region
      $region9: #{causal_conformer_encoder.13} parent=5 // pred_check
        _
      $region10: #{causal_conformer_encoder.13} parent=5 // pred_check_branch
        %78 = sbr.rel (%p75) target = $region12
      $region11: #{causal_conformer_encoder.13} parent=5 // pred_region
        %s79 = ssub.s32 %s13, 1
      $region12: #{causal_conformer_encoder.13} parent=5 // pred_fallthru
        _
      %p80 = scmp.lt.s32.totalorder %s13, 2
      // Predicated region
      $region13: #{causal_conformer_encoder.13} parent=5 // pred_check
        %p81 = pneg %p80
      $region14: #{causal_conformer_encoder.13} parent=5 // pred_check_branch
        %83 = sbr.rel (%p81) target = $region16
      $region15: #{causal_conformer_encoder.13} parent=5 // pred_region
        // Predicated region
        $region17: #{causal_conformer_encoder.13} parent=15 // pred_check
          %p84 = pneg %p33
        $region18: #{causal_conformer_encoder.13} parent=15 // pred_check_branch
          %86 = sbr.rel (%p84) target = $region20
        $region19: #{causal_conformer_encoder.13} parent=15 // pred_region
          %s87 = sand.u32 %s23, 1
          %s88 = scalar_lea.sflag [#allocation3], %s87
          %s89 = sand.u32 %s23, 1
          %s90 = smul.addr %s89, 32
          %s91 = scalar_lea.vmem [#allocation2], %s90
          %s93 = ssub.s32 512, 512
          %94 = vsyncadd %s88, %s93
          %s95 = smul.addr %s13, 4
          %s96 = smul.addr %s95, 128
          %s97 = scalar_lea.hbm %s0, %s96
          %s98 = sshll.u32 %s91, 4
          %s99 = int_to_ptr.vmem [resolvable:$true] %s98
          %104 = dma.hbm_to_vmem [thread:$0]  %s97, 512, %s99, %s88, 128, 128, 8
        $region20: #{causal_conformer_encoder.13} parent=15 // pred_fallthru
          _
      $region16: #{causal_conformer_encoder.13} parent=5 // pred_fallthru
        _
      %p105 = scmp.le.s32.totalorder 1, %s13
      %p106 = scmp.lt.s32.totalorder %s13, 3
      %p107 = pnand %p105, %p106
      %p108 = pneg %p107
      // Predicated region
      $region21: #{causal_conformer_encoder.13} parent=5 // pred_check
        _
      $region22: #{causal_conformer_encoder.13} parent=5 // pred_check_branch
        %110 = sbr.rel (%p107) target = $region24
      $region23: #{causal_conformer_encoder.13} parent=5 // pred_region
        %s111 = ssub.s32 %s13, 1
        %s112 = sand.u32 %s26, 1
        %s113 = scalar_lea.sflag [#allocation3], %s112
        %s114 = sand.u32 %s26, 1
        %s115 = smul.addr %s114, 32
        %s116 = scalar_lea.vmem [#allocation2], %s115
        // Predicated region
        $region25: #{causal_conformer_encoder.13} parent=23 // pred_check
          %p117 = pneg %p39
        $region26: #{causal_conformer_encoder.13} parent=23 // pred_check_branch
          %119 = sbr.rel (%p117) target = $region28
        $region27: #{causal_conformer_encoder.13} parent=23 // pred_region
          %120 = dma.done %s113, 512
        $region28: #{causal_conformer_encoder.13} parent=23 // pred_fallthru
          _
        %s121 = sand.u32 %s26, 1
        %s122 = scalar_lea.sflag [#allocation3], %s121
        %s123 = sand.u32 %s26, 1
        %s124 = smul.addr %s123, 32
        %s125 = scalar_lea.vmem [#allocation2], %s124
        %p126 = pneg %p39
        %p127 = pneg %p36
        %p128 = pneg %p65
        %p129 = pneg %p62
        %s130 = sand.u32 %s52, 1
        %s131 = scalar_lea.sflag [#allocation4], %s130
        %s132 = sand.u32 %s52, 1
        %s133 = smul.addr %s132, 32
        %s134 = scalar_lea.vmem [#allocation5], %s133
        %v135 = vld [vmem:[%s116] sm:$0xff]
        %v136 = vld [vmem:[%s116 + $0x8] sm:$0xff]
        %v137 = vld [vmem:[%s116 + $0x10] sm:$0xff]
        %v138 = vld [vmem:[%s116 + $0x18] sm:$0xff]
        %vm139 = vcmask 130048
        %v140 = vsel %vm139, %v135, 0.0
        %v141 = vsel %vm139, %v136, 0.0
        %v142 = vadd.f32 %v140, %v141
        %v143 = vsel %vm139, %v137, 0.0
        %v144 = vadd.f32 %v142, %v143
        %v145 = vsel %vm139, %v138, 0.0
        %v146 = vadd.f32 %v144, %v145
        %v147 = vrot.slane %v146, 4
        %v148 = vadd.f32 %v146, %v147
        %v149 = vrot.slane %v148, 2
        %v150 = vadd.f32 %v148, %v149
        %v151 = vrot.slane %v150, 1
        %v152 = vadd.f32 %v150, %v151
        %v153 = vmul.f32 %v152, 0.03125
        %v154 = vsub.f32 %v135, %v153
        %v155 = vsub.f32 %v136, %v153
        %v156 = vsub.f32 %v137, %v153
        %v157 = vsub.f32 %v138, %v153
        %v158 = vmul.f32 %v154, %v154
        %v159 = vmul.f32 %v155, %v155
        %v160 = vmul.f32 %v156, %v156
        %v161 = vmul.f32 %v157, %v157
        %v162 = vsel %vm139, %v158, 0.0
        %v163 = vsel %vm139, %v159, 0.0
        %v164 = vadd.f32 %v162, %v163
        %v165 = vsel %vm139, %v160, 0.0
        %v166 = vadd.f32 %v164, %v165
        %v167 = vsel %vm139, %v161, 0.0
        %v168 = vadd.f32 %v166, %v167
        %v169 = vrot.slane %v168, 4
        %v170 = vadd.f32 %v168, %v169
        %v171 = vrot.slane %v170, 2
        %v172 = vadd.f32 %v170, %v171
        %v173 = vrot.slane %v172, 1
        %v174 = vadd.f32 %v172, %v173
        %v175 = vmul.f32 %v174, 0.032258064
        %v176 = vrsqrt.pop %v175
        %v177 = vmul.f32 %v175, %v176
        %vm178 = vcmp.eq.f32.partialorder %v175, inf
        %v179 = vsel %vm178, %v175, %v177
        %vm180 = vcmp.eq.f32.partialorder %v175, 0.0
        %v181 = vand.u32 %v175, 2147483648
        %v182 = vsel %vm180, %v181, %v179
        %v183 = vadd.f32 %v182, 1e-05
        %v184 = vrcp.pop %v183
        %v185 = vmul.f32 1.0, %v184
        %v186 = vmul.f32 %v154, %v185
        %v187 = vmul.f32 %v155, %v185
        %v188 = vmul.f32 %v156, %v185
        %v189 = vmul.f32 %v157, %v185
        %190 = vst.msk [vmem:[%s134] sm:$0xff] %vm139, %v186
        %191 = vst.msk [vmem:[%s134 + $0x8] sm:$0xff] %vm139, %v187
        %192 = vst.msk [vmem:[%s134 + $0x10] sm:$0xff] %vm139, %v188
        %193 = vst.msk [vmem:[%s134 + $0x18] sm:$0xff] %vm139, %v189
        %s194 = sand.u32 %s52, 1
        %s195 = scalar_lea.sflag [#allocation4], %s194
        %s196 = sand.u32 %s52, 1
        %s197 = smul.addr %s196, 32
        %s198 = scalar_lea.vmem [#allocation5], %s197
        // Predicated region
        $region29: #{causal_conformer_encoder.13} parent=23 // pred_check
          %p199 = pneg %p62
        $region30: #{causal_conformer_encoder.13} parent=23 // pred_check_branch
          %201 = sbr.rel (%p199) target = $region32
        $region31: #{causal_conformer_encoder.13} parent=23 // pred_region
          %s203 = ssub.s32 512, 512
          %204 = vsyncadd %s195, %s203
          %s205 = smul.addr %s18, 4
          %s206 = smul.addr %s205, 128
          %s207 = scalar_lea.hbm %s1, %s206
          %s208 = sshll.u32 %s198, 4
          %s209 = int_to_ptr.vmem [resolvable:$true] %s208
          %214 = dma.vmem_to_hbm [thread:$0]  %s209, 512, %s207, %s195, 128, 128, 8
        $region32: #{causal_conformer_encoder.13} parent=23 // pred_fallthru
          _
      $region24: #{causal_conformer_encoder.13} parent=5 // pred_fallthru
        _
      %p215 = scmp.le.s32.totalorder 2, %s13
      // Predicated region
      $region33: #{causal_conformer_encoder.13} parent=5 // pred_check
        %p216 = pneg %p215
      $region34: #{causal_conformer_encoder.13} parent=5 // pred_check_branch
        %218 = sbr.rel (%p216) target = $region36
      $region35: #{causal_conformer_encoder.13} parent=5 // pred_region
        %s219 = ssub.s32 %s13, 2
        // Predicated region
        $region37: #{causal_conformer_encoder.13} parent=35 // pred_check
          %p220 = pneg %p68
        $region38: #{causal_conformer_encoder.13} parent=35 // pred_check_branch
          %222 = sbr.rel (%p220) target = $region40
        $region39: #{causal_conformer_encoder.13} parent=35 // pred_region
          %s223 = sand.u32 %s53, 1
          %s224 = scalar_lea.sflag [#allocation4], %s223
          %s225 = sand.u32 %s53, 1
          %s226 = smul.addr %s225, 32
          %s227 = scalar_lea.vmem [#allocation5], %s226
          %228 = dma.done %s224, 512
        $region40: #{causal_conformer_encoder.13} parent=35 // pred_fallthru
          _
      $region36: #{causal_conformer_encoder.13} parent=5 // pred_fallthru
        _
    $region6: #{causal_conformer_encoder.13} parent=1 // loop_footer
      %s17 = sadd.s32 1, %s13
    $region7: #{causal_conformer_encoder.13} parent=1 // loop_footer_branch
      %12 = sbr.rel target = $region3
    $region8: #{causal_conformer_encoder.13} parent=1 // loop_exit
      _
    %229 = vsyncpa [#allocation3], 1
    %s230 = scalar_lea.sflag [#allocation3], 1
    %231 = vsyncpa %s230, 1
    %232 = vsyncpa [#allocation4], 1
    %s233 = scalar_lea.sflag [#allocation4], 1
    %234 = vsyncpa %s233, 1

// kernel: causal_conformer_encoder.14
$region0: #{causal_conformer_encoder.14}
  #allocation0 [shape = 'u32[]', space=smem, size = 0x4, offset = 0x4, fixed_abs, tag = 'smem constant byte address 0x4 - core index']
  #allocation1 [shape = 'u32[144,128]{1,0:T(1,128)}', space=vmem, size = 0x12000, scoped, tag = 'internal scratch']
  %s0 = inlined_call_operand.hbm [shape: f32[210,9], index: 0, kind: input, shape index: {}]
  %s1 = inlined_call_operand.hbm [shape: bf16[9,16], index: 1, kind: input, shape index: {}]
  %s2 = inlined_call_operand.hbm [shape: f32[1,16], index: 2, kind: input, shape index: {}]
  %s3 = inlined_call_operand.hbm [shape: f32[210,16], index: 3, kind: output, shape index: {}]
  %s4 = sld [smem:[#allocation0]]
  $region57: #{causal_conformer_encoder.14} parent=0
    _
  %s6 = ssub.s32 1, %s4
  %s7 = scalar_select 0, %s6, %s4
  $region1: #{causal_conformer_encoder.14} parent=0
    #allocation2 [shape = 'u8[114688]{0}', space=vmem, size = 0x1c000, scoped, tag = 'input window, operand 0']
    #allocation3 [shape = 's32[2]{0}', space=sflag, size = 0x8, scoped, tag = 'scoped memory for causal_conformer_encoder.14']
    #allocation4 [shape = 's32[2]{0}', space=sflag, size = 0x8, scoped, tag = 'scoped memory for causal_conformer_encoder.14']
    #allocation5 [shape = 'u8[4096]{0}', space=vmem, size = 0x1000, scoped, tag = 'input window, operand 1, single buffered']
    #allocation6 [shape = 's32[1]{0}', space=sflag, size = 0x4, scoped, tag = 'scoped memory for causal_conformer_encoder.14']
    #allocation7 [shape = 'u8[512]{0}', space=vmem, size = 0x400, scoped, tag = 'input window, operand 2, single buffered']
    #allocation8 [shape = 'u8[114688]{0}', space=vmem, size = 0x1c000, scoped, tag = 'output window, operand 0']
    %8 = vsyncpa [#allocation3], 0
    %s9 = scalar_lea.sflag [#allocation3], 1
    %10 = vsyncpa %s9, 0
    %11 = vsyncpa [#allocation6], 0
    %12 = vsyncpa [#allocation4], 0
    %s13 = scalar_lea.sflag [#allocation4], 1
    %14 = vsyncpa %s13, 0
    loop: start=0, step=1, limit=4
    $region2: #{causal_conformer_encoder.14} parent=1 // loop_pre_header
      _
    $region3: #{causal_conformer_encoder.14} parent=1 // loop_header
      %s16 = sphi 0, %s20
      %p17 = scmp.ge.s32.totalorder %s16, 4
      %s26 = sphi 0, %s28
      %s29 = sphi 0, %s26
      %s30 = sphi 0, %s29
      %s46 = sphi 0, %s30
      %s50 = sphi 0, %s50
      %s52 = sphi 0, %s50
      %s53 = sphi 0, %s52
      %s67 = sphi 0, %s53
      %s71 = sphi 0, %s71
      %s73 = sphi 0, %s71
      %s74 = sphi 0, %s73
      %s88 = sphi 0, %s74
      %s94 = sphi 0, %s96
      %s97 = sphi 0, %s94
      %s98 = sphi 0, %s97
      %s114 = sphi 0, %s98
    $region4: #{causal_conformer_encoder.14} parent=1 // loop_header_branch
      %19 = sbr.rel (%p17) target = $region8
    $region5: #{causal_conformer_encoder.14} parent=1 // loop_body
      %s21 = ssub.s32 %s16, 1
      %s22 = ssub.s32 %s16, 2
      %s23 = sadd.s32 %s16, 1
      %s24 = ssub.s32 %s16, %s23
      %p25 = scmp.eq.s32.totalorder %s24, 0
      %s27 = sadd.s32 %s26, 1
      %s28 = scalar_select %p25, %s26, %s27
      %p31 = pneg %p25
      %p32 = scmp.eq.s32.totalorder %s16, 1
      %p33 = por %p31, %p32
      %p34 = scmp.ne.s32.totalorder %s26, %s29
      %p35 = scmp.eq.s32.totalorder %s16, 0
      %p36 = por %p34, %p35
      %p37 = scmp.ne.s32.totalorder %s26, %s29
      %p38 = scmp.eq.s32.totalorder %s21, 1
      %p39 = por %p37, %p38
      %p40 = scmp.ne.s32.totalorder %s29, %s30
      %p41 = scmp.eq.s32.totalorder %s21, 0
      %p42 = por %p40, %p41
      %p43 = scmp.ne.s32.totalorder %s29, %s30
      %p44 = scmp.eq.s32.totalorder %s22, 1
      %p45 = por %p43, %p44
      %p47 = scmp.ne.s32.totalorder %s30, %s46
      %p48 = scmp.eq.s32.totalorder %s22, 0
      %p49 = por %p47, %p48
      %s51 = sadd.s32 %s50, 1
      %p54 = scmp.eq.s32.totalorder %s16, 1
      %p55 = scmp.ne.s32.totalorder %s50, %s52
      %p56 = scmp.eq.s32.totalorder %s16, 0
      %p57 = por %p55, %p56
      %p58 = scmp.ne.s32.totalorder %s50, %s52
      %p59 = scmp.eq.s32.totalorder %s21, 1
      %p60 = por %p58, %p59
      %p61 = scmp.ne.s32.totalorder %s52, %s53
      %p62 = scmp.eq.s32.totalorder %s21, 0
      %p63 = por %p61, %p62
      %p64 = scmp.ne.s32.totalorder %s52, %s53
      %p65 = scmp.eq.s32.totalorder %s22, 1
      %p66 = por %p64, %p65
      %p68 = scmp.ne.s32.totalorder %s53, %s67
      %p69 = scmp.eq.s32.totalorder %s22, 0
      %p70 = por %p68, %p69
      %s72 = sadd.s32 %s71, 1
      %p75 = scmp.eq.s32.totalorder %s16, 1
      %p76 = scmp.ne.s32.totalorder %s71, %s73
      %p77 = scmp.eq.s32.totalorder %s16, 0
      %p78 = por %p76, %p77
      %p79 = scmp.ne.s32.totalorder %s71, %s73
      %p80 = scmp.eq.s32.totalorder %s21, 1
      %p81 = por %p79, %p80
      %p82 = scmp.ne.s32.totalorder %s73, %s74
      %p83 = scmp.eq.s32.totalorder %s21, 0
      %p84 = por %p82, %p83
      %p85 = scmp.ne.s32.totalorder %s73, %s74
      %p86 = scmp.eq.s32.totalorder %s22, 1
      %p87 = por %p85, %p86
      %p89 = scmp.ne.s32.totalorder %s74, %s88
      %p90 = scmp.eq.s32.totalorder %s22, 0
      %p91 = por %p89, %p90
      %s92 = ssub.s32 %s16, %s23
      %p93 = scmp.eq.s32.totalorder %s92, 0
      %s95 = sadd.s32 %s94, 1
      %s96 = scalar_select %p93, %s94, %s95
      %p99 = pneg %p93
      %p100 = scmp.eq.s32.totalorder %s16, 1
      %p101 = por %p99, %p100
      %p102 = scmp.ne.s32.totalorder %s94, %s97
      %p103 = scmp.eq.s32.totalorder %s16, 0
      %p104 = por %p102, %p103
      %p105 = scmp.ne.s32.totalorder %s94, %s97
      %p106 = scmp.eq.s32.totalorder %s21, 1
      %p107 = por %p105, %p106
      %p108 = scmp.ne.s32.totalorder %s97, %s98
      %p109 = scmp.eq.s32.totalorder %s21, 0
      %p110 = por %p108, %p109
      %p111 = scmp.ne.s32.totalorder %s97, %s98
      %p112 = scmp.eq.s32.totalorder %s22, 1
      %p113 = por %p111, %p112
      %p115 = scmp.ne.s32.totalorder %s98, %s114
      %p116 = scmp.eq.s32.totalorder %s22, 0
      %p117 = por %p115, %p116
      %p118 = scmp.le.s32.totalorder 1, %s16
      %p119 = scmp.lt.s32.totalorder %s16, 3
      %p120 = pnand %p118, %p119
      %p121 = pneg %p120
      // Predicated region
      $region9: #{causal_conformer_encoder.14} parent=5 // pred_check
        _
      $region10: #{causal_conformer_encoder.14} parent=5 // pred_check_branch
        %123 = sbr.rel (%p120) target = $region12
      $region11: #{causal_conformer_encoder.14} parent=5 // pred_region
        %s124 = ssub.s32 %s16, 1
        // Predicated region
        $region13: #{causal_conformer_encoder.14} parent=11 // pred_check
          %p125 = pneg %p63
        $region14: #{causal_conformer_encoder.14} parent=11 // pred_check_branch
          %127 = sbr.rel (%p125) target = $region16
        $region15: #{causal_conformer_encoder.14} parent=11 // pred_region
          %s129 = ssub.s32 128, 128
          %130 = vsyncadd [#allocation6], %s129
          %s131 = sshll.u32 [#allocation5], 4
          %s132 = int_to_ptr.vmem [resolvable:$true] %s131
          %137 = dma.hbm_to_vmem [thread:$0]  %s1, 128, %s132, [#allocation6], 64, 64, 4
        $region16: #{causal_conformer_encoder.14} parent=11 // pred_fallthru
          _
        // Predicated region
        $region17: #{causal_conformer_encoder.14} parent=11 // pred_check
          %p138 = pneg %p84
        $region18: #{causal_conformer_encoder.14} parent=11 // pred_check_branch
          %140 = sbr.rel (%p138) target = $region20
        $region19: #{causal_conformer_encoder.14} parent=11 // pred_region
          %s142 = ssub.s32 16, 16
          %143 = vsyncadd [#allocation6], %s142
          %s145 = sshll.u32 [#allocation7], 4
          %s146 = int_to_ptr.vmem [resolvable:$true] %s145
          %148 = dma.hbm_to_vmem [thread:$0]  %s2, 16, %s146, [#allocation6]
        $region20: #{causal_conformer_encoder.14} parent=11 // pred_fallthru
          _
      $region12: #{causal_conformer_encoder.14} parent=5 // pred_fallthru
        _
      %p149 = scmp.lt.s32.totalorder %s16, 2
      // Predicated region
      $region21: #{causal_conformer_encoder.14} parent=5 // pred_check
        %p150 = pneg %p149
      $region22: #{causal_conformer_encoder.14} parent=5 // pred_check_branch
        %152 = sbr.rel (%p150) target = $region24
      $region23: #{causal_conformer_encoder.14} parent=5 // pred_region
        // Predicated region
        $region25: #{causal_conformer_encoder.14} parent=23 // pred_check
          %p153 = pneg %p36
        $region26: #{causal_conformer_encoder.14} parent=23 // pred_check_branch
          %155 = sbr.rel (%p153) target = $region28
        $region27: #{causal_conformer_encoder.14} parent=23 // pred_region
          %s156 = sand.u32 %s26, 1
          %s157 = scalar_lea.sflag [#allocation3], %s156
          %s158 = sand.u32 %s26, 1
          %s159 = smul.addr %s158, 112
          %s160 = scalar_lea.vmem [#allocation2], %s159
          %s161 = smul.u32 14, %s16
          %s162 = ssub.s32 27, %s161
          %p163 = scmp.lt.s32.totalorder %s162, 14
          %s164 = scalar_select %p163, %s162, 14
          %s165 = smul.u32 128, %s164
          %s167 = ssub.s32 1792, %s165
          %168 = vsyncadd %s157, %s167
          %p169 = scmp.ne.s32.totalorder 0, %s165
          %s170 = smul.addr %s161, 128
          %s171 = scalar_lea.hbm %s0, %s170
          %s172 = smul.u32 8, %s164
          %s173 = sshll.u32 %s160, 4
          %s174 = int_to_ptr.vmem [resolvable:$true] %s173
          %s175 = sshll.u32 %s172, 4
          %179 = dma.hbm_to_vmem [thread:$0]  (%p169), %s171, %s175, %s174, %s157, 128, 128, 8
        $region28: #{causal_conformer_encoder.14} parent=23 // pred_fallthru
          _
      $region24: #{causal_conformer_encoder.14} parent=5 // pred_fallthru
        _
      %p180 = scmp.le.s32.totalorder 1, %s16
      %p181 = scmp.lt.s32.totalorder %s16, 3
      %p182 = pnand %p180, %p181
      %p183 = pneg %p182
      // Predicated region
      $region29: #{causal_conformer_encoder.14} parent=5 // pred_check
        _
      $region30: #{causal_conformer_encoder.14} parent=5 // pred_check_branch
        %185 = sbr.rel (%p182) target = $region32
      $region31: #{causal_conformer_encoder.14} parent=5 // pred_region
        %s186 = ssub.s32 %s16, 1
        %s187 = sand.u32 %s29, 1
        %s188 = scalar_lea.sflag [#allocation3], %s187
        %s189 = sand.u32 %s29, 1
        %s190 = smul.addr %s189, 112
        %s191 = scalar_lea.vmem [#allocation2], %s190
        // Predicated region
        $region33: #{causal_conformer_encoder.14} parent=31 // pred_check
          %p192 = pneg %p42
        $region34: #{causal_conformer_encoder.14} parent=31 // pred_check_branch
          %194 = sbr.rel (%p192) target = $region36
        $region35: #{causal_conformer_encoder.14} parent=31 // pred_region
          %195 = dma.done %s188, 1792
        $region36: #{causal_conformer_encoder.14} parent=31 // pred_fallthru
          _
        // Predicated region
        $region37: #{causal_conformer_encoder.14} parent=31 // pred_check
          %p196 = pneg %p63
        $region38: #{causal_conformer_encoder.14} parent=31 // pred_check_branch
          %198 = sbr.rel (%p196) target = $region40
        $region39: #{causal_conformer_encoder.14} parent=31 // pred_region
          %199 = dma.done [#allocation6], 128
        $region40: #{causal_conformer_encoder.14} parent=31 // pred_fallthru
          _
        // Predicated region
        $region41: #{causal_conformer_encoder.14} parent=31 // pred_check
          %p200 = pneg %p84
        $region42: #{causal_conformer_encoder.14} parent=31 // pred_check_branch
          %202 = sbr.rel (%p200) target = $region44
        $region43: #{causal_conformer_encoder.14} parent=31 // pred_region
          %203 = dma.done [#allocation6], 16
        $region44: #{causal_conformer_encoder.14} parent=31 // pred_fallthru
          _
        %s204 = sand.u32 %s29, 1
        %s205 = scalar_lea.sflag [#allocation3], %s204
        %s206 = sand.u32 %s29, 1
        %s207 = smul.addr %s206, 112
        %s208 = scalar_lea.vmem [#allocation2], %s207
        %p209 = pneg %p42
        %p210 = pneg %p39
        %p211 = pneg %p63
        %p212 = pneg %p60
        %p213 = pneg %p84
        %p214 = pneg %p81
        %p215 = pneg %p110
        %p216 = pneg %p107
        %s217 = sand.u32 %s97, 1
        %s218 = scalar_lea.sflag [#allocation4], %s217
        %s219 = sand.u32 %s97, 1
        %s220 = smul.addr %s219, 112
        %s221 = scalar_lea.vmem [#allocation8], %s220
        %s222 = smul.u32 14, %s21
        %s223 = ssub.s32 27, %s222
        %p224 = scmp.lt.s32.totalorder %s223, 14
        %s225 = scalar_select %p224, %s223, 14
        %s226 = smul.u32 128, %s225
        %s227 = smul.u32 14, %s21
        %s228 = ssub.s32 27, %s227
        %p229 = scmp.lt.s32.totalorder %s228, 14
        %s230 = scalar_select %p229, %s228, 14
        %s231 = smul.u32 128, %s230
        %v233 = vld [vmem:[%s191] sm:$0xff]
        %v234 = vld [vmem:[%s191 + $0x8] sm:$0xff]
        %v235 = vld [vmem:[%s191 + $0x10] sm:$0xff]
        %v236 = vld [vmem:[%s191 + $0x18] sm:$0xff]
        %v237 = vld [vmem:[%s191 + $0x20] sm:$0xff]
        %v238 = vld [vmem:[%s191 + $0x28] sm:$0xff]
        %v239 = vld [vmem:[%s191 + $0x30] sm:$0xff]
        %v240 = vld [vmem:[%s191 + $0x38] sm:$0xff]
        %v241 = vld [vmem:[%s191 + $0x40] sm:$0xff]
        %v242 = vld [vmem:[%s191 + $0x48] sm:$0xff]
        %v243 = vld [vmem:[%s191 + $0x50] sm:$0xff]
        %v244 = vld [vmem:[%s191 + $0x58] sm:$0xff]
        %v245 = vld [vmem:[%s191 + $0x60] sm:$0xff]
        %v246 = vld [vmem:[%s191 + $0x68] sm:$0xff]
        %v247 = vld [vmem:[#allocation5] sm:$0xf]
        %v248 = vld [vmem:[#allocation5 + $0x4] sm:$0x1]
        %v249 = vpack.c.bf16 %v234, %v233
        %v250 = vpack.c.bf16 %v236, %v235
        %v251 = vpack.c.bf16 %v238, %v237
        %v252 = vpack.c.bf16 %v240, %v239
        %v253 = vpack.c.bf16 %v242, %v241
        %v254 = vpack.c.bf16 %v244, %v243
        %v255 = vpack.c.bf16 %v246, %v245
        %v256 = vld [vmem:[#allocation7] sm:$0x1]
        %v258 = vlaneseq
        %v259 = vshrl.u32 %v258, 7
        %v260 = vsub.s32 0, %v259
        %v261 = vrot.slane %v256, %v260
        %v265 = vunpack.c.l.b16 %v247
        %v266 = vunpack.c.l.b16 %v248
        %v267 = vpack.c.b16 %v266, %v265
        %vm268 = vcmask 72704
        %v270 = vsel %vm268, %v249, 0
        %v273 = vsel %vm268, %v250, 0
        %v276 = vsel %vm268, %v251, 0
        %v279 = vsel %vm268, %v252, 0
        %v282 = vsel %vm268, %v253, 0
        %v285 = vsel %vm268, %v254, 0
        %v288 = vsel %vm268, %v255, 0
        %vm290 = vcmask 1043456
        %vm291 = vcmask 1044480
        %v292 = vsel %vm290, 4294967295, 65535
        %v293 = vsel %vm291, %v292, 0
        %v295 = vand.u32 %v267, %v293
        %297 = vmatprep.subr.bf16.mxu0 0
        %298 = vmatpush1.bf16.msra.mxu0 %v295
        %299 = vmatprep.subr.bf16.mxu0 0
        %300 = vmatpush1.bf16.msra.mxu0 0
        %301 = vmatprep.subr.bf16.mxu0 0
        %302 = vmatpush1.bf16.msra.mxu0 0
        %303 = vmatprep.subr.bf16.mxu0 0
        %304 = vmatpush1.bf16.msra.mxu0 0
        %305 = vmatprep.subr.bf16.mxu0 0
        %306 = vmatpush1.bf16.msra.mxu0 0
        %307 = vmatprep.subr.bf16.mxu0 0
        %308 = vmatpush1.bf16.msra.mxu0 0
        %309 = vmatprep.subr.bf16.mxu0 0
        %310 = vmatpush1.bf16.msra.mxu0 0
        %311 = vmatprep.subr.bf16.mxu0 0
        %312 = vmatpush1.bf16.msra.mxu0 0
        %313 = vmatprep.subr.bf16.mxu0 0
        %314 = vmatpush1.bf16.msra.mxu0 0
        %315 = vmatprep.subr.bf16.mxu0 0
        %316 = vmatpush1.bf16.msra.mxu0 0
        %317 = vmatprep.subr.bf16.mxu0 0
        %318 = vmatpush1.bf16.msra.mxu0 0
        %319 = vmatprep.subr.bf16.mxu0 0
        %320 = vmatpush1.bf16.msra.mxu0 0
        %321 = vmatprep.subr.bf16.mxu0 0
        %322 = vmatpush1.bf16.msra.mxu0 0
        %323 = vmatprep.subr.bf16.mxu0 0
        %324 = vmatpush1.bf16.msra.mxu0 0
        %325 = vmatprep.subr.bf16.mxu0 0
        %326 = vmatpush1.bf16.msra.mxu0 0
        %327 = vmatprep.subr.bf16.mxu0 0
        %328 = vmatpush1.bf16.msra.mxu0 0
        %329 = vmatprep.mubr.bf16.mxu0 0
        %330 = vmatmul.mubr.bf16.gmra.mrb[0].mxu0 %v270
        %v331 = vpop.f32.mrb[0].mxu0
        %v332 = vadd.f32 %v261, %v331
        %v333 = vpop.f32.mrb[0].mxu0
        %v334 = vpop.f32.mrb[0].mxu0
        %v335 = vadd.f32 %v261, %v334
        %v336 = vpop.f32.mrb[0].mxu0
        %337 = vmatprep.mubr.bf16.mxu0 0
        %338 = vmatmul.mubr.bf16.gmra.mrb[0].mxu0 %v273
        %v339 = vpop.f32.mrb[0].mxu0
        %v340 = vadd.f32 %v261, %v339
        %v341 = vpop.f32.mrb[0].mxu0
        %v342 = vpop.f32.mrb[0].mxu0
        %v343 = vadd.f32 %v261, %v342
        %v344 = vpop.f32.mrb[0].mxu0
        %345 = vmatprep.mubr.bf16.mxu0 0
        %346 = vmatmul.mubr.bf16.gmra.mrb[0].mxu0 %v276
        %v347 = vpop.f32.mrb[0].mxu0
        %v348 = vadd.f32 %v261, %v347
        %v349 = vpop.f32.mrb[0].mxu0
        %v350 = vpop.f32.mrb[0].mxu0
        %v351 = vadd.f32 %v261, %v350
        %v352 = vpop.f32.mrb[0].mxu0
        %353 = vmatprep.mubr.bf16.mxu0 0
        %354 = vmatmul.mubr.bf16.gmra.mrb[0].mxu0 %v279
        %v355 = vpop.f32.mrb[0].mxu0
        %v356 = vadd.f32 %v261, %v355
        %v357 = vpop.f32.mrb[0].mxu0
        %v358 = vpop.f32.mrb[0].mxu0
        %v359 = vadd.f32 %v261, %v358
        %v360 = vpop.f32.mrb[0].mxu0
        %361 = vmatprep.mubr.bf16.mxu0 0
        %362 = vmatmul.mubr.bf16.gmra.mrb[0].mxu0 %v282
        %v363 = vpop.f32.mrb[0].mxu0
        %v364 = vadd.f32 %v261, %v363
        %v365 = vpop.f32.mrb[0].mxu0
        %v366 = vpop.f32.mrb[0].mxu0
        %v367 = vadd.f32 %v261, %v366
        %v368 = vpop.f32.mrb[0].mxu0
        %369 = vmatprep.mubr.bf16.mxu0 0
        %370 = vmatmul.mubr.bf16.gmra.mrb[0].mxu0 %v285
        %v371 = vpop.f32.mrb[0].mxu0
        %v372 = vadd.f32 %v261, %v371
        %v373 = vpop.f32.mrb[0].mxu0
        %v374 = vpop.f32.mrb[0].mxu0
        %v375 = vadd.f32 %v261, %v374
        %v376 = vpop.f32.mrb[0].mxu0
        %377 = vmatprep.mubr.bf16.mxu0 0
        %378 = vmatmul.mubr.bf16.gmra.mrb[0].mxu0 %v288
        %v379 = vpop.f32.mrb[0].mxu0
        %v380 = vadd.f32 %v261, %v379
        %v381 = vpop.f32.mrb[0].mxu0
        %v382 = vpop.f32.mrb[0].mxu0
        %v383 = vadd.f32 %v261, %v382
        %v384 = vpop.f32.mrb[0].mxu0
        %385 = vdwg.mxu0
        %v386 = vmax.f32 %v332, 0.0
        %v387 = vmax.f32 %v335, 0.0
        %v388 = vmax.f32 %v340, 0.0
        %v389 = vmax.f32 %v343, 0.0
        %v390 = vmax.f32 %v348, 0.0
        %v391 = vmax.f32 %v351, 0.0
        %v392 = vmax.f32 %v356, 0.0
        %v393 = vmax.f32 %v359, 0.0
        %v394 = vmax.f32 %v364, 0.0
        %v395 = vmax.f32 %v367, 0.0
        %v396 = vmax.f32 %v372, 0.0
        %v397 = vmax.f32 %v375, 0.0
        %v398 = vmax.f32 %v380, 0.0
        %v399 = vmax.f32 %v383, 0.0
        %vm400 = vcmask 130048
        %401 = vst.msk [vmem:[%s221] sm:$0xff] %vm400, %v386
        %402 = vst.msk [vmem:[%s221 + $0x8] sm:$0xff] %vm400, %v387
        %403 = vst.msk [vmem:[%s221 + $0x10] sm:$0xff] %vm400, %v388
        %404 = vst.msk [vmem:[%s221 + $0x18] sm:$0xff] %vm400, %v389
        %405 = vst.msk [vmem:[%s221 + $0x20] sm:$0xff] %vm400, %v390
        %406 = vst.msk [vmem:[%s221 + $0x28] sm:$0xff] %vm400, %v391
        %407 = vst.msk [vmem:[%s221 + $0x30] sm:$0xff] %vm400, %v392
        %408 = vst.msk [vmem:[%s221 + $0x38] sm:$0xff] %vm400, %v393
        %409 = vst.msk [vmem:[%s221 + $0x40] sm:$0xff] %vm400, %v394
        %410 = vst.msk [vmem:[%s221 + $0x48] sm:$0xff] %vm400, %v395
        %411 = vst.msk [vmem:[%s221 + $0x50] sm:$0xff] %vm400, %v396
        %412 = vst.msk [vmem:[%s221 + $0x58] sm:$0xff] %vm400, %v397
        %413 = vst.msk [vmem:[%s221 + $0x60] sm:$0xff] %vm400, %v398
        %414 = vst.msk [vmem:[%s221 + $0x68] sm:$0xff] %vm400, %v399
        %s415 = sand.u32 %s97, 1
        %s416 = scalar_lea.sflag [#allocation4], %s415
        %s417 = sand.u32 %s97, 1
        %s418 = smul.addr %s417, 112
        %s419 = scalar_lea.vmem [#allocation8], %s418
        // Predicated region
        $region45: #{causal_conformer_encoder.14} parent=31 // pred_check
          %p420 = pneg %p107
        $region46: #{causal_conformer_encoder.14} parent=31 // pred_check_branch
          %422 = sbr.rel (%p420) target = $region48
        $region47: #{causal_conformer_encoder.14} parent=31 // pred_region
          %s423 = smul.u32 14, %s21
          %s424 = ssub.s32 27, %s423
          %p425 = scmp.lt.s32.totalorder %s424, 14
          %s426 = scalar_select %p425, %s424, 14
          %s427 = smul.u32 128, %s426
          %s429 = ssub.s32 1792, %s427
          %430 = vsyncadd %s416, %s429
          %p431 = scmp.ne.s32.totalorder 0, %s427
          %s432 = smul.addr %s423, 128
          %s433 = scalar_lea.hbm %s3, %s432
          %s434 = smul.u32 8, %s426
          %s435 = sshll.u32 %s419, 4
          %s436 = int_to_ptr.vmem [resolvable:$true] %s435
          %s437 = sshll.u32 %s434, 4
          %441 = dma.vmem_to_hbm [thread:$0]  (%p431), %s436, %s437, %s433, %s416, 128, 128, 8
        $region48: #{causal_conformer_encoder.14} parent=31 // pred_fallthru
          _
      $region32: #{causal_conformer_encoder.14} parent=5 // pred_fallthru
        _
      %p442 = scmp.le.s32.totalorder 2, %s16
      // Predicated region
      $region49: #{causal_conformer_encoder.14} parent=5 // pred_check
        %p443 = pneg %p442
      $region50: #{causal_conformer_encoder.14} parent=5 // pred_check_branch
        %445 = sbr.rel (%p443) target = $region52
      $region51: #{causal_conformer_encoder.14} parent=5 // pred_region
        %s446 = ssub.s32 %s16, 2
        // Predicated region
        $region53: #{causal_conformer_encoder.14} parent=51 // pred_check
          %p447 = pneg %p113
        $region54: #{causal_conformer_encoder.14} parent=51 // pred_check_branch
          %449 = sbr.rel (%p447) target = $region56
        $region55: #{causal_conformer_encoder.14} parent=51 // pred_region
          %s450 = sand.u32 %s98, 1
          %s451 = scalar_lea.sflag [#allocation4], %s450
          %s452 = sand.u32 %s98, 1
          %s453 = smul.addr %s452, 112
          %s454 = scalar_lea.vmem [#allocation8], %s453
          %455 = dma.done %s451, 1792
        $region56: #{causal_conformer_encoder.14} parent=51 // pred_fallthru
          _
      $region52: #{causal_conformer_encoder.14} parent=5 // pred_fallthru
        _
    $region6: #{causal_conformer_encoder.14} parent=1 // loop_footer
      %s20 = sadd.s32 1, %s16
    $region7: #{causal_conformer_encoder.14} parent=1 // loop_footer_branch
      %15 = sbr.rel target = $region3
    $region8: #{causal_conformer_encoder.14} parent=1 // loop_exit
      _
    %456 = vsyncpa [#allocation3], 1
    %s457 = scalar_lea.sflag [#allocation3], 1
    %458 = vsyncpa %s457, 1
    %459 = vsyncpa [#allocation6], 1
    %460 = vsyncpa [#allocation4], 1
    %s461 = scalar_lea.sflag [#allocation4], 1
    %462 = vsyncpa %s461, 1

// kernel: causal_conformer_encoder.15
$region0: #{causal_conformer_encoder.15}
  #allocation0 [shape = 'u32[]', space=smem, size = 0x4, offset = 0x4, fixed_abs, tag = 'smem constant byte address 0x4 - core index']
  #allocation1 [shape = 'u32[144,128]{1,0:T(1,128)}', space=vmem, size = 0x12000, scoped, tag = 'internal scratch']
  %s0 = inlined_call_operand.hbm [shape: f32[42,144], index: 0, kind: input, shape index: {}]
  %s1 = inlined_call_operand.hbm [shape: bf16[144,16], index: 1, kind: input, shape index: {}]
  %s2 = inlined_call_operand.hbm [shape: f32[1,16], index: 2, kind: input, shape index: {}]
  %s3 = inlined_call_operand.hbm [shape: f32[42,16], index: 3, kind: output, shape index: {}]
  %s4 = sld [smem:[#allocation0]]
  $region57: #{causal_conformer_encoder.15} parent=0
    _
  %s6 = ssub.s32 1, %s4
  %s7 = scalar_select 0, %s6, %s4
  $region1: #{causal_conformer_encoder.15} parent=0
    #allocation2 [shape = 'u8[49152]{0}', space=vmem, size = 0xc000, scoped, tag = 'input window, operand 0']
    #allocation3 [shape = 's32[2]{0}', space=sflag, size = 0x8, scoped, tag = 'scoped memory for causal_conformer_encoder.15']
    #allocation4 [shape = 's32[2]{0}', space=sflag, size = 0x8, scoped, tag = 'scoped memory for causal_conformer_encoder.15']
    #allocation5 [shape = 'u8[36864]{0}', space=vmem, size = 0x9000, scoped, tag = 'input window, operand 1, single buffered']
    #allocation6 [shape = 's32[1]{0}', space=sflag, size = 0x4, scoped, tag = 'scoped memory for causal_conformer_encoder.15']
    #allocation7 [shape = 'u8[512]{0}', space=vmem, size = 0x400, scoped, tag = 'input window, operand 2, single buffered']
    #allocation8 [shape = 'u8[24576]{0}', space=vmem, size = 0x6000, scoped, tag = 'output window, operand 0']
    %8 = vsyncpa [#allocation3], 0
    %s9 = scalar_lea.sflag [#allocation3], 1
    %10 = vsyncpa %s9, 0
    %11 = vsyncpa [#allocation6], 0
    %12 = vsyncpa [#allocation4], 0
    %s13 = scalar_lea.sflag [#allocation4], 1
    %14 = vsyncpa %s13, 0
    loop: start=0, step=1, limit=4
    $region2: #{causal_conformer_encoder.15} parent=1 // loop_pre_header
      _
    $region3: #{causal_conformer_encoder.15} parent=1 // loop_header
      %s16 = sphi 0, %s20
      %p17 = scmp.ge.s32.totalorder %s16, 4
      %s26 = sphi 0, %s28
      %s29 = sphi 0, %s26
      %s30 = sphi 0, %s29
      %s46 = sphi 0, %s30
      %s50 = sphi 0, %s50
      %s52 = sphi 0, %s50
      %s53 = sphi 0, %s52
      %s67 = sphi 0, %s53
      %s71 = sphi 0, %s71
      %s73 = sphi 0, %s71
      %s74 = sphi 0, %s73
      %s88 = sphi 0, %s74
      %s94 = sphi 0, %s96
      %s97 = sphi 0, %s94
      %s98 = sphi 0, %s97
      %s114 = sphi 0, %s98
    $region4: #{causal_conformer_encoder.15} parent=1 // loop_header_branch
      %19 = sbr.rel (%p17) target = $region8
    $region5: #{causal_conformer_encoder.15} parent=1 // loop_body
      %s21 = ssub.s32 %s16, 1
      %s22 = ssub.s32 %s16, 2
      %s23 = sadd.s32 %s16, 1
      %s24 = ssub.s32 %s16, %s23
      %p25 = scmp.eq.s32.totalorder %s24, 0
      %s27 = sadd.s32 %s26, 1
      %s28 = scalar_select %p25, %s26, %s27
      %p31 = pneg %p25
      %p32 = scmp.eq.s32.totalorder %s16, 1
      %p33 = por %p31, %p32
      %p34 = scmp.ne.s32.totalorder %s26, %s29
      %p35 = scmp.eq.s32.totalorder %s16, 0
      %p36 = por %p34, %p35
      %p37 = scmp.ne.s32.totalorder %s26, %s29
      %p38 = scmp.eq.s32.totalorder %s21, 1
      %p39 = por %p37, %p38
      %p40 = scmp.ne.s32.totalorder %s29, %s30
      %p41 = scmp.eq.s32.totalorder %s21, 0
      %p42 = por %p40, %p41
      %p43 = scmp.ne.s32.totalorder %s29, %s30
      %p44 = scmp.eq.s32.totalorder %s22, 1
      %p45 = por %p43, %p44
      %p47 = scmp.ne.s32.totalorder %s30, %s46
      %p48 = scmp.eq.s32.totalorder %s22, 0
      %p49 = por %p47, %p48
      %s51 = sadd.s32 %s50, 1
      %p54 = scmp.eq.s32.totalorder %s16, 1
      %p55 = scmp.ne.s32.totalorder %s50, %s52
      %p56 = scmp.eq.s32.totalorder %s16, 0
      %p57 = por %p55, %p56
      %p58 = scmp.ne.s32.totalorder %s50, %s52
      %p59 = scmp.eq.s32.totalorder %s21, 1
      %p60 = por %p58, %p59
      %p61 = scmp.ne.s32.totalorder %s52, %s53
      %p62 = scmp.eq.s32.totalorder %s21, 0
      %p63 = por %p61, %p62
      %p64 = scmp.ne.s32.totalorder %s52, %s53
      %p65 = scmp.eq.s32.totalorder %s22, 1
      %p66 = por %p64, %p65
      %p68 = scmp.ne.s32.totalorder %s53, %s67
      %p69 = scmp.eq.s32.totalorder %s22, 0
      %p70 = por %p68, %p69
      %s72 = sadd.s32 %s71, 1
      %p75 = scmp.eq.s32.totalorder %s16, 1
      %p76 = scmp.ne.s32.totalorder %s71, %s73
      %p77 = scmp.eq.s32.totalorder %s16, 0
      %p78 = por %p76, %p77
      %p79 = scmp.ne.s32.totalorder %s71, %s73
      %p80 = scmp.eq.s32.totalorder %s21, 1
      %p81 = por %p79, %p80
      %p82 = scmp.ne.s32.totalorder %s73, %s74
      %p83 = scmp.eq.s32.totalorder %s21, 0
      %p84 = por %p82, %p83
      %p85 = scmp.ne.s32.totalorder %s73, %s74
      %p86 = scmp.eq.s32.totalorder %s22, 1
      %p87 = por %p85, %p86
      %p89 = scmp.ne.s32.totalorder %s74, %s88
      %p90 = scmp.eq.s32.totalorder %s22, 0
      %p91 = por %p89, %p90
      %s92 = ssub.s32 %s16, %s23
      %p93 = scmp.eq.s32.totalorder %s92, 0
      %s95 = sadd.s32 %s94, 1
      %s96 = scalar_select %p93, %s94, %s95
      %p99 = pneg %p93
      %p100 = scmp.eq.s32.totalorder %s16, 1
      %p101 = por %p99, %p100
      %p102 = scmp.ne.s32.totalorder %s94, %s97
      %p103 = scmp.eq.s32.totalorder %s16, 0
      %p104 = por %p102, %p103
      %p105 = scmp.ne.s32.totalorder %s94, %s97
      %p106 = scmp.eq.s32.totalorder %s21, 1
      %p107 = por %p105, %p106
      %p108 = scmp.ne.s32.totalorder %s97, %s98
      %p109 = scmp.eq.s32.totalorder %s21, 0
      %p110 = por %p108, %p109
      %p111 = scmp.ne.s32.totalorder %s97, %s98
      %p112 = scmp.eq.s32.totalorder %s22, 1
      %p113 = por %p111, %p112
      %p115 = scmp.ne.s32.totalorder %s98, %s114
      %p116 = scmp.eq.s32.totalorder %s22, 0
      %p117 = por %p115, %p116
      %p118 = scmp.le.s32.totalorder 1, %s16
      %p119 = scmp.lt.s32.totalorder %s16, 3
      %p120 = pnand %p118, %p119
      %p121 = pneg %p120
      // Predicated region
      $region9: #{causal_conformer_encoder.15} parent=5 // pred_check
        _
      $region10: #{causal_conformer_encoder.15} parent=5 // pred_check_branch
        %123 = sbr.rel (%p120) target = $region12
      $region11: #{causal_conformer_encoder.15} parent=5 // pred_region
        %s124 = ssub.s32 %s16, 1
        // Predicated region
        $region13: #{causal_conformer_encoder.15} parent=11 // pred_check
          %p125 = pneg %p63
        $region14: #{causal_conformer_encoder.15} parent=11 // pred_check_branch
          %127 = sbr.rel (%p125) target = $region16
        $region15: #{causal_conformer_encoder.15} parent=11 // pred_region
          %s129 = ssub.s32 1152, 1152
          %130 = vsyncadd [#allocation6], %s129
          %s131 = sshll.u32 [#allocation5], 4
          %s132 = int_to_ptr.vmem [resolvable:$true] %s131
          %137 = dma.hbm_to_vmem [thread:$0]  %s1, 1152, %s132, [#allocation6], 64, 64, 4
        $region16: #{causal_conformer_encoder.15} parent=11 // pred_fallthru
          _
        // Predicated region
        $region17: #{causal_conformer_encoder.15} parent=11 // pred_check
          %p138 = pneg %p84
        $region18: #{causal_conformer_encoder.15} parent=11 // pred_check_branch
          %140 = sbr.rel (%p138) target = $region20
        $region19: #{causal_conformer_encoder.15} parent=11 // pred_region
          %s142 = ssub.s32 16, 16
          %143 = vsyncadd [#allocation6], %s142
          %s145 = sshll.u32 [#allocation7], 4
          %s146 = int_to_ptr.vmem [resolvable:$true] %s145
          %148 = dma.hbm_to_vmem [thread:$0]  %s2, 16, %s146, [#allocation6]
        $region20: #{causal_conformer_encoder.15} parent=11 // pred_fallthru
          _
      $region12: #{causal_conformer_encoder.15} parent=5 // pred_fallthru
        _
      %p149 = scmp.lt.s32.totalorder %s16, 2
      // Predicated region
      $region21: #{causal_conformer_encoder.15} parent=5 // pred_check
        %p150 = pneg %p149
      $region22: #{causal_conformer_encoder.15} parent=5 // pred_check_branch
        %152 = sbr.rel (%p150) target = $region24
      $region23: #{causal_conformer_encoder.15} parent=5 // pred_region
        // Predicated region
        $region25: #{causal_conformer_encoder.15} parent=23 // pred_check
          %p153 = pneg %p36
        $region26: #{causal_conformer_encoder.15} parent=23 // pred_check_branch
          %155 = sbr.rel (%p153) target = $region28
        $region27: #{causal_conformer_encoder.15} parent=23 // pred_region
          %s156 = sand.u32 %s26, 1
          %s157 = scalar_lea.sflag [#allocation3], %s156
          %s158 = sand.u32 %s26, 1
          %s159 = smul.addr %s158, 48
          %s160 = scalar_lea.vmem [#allocation2], %s159
          %s161 = smul.u32 3, %s16
          %s163 = ssub.s32 768, 768
          %164 = vsyncadd %s157, %s163
          %s165 = smul.addr %s161, 2
          %s166 = smul.addr %s165, 128
          %s167 = scalar_lea.hbm %s0, %s166
          %s168 = sshll.u32 %s160, 4
          %s169 = int_to_ptr.vmem [resolvable:$true] %s168
          %174 = dma.hbm_to_vmem [thread:$0]  %s167, 768, %s169, %s157, 256, 256, 16
        $region28: #{causal_conformer_encoder.15} parent=23 // pred_fallthru
          _
      $region24: #{causal_conformer_encoder.15} parent=5 // pred_fallthru
        _
      %p175 = scmp.le.s32.totalorder 1, %s16
      %p176 = scmp.lt.s32.totalorder %s16, 3
      %p177 = pnand %p175, %p176
      %p178 = pneg %p177
      // Predicated region
      $region29: #{causal_conformer_encoder.15} parent=5 // pred_check
        _
      $region30: #{causal_conformer_encoder.15} parent=5 // pred_check_branch
        %180 = sbr.rel (%p177) target = $region32
      $region31: #{causal_conformer_encoder.15} parent=5 // pred_region
        %s181 = ssub.s32 %s16, 1
        %s182 = sand.u32 %s29, 1
        %s183 = scalar_lea.sflag [#allocation3], %s182
        %s184 = sand.u32 %s29, 1
        %s185 = smul.addr %s184, 48
        %s186 = scalar_lea.vmem [#allocation2], %s185
        // Predicated region
        $region33: #{causal_conformer_encoder.15} parent=31 // pred_check
          %p187 = pneg %p42
        $region34: #{causal_conformer_encoder.15} parent=31 // pred_check_branch
          %189 = sbr.rel (%p187) target = $region36
        $region35: #{causal_conformer_encoder.15} parent=31 // pred_region
          %190 = dma.done %s183, 768
        $region36: #{causal_conformer_encoder.15} parent=31 // pred_fallthru
          _
        // Predicated region
        $region37: #{causal_conformer_encoder.15} parent=31 // pred_check
          %p191 = pneg %p63
        $region38: #{causal_conformer_encoder.15} parent=31 // pred_check_branch
          %193 = sbr.rel (%p191) target = $region40
        $region39: #{causal_conformer_encoder.15} parent=31 // pred_region
          %194 = dma.done [#allocation6], 1152
        $region40: #{causal_conformer_encoder.15} parent=31 // pred_fallthru
          _
        // Predicated region
        $region41: #{causal_conformer_encoder.15} parent=31 // pred_check
          %p195 = pneg %p84
        $region42: #{causal_conformer_encoder.15} parent=31 // pred_check_branch
          %197 = sbr.rel (%p195) target = $region44
        $region43: #{causal_conformer_encoder.15} parent=31 // pred_region
          %198 = dma.done [#allocation6], 16
        $region44: #{causal_conformer_encoder.15} parent=31 // pred_fallthru
          _
        %s199 = sand.u32 %s29, 1
        %s200 = scalar_lea.sflag [#allocation3], %s199
        %s201 = sand.u32 %s29, 1
        %s202 = smul.addr %s201, 48
        %s203 = scalar_lea.vmem [#allocation2], %s202
        %p204 = pneg %p42
        %p205 = pneg %p39
        %p206 = pneg %p63
        %p207 = pneg %p60
        %p208 = pneg %p84
        %p209 = pneg %p81
        %p210 = pneg %p110
        %p211 = pneg %p107
        %s212 = sand.u32 %s97, 1
        %s213 = scalar_lea.sflag [#allocation4], %s212
        %s214 = sand.u32 %s97, 1
        %s215 = smul.addr %s214, 24
        %s216 = scalar_lea.vmem [#allocation8], %s215
        %s217 = smul.u32 3, %s21
        %s218 = smul.u32 3, %s21
        %v220 = vld [vmem:[%s186] sm:$0xff]
        %v221 = vld [vmem:[%s186 + $0x8] sm:$0xff]
        %v222 = vld [vmem:[%s186 + $0x10] sm:$0xff]
        %v223 = vld [vmem:[%s186 + $0x18] sm:$0xff]
        %v224 = vld [vmem:[%s186 + $0x20] sm:$0xff]
        %v225 = vld [vmem:[%s186 + $0x28] sm:$0xff]
        %v226 = vld [vmem:[#allocation5] sm:$0xf]
        %v227 = vld [vmem:[#allocation5 + $0x4] sm:$0xf]
        %v228 = vld [vmem:[#allocation5 + $0x8] sm:$0xf]
        %v229 = vld [vmem:[#allocation5 + $0xc] sm:$0xf]
        %v230 = vld [vmem:[#allocation5 + $0x10] sm:$0xf]
        %v231 = vld [vmem:[#allocation5 + $0x14] sm:$0xf]
        %v232 = vld [vmem:[#allocation5 + $0x18] sm:$0xf]
        %v233 = vld [vmem:[#allocation5 + $0x1c] sm:$0xf]
        %v234 = vld [vmem:[#allocation5 + $0x20] sm:$0xf]
        %v235 = vld [vmem:[#allocation5 + $0x24] sm:$0xf]
        %v236 = vld [vmem:[#allocation5 + $0x28] sm:$0xf]
        %v237 = vld [vmem:[#allocation5 + $0x2c] sm:$0xf]
        %v238 = vld [vmem:[#allocation5 + $0x30] sm:$0xf]
        %v239 = vld [vmem:[#allocation5 + $0x34] sm:$0xf]
        %v240 = vld [vmem:[#allocation5 + $0x38] sm:$0xf]
        %v241 = vld [vmem:[#allocation5 + $0x3c] sm:$0xf]
        %v242 = vld [vmem:[#allocation5 + $0x40] sm:$0xf]
        %v243 = vld [vmem:[#allocation5 + $0x44] sm:$0xf]
        %v244 = vpack.c.bf16 %v222, %v220
        %v245 = vpack.c.bf16 %v223, %v221
        %v246 = vpack.c.bf16 %v224, %v224
        %v247 = vpack.c.bf16 %v225, %v225
        %v248 = vld [vmem:[#allocation7] sm:$0x1]
        %v250 = vlaneseq
        %v251 = vshrl.u32 %v250, 7
        %v252 = vsub.s32 0, %v251
        %v253 = vrot.slane %v248, %v252
        %v273 = vunpack.c.l.b16 %v226
        %v274 = vunpack.c.l.b16 %v227
        %v275 = vunpack.c.l.b16 %v228
        %v276 = vunpack.c.l.b16 %v229
        %v277 = vunpack.c.l.b16 %v230
        %v278 = vunpack.c.l.b16 %v231
        %v279 = vunpack.c.l.b16 %v232
        %v280 = vunpack.c.l.b16 %v233
        %v281 = vunpack.c.l.b16 %v234
        %v282 = vunpack.c.l.b16 %v235
        %v283 = vunpack.c.l.b16 %v236
        %v284 = vunpack.c.l.b16 %v237
        %v285 = vunpack.c.l.b16 %v238
        %v286 = vunpack.c.l.b16 %v239
        %v287 = vunpack.c.l.b16 %v240
        %v288 = vunpack.c.l.b16 %v241
        %v289 = vunpack.c.l.b16 %v242
        %v290 = vunpack.c.l.b16 %v243
        %v291 = vpack.c.b16 %v274, %v273
        %v292 = vpack.c.b16 %v276, %v275
        %v293 = vpack.c.b16 %v278, %v277
        %v294 = vpack.c.b16 %v280, %v279
        %v295 = vpack.c.b16 %v282, %v281
        %v296 = vpack.c.b16 %v284, %v283
        %v297 = vpack.c.b16 %v286, %v285
        %v298 = vpack.c.b16 %v288, %v287
        %v299 = vpack.c.b16 %v290, %v289
        %vm309 = vcmask 130048
        %v311 = vsel %vm309, %v245, 0
        %v314 = vsel %vm309, %v247, 0
        %316 = vmatprep.subr.bf16.mxu0 0
        %317 = vmatpush1.bf16.msra.mxu0 %v291
        %318 = vmatprep.subr.bf16.mxu0 0
        %319 = vmatpush1.bf16.msra.mxu0 %v292
        %320 = vmatprep.subr.bf16.mxu0 0
        %321 = vmatpush1.bf16.msra.mxu0 %v293
        %322 = vmatprep.subr.bf16.mxu0 0
        %323 = vmatpush1.bf16.msra.mxu0 %v294
        %324 = vmatprep.subr.bf16.mxu0 0
        %325 = vmatpush1.bf16.msra.mxu0 %v295
        %326 = vmatprep.subr.bf16.mxu0 0
        %327 = vmatpush1.bf16.msra.mxu0 %v296
        %328 = vmatprep.subr.bf16.mxu0 0
        %329 = vmatpush1.bf16.msra.mxu0 %v297
        %330 = vmatprep.subr.bf16.mxu0 0
        %331 = vmatpush1.bf16.msra.mxu0 %v298
        %332 = vmatprep.subr.bf16.mxu0 0
        %333 = vmatpush1.bf16.msra.mxu0 %v299
        %334 = vmatprep.subr.bf16.mxu0 0
        %335 = vmatpush1.bf16.msra.mxu0 0
        %336 = vmatprep.subr.bf16.mxu0 0
        %337 = vmatpush1.bf16.msra.mxu0 0
        %338 = vmatprep.subr.bf16.mxu0 0
        %339 = vmatpush1.bf16.msra.mxu0 0
        %340 = vmatprep.subr.bf16.mxu0 0
        %341 = vmatpush1.bf16.msra.mxu0 0
        %342 = vmatprep.subr.bf16.mxu0 0
        %343 = vmatpush1.bf16.msra.mxu0 0
        %344 = vmatprep.subr.bf16.mxu0 0
        %345 = vmatpush1.bf16.msra.mxu0 0
        %346 = vmatprep.subr.bf16.mxu0 0
        %347 = vmatpush1.bf16.msra.mxu0 0
        %348 = vmatprep.mubr.bf16.mxu0 %v311
        %349 = vmatmul.mubr.bf16.gmra.mrb[0].mxu0 %v244
        %v350 = vpop.f32.mrb[0].mxu0
        %v351 = vadd.f32 %v253, %v350
        %v352 = vpop.f32.mrb[0].mxu0
        %v353 = vpop.f32.mrb[0].mxu0
        %v354 = vadd.f32 %v253, %v353
        %v355 = vpop.f32.mrb[0].mxu0
        %356 = vmatprep.mubr.bf16.mxu0 %v314
        %357 = vmatmul.mubr.bf16.gmra.mrb[0].mxu0 %v246
        %v358 = vpop.f32.mrb[0].mxu0
        %v359 = vadd.f32 %v253, %v358
        %v360 = vpop.f32.mrb[0].mxu0
        %v361 = vpop.f32.mrb[0].mxu0
        %v362 = vpop.f32.mrb[0].mxu0
        %363 = vdwg.mxu0
        %v364 = vmax.f32 %v351, 0.0
        %v365 = vmax.f32 %v354, 0.0
        %v366 = vmax.f32 %v359, 0.0
        %367 = vst.msk [vmem:[%s216] sm:$0xff] %vm309, %v364
        %368 = vst.msk [vmem:[%s216 + $0x8] sm:$0xff] %vm309, %v365
        %369 = vst.msk [vmem:[%s216 + $0x10] sm:$0xff] %vm309, %v366
        %s370 = sand.u32 %s97, 1
        %s371 = scalar_lea.sflag [#allocation4], %s370
        %s372 = sand.u32 %s97, 1
        %s373 = smul.addr %s372, 24
        %s374 = scalar_lea.vmem [#allocation8], %s373
        // Predicated region
        $region45: #{causal_conformer_encoder.15} parent=31 // pred_check
          %p375 = pneg %p107
        $region46: #{causal_conformer_encoder.15} parent=31 // pred_check_branch
          %377 = sbr.rel (%p375) target = $region48
        $region47: #{causal_conformer_encoder.15} parent=31 // pred_region
          %s378 = smul.u32 3, %s21
          %s380 = ssub.s32 384, 384
          %381 = vsyncadd %s371, %s380
          %s382 = smul.addr %s378, 128
          %s383 = scalar_lea.hbm %s3, %s382
          %s384 = sshll.u32 %s374, 4
          %s385 = int_to_ptr.vmem [resolvable:$true] %s384
          %390 = dma.vmem_to_hbm [thread:$0]  %s385, 384, %s383, %s371, 128, 128, 8
        $region48: #{causal_conformer_encoder.15} parent=31 // pred_fallthru
          _
      $region32: #{causal_conformer_encoder.15} parent=5 // pred_fallthru
        _
      %p391 = scmp.le.s32.totalorder 2, %s16
      // Predicated region
      $region49: #{causal_conformer_encoder.15} parent=5 // pred_check
        %p392 = pneg %p391
      $region50: #{causal_conformer_encoder.15} parent=5 // pred_check_branch
        %394 = sbr.rel (%p392) target = $region52
      $region51: #{causal_conformer_encoder.15} parent=5 // pred_region
        %s395 = ssub.s32 %s16, 2
        // Predicated region
        $region53: #{causal_conformer_encoder.15} parent=51 // pred_check
          %p396 = pneg %p113
        $region54: #{causal_conformer_encoder.15} parent=51 // pred_check_branch
          %398 = sbr.rel (%p396) target = $region56
        $region55: #{causal_conformer_encoder.15} parent=51 // pred_region
          %s399 = sand.u32 %s98, 1
          %s400 = scalar_lea.sflag [#allocation4], %s399
          %s401 = sand.u32 %s98, 1
          %s402 = smul.addr %s401, 24
          %s403 = scalar_lea.vmem [#allocation8], %s402
          %404 = dma.done %s400, 384
        $region56: #{causal_conformer_encoder.15} parent=51 // pred_fallthru
          _
      $region52: #{causal_conformer_encoder.15} parent=5 // pred_fallthru
        _
    $region6: #{causal_conformer_encoder.15} parent=1 // loop_footer
      %s20 = sadd.s32 1, %s16
    $region7: #{causal_conformer_encoder.15} parent=1 // loop_footer_branch
      %15 = sbr.rel target = $region3
    $region8: #{causal_conformer_encoder.15} parent=1 // loop_exit
      _
    %405 = vsyncpa [#allocation3], 1
    %s406 = scalar_lea.sflag [#allocation3], 1
    %407 = vsyncpa %s406, 1
    %408 = vsyncpa [#allocation6], 1
    %409 = vsyncpa [#allocation4], 1
    %s410 = scalar_lea.sflag [#allocation4], 1
    %411 = vsyncpa %s410, 1

// kernel: causal_conformer_encoder.17
$region0: #{causal_conformer_encoder.17}
  #allocation0 [shape = 'u32[]', space=smem, size = 0x4, offset = 0x4, fixed_abs, tag = 'smem constant byte address 0x4 - core index']
  #allocation1 [shape = 'u32[144,128]{1,0:T(1,128)}', space=vmem, size = 0x12000, scoped, tag = 'internal scratch']
  %s0 = inlined_call_operand.hbm [shape: f32[14,16], index: 0, kind: input, shape index: {}]
  %s1 = inlined_call_operand.hbm [shape: bf16[16,16], index: 1, kind: input, shape index: {}]
  %s2 = inlined_call_operand.hbm [shape: f32[1,16], index: 2, kind: input, shape index: {}]
  %s3 = inlined_call_operand.hbm [shape: f32[14,16], index: 3, kind: output, shape index: {}]
  %s4 = sld [smem:[#allocation0]]
  $region57: #{causal_conformer_encoder.17} parent=0
    _
  %s6 = ssub.s32 1, %s4
  %s7 = scalar_select 0, %s6, %s4
  $region1: #{causal_conformer_encoder.17} parent=0
    #allocation2 [shape = 'u8[8192]{0}', space=vmem, size = 0x2000, scoped, tag = 'input window, operand 0']
    #allocation3 [shape = 's32[2]{0}', space=sflag, size = 0x8, scoped, tag = 'scoped memory for causal_conformer_encoder.17']
    #allocation4 [shape = 's32[2]{0}', space=sflag, size = 0x8, scoped, tag = 'scoped memory for causal_conformer_encoder.17']
    #allocation5 [shape = 'u8[4096]{0}', space=vmem, size = 0x1000, scoped, tag = 'input window, operand 1, single buffered']
    #allocation6 [shape = 's32[1]{0}', space=sflag, size = 0x4, scoped, tag = 'scoped memory for causal_conformer_encoder.17']
    #allocation7 [shape = 'u8[512]{0}', space=vmem, size = 0x400, scoped, tag = 'input window, operand 2, single buffered']
    #allocation8 [shape = 'u8[8192]{0}', space=vmem, size = 0x2000, scoped, tag = 'output window, operand 0']
    %8 = vsyncpa [#allocation3], 0
    %s9 = scalar_lea.sflag [#allocation3], 1
    %10 = vsyncpa %s9, 0
    %11 = vsyncpa [#allocation6], 0
    %12 = vsyncpa [#allocation4], 0
    %s13 = scalar_lea.sflag [#allocation4], 1
    %14 = vsyncpa %s13, 0
    loop: start=0, step=1, limit=4
    $region2: #{causal_conformer_encoder.17} parent=1 // loop_pre_header
      _
    $region3: #{causal_conformer_encoder.17} parent=1 // loop_header
      %s16 = sphi 0, %s20
      %p17 = scmp.ge.s32.totalorder %s16, 4
      %s26 = sphi 0, %s28
      %s29 = sphi 0, %s26
      %s30 = sphi 0, %s29
      %s46 = sphi 0, %s30
      %s50 = sphi 0, %s50
      %s52 = sphi 0, %s50
      %s53 = sphi 0, %s52
      %s67 = sphi 0, %s53
      %s71 = sphi 0, %s71
      %s73 = sphi 0, %s71
      %s74 = sphi 0, %s73
      %s88 = sphi 0, %s74
      %s94 = sphi 0, %s96
      %s97 = sphi 0, %s94
      %s98 = sphi 0, %s97
      %s114 = sphi 0, %s98
    $region4: #{causal_conformer_encoder.17} parent=1 // loop_header_branch
      %19 = sbr.rel (%p17) target = $region8
    $region5: #{causal_conformer_encoder.17} parent=1 // loop_body
      %s21 = ssub.s32 %s16, 1
      %s22 = ssub.s32 %s16, 2
      %s23 = sadd.s32 %s16, 1
      %s24 = ssub.s32 %s16, %s23
      %p25 = scmp.eq.s32.totalorder %s24, 0
      %s27 = sadd.s32 %s26, 1
      %s28 = scalar_select %p25, %s26, %s27
      %p31 = pneg %p25
      %p32 = scmp.eq.s32.totalorder %s16, 1
      %p33 = por %p31, %p32
      %p34 = scmp.ne.s32.totalorder %s26, %s29
      %p35 = scmp.eq.s32.totalorder %s16, 0
      %p36 = por %p34, %p35
      %p37 = scmp.ne.s32.totalorder %s26, %s29
      %p38 = scmp.eq.s32.totalorder %s21, 1
      %p39 = por %p37, %p38
      %p40 = scmp.ne.s32.totalorder %s29, %s30
      %p41 = scmp.eq.s32.totalorder %s21, 0
      %p42 = por %p40, %p41
      %p43 = scmp.ne.s32.totalorder %s29, %s30
      %p44 = scmp.eq.s32.totalorder %s22, 1
      %p45 = por %p43, %p44
      %p47 = scmp.ne.s32.totalorder %s30, %s46
      %p48 = scmp.eq.s32.totalorder %s22, 0
      %p49 = por %p47, %p48
      %s51 = sadd.s32 %s50, 1
      %p54 = scmp.eq.s32.totalorder %s16, 1
      %p55 = scmp.ne.s32.totalorder %s50, %s52
      %p56 = scmp.eq.s32.totalorder %s16, 0
      %p57 = por %p55, %p56
      %p58 = scmp.ne.s32.totalorder %s50, %s52
      %p59 = scmp.eq.s32.totalorder %s21, 1
      %p60 = por %p58, %p59
      %p61 = scmp.ne.s32.totalorder %s52, %s53
      %p62 = scmp.eq.s32.totalorder %s21, 0
      %p63 = por %p61, %p62
      %p64 = scmp.ne.s32.totalorder %s52, %s53
      %p65 = scmp.eq.s32.totalorder %s22, 1
      %p66 = por %p64, %p65
      %p68 = scmp.ne.s32.totalorder %s53, %s67
      %p69 = scmp.eq.s32.totalorder %s22, 0
      %p70 = por %p68, %p69
      %s72 = sadd.s32 %s71, 1
      %p75 = scmp.eq.s32.totalorder %s16, 1
      %p76 = scmp.ne.s32.totalorder %s71, %s73
      %p77 = scmp.eq.s32.totalorder %s16, 0
      %p78 = por %p76, %p77
      %p79 = scmp.ne.s32.totalorder %s71, %s73
      %p80 = scmp.eq.s32.totalorder %s21, 1
      %p81 = por %p79, %p80
      %p82 = scmp.ne.s32.totalorder %s73, %s74
      %p83 = scmp.eq.s32.totalorder %s21, 0
      %p84 = por %p82, %p83
      %p85 = scmp.ne.s32.totalorder %s73, %s74
      %p86 = scmp.eq.s32.totalorder %s22, 1
      %p87 = por %p85, %p86
      %p89 = scmp.ne.s32.totalorder %s74, %s88
      %p90 = scmp.eq.s32.totalorder %s22, 0
      %p91 = por %p89, %p90
      %s92 = ssub.s32 %s16, %s23
      %p93 = scmp.eq.s32.totalorder %s92, 0
      %s95 = sadd.s32 %s94, 1
      %s96 = scalar_select %p93, %s94, %s95
      %p99 = pneg %p93
      %p100 = scmp.eq.s32.totalorder %s16, 1
      %p101 = por %p99, %p100
      %p102 = scmp.ne.s32.totalorder %s94, %s97
      %p103 = scmp.eq.s32.totalorder %s16, 0
      %p104 = por %p102, %p103
      %p105 = scmp.ne.s32.totalorder %s94, %s97
      %p106 = scmp.eq.s32.totalorder %s21, 1
      %p107 = por %p105, %p106
      %p108 = scmp.ne.s32.totalorder %s97, %s98
      %p109 = scmp.eq.s32.totalorder %s21, 0
      %p110 = por %p108, %p109
      %p111 = scmp.ne.s32.totalorder %s97, %s98
      %p112 = scmp.eq.s32.totalorder %s22, 1
      %p113 = por %p111, %p112
      %p115 = scmp.ne.s32.totalorder %s98, %s114
      %p116 = scmp.eq.s32.totalorder %s22, 0
      %p117 = por %p115, %p116
      %p118 = scmp.le.s32.totalorder 1, %s16
      %p119 = scmp.lt.s32.totalorder %s16, 3
      %p120 = pnand %p118, %p119
      %p121 = pneg %p120
      // Predicated region
      $region9: #{causal_conformer_encoder.17} parent=5 // pred_check
        _
      $region10: #{causal_conformer_encoder.17} parent=5 // pred_check_branch
        %123 = sbr.rel (%p120) target = $region12
      $region11: #{causal_conformer_encoder.17} parent=5 // pred_region
        %s124 = ssub.s32 %s16, 1
        // Predicated region
        $region13: #{causal_conformer_encoder.17} parent=11 // pred_check
          %p125 = pneg %p63
        $region14: #{causal_conformer_encoder.17} parent=11 // pred_check_branch
          %127 = sbr.rel (%p125) target = $region16
        $region15: #{causal_conformer_encoder.17} parent=11 // pred_region
          %s129 = ssub.s32 128, 128
          %130 = vsyncadd [#allocation6], %s129
          %s131 = sshll.u32 [#allocation5], 4
          %s132 = int_to_ptr.vmem [resolvable:$true] %s131
          %137 = dma.hbm_to_vmem [thread:$0]  %s1, 128, %s132, [#allocation6], 64, 64, 4
        $region16: #{causal_conformer_encoder.17} parent=11 // pred_fallthru
          _
        // Predicated region
        $region17: #{causal_conformer_encoder.17} parent=11 // pred_check
          %p138 = pneg %p84
        $region18: #{causal_conformer_encoder.17} parent=11 // pred_check_branch
          %140 = sbr.rel (%p138) target = $region20
        $region19: #{causal_conformer_encoder.17} parent=11 // pred_region
          %s142 = ssub.s32 16, 16
          %143 = vsyncadd [#allocation6], %s142
          %s145 = sshll.u32 [#allocation7], 4
          %s146 = int_to_ptr.vmem [resolvable:$true] %s145
          %148 = dma.hbm_to_vmem [thread:$0]  %s2, 16, %s146, [#allocation6]
        $region20: #{causal_conformer_encoder.17} parent=11 // pred_fallthru
          _
      $region12: #{causal_conformer_encoder.17} parent=5 // pred_fallthru
        _
      %p149 = scmp.lt.s32.totalorder %s16, 2
      // Predicated region
      $region21: #{causal_conformer_encoder.17} parent=5 // pred_check
        %p150 = pneg %p149
      $region22: #{causal_conformer_encoder.17} parent=5 // pred_check_branch
        %152 = sbr.rel (%p150) target = $region24
      $region23: #{causal_conformer_encoder.17} parent=5 // pred_region
        // Predicated region
        $region25: #{causal_conformer_encoder.17} parent=23 // pred_check
          %p153 = pneg %p36
        $region26: #{causal_conformer_encoder.17} parent=23 // pred_check_branch
          %155 = sbr.rel (%p153) target = $region28
        $region27: #{causal_conformer_encoder.17} parent=23 // pred_region
          %s156 = sand.u32 %s26, 1
          %s157 = scalar_lea.sflag [#allocation3], %s156
          %s158 = sand.u32 %s26, 1
          %s159 = smul.addr %s158, 8
          %s160 = scalar_lea.vmem [#allocation2], %s159
          %s162 = ssub.s32 128, 128
          %163 = vsyncadd %s157, %s162
          %s164 = smul.addr %s16, 128
          %s165 = scalar_lea.hbm %s0, %s164
          %s167 = sshll.u32 %s160, 4
          %s168 = int_to_ptr.vmem [resolvable:$true] %s167
          %170 = dma.hbm_to_vmem [thread:$0]  %s165, 128, %s168, %s157
        $region28: #{causal_conformer_encoder.17} parent=23 // pred_fallthru
          _
      $region24: #{causal_conformer_encoder.17} parent=5 // pred_fallthru
        _
      %p171 = scmp.le.s32.totalorder 1, %s16
      %p172 = scmp.lt.s32.totalorder %s16, 3
      %p173 = pnand %p171, %p172
      %p174 = pneg %p173
      // Predicated region
      $region29: #{causal_conformer_encoder.17} parent=5 // pred_check
        _
      $region30: #{causal_conformer_encoder.17} parent=5 // pred_check_branch
        %176 = sbr.rel (%p173) target = $region32
      $region31: #{causal_conformer_encoder.17} parent=5 // pred_region
        %s177 = ssub.s32 %s16, 1
        %s178 = sand.u32 %s29, 1
        %s179 = scalar_lea.sflag [#allocation3], %s178
        %s180 = sand.u32 %s29, 1
        %s181 = smul.addr %s180, 8
        %s182 = scalar_lea.vmem [#allocation2], %s181
        // Predicated region
        $region33: #{causal_conformer_encoder.17} parent=31 // pred_check
          %p183 = pneg %p42
        $region34: #{causal_conformer_encoder.17} parent=31 // pred_check_branch
          %185 = sbr.rel (%p183) target = $region36
        $region35: #{causal_conformer_encoder.17} parent=31 // pred_region
          %186 = dma.done %s179, 128
        $region36: #{causal_conformer_encoder.17} parent=31 // pred_fallthru
          _
        // Predicated region
        $region37: #{causal_conformer_encoder.17} parent=31 // pred_check
          %p187 = pneg %p63
        $region38: #{causal_conformer_encoder.17} parent=31 // pred_check_branch
          %189 = sbr.rel (%p187) target = $region40
        $region39: #{causal_conformer_encoder.17} parent=31 // pred_region
          %190 = dma.done [#allocation6], 128
        $region40: #{causal_conformer_encoder.17} parent=31 // pred_fallthru
          _
        // Predicated region
        $region41: #{causal_conformer_encoder.17} parent=31 // pred_check
          %p191 = pneg %p84
        $region42: #{causal_conformer_encoder.17} parent=31 // pred_check_branch
          %193 = sbr.rel (%p191) target = $region44
        $region43: #{causal_conformer_encoder.17} parent=31 // pred_region
          %194 = dma.done [#allocation6], 16
        $region44: #{causal_conformer_encoder.17} parent=31 // pred_fallthru
          _
        %s195 = sand.u32 %s29, 1
        %s196 = scalar_lea.sflag [#allocation3], %s195
        %s197 = sand.u32 %s29, 1
        %s198 = smul.addr %s197, 8
        %s199 = scalar_lea.vmem [#allocation2], %s198
        %p200 = pneg %p42
        %p201 = pneg %p39
        %p202 = pneg %p63
        %p203 = pneg %p60
        %p204 = pneg %p84
        %p205 = pneg %p81
        %p206 = pneg %p110
        %p207 = pneg %p107
        %s208 = sand.u32 %s97, 1
        %s209 = scalar_lea.sflag [#allocation4], %s208
        %s210 = sand.u32 %s97, 1
        %s211 = smul.addr %s210, 8
        %s212 = scalar_lea.vmem [#allocation8], %s211
        %v214 = vld [vmem:[%s182] sm:$0xff]
        %v215 = vld [vmem:[#allocation5] sm:$0xf]
        %v216 = vld [vmem:[#allocation5 + $0x4] sm:$0xf]
        %v217 = vpack.c.bf16 %v214, %v214
        %v218 = vld [vmem:[#allocation7] sm:$0x1]
        %v220 = vlaneseq
        %v221 = vshrl.u32 %v220, 7
        %v222 = vsub.s32 0, %v221
        %v223 = vrot.slane %v218, %v222
        %v227 = vunpack.c.l.b16 %v215
        %v228 = vunpack.c.l.b16 %v216
        %v229 = vpack.c.b16 %v228, %v227
        %vm231 = vcmask 130048
        %v233 = vsel %vm231, %v217, 0
        %235 = vmatprep.subr.bf16.mxu0 0
        %236 = vmatpush1.bf16.msra.mxu0 %v229
        %237 = vmatprep.subr.bf16.mxu0 0
        %238 = vmatpush1.bf16.msra.mxu0 0
        %239 = vmatprep.subr.bf16.mxu0 0
        %240 = vmatpush1.bf16.msra.mxu0 0
        %241 = vmatprep.subr.bf16.mxu0 0
        %242 = vmatpush1.bf16.msra.mxu0 0
        %243 = vmatprep.subr.bf16.mxu0 0
        %244 = vmatpush1.bf16.msra.mxu0 0
        %245 = vmatprep.subr.bf16.mxu0 0
        %246 = vmatpush1.bf16.msra.mxu0 0
        %247 = vmatprep.subr.bf16.mxu0 0
        %248 = vmatpush1.bf16.msra.mxu0 0
        %249 = vmatprep.subr.bf16.mxu0 0
        %250 = vmatpush1.bf16.msra.mxu0 0
        %251 = vmatprep.subr.bf16.mxu0 0
        %252 = vmatpush1.bf16.msra.mxu0 0
        %253 = vmatprep.subr.bf16.mxu0 0
        %254 = vmatpush1.bf16.msra.mxu0 0
        %255 = vmatprep.subr.bf16.mxu0 0
        %256 = vmatpush1.bf16.msra.mxu0 0
        %257 = vmatprep.subr.bf16.mxu0 0
        %258 = vmatpush1.bf16.msra.mxu0 0
        %259 = vmatprep.subr.bf16.mxu0 0
        %260 = vmatpush1.bf16.msra.mxu0 0
        %261 = vmatprep.subr.bf16.mxu0 0
        %262 = vmatpush1.bf16.msra.mxu0 0
        %263 = vmatprep.subr.bf16.mxu0 0
        %264 = vmatpush1.bf16.msra.mxu0 0
        %265 = vmatprep.subr.bf16.mxu0 0
        %266 = vmatpush1.bf16.msra.mxu0 0
        %267 = vmatprep.mubr.bf16.mxu0 0
        %268 = vmatmul.mubr.bf16.gmra.mrb[0].mxu0 %v233
        %v269 = vpop.f32.mrb[0].mxu0
        %v270 = vadd.f32 %v223, %v269
        %v271 = vpop.f32.mrb[0].mxu0
        %v272 = vpop.f32.mrb[0].mxu0
        %v273 = vpop.f32.mrb[0].mxu0
        %274 = vdwg.mxu0
        %275 = vst.msk [vmem:[%s212] sm:$0xff] %vm231, %v270
        %s276 = sand.u32 %s97, 1
        %s277 = scalar_lea.sflag [#allocation4], %s276
        %s278 = sand.u32 %s97, 1
        %s279 = smul.addr %s278, 8
        %s280 = scalar_lea.vmem [#allocation8], %s279
        // Predicated region
        $region45: #{causal_conformer_encoder.17} parent=31 // pred_check
          %p281 = pneg %p107
        $region46: #{causal_conformer_encoder.17} parent=31 // pred_check_branch
          %283 = sbr.rel (%p281) target = $region48
        $region47: #{causal_conformer_encoder.17} parent=31 // pred_region
          %s285 = ssub.s32 128, 128
          %286 = vsyncadd %s277, %s285
          %s287 = smul.addr %s21, 128
          %s288 = scalar_lea.hbm %s3, %s287
          %s290 = sshll.u32 %s280, 4
          %s291 = int_to_ptr.vmem [resolvable:$true] %s290
          %293 = dma.vmem_to_hbm [thread:$0]  %s291, 128, %s288, %s277
        $region48: #{causal_conformer_encoder.17} parent=31 // pred_fallthru
          _
      $region32: #{causal_conformer_encoder.17} parent=5 // pred_fallthru
        _
      %p294 = scmp.le.s32.totalorder 2, %s16
      // Predicated region
      $region49: #{causal_conformer_encoder.17} parent=5 // pred_check
        %p295 = pneg %p294
      $region50: #{causal_conformer_encoder.17} parent=5 // pred_check_branch
        %297 = sbr.rel (%p295) target = $region52
      $region51: #{causal_conformer_encoder.17} parent=5 // pred_region
        %s298 = ssub.s32 %s16, 2
        // Predicated region
        $region53: #{causal_conformer_encoder.17} parent=51 // pred_check
          %p299 = pneg %p113
        $region54: #{causal_conformer_encoder.17} parent=51 // pred_check_branch
          %301 = sbr.rel (%p299) target = $region56
        $region55: #{causal_conformer_encoder.17} parent=51 // pred_region
          %s302 = sand.u32 %s98, 1
          %s303 = scalar_lea.sflag [#allocation4], %s302
          %s304 = sand.u32 %s98, 1
          %s305 = smul.addr %s304, 8
          %s306 = scalar_lea.vmem [#allocation8], %s305
          %307 = dma.done %s303, 128
        $region56: #{causal_conformer_encoder.17} parent=51 // pred_fallthru
          _
      $region52: #{causal_conformer_encoder.17} parent=5 // pred_fallthru
        _
    $region6: #{causal_conformer_encoder.17} parent=1 // loop_footer
      %s20 = sadd.s32 1, %s16
    $region7: #{causal_conformer_encoder.17} parent=1 // loop_footer_branch
      %15 = sbr.rel target = $region3
    $region8: #{causal_conformer_encoder.17} parent=1 // loop_exit
      _
    %308 = vsyncpa [#allocation3], 1
    %s309 = scalar_lea.sflag [#allocation3], 1
    %310 = vsyncpa %s309, 1
    %311 = vsyncpa [#allocation6], 1
    %312 = vsyncpa [#allocation4], 1
    %s313 = scalar_lea.sflag [#allocation4], 1
    %314 = vsyncpa %s313, 1

// kernel: causal_conformer_encoder.16
$region0: #{causal_conformer_encoder.16}
  #allocation0 [shape = 'u32[]', space=smem, size = 0x4, offset = 0x4, fixed_abs, tag = 'smem constant byte address 0x4 - core index']
  #allocation1 [shape = 'u32[144,128]{1,0:T(1,128)}', space=vmem, size = 0x12000, scoped, tag = 'internal scratch']
  %s0 = inlined_call_operand.hbm [shape: f32[14,48], index: 0, kind: input, shape index: {}]
  %s1 = inlined_call_operand.hbm [shape: bf16[48,16], index: 1, kind: input, shape index: {}]
  %s2 = inlined_call_operand.hbm [shape: f32[1,16], index: 2, kind: input, shape index: {}]
  %s3 = inlined_call_operand.hbm [shape: f32[14,16], index: 3, kind: output, shape index: {}]
  %s4 = sld [smem:[#allocation0]]
  $region57: #{causal_conformer_encoder.16} parent=0
    _
  %s6 = ssub.s32 1, %s4
  %s7 = scalar_select 0, %s6, %s4
  $region1: #{causal_conformer_encoder.16} parent=0
    #allocation2 [shape = 'u8[8192]{0}', space=vmem, size = 0x2000, scoped, tag = 'input window, operand 0']
    #allocation3 [shape = 's32[2]{0}', space=sflag, size = 0x8, scoped, tag = 'scoped memory for causal_conformer_encoder.16']
    #allocation4 [shape = 's32[2]{0}', space=sflag, size = 0x8, scoped, tag = 'scoped memory for causal_conformer_encoder.16']
    #allocation5 [shape = 'u8[12288]{0}', space=vmem, size = 0x3000, scoped, tag = 'input window, operand 1, single buffered']
    #allocation6 [shape = 's32[1]{0}', space=sflag, size = 0x4, scoped, tag = 'scoped memory for causal_conformer_encoder.16']
    #allocation7 [shape = 'u8[512]{0}', space=vmem, size = 0x400, scoped, tag = 'input window, operand 2, single buffered']
    #allocation8 [shape = 'u8[8192]{0}', space=vmem, size = 0x2000, scoped, tag = 'output window, operand 0']
    %8 = vsyncpa [#allocation3], 0
    %s9 = scalar_lea.sflag [#allocation3], 1
    %10 = vsyncpa %s9, 0
    %11 = vsyncpa [#allocation6], 0
    %12 = vsyncpa [#allocation4], 0
    %s13 = scalar_lea.sflag [#allocation4], 1
    %14 = vsyncpa %s13, 0
    loop: start=0, step=1, limit=4
    $region2: #{causal_conformer_encoder.16} parent=1 // loop_pre_header
      _
    $region3: #{causal_conformer_encoder.16} parent=1 // loop_header
      %s16 = sphi 0, %s20
      %p17 = scmp.ge.s32.totalorder %s16, 4
      %s26 = sphi 0, %s28
      %s29 = sphi 0, %s26
      %s30 = sphi 0, %s29
      %s46 = sphi 0, %s30
      %s50 = sphi 0, %s50
      %s52 = sphi 0, %s50
      %s53 = sphi 0, %s52
      %s67 = sphi 0, %s53
      %s71 = sphi 0, %s71
      %s73 = sphi 0, %s71
      %s74 = sphi 0, %s73
      %s88 = sphi 0, %s74
      %s94 = sphi 0, %s96
      %s97 = sphi 0, %s94
      %s98 = sphi 0, %s97
      %s114 = sphi 0, %s98
    $region4: #{causal_conformer_encoder.16} parent=1 // loop_header_branch
      %19 = sbr.rel (%p17) target = $region8
    $region5: #{causal_conformer_encoder.16} parent=1 // loop_body
      %s21 = ssub.s32 %s16, 1
      %s22 = ssub.s32 %s16, 2
      %s23 = sadd.s32 %s16, 1
      %s24 = ssub.s32 %s16, %s23
      %p25 = scmp.eq.s32.totalorder %s24, 0
      %s27 = sadd.s32 %s26, 1
      %s28 = scalar_select %p25, %s26, %s27
      %p31 = pneg %p25
      %p32 = scmp.eq.s32.totalorder %s16, 1
      %p33 = por %p31, %p32
      %p34 = scmp.ne.s32.totalorder %s26, %s29
      %p35 = scmp.eq.s32.totalorder %s16, 0
      %p36 = por %p34, %p35
      %p37 = scmp.ne.s32.totalorder %s26, %s29
      %p38 = scmp.eq.s32.totalorder %s21, 1
      %p39 = por %p37, %p38
      %p40 = scmp.ne.s32.totalorder %s29, %s30
      %p41 = scmp.eq.s32.totalorder %s21, 0
      %p42 = por %p40, %p41
      %p43 = scmp.ne.s32.totalorder %s29, %s30
      %p44 = scmp.eq.s32.totalorder %s22, 1
      %p45 = por %p43, %p44
      %p47 = scmp.ne.s32.totalorder %s30, %s46
      %p48 = scmp.eq.s32.totalorder %s22, 0
      %p49 = por %p47, %p48
      %s51 = sadd.s32 %s50, 1
      %p54 = scmp.eq.s32.totalorder %s16, 1
      %p55 = scmp.ne.s32.totalorder %s50, %s52
      %p56 = scmp.eq.s32.totalorder %s16, 0
      %p57 = por %p55, %p56
      %p58 = scmp.ne.s32.totalorder %s50, %s52
      %p59 = scmp.eq.s32.totalorder %s21, 1
      %p60 = por %p58, %p59
      %p61 = scmp.ne.s32.totalorder %s52, %s53
      %p62 = scmp.eq.s32.totalorder %s21, 0
      %p63 = por %p61, %p62
      %p64 = scmp.ne.s32.totalorder %s52, %s53
      %p65 = scmp.eq.s32.totalorder %s22, 1
      %p66 = por %p64, %p65
      %p68 = scmp.ne.s32.totalorder %s53, %s67
      %p69 = scmp.eq.s32.totalorder %s22, 0
      %p70 = por %p68, %p69
      %s72 = sadd.s32 %s71, 1
      %p75 = scmp.eq.s32.totalorder %s16, 1
      %p76 = scmp.ne.s32.totalorder %s71, %s73
      %p77 = scmp.eq.s32.totalorder %s16, 0
      %p78 = por %p76, %p77
      %p79 = scmp.ne.s32.totalorder %s71, %s73
      %p80 = scmp.eq.s32.totalorder %s21, 1
      %p81 = por %p79, %p80
      %p82 = scmp.ne.s32.totalorder %s73, %s74
      %p83 = scmp.eq.s32.totalorder %s21, 0
      %p84 = por %p82, %p83
      %p85 = scmp.ne.s32.totalorder %s73, %s74
      %p86 = scmp.eq.s32.totalorder %s22, 1
      %p87 = por %p85, %p86
      %p89 = scmp.ne.s32.totalorder %s74, %s88
      %p90 = scmp.eq.s32.totalorder %s22, 0
      %p91 = por %p89, %p90
      %s92 = ssub.s32 %s16, %s23
      %p93 = scmp.eq.s32.totalorder %s92, 0
      %s95 = sadd.s32 %s94, 1
      %s96 = scalar_select %p93, %s94, %s95
      %p99 = pneg %p93
      %p100 = scmp.eq.s32.totalorder %s16, 1
      %p101 = por %p99, %p100
      %p102 = scmp.ne.s32.totalorder %s94, %s97
      %p103 = scmp.eq.s32.totalorder %s16, 0
      %p104 = por %p102, %p103
      %p105 = scmp.ne.s32.totalorder %s94, %s97
      %p106 = scmp.eq.s32.totalorder %s21, 1
      %p107 = por %p105, %p106
      %p108 = scmp.ne.s32.totalorder %s97, %s98
      %p109 = scmp.eq.s32.totalorder %s21, 0
      %p110 = por %p108, %p109
      %p111 = scmp.ne.s32.totalorder %s97, %s98
      %p112 = scmp.eq.s32.totalorder %s22, 1
      %p113 = por %p111, %p112
      %p115 = scmp.ne.s32.totalorder %s98, %s114
      %p116 = scmp.eq.s32.totalorder %s22, 0
      %p117 = por %p115, %p116
      %p118 = scmp.le.s32.totalorder 1, %s16
      %p119 = scmp.lt.s32.totalorder %s16, 3
      %p120 = pnand %p118, %p119
      %p121 = pneg %p120
      // Predicated region
      $region9: #{causal_conformer_encoder.16} parent=5 // pred_check
        _
      $region10: #{causal_conformer_encoder.16} parent=5 // pred_check_branch
        %123 = sbr.rel (%p120) target = $region12
      $region11: #{causal_conformer_encoder.16} parent=5 // pred_region
        %s124 = ssub.s32 %s16, 1
        // Predicated region
        $region13: #{causal_conformer_encoder.16} parent=11 // pred_check
          %p125 = pneg %p63
        $region14: #{causal_conformer_encoder.16} parent=11 // pred_check_branch
          %127 = sbr.rel (%p125) target = $region16
        $region15: #{causal_conformer_encoder.16} parent=11 // pred_region
          %s129 = ssub.s32 384, 384
          %130 = vsyncadd [#allocation6], %s129
          %s131 = sshll.u32 [#allocation5], 4
          %s132 = int_to_ptr.vmem [resolvable:$true] %s131
          %137 = dma.hbm_to_vmem [thread:$0]  %s1, 384, %s132, [#allocation6], 64, 64, 4
        $region16: #{causal_conformer_encoder.16} parent=11 // pred_fallthru
          _
        // Predicated region
        $region17: #{causal_conformer_encoder.16} parent=11 // pred_check
          %p138 = pneg %p84
        $region18: #{causal_conformer_encoder.16} parent=11 // pred_check_branch
          %140 = sbr.rel (%p138) target = $region20
        $region19: #{causal_conformer_encoder.16} parent=11 // pred_region
          %s142 = ssub.s32 16, 16
          %143 = vsyncadd [#allocation6], %s142
          %s145 = sshll.u32 [#allocation7], 4
          %s146 = int_to_ptr.vmem [resolvable:$true] %s145
          %148 = dma.hbm_to_vmem [thread:$0]  %s2, 16, %s146, [#allocation6]
        $region20: #{causal_conformer_encoder.16} parent=11 // pred_fallthru
          _
      $region12: #{causal_conformer_encoder.16} parent=5 // pred_fallthru
        _
      %p149 = scmp.lt.s32.totalorder %s16, 2
      // Predicated region
      $region21: #{causal_conformer_encoder.16} parent=5 // pred_check
        %p150 = pneg %p149
      $region22: #{causal_conformer_encoder.16} parent=5 // pred_check_branch
        %152 = sbr.rel (%p150) target = $region24
      $region23: #{causal_conformer_encoder.16} parent=5 // pred_region
        // Predicated region
        $region25: #{causal_conformer_encoder.16} parent=23 // pred_check
          %p153 = pneg %p36
        $region26: #{causal_conformer_encoder.16} parent=23 // pred_check_branch
          %155 = sbr.rel (%p153) target = $region28
        $region27: #{causal_conformer_encoder.16} parent=23 // pred_region
          %s156 = sand.u32 %s26, 1
          %s157 = scalar_lea.sflag [#allocation3], %s156
          %s158 = sand.u32 %s26, 1
          %s159 = smul.addr %s158, 8
          %s160 = scalar_lea.vmem [#allocation2], %s159
          %s162 = ssub.s32 128, 128
          %163 = vsyncadd %s157, %s162
          %s164 = smul.addr %s16, 128
          %s165 = scalar_lea.hbm %s0, %s164
          %s167 = sshll.u32 %s160, 4
          %s168 = int_to_ptr.vmem [resolvable:$true] %s167
          %170 = dma.hbm_to_vmem [thread:$0]  %s165, 128, %s168, %s157
        $region28: #{causal_conformer_encoder.16} parent=23 // pred_fallthru
          _
      $region24: #{causal_conformer_encoder.16} parent=5 // pred_fallthru
        _
      %p171 = scmp.le.s32.totalorder 1, %s16
      %p172 = scmp.lt.s32.totalorder %s16, 3
      %p173 = pnand %p171, %p172
      %p174 = pneg %p173
      // Predicated region
      $region29: #{causal_conformer_encoder.16} parent=5 // pred_check
        _
      $region30: #{causal_conformer_encoder.16} parent=5 // pred_check_branch
        %176 = sbr.rel (%p173) target = $region32
      $region31: #{causal_conformer_encoder.16} parent=5 // pred_region
        %s177 = ssub.s32 %s16, 1
        %s178 = sand.u32 %s29, 1
        %s179 = scalar_lea.sflag [#allocation3], %s178
        %s180 = sand.u32 %s29, 1
        %s181 = smul.addr %s180, 8
        %s182 = scalar_lea.vmem [#allocation2], %s181
        // Predicated region
        $region33: #{causal_conformer_encoder.16} parent=31 // pred_check
          %p183 = pneg %p42
        $region34: #{causal_conformer_encoder.16} parent=31 // pred_check_branch
          %185 = sbr.rel (%p183) target = $region36
        $region35: #{causal_conformer_encoder.16} parent=31 // pred_region
          %186 = dma.done %s179, 128
        $region36: #{causal_conformer_encoder.16} parent=31 // pred_fallthru
          _
        // Predicated region
        $region37: #{causal_conformer_encoder.16} parent=31 // pred_check
          %p187 = pneg %p63
        $region38: #{causal_conformer_encoder.16} parent=31 // pred_check_branch
          %189 = sbr.rel (%p187) target = $region40
        $region39: #{causal_conformer_encoder.16} parent=31 // pred_region
          %190 = dma.done [#allocation6], 384
        $region40: #{causal_conformer_encoder.16} parent=31 // pred_fallthru
          _
        // Predicated region
        $region41: #{causal_conformer_encoder.16} parent=31 // pred_check
          %p191 = pneg %p84
        $region42: #{causal_conformer_encoder.16} parent=31 // pred_check_branch
          %193 = sbr.rel (%p191) target = $region44
        $region43: #{causal_conformer_encoder.16} parent=31 // pred_region
          %194 = dma.done [#allocation6], 16
        $region44: #{causal_conformer_encoder.16} parent=31 // pred_fallthru
          _
        %s195 = sand.u32 %s29, 1
        %s196 = scalar_lea.sflag [#allocation3], %s195
        %s197 = sand.u32 %s29, 1
        %s198 = smul.addr %s197, 8
        %s199 = scalar_lea.vmem [#allocation2], %s198
        %p200 = pneg %p42
        %p201 = pneg %p39
        %p202 = pneg %p63
        %p203 = pneg %p60
        %p204 = pneg %p84
        %p205 = pneg %p81
        %p206 = pneg %p110
        %p207 = pneg %p107
        %s208 = sand.u32 %s97, 1
        %s209 = scalar_lea.sflag [#allocation4], %s208
        %s210 = sand.u32 %s97, 1
        %s211 = smul.addr %s210, 8
        %s212 = scalar_lea.vmem [#allocation8], %s211
        %v214 = vld [vmem:[%s182] sm:$0xff]
        %v215 = vld [vmem:[#allocation5] sm:$0xf]
        %v216 = vld [vmem:[#allocation5 + $0x4] sm:$0xf]
        %v217 = vld [vmem:[#allocation5 + $0x8] sm:$0xf]
        %v218 = vld [vmem:[#allocation5 + $0xc] sm:$0xf]
        %v219 = vld [vmem:[#allocation5 + $0x10] sm:$0xf]
        %v220 = vld [vmem:[#allocation5 + $0x14] sm:$0xf]
        %v221 = vpack.c.bf16 %v214, %v214
        %v222 = vld [vmem:[#allocation7] sm:$0x1]
        %v224 = vlaneseq
        %v225 = vshrl.u32 %v224, 7
        %v226 = vsub.s32 0, %v225
        %v227 = vrot.slane %v222, %v226
        %v235 = vunpack.c.l.b16 %v215
        %v236 = vunpack.c.l.b16 %v216
        %v237 = vunpack.c.l.b16 %v217
        %v238 = vunpack.c.l.b16 %v218
        %v239 = vunpack.c.l.b16 %v219
        %v240 = vunpack.c.l.b16 %v220
        %v241 = vpack.c.b16 %v236, %v235
        %v242 = vpack.c.b16 %v238, %v237
        %v243 = vpack.c.b16 %v240, %v239
        %vm247 = vcmask 392192
        %v249 = vsel %vm247, %v221, 0
        %251 = vmatprep.subr.bf16.mxu0 0
        %252 = vmatpush1.bf16.msra.mxu0 %v241
        %253 = vmatprep.subr.bf16.mxu0 0
        %254 = vmatpush1.bf16.msra.mxu0 %v242
        %255 = vmatprep.subr.bf16.mxu0 0
        %256 = vmatpush1.bf16.msra.mxu0 %v243
        %257 = vmatprep.subr.bf16.mxu0 0
        %258 = vmatpush1.bf16.msra.mxu0 0
        %259 = vmatprep.subr.bf16.mxu0 0
        %260 = vmatpush1.bf16.msra.mxu0 0
        %261 = vmatprep.subr.bf16.mxu0 0
        %262 = vmatpush1.bf16.msra.mxu0 0
        %263 = vmatprep.subr.bf16.mxu0 0
        %264 = vmatpush1.bf16.msra.mxu0 0
        %265 = vmatprep.subr.bf16.mxu0 0
        %266 = vmatpush1.bf16.msra.mxu0 0
        %267 = vmatprep.subr.bf16.mxu0 0
        %268 = vmatpush1.bf16.msra.mxu0 0
        %269 = vmatprep.subr.bf16.mxu0 0
        %270 = vmatpush1.bf16.msra.mxu0 0
        %271 = vmatprep.subr.bf16.mxu0 0
        %272 = vmatpush1.bf16.msra.mxu0 0
        %273 = vmatprep.subr.bf16.mxu0 0
        %274 = vmatpush1.bf16.msra.mxu0 0
        %275 = vmatprep.subr.bf16.mxu0 0
        %276 = vmatpush1.bf16.msra.mxu0 0
        %277 = vmatprep.subr.bf16.mxu0 0
        %278 = vmatpush1.bf16.msra.mxu0 0
        %279 = vmatprep.subr.bf16.mxu0 0
        %280 = vmatpush1.bf16.msra.mxu0 0
        %281 = vmatprep.subr.bf16.mxu0 0
        %282 = vmatpush1.bf16.msra.mxu0 0
        %283 = vmatprep.mubr.bf16.mxu0 0
        %284 = vmatmul.mubr.bf16.gmra.mrb[0].mxu0 %v249
        %v285 = vpop.f32.mrb[0].mxu0
        %v286 = vadd.f32 %v227, %v285
        %v287 = vpop.f32.mrb[0].mxu0
        %v288 = vpop.f32.mrb[0].mxu0
        %v289 = vpop.f32.mrb[0].mxu0
        %290 = vdwg.mxu0
        %vm291 = vcmask 130048
        %292 = vst.msk [vmem:[%s212] sm:$0xff] %vm291, %v286
        %s293 = sand.u32 %s97, 1
        %s294 = scalar_lea.sflag [#allocation4], %s293
        %s295 = sand.u32 %s97, 1
        %s296 = smul.addr %s295, 8
        %s297 = scalar_lea.vmem [#allocation8], %s296
        // Predicated region
        $region45: #{causal_conformer_encoder.16} parent=31 // pred_check
          %p298 = pneg %p107
        $region46: #{causal_conformer_encoder.16} parent=31 // pred_check_branch
          %300 = sbr.rel (%p298) target = $region48
        $region47: #{causal_conformer_encoder.16} parent=31 // pred_region
          %s302 = ssub.s32 128, 128
          %303 = vsyncadd %s294, %s302
          %s304 = smul.addr %s21, 128
          %s305 = scalar_lea.hbm %s3, %s304
          %s307 = sshll.u32 %s297, 4
          %s308 = int_to_ptr.vmem [resolvable:$true] %s307
          %310 = dma.vmem_to_hbm [thread:$0]  %s308, 128, %s305, %s294
        $region48: #{causal_conformer_encoder.16} parent=31 // pred_fallthru
          _
      $region32: #{causal_conformer_encoder.16} parent=5 // pred_fallthru
        _
      %p311 = scmp.le.s32.totalorder 2, %s16
      // Predicated region
      $region49: #{causal_conformer_encoder.16} parent=5 // pred_check
        %p312 = pneg %p311
      $region50: #{causal_conformer_encoder.16} parent=5 // pred_check_branch
        %314 = sbr.rel (%p312) target = $region52
      $region51: #{causal_conformer_encoder.16} parent=5 // pred_region
        %s315 = ssub.s32 %s16, 2
        // Predicated region
        $region53: #{causal_conformer_encoder.16} parent=51 // pred_check
          %p316 = pneg %p113
        $region54: #{causal_conformer_encoder.16} parent=51 // pred_check_branch
          %318 = sbr.rel (%p316) target = $region56
        $region55: #{causal_conformer_encoder.16} parent=51 // pred_region
          %s319 = sand.u32 %s98, 1
          %s320 = scalar_lea.sflag [#allocation4], %s319
          %s321 = sand.u32 %s98, 1
          %s322 = smul.addr %s321, 8
          %s323 = scalar_lea.vmem [#allocation8], %s322
          %324 = dma.done %s320, 128
        $region56: #{causal_conformer_encoder.16} parent=51 // pred_fallthru
          _
      $region52: #{causal_conformer_encoder.16} parent=5 // pred_fallthru
        _
    $region6: #{causal_conformer_encoder.16} parent=1 // loop_footer
      %s20 = sadd.s32 1, %s16
    $region7: #{causal_conformer_encoder.16} parent=1 // loop_footer_branch
      %15 = sbr.rel target = $region3
    $region8: #{causal_conformer_encoder.16} parent=1 // loop_exit
      _
    %325 = vsyncpa [#allocation3], 1
    %s326 = scalar_lea.sflag [#allocation3], 1
    %327 = vsyncpa %s326, 1
    %328 = vsyncpa [#allocation6], 1
    %329 = vsyncpa [#allocation4], 1
    %s330 = scalar_lea.sflag [#allocation4], 1
    %331 = vsyncpa %s330, 1

// kernel: causal_conformer_encoder.18
$region0: #{causal_conformer_encoder.18}
  #allocation0 [shape = 'u32[]', space=smem, size = 0x4, offset = 0x4, fixed_abs, tag = 'smem constant byte address 0x4 - core index']
  #allocation1 [shape = 'u32[144,128]{1,0:T(1,128)}', space=vmem, size = 0x12000, scoped, tag = 'internal scratch']
  %s0 = inlined_call_operand.hbm [shape: f32[16,16], index: 0, kind: input, shape index: {}]
  %s1 = inlined_call_operand.hbm [shape: f32[1,16], index: 1, kind: input, shape index: {}]
  %s2 = inlined_call_operand.hbm [shape: f32[1,16], index: 2, kind: input, shape index: {}]
  %s3 = inlined_call_operand.hbm [shape: bf16[16,32], index: 3, kind: input, shape index: {}]
  %s4 = inlined_call_operand.hbm [shape: f32[1,32], index: 4, kind: input, shape index: {}]
  %s5 = inlined_call_operand.hbm [shape: bf16[32,16], index: 5, kind: input, shape index: {}]
  %s6 = inlined_call_operand.hbm [shape: f32[1,16], index: 6, kind: input, shape index: {}]
  %s7 = inlined_call_operand.hbm [shape: f32[1,16], index: 7, kind: input, shape index: {}]
  %s8 = inlined_call_operand.hbm [shape: f32[1,16], index: 8, kind: input, shape index: {}]
  %s9 = inlined_call_operand.hbm [shape: f32[16,16], index: 9, kind: output, shape index: {}]
  %s10 = sld [smem:[#allocation0]]
  $region105: #{causal_conformer_encoder.18} parent=0
    _
  %s12 = ssub.s32 1, %s10
  %s13 = scalar_select 0, %s12, %s10
  $region1: #{causal_conformer_encoder.18} parent=0
    #allocation2 [shape = 'u8[8192]{0}', space=vmem, size = 0x2000, scoped, tag = 'input window, operand 0']
    #allocation3 [shape = 's32[2]{0}', space=sflag, size = 0x8, scoped, tag = 'scoped memory for causal_conformer_encoder.18']
    #allocation4 [shape = 's32[2]{0}', space=sflag, size = 0x8, scoped, tag = 'scoped memory for causal_conformer_encoder.18']
    #allocation5 [shape = 'u8[512]{0}', space=vmem, size = 0x400, scoped, tag = 'input window, operand 1, single buffered']
    #allocation6 [shape = 's32[1]{0}', space=sflag, size = 0x4, scoped, tag = 'scoped memory for causal_conformer_encoder.18']
    #allocation7 [shape = 'u8[512]{0}', space=vmem, size = 0x400, scoped, tag = 'input window, operand 2, single buffered']
    #allocation8 [shape = 'u8[4096]{0}', space=vmem, size = 0x1000, scoped, tag = 'input window, operand 3, single buffered']
    #allocation9 [shape = 's32[1]{0}', space=sflag, size = 0x4, scoped, tag = 'scoped memory for causal_conformer_encoder.18']
    #allocation10 [shape = 'u8[512]{0}', space=vmem, size = 0x400, scoped, tag = 'input window, operand 4, single buffered']
    #allocation11 [shape = 'u8[8192]{0}', space=vmem, size = 0x2000, scoped, tag = 'input window, operand 5, single buffered']
    #allocation12 [shape = 's32[1]{0}', space=sflag, size = 0x4, scoped, tag = 'scoped memory for causal_conformer_encoder.18']
    #allocation13 [shape = 'u8[512]{0}', space=vmem, size = 0x400, scoped, tag = 'input window, operand 6, single buffered']
    #allocation14 [shape = 'u8[512]{0}', space=vmem, size = 0x400, scoped, tag = 'input window, operand 7, single buffered']
    #allocation15 [shape = 's32[1]{0}', space=sflag, size = 0x4, scoped, tag = 'scoped memory for causal_conformer_encoder.18']
    #allocation16 [shape = 'u8[512]{0}', space=vmem, size = 0x400, scoped, tag = 'input window, operand 8, single buffered']
    #allocation17 [shape = 'u8[8192]{0}', space=vmem, size = 0x2000, scoped, tag = 'output window, operand 0']
    %14 = vsyncpa [#allocation3], 0
    %s15 = scalar_lea.sflag [#allocation3], 1
    %16 = vsyncpa %s15, 0
    %17 = vsyncpa [#allocation6], 0
    %18 = vsyncpa [#allocation9], 0
    %19 = vsyncpa [#allocation12], 0
    %20 = vsyncpa [#allocation15], 0
    %21 = vsyncpa [#allocation4], 0
    %s22 = scalar_lea.sflag [#allocation4], 1
    %23 = vsyncpa %s22, 0
    loop: start=0, step=1, limit=4
    $region2: #{causal_conformer_encoder.18} parent=1 // loop_pre_header
      _
    $region3: #{causal_conformer_encoder.18} parent=1 // loop_header
      %s25 = sphi 0, %s29
      %p26 = scmp.ge.s32.totalorder %s25, 4
      %s35 = sphi 0, %s37
      %s38 = sphi 0, %s35
      %s39 = sphi 0, %s38
      %s55 = sphi 0, %s39
      %s59 = sphi 0, %s59
      %s61 = sphi 0, %s59
      %s62 = sphi 0, %s61
      %s76 = sphi 0, %s62
      %s80 = sphi 0, %s80
      %s82 = sphi 0, %s80
      %s83 = sphi 0, %s82
      %s97 = sphi 0, %s83
      %s101 = sphi 0, %s101
      %s103 = sphi 0, %s101
      %s104 = sphi 0, %s103
      %s118 = sphi 0, %s104
      %s122 = sphi 0, %s122
      %s124 = sphi 0, %s122
      %s125 = sphi 0, %s124
      %s139 = sphi 0, %s125
      %s143 = sphi 0, %s143
      %s145 = sphi 0, %s143
      %s146 = sphi 0, %s145
      %s160 = sphi 0, %s146
      %s164 = sphi 0, %s164
      %s166 = sphi 0, %s164
      %s167 = sphi 0, %s166
      %s181 = sphi 0, %s167
      %s185 = sphi 0, %s185
      %s187 = sphi 0, %s185
      %s188 = sphi 0, %s187
      %s202 = sphi 0, %s188
      %s206 = sphi 0, %s206
      %s208 = sphi 0, %s206
      %s209 = sphi 0, %s208
      %s223 = sphi 0, %s209
      %s229 = sphi 0, %s231
      %s232 = sphi 0, %s229
      %s233 = sphi 0, %s232
      %s249 = sphi 0, %s233
    $region4: #{causal_conformer_encoder.18} parent=1 // loop_header_branch
      %28 = sbr.rel (%p26) target = $region8
    $region5: #{causal_conformer_encoder.18} parent=1 // loop_body
      %s30 = ssub.s32 %s25, 1
      %s31 = ssub.s32 %s25, 2
      %s32 = sadd.s32 %s25, 1
      %s33 = ssub.s32 %s25, %s32
      %p34 = scmp.eq.s32.totalorder %s33, 0
      %s36 = sadd.s32 %s35, 1
      %s37 = scalar_select %p34, %s35, %s36
      %p40 = pneg %p34
      %p41 = scmp.eq.s32.totalorder %s25, 1
      %p42 = por %p40, %p41
      %p43 = scmp.ne.s32.totalorder %s35, %s38
      %p44 = scmp.eq.s32.totalorder %s25, 0
      %p45 = por %p43, %p44
      %p46 = scmp.ne.s32.totalorder %s35, %s38
      %p47 = scmp.eq.s32.totalorder %s30, 1
      %p48 = por %p46, %p47
      %p49 = scmp.ne.s32.totalorder %s38, %s39
      %p50 = scmp.eq.s32.totalorder %s30, 0
      %p51 = por %p49, %p50
      %p52 = scmp.ne.s32.totalorder %s38, %s39
      %p53 = scmp.eq.s32.totalorder %s31, 1
      %p54 = por %p52, %p53
      %p56 = scmp.ne.s32.totalorder %s39, %s55
      %p57 = scmp.eq.s32.totalorder %s31, 0
      %p58 = por %p56, %p57
      %s60 = sadd.s32 %s59, 1
      %p63 = scmp.eq.s32.totalorder %s25, 1
      %p64 = scmp.ne.s32.totalorder %s59, %s61
      %p65 = scmp.eq.s32.totalorder %s25, 0
      %p66 = por %p64, %p65
      %p67 = scmp.ne.s32.totalorder %s59, %s61
      %p68 = scmp.eq.s32.totalorder %s30, 1
      %p69 = por %p67, %p68
      %p70 = scmp.ne.s32.totalorder %s61, %s62
      %p71 = scmp.eq.s32.totalorder %s30, 0
      %p72 = por %p70, %p71
      %p73 = scmp.ne.s32.totalorder %s61, %s62
      %p74 = scmp.eq.s32.totalorder %s31, 1
      %p75 = por %p73, %p74
      %p77 = scmp.ne.s32.totalorder %s62, %s76
      %p78 = scmp.eq.s32.totalorder %s31, 0
      %p79 = por %p77, %p78
      %s81 = sadd.s32 %s80, 1
      %p84 = scmp.eq.s32.totalorder %s25, 1
      %p85 = scmp.ne.s32.totalorder %s80, %s82
      %p86 = scmp.eq.s32.totalorder %s25, 0
      %p87 = por %p85, %p86
      %p88 = scmp.ne.s32.totalorder %s80, %s82
      %p89 = scmp.eq.s32.totalorder %s30, 1
      %p90 = por %p88, %p89
      %p91 = scmp.ne.s32.totalorder %s82, %s83
      %p92 = scmp.eq.s32.totalorder %s30, 0
      %p93 = por %p91, %p92
      %p94 = scmp.ne.s32.totalorder %s82, %s83
      %p95 = scmp.eq.s32.totalorder %s31, 1
      %p96 = por %p94, %p95
      %p98 = scmp.ne.s32.totalorder %s83, %s97
      %p99 = scmp.eq.s32.totalorder %s31, 0
      %p100 = por %p98, %p99
      %s102 = sadd.s32 %s101, 1
      %p105 = scmp.eq.s32.totalorder %s25, 1
      %p106 = scmp.ne.s32.totalorder %s101, %s103
      %p107 = scmp.eq.s32.totalorder %s25, 0
      %p108 = por %p106, %p107
      %p109 = scmp.ne.s32.totalorder %s101, %s103
      %p110 = scmp.eq.s32.totalorder %s30, 1
      %p111 = por %p109, %p110
      %p112 = scmp.ne.s32.totalorder %s103, %s104
      %p113 = scmp.eq.s32.totalorder %s30, 0
      %p114 = por %p112, %p113
      %p115 = scmp.ne.s32.totalorder %s103, %s104
      %p116 = scmp.eq.s32.totalorder %s31, 1
      %p117 = por %p115, %p116
      %p119 = scmp.ne.s32.totalorder %s104, %s118
      %p120 = scmp.eq.s32.totalorder %s31, 0
      %p121 = por %p119, %p120
      %s123 = sadd.s32 %s122, 1
      %p126 = scmp.eq.s32.totalorder %s25, 1
      %p127 = scmp.ne.s32.totalorder %s122, %s124
      %p128 = scmp.eq.s32.totalorder %s25, 0
      %p129 = por %p127, %p128
      %p130 = scmp.ne.s32.totalorder %s122, %s124
      %p131 = scmp.eq.s32.totalorder %s30, 1
      %p132 = por %p130, %p131
      %p133 = scmp.ne.s32.totalorder %s124, %s125
      %p134 = scmp.eq.s32.totalorder %s30, 0
      %p135 = por %p133, %p134
      %p136 = scmp.ne.s32.totalorder %s124, %s125
      %p137 = scmp.eq.s32.totalorder %s31, 1
      %p138 = por %p136, %p137
      %p140 = scmp.ne.s32.totalorder %s125, %s139
      %p141 = scmp.eq.s32.totalorder %s31, 0
      %p142 = por %p140, %p141
      %s144 = sadd.s32 %s143, 1
      %p147 = scmp.eq.s32.totalorder %s25, 1
      %p148 = scmp.ne.s32.totalorder %s143, %s145
      %p149 = scmp.eq.s32.totalorder %s25, 0
      %p150 = por %p148, %p149
      %p151 = scmp.ne.s32.totalorder %s143, %s145
      %p152 = scmp.eq.s32.totalorder %s30, 1
      %p153 = por %p151, %p152
      %p154 = scmp.ne.s32.totalorder %s145, %s146
      %p155 = scmp.eq.s32.totalorder %s30, 0
      %p156 = por %p154, %p155
      %p157 = scmp.ne.s32.totalorder %s145, %s146
      %p158 = scmp.eq.s32.totalorder %s31, 1
      %p159 = por %p157, %p158
      %p161 = scmp.ne.s32.totalorder %s146, %s160
      %p162 = scmp.eq.s32.totalorder %s31, 0
      %p163 = por %p161, %p162
      %s165 = sadd.s32 %s164, 1
      %p168 = scmp.eq.s32.totalorder %s25, 1
      %p169 = scmp.ne.s32.totalorder %s164, %s166
      %p170 = scmp.eq.s32.totalorder %s25, 0
      %p171 = por %p169, %p170
      %p172 = scmp.ne.s32.totalorder %s164, %s166
      %p173 = scmp.eq.s32.totalorder %s30, 1
      %p174 = por %p172, %p173
      %p175 = scmp.ne.s32.totalorder %s166, %s167
      %p176 = scmp.eq.s32.totalorder %s30, 0
      %p177 = por %p175, %p176
      %p178 = scmp.ne.s32.totalorder %s166, %s167
      %p179 = scmp.eq.s32.totalorder %s31, 1
      %p180 = por %p178, %p179
      %p182 = scmp.ne.s32.totalorder %s167, %s181
      %p183 = scmp.eq.s32.totalorder %s31, 0
      %p184 = por %p182, %p183
      %s186 = sadd.s32 %s185, 1
      %p189 = scmp.eq.s32.totalorder %s25, 1
      %p190 = scmp.ne.s32.totalorder %s185, %s187
      %p191 = scmp.eq.s32.totalorder %s25, 0
      %p192 = por %p190, %p191
      %p193 = scmp.ne.s32.totalorder %s185, %s187
      %p194 = scmp.eq.s32.totalorder %s30, 1
      %p195 = por %p193, %p194
      %p196 = scmp.ne.s32.totalorder %s187, %s188
      %p197 = scmp.eq.s32.totalorder %s30, 0
      %p198 = por %p196, %p197
      %p199 = scmp.ne.s32.totalorder %s187, %s188
      %p200 = scmp.eq.s32.totalorder %s31, 1
      %p201 = por %p199, %p200
      %p203 = scmp.ne.s32.totalorder %s188, %s202
      %p204 = scmp.eq.s32.totalorder %s31, 0
      %p205 = por %p203, %p204
      %s207 = sadd.s32 %s206, 1
      %p210 = scmp.eq.s32.totalorder %s25, 1
      %p211 = scmp.ne.s32.totalorder %s206, %s208
      %p212 = scmp.eq.s32.totalorder %s25, 0
      %p213 = por %p211, %p212
      %p214 = scmp.ne.s32.totalorder %s206, %s208
      %p215 = scmp.eq.s32.totalorder %s30, 1
      %p216 = por %p214, %p215
      %p217 = scmp.ne.s32.totalorder %s208, %s209
      %p218 = scmp.eq.s32.totalorder %s30, 0
      %p219 = por %p217, %p218
      %p220 = scmp.ne.s32.totalorder %s208, %s209
      %p221 = scmp.eq.s32.totalorder %s31, 1
      %p222 = por %p220, %p221
      %p224 = scmp.ne.s32.totalorder %s209, %s223
      %p225 = scmp.eq.s32.totalorder %s31, 0
      %p226 = por %p224, %p225
      %s227 = ssub.s32 %s25, %s32
      %p228 = scmp.eq.s32.totalorder %s227, 0
      %s230 = sadd.s32 %s229, 1
      %s231 = scalar_select %p228, %s229, %s230
      %p234 = pneg %p228
      %p235 = scmp.eq.s32.totalorder %s25, 1
      %p236 = por %p234, %p235
      %p237 = scmp.ne.s32.totalorder %s229, %s232
      %p238 = scmp.eq.s32.totalorder %s25, 0
      %p239 = por %p237, %p238
      %p240 = scmp.ne.s32.totalorder %s229, %s232
      %p241 = scmp.eq.s32.totalorder %s30, 1
      %p242 = por %p240, %p241
      %p243 = scmp.ne.s32.totalorder %s232, %s233
      %p244 = scmp.eq.s32.totalorder %s30, 0
      %p245 = por %p243, %p244
      %p246 = scmp.ne.s32.totalorder %s232, %s233
      %p247 = scmp.eq.s32.totalorder %s31, 1
      %p248 = por %p246, %p247
      %p250 = scmp.ne.s32.totalorder %s233, %s249
      %p251 = scmp.eq.s32.totalorder %s31, 0
      %p252 = por %p250, %p251
      %p253 = scmp.le.s32.totalorder 1, %s25
      %p254 = scmp.lt.s32.totalorder %s25, 3
      %p255 = pnand %p253, %p254
      %p256 = pneg %p255
      // Predicated region
      $region9: #{causal_conformer_encoder.18} parent=5 // pred_check
        _
      $region10: #{causal_conformer_encoder.18} parent=5 // pred_check_branch
        %258 = sbr.rel (%p255) target = $region12
      $region11: #{causal_conformer_encoder.18} parent=5 // pred_region
        %s259 = ssub.s32 %s25, 1
        // Predicated region
        $region13: #{causal_conformer_encoder.18} parent=11 // pred_check
          %p260 = pneg %p72
        $region14: #{causal_conformer_encoder.18} parent=11 // pred_check_branch
          %262 = sbr.rel (%p260) target = $region16
        $region15: #{causal_conformer_encoder.18} parent=11 // pred_region
          %s264 = ssub.s32 16, 16
          %265 = vsyncadd [#allocation6], %s264
          %s267 = sshll.u32 [#allocation5], 4
          %s268 = int_to_ptr.vmem [resolvable:$true] %s267
          %270 = dma.hbm_to_vmem [thread:$0]  %s1, 16, %s268, [#allocation6]
        $region16: #{causal_conformer_encoder.18} parent=11 // pred_fallthru
          _
        // Predicated region
        $region17: #{causal_conformer_encoder.18} parent=11 // pred_check
          %p271 = pneg %p93
        $region18: #{causal_conformer_encoder.18} parent=11 // pred_check_branch
          %273 = sbr.rel (%p271) target = $region20
        $region19: #{causal_conformer_encoder.18} parent=11 // pred_region
          %s275 = ssub.s32 16, 16
          %276 = vsyncadd [#allocation6], %s275
          %s278 = sshll.u32 [#allocation7], 4
          %s279 = int_to_ptr.vmem [resolvable:$true] %s278
          %281 = dma.hbm_to_vmem [thread:$0]  %s2, 16, %s279, [#allocation6]
        $region20: #{causal_conformer_encoder.18} parent=11 // pred_fallthru
          _
        // Predicated region
        $region21: #{causal_conformer_encoder.18} parent=11 // pred_check
          %p282 = pneg %p114
        $region22: #{causal_conformer_encoder.18} parent=11 // pred_check_branch
          %284 = sbr.rel (%p282) target = $region24
        $region23: #{causal_conformer_encoder.18} parent=11 // pred_region
          %s286 = ssub.s32 128, 128
          %287 = vsyncadd [#allocation9], %s286
          %s288 = sshll.u32 [#allocation8], 4
          %s289 = int_to_ptr.vmem [resolvable:$true] %s288
          %294 = dma.hbm_to_vmem [thread:$0]  %s3, 128, %s289, [#allocation9], 64, 64, 4
        $region24: #{causal_conformer_encoder.18} parent=11 // pred_fallthru
          _
        // Predicated region
        $region25: #{causal_conformer_encoder.18} parent=11 // pred_check
          %p295 = pneg %p135
        $region26: #{causal_conformer_encoder.18} parent=11 // pred_check_branch
          %297 = sbr.rel (%p295) target = $region28
        $region27: #{causal_conformer_encoder.18} parent=11 // pred_region
          %s299 = ssub.s32 16, 16
          %300 = vsyncadd [#allocation9], %s299
          %s302 = sshll.u32 [#allocation10], 4
          %s303 = int_to_ptr.vmem [resolvable:$true] %s302
          %305 = dma.hbm_to_vmem [thread:$0]  %s4, 16, %s303, [#allocation9]
        $region28: #{causal_conformer_encoder.18} parent=11 // pred_fallthru
          _
        // Predicated region
        $region29: #{causal_conformer_encoder.18} parent=11 // pred_check
          %p306 = pneg %p156
        $region30: #{causal_conformer_encoder.18} parent=11 // pred_check_branch
          %308 = sbr.rel (%p306) target = $region32
        $region31: #{causal_conformer_encoder.18} parent=11 // pred_region
          %s310 = ssub.s32 256, 256
          %311 = vsyncadd [#allocation12], %s310
          %s312 = sshll.u32 [#allocation11], 4
          %s313 = int_to_ptr.vmem [resolvable:$true] %s312
          %318 = dma.hbm_to_vmem [thread:$0]  %s5, 256, %s313, [#allocation12], 64, 64, 4
        $region32: #{causal_conformer_encoder.18} parent=11 // pred_fallthru
          _
        // Predicated region
        $region33: #{causal_conformer_encoder.18} parent=11 // pred_check
          %p319 = pneg %p177
        $region34: #{causal_conformer_encoder.18} parent=11 // pred_check_branch
          %321 = sbr.rel (%p319) target = $region36
        $region35: #{causal_conformer_encoder.18} parent=11 // pred_region
          %s323 = ssub.s32 16, 16
          %324 = vsyncadd [#allocation12], %s323
          %s326 = sshll.u32 [#allocation13], 4
          %s327 = int_to_ptr.vmem [resolvable:$true] %s326
          %329 = dma.hbm_to_vmem [thread:$0]  %s6, 16, %s327, [#allocation12]
        $region36: #{causal_conformer_encoder.18} parent=11 // pred_fallthru
          _
        // Predicated region
        $region37: #{causal_conformer_encoder.18} parent=11 // pred_check
          %p330 = pneg %p198
        $region38: #{causal_conformer_encoder.18} parent=11 // pred_check_branch
          %332 = sbr.rel (%p330) target = $region40
        $region39: #{causal_conformer_encoder.18} parent=11 // pred_region
          %s334 = ssub.s32 16, 16
          %335 = vsyncadd [#allocation15], %s334
          %s337 = sshll.u32 [#allocation14], 4
          %s338 = int_to_ptr.vmem [resolvable:$true] %s337
          %340 = dma.hbm_to_vmem [thread:$0]  %s7, 16, %s338, [#allocation15]
        $region40: #{causal_conformer_encoder.18} parent=11 // pred_fallthru
          _
        // Predicated region
        $region41: #{causal_conformer_encoder.18} parent=11 // pred_check
          %p341 = pneg %p219
        $region42: #{causal_conformer_encoder.18} parent=11 // pred_check_branch
          %343 = sbr.rel (%p341) target = $region44
        $region43: #{causal_conformer_encoder.18} parent=11 // pred_region
          %s345 = ssub.s32 16, 16
          %346 = vsyncadd [#allocation15], %s345
          %s348 = sshll.u32 [#allocation16], 4
          %s349 = int_to_ptr.vmem [resolvable:$true] %s348
          %351 = dma.hbm_to_vmem [thread:$0]  %s8, 16, %s349, [#allocation15]
        $region44: #{causal_conformer_encoder.18} parent=11 // pred_fallthru
          _
      $region12: #{causal_conformer_encoder.18} parent=5 // pred_fallthru
        _
      %p352 = scmp.lt.s32.totalorder %s25, 2
      // Predicated region
      $region45: #{causal_conformer_encoder.18} parent=5 // pred_check
        %p353 = pneg %p352
      $region46: #{causal_conformer_encoder.18} parent=5 // pred_check_branch
        %355 = sbr.rel (%p353) target = $region48
      $region47: #{causal_conformer_encoder.18} parent=5 // pred_region
        // Predicated region
        $region49: #{causal_conformer_encoder.18} parent=47 // pred_check
          %p356 = pneg %p45
        $region50: #{causal_conformer_encoder.18} parent=47 // pred_check_branch
          %358 = sbr.rel (%p356) target = $region52
        $region51: #{causal_conformer_encoder.18} parent=47 // pred_region
          %s359 = sand.u32 %s35, 1
          %s360 = scalar_lea.sflag [#allocation3], %s359
          %s361 = sand.u32 %s35, 1
          %s362 = smul.addr %s361, 8
          %s363 = scalar_lea.vmem [#allocation2], %s362
          %s365 = ssub.s32 128, 128
          %366 = vsyncadd %s360, %s365
          %s367 = smul.addr %s25, 128
          %s368 = scalar_lea.hbm %s0, %s367
          %s370 = sshll.u32 %s363, 4
          %s371 = int_to_ptr.vmem [resolvable:$true] %s370
          %373 = dma.hbm_to_vmem [thread:$0]  %s368, 128, %s371, %s360
        $region52: #{causal_conformer_encoder.18} parent=47 // pred_fallthru
          _
      $region48: #{causal_conformer_encoder.18} parent=5 // pred_fallthru
        _
      %p374 = scmp.le.s32.totalorder 1, %s25
      %p375 = scmp.lt.s32.totalorder %s25, 3
      %p376 = pnand %p374, %p375
      %p377 = pneg %p376
      // Predicated region
      $region53: #{causal_conformer_encoder.18} parent=5 // pred_check
        _
      $region54: #{causal_conformer_encoder.18} parent=5 // pred_check_branch
        %379 = sbr.rel (%p376) target = $region56
      $region55: #{causal_conformer_encoder.18} parent=5 // pred_region
        %s380 = ssub.s32 %s25, 1
        %s381 = sand.u32 %s38, 1
        %s382 = scalar_lea.sflag [#allocation3], %s381
        %s383 = sand.u32 %s38, 1
        %s384 = smul.addr %s383, 8
        %s385 = scalar_lea.vmem [#allocation2], %s384
        // Predicated region
        $region57: #{causal_conformer_encoder.18} parent=55 // pred_check
          %p386 = pneg %p51
        $region58: #{causal_conformer_encoder.18} parent=55 // pred_check_branch
          %388 = sbr.rel (%p386) target = $region60
        $region59: #{causal_conformer_encoder.18} parent=55 // pred_region
          %389 = dma.done %s382, 128
        $region60: #{causal_conformer_encoder.18} parent=55 // pred_fallthru
          _
        // Predicated region
        $region61: #{causal_conformer_encoder.18} parent=55 // pred_check
          %p390 = pneg %p72
        $region62: #{causal_conformer_encoder.18} parent=55 // pred_check_branch
          %392 = sbr.rel (%p390) target = $region64
        $region63: #{causal_conformer_encoder.18} parent=55 // pred_region
          %393 = dma.done [#allocation6], 16
        $region64: #{causal_conformer_encoder.18} parent=55 // pred_fallthru
          _
        // Predicated region
        $region65: #{causal_conformer_encoder.18} parent=55 // pred_check
          %p394 = pneg %p93
        $region66: #{causal_conformer_encoder.18} parent=55 // pred_check_branch
          %396 = sbr.rel (%p394) target = $region68
        $region67: #{causal_conformer_encoder.18} parent=55 // pred_region
          %397 = dma.done [#allocation6], 16
        $region68: #{causal_conformer_encoder.18} parent=55 // pred_fallthru
          _
        // Predicated region
        $region69: #{causal_conformer_encoder.18} parent=55 // pred_check
          %p398 = pneg %p114
        $region70: #{causal_conformer_encoder.18} parent=55 // pred_check_branch
          %400 = sbr.rel (%p398) target = $region72
        $region71: #{causal_conformer_encoder.18} parent=55 // pred_region
          %401 = dma.done [#allocation9], 128
        $region72: #{causal_conformer_encoder.18} parent=55 // pred_fallthru
          _
        // Predicated region
        $region73: #{causal_conformer_encoder.18} parent=55 // pred_check
          %p402 = pneg %p135
        $region74: #{causal_conformer_encoder.18} parent=55 // pred_check_branch
          %404 = sbr.rel (%p402) target = $region76
        $region75: #{causal_conformer_encoder.18} parent=55 // pred_region
          %405 = dma.done [#allocation9], 16
        $region76: #{causal_conformer_encoder.18} parent=55 // pred_fallthru
          _
        // Predicated region
        $region77: #{causal_conformer_encoder.18} parent=55 // pred_check
          %p406 = pneg %p156
        $region78: #{causal_conformer_encoder.18} parent=55 // pred_check_branch
          %408 = sbr.rel (%p406) target = $region80
        $region79: #{causal_conformer_encoder.18} parent=55 // pred_region
          %409 = dma.done [#allocation12], 256
        $region80: #{causal_conformer_encoder.18} parent=55 // pred_fallthru
          _
        // Predicated region
        $region81: #{causal_conformer_encoder.18} parent=55 // pred_check
          %p410 = pneg %p177
        $region82: #{causal_conformer_encoder.18} parent=55 // pred_check_branch
          %412 = sbr.rel (%p410) target = $region84
        $region83: #{causal_conformer_encoder.18} parent=55 // pred_region
          %413 = dma.done [#allocation12], 16
        $region84: #{causal_conformer_encoder.18} parent=55 // pred_fallthru
          _
        // Predicated region
        $region85: #{causal_conformer_encoder.18} parent=55 // pred_check
          %p414 = pneg %p198
        $region86: #{causal_conformer_encoder.18} parent=55 // pred_check_branch
          %416 = sbr.rel (%p414) target = $region88
        $region87: #{causal_conformer_encoder.18} parent=55 // pred_region
          %417 = dma.done [#allocation15], 16
        $region88: #{causal_conformer_encoder.18} parent=55 // pred_fallthru
          _
        // Predicated region
        $region89: #{causal_conformer_encoder.18} parent=55 // pred_check
          %p418 = pneg %p219
        $region90: #{causal_conformer_encoder.18} parent=55 // pred_check_branch
          %420 = sbr.rel (%p418) target = $region92
        $region91: #{causal_conformer_encoder.18} parent=55 // pred_region
          %421 = dma.done [#allocation15], 16
        $region92: #{causal_conformer_encoder.18} parent=55 // pred_fallthru
          _
        %s422 = sand.u32 %s38, 1
        %s423 = scalar_lea.sflag [#allocation3], %s422
        %s424 = sand.u32 %s38, 1
        %s425 = smul.addr %s424, 8
        %s426 = scalar_lea.vmem [#allocation2], %s425
        %p427 = pneg %p51
        %p428 = pneg %p48
        %p429 = pneg %p72
        %p430 = pneg %p69
        %p431 = pneg %p93
        %p432 = pneg %p90
        %p433 = pneg %p114
        %p434 = pneg %p111
        %p435 = pneg %p135
        %p436 = pneg %p132
        %p437 = pneg %p156
        %p438 = pneg %p153
        %p439 = pneg %p177
        %p440 = pneg %p174
        %p441 = pneg %p198
        %p442 = pneg %p195
        %p443 = pneg %p219
        %p444 = pneg %p216
        %p445 = pneg %p245
        %p446 = pneg %p242
        %s447 = sand.u32 %s232, 1
        %s448 = scalar_lea.sflag [#allocation4], %s447
        %s449 = sand.u32 %s232, 1
        %s450 = smul.addr %s449, 8
        %s451 = scalar_lea.vmem [#allocation17], %s450
        %v453 = vld [vmem:[%s385] sm:$0xff]
        %v454 = vld [vmem:[#allocation5] sm:$0x1]
        %v455 = vld [vmem:[#allocation7] sm:$0x1]
        %vm456 = vcmask 130048
        %v457 = vsel %vm456, %v453, 0.0
        %458 = vadd.xlane.f32.xlu0 %v457
        %v459 = vpop.xlane.xlu0 %458
        %v460 = vrcp.pop 16.0
        %v461 = vmul.f32 %v459, %v460
        %v462 = vsub.f32 %v453, %v461
        %v463 = vmul.f32 %v462, %v462
        %v464 = vsel %vm456, %v463, 0.0
        %465 = vadd.xlane.f32.xlu0 %v464
        %v466 = vpop.xlane.xlu0 %465
        %v467 = vmul.f32 %v466, %v460
        %v468 = vadd.f32 %v467, 1e-05
        %v469 = vrsqrt.pop %v468
        %v470 = vmul.f32 %v462, %v469
        %v472 = vlaneseq
        %v473 = vshrl.u32 %v472, 7
        %v474 = vsub.s32 0, %v473
        %v475 = vrot.slane %v454, %v474
        %v477 = vmul.f32 %v470, %v475
        %v479 = vlaneseq
        %v480 = vshrl.u32 %v479, 7
        %v481 = vsub.s32 0, %v480
        %v482 = vrot.slane %v455, %v481
        %v484 = vadd.f32 %v477, %v482
        %v485 = vld [vmem:[#allocation8] sm:$0xf]
        %v486 = vld [vmem:[#allocation8 + $0x4] sm:$0xf]
        %v487 = vpack.c.bf16 %v484, %v484
        %v488 = vld [vmem:[#allocation10] sm:$0x1]
        %v490 = vlaneseq
        %v491 = vshrl.u32 %v490, 7
        %v492 = vsub.s32 0, %v491
        %v493 = vrot.slane %v488, %v492
        %v497 = vunpack.c.l.b16 %v485
        %v498 = vunpack.c.l.b16 %v486
        %v499 = vpack.c.b16 %v498, %v497
        %v502 = vsel %vm456, %v487, 0
        %504 = vmatprep.subr.bf16.mxu0 0
        %505 = vmatpush1.bf16.msra.mxu0 %v499
        %506 = vmatprep.subr.bf16.mxu0 0
        %507 = vmatpush1.bf16.msra.mxu0 0
        %508 = vmatprep.subr.bf16.mxu0 0
        %509 = vmatpush1.bf16.msra.mxu0 0
        %510 = vmatprep.subr.bf16.mxu0 0
        %511 = vmatpush1.bf16.msra.mxu0 0
        %512 = vmatprep.subr.bf16.mxu0 0
        %513 = vmatpush1.bf16.msra.mxu0 0
        %514 = vmatprep.subr.bf16.mxu0 0
        %515 = vmatpush1.bf16.msra.mxu0 0
        %516 = vmatprep.subr.bf16.mxu0 0
        %517 = vmatpush1.bf16.msra.mxu0 0
        %518 = vmatprep.subr.bf16.mxu0 0
        %519 = vmatpush1.bf16.msra.mxu0 0
        %520 = vmatprep.subr.bf16.mxu0 0
        %521 = vmatpush1.bf16.msra.mxu0 0
        %522 = vmatprep.subr.bf16.mxu0 0
        %523 = vmatpush1.bf16.msra.mxu0 0
        %524 = vmatprep.subr.bf16.mxu0 0
        %525 = vmatpush1.bf16.msra.mxu0 0
        %526 = vmatprep.subr.bf16.mxu0 0
        %527 = vmatpush1.bf16.msra.mxu0 0
        %528 = vmatprep.subr.bf16.mxu0 0
        %529 = vmatpush1.bf16.msra.mxu0 0
        %530 = vmatprep.subr.bf16.mxu0 0
        %531 = vmatpush1.bf16.msra.mxu0 0
        %532 = vmatprep.subr.bf16.mxu0 0
        %533 = vmatpush1.bf16.msra.mxu0 0
        %534 = vmatprep.subr.bf16.mxu0 0
        %535 = vmatpush1.bf16.msra.mxu0 0
        %536 = vmatprep.mubr.bf16.mxu0 0
        %537 = vmatmul.mubr.bf16.gmra.mrb[0].mxu0 %v502
        %v538 = vpop.f32.mrb[0].mxu0
        %v539 = vadd.f32 %v493, %v538
        %v540 = vpop.f32.mrb[0].mxu0
        %v541 = vpop.f32.mrb[0].mxu0
        %v542 = vpop.f32.mrb[0].mxu0
        %543 = vdwg.mxu0
        %v544 = vxor.u32 %v539, 2147483648
        %v545 = vmul.f32 %v544, 1.442695
        %v546 = vpow.pop %v545
        %v547 = vadd.f32 %v546, 1.0
        %v548 = vrcp.pop %v547
        %v549 = vmul.f32 1.0, %v548
        %v550 = vmul.f32 %v539, %v549
        %v551 = vld [vmem:[#allocation11] sm:$0xf]
        %v552 = vld [vmem:[#allocation11 + $0x4] sm:$0xf]
        %v553 = vld [vmem:[#allocation11 + $0x8] sm:$0xf]
        %v554 = vld [vmem:[#allocation11 + $0xc] sm:$0xf]
        %v555 = vpack.c.bf16 %v550, %v550
        %v556 = vld [vmem:[#allocation13] sm:$0x1]
        %v558 = vlaneseq
        %v559 = vshrl.u32 %v558, 7
        %v560 = vsub.s32 0, %v559
        %v561 = vrot.slane %v556, %v560
        %v567 = vunpack.c.l.b16 %v551
        %v568 = vunpack.c.l.b16 %v552
        %v569 = vunpack.c.l.b16 %v553
        %v570 = vunpack.c.l.b16 %v554
        %v571 = vpack.c.b16 %v568, %v567
        %v572 = vpack.c.b16 %v570, %v569
        %vm575 = vcmask 261120
        %v577 = vsel %vm575, %v555, 0
        %579 = vmatprep.subr.bf16.mxu0 0
        %580 = vmatpush1.bf16.msra.mxu0 %v571
        %581 = vmatprep.subr.bf16.mxu0 0
        %582 = vmatpush1.bf16.msra.mxu0 %v572
        %583 = vmatprep.subr.bf16.mxu0 0
        %584 = vmatpush1.bf16.msra.mxu0 0
        %585 = vmatprep.subr.bf16.mxu0 0
        %586 = vmatpush1.bf16.msra.mxu0 0
        %587 = vmatprep.subr.bf16.mxu0 0
        %588 = vmatpush1.bf16.msra.mxu0 0
        %589 = vmatprep.subr.bf16.mxu0 0
        %590 = vmatpush1.bf16.msra.mxu0 0
        %591 = vmatprep.subr.bf16.mxu0 0
        %592 = vmatpush1.bf16.msra.mxu0 0
        %593 = vmatprep.subr.bf16.mxu0 0
        %594 = vmatpush1.bf16.msra.mxu0 0
        %595 = vmatprep.subr.bf16.mxu0 0
        %596 = vmatpush1.bf16.msra.mxu0 0
        %597 = vmatprep.subr.bf16.mxu0 0
        %598 = vmatpush1.bf16.msra.mxu0 0
        %599 = vmatprep.subr.bf16.mxu0 0
        %600 = vmatpush1.bf16.msra.mxu0 0
        %601 = vmatprep.subr.bf16.mxu0 0
        %602 = vmatpush1.bf16.msra.mxu0 0
        %603 = vmatprep.subr.bf16.mxu0 0
        %604 = vmatpush1.bf16.msra.mxu0 0
        %605 = vmatprep.subr.bf16.mxu0 0
        %606 = vmatpush1.bf16.msra.mxu0 0
        %607 = vmatprep.subr.bf16.mxu0 0
        %608 = vmatpush1.bf16.msra.mxu0 0
        %609 = vmatprep.subr.bf16.mxu0 0
        %610 = vmatpush1.bf16.msra.mxu0 0
        %611 = vmatprep.mubr.bf16.mxu0 0
        %612 = vmatmul.mubr.bf16.gmra.mrb[0].mxu0 %v577
        %v613 = vpop.f32.mrb[0].mxu0
        %v614 = vadd.f32 %v561, %v613
        %v615 = vpop.f32.mrb[0].mxu0
        %v616 = vpop.f32.mrb[0].mxu0
        %v617 = vpop.f32.mrb[0].mxu0
        %618 = vdwg.mxu0
        %v619 = vmul.f32 %v614, 0.5
        %v620 = vadd.f32 %v453, %v619
        %621 = vst.msk [vmem:[%s451] sm:$0xff] %vm456, %v620
        %s622 = sand.u32 %s232, 1
        %s623 = scalar_lea.sflag [#allocation4], %s622
        %s624 = sand.u32 %s232, 1
        %s625 = smul.addr %s624, 8
        %s626 = scalar_lea.vmem [#allocation17], %s625
        // Predicated region
        $region93: #{causal_conformer_encoder.18} parent=55 // pred_check
          %p627 = pneg %p242
        $region94: #{causal_conformer_encoder.18} parent=55 // pred_check_branch
          %629 = sbr.rel (%p627) target = $region96
        $region95: #{causal_conformer_encoder.18} parent=55 // pred_region
          %s631 = ssub.s32 128, 128
          %632 = vsyncadd %s623, %s631
          %s633 = smul.addr %s30, 128
          %s634 = scalar_lea.hbm %s9, %s633
          %s636 = sshll.u32 %s626, 4
          %s637 = int_to_ptr.vmem [resolvable:$true] %s636
          %639 = dma.vmem_to_hbm [thread:$0]  %s637, 128, %s634, %s623
        $region96: #{causal_conformer_encoder.18} parent=55 // pred_fallthru
          _
      $region56: #{causal_conformer_encoder.18} parent=5 // pred_fallthru
        _
      %p640 = scmp.le.s32.totalorder 2, %s25
      // Predicated region
      $region97: #{causal_conformer_encoder.18} parent=5 // pred_check
        %p641 = pneg %p640
      $region98: #{causal_conformer_encoder.18} parent=5 // pred_check_branch
        %643 = sbr.rel (%p641) target = $region100
      $region99: #{causal_conformer_encoder.18} parent=5 // pred_region
        %s644 = ssub.s32 %s25, 2
        // Predicated region
        $region101: #{causal_conformer_encoder.18} parent=99 // pred_check
          %p645 = pneg %p248
        $region102: #{causal_conformer_encoder.18} parent=99 // pred_check_branch
          %647 = sbr.rel (%p645) target = $region104
        $region103: #{causal_conformer_encoder.18} parent=99 // pred_region
          %s648 = sand.u32 %s233, 1
          %s649 = scalar_lea.sflag [#allocation4], %s648
          %s650 = sand.u32 %s233, 1
          %s651 = smul.addr %s650, 8
          %s652 = scalar_lea.vmem [#allocation17], %s651
          %653 = dma.done %s649, 128
        $region104: #{causal_conformer_encoder.18} parent=99 // pred_fallthru
          _
      $region100: #{causal_conformer_encoder.18} parent=5 // pred_fallthru
        _
    $region6: #{causal_conformer_encoder.18} parent=1 // loop_footer
      %s29 = sadd.s32 1, %s25
    $region7: #{causal_conformer_encoder.18} parent=1 // loop_footer_branch
      %24 = sbr.rel target = $region3
    $region8: #{causal_conformer_encoder.18} parent=1 // loop_exit
      _
    %654 = vsyncpa [#allocation3], 1
    %s655 = scalar_lea.sflag [#allocation3], 1
    %656 = vsyncpa %s655, 1
    %657 = vsyncpa [#allocation6], 1
    %658 = vsyncpa [#allocation9], 1
    %659 = vsyncpa [#allocation12], 1
    %660 = vsyncpa [#allocation15], 1
    %661 = vsyncpa [#allocation4], 1
    %s662 = scalar_lea.sflag [#allocation4], 1
    %663 = vsyncpa %s662, 1

// kernel: causal_conformer_encoder.21
$region0: #{causal_conformer_encoder.21}
  #allocation0 [shape = 'u32[]', space=smem, size = 0x4, offset = 0x4, fixed_abs, tag = 'smem constant byte address 0x4 - core index']
  #allocation1 [shape = 'u32[144,128]{1,0:T(1,128)}', space=vmem, size = 0x12000, scoped, tag = 'internal scratch']
  %s0 = inlined_call_operand.hbm [shape: f32[16,16], index: 0, kind: input, shape index: {}]
  %s1 = inlined_call_operand.hbm [shape: f32[1,16], index: 1, kind: input, shape index: {}]
  %s2 = inlined_call_operand.hbm [shape: f32[1,16], index: 2, kind: input, shape index: {}]
  %s3 = inlined_call_operand.hbm [shape: bf16[16,32], index: 3, kind: input, shape index: {}]
  %s4 = inlined_call_operand.hbm [shape: f32[1,32], index: 4, kind: input, shape index: {}]
  %s5 = inlined_call_operand.hbm [shape: bf16[32,16], index: 5, kind: input, shape index: {}]
  %s6 = inlined_call_operand.hbm [shape: f32[1,16], index: 6, kind: input, shape index: {}]
  %s7 = inlined_call_operand.hbm [shape: f32[1,16], index: 7, kind: input, shape index: {}]
  %s8 = inlined_call_operand.hbm [shape: f32[1,16], index: 8, kind: input, shape index: {}]
  %s9 = inlined_call_operand.hbm [shape: f32[16,16], index: 9, kind: output, shape index: {}]
  %s10 = sld [smem:[#allocation0]]
  $region105: #{causal_conformer_encoder.21} parent=0
    _
  %s12 = ssub.s32 1, %s10
  %s13 = scalar_select 0, %s12, %s10
  $region1: #{causal_conformer_encoder.21} parent=0
    #allocation2 [shape = 'u8[8192]{0}', space=vmem, size = 0x2000, scoped, tag = 'input window, operand 0']
    #allocation3 [shape = 's32[2]{0}', space=sflag, size = 0x8, scoped, tag = 'scoped memory for causal_conformer_encoder.21']
    #allocation4 [shape = 's32[2]{0}', space=sflag, size = 0x8, scoped, tag = 'scoped memory for causal_conformer_encoder.21']
    #allocation5 [shape = 'u8[512]{0}', space=vmem, size = 0x400, scoped, tag = 'input window, operand 1, single buffered']
    #allocation6 [shape = 's32[1]{0}', space=sflag, size = 0x4, scoped, tag = 'scoped memory for causal_conformer_encoder.21']
    #allocation7 [shape = 'u8[512]{0}', space=vmem, size = 0x400, scoped, tag = 'input window, operand 2, single buffered']
    #allocation8 [shape = 'u8[4096]{0}', space=vmem, size = 0x1000, scoped, tag = 'input window, operand 3, single buffered']
    #allocation9 [shape = 's32[1]{0}', space=sflag, size = 0x4, scoped, tag = 'scoped memory for causal_conformer_encoder.21']
    #allocation10 [shape = 'u8[512]{0}', space=vmem, size = 0x400, scoped, tag = 'input window, operand 4, single buffered']
    #allocation11 [shape = 'u8[8192]{0}', space=vmem, size = 0x2000, scoped, tag = 'input window, operand 5, single buffered']
    #allocation12 [shape = 's32[1]{0}', space=sflag, size = 0x4, scoped, tag = 'scoped memory for causal_conformer_encoder.21']
    #allocation13 [shape = 'u8[512]{0}', space=vmem, size = 0x400, scoped, tag = 'input window, operand 6, single buffered']
    #allocation14 [shape = 'u8[512]{0}', space=vmem, size = 0x400, scoped, tag = 'input window, operand 7, single buffered']
    #allocation15 [shape = 's32[1]{0}', space=sflag, size = 0x4, scoped, tag = 'scoped memory for causal_conformer_encoder.21']
    #allocation16 [shape = 'u8[512]{0}', space=vmem, size = 0x400, scoped, tag = 'input window, operand 8, single buffered']
    #allocation17 [shape = 'u8[8192]{0}', space=vmem, size = 0x2000, scoped, tag = 'output window, operand 0']
    %14 = vsyncpa [#allocation3], 0
    %s15 = scalar_lea.sflag [#allocation3], 1
    %16 = vsyncpa %s15, 0
    %17 = vsyncpa [#allocation6], 0
    %18 = vsyncpa [#allocation9], 0
    %19 = vsyncpa [#allocation12], 0
    %20 = vsyncpa [#allocation15], 0
    %21 = vsyncpa [#allocation4], 0
    %s22 = scalar_lea.sflag [#allocation4], 1
    %23 = vsyncpa %s22, 0
    loop: start=0, step=1, limit=4
    $region2: #{causal_conformer_encoder.21} parent=1 // loop_pre_header
      _
    $region3: #{causal_conformer_encoder.21} parent=1 // loop_header
      %s25 = sphi 0, %s29
      %p26 = scmp.ge.s32.totalorder %s25, 4
      %s35 = sphi 0, %s37
      %s38 = sphi 0, %s35
      %s39 = sphi 0, %s38
      %s55 = sphi 0, %s39
      %s59 = sphi 0, %s59
      %s61 = sphi 0, %s59
      %s62 = sphi 0, %s61
      %s76 = sphi 0, %s62
      %s80 = sphi 0, %s80
      %s82 = sphi 0, %s80
      %s83 = sphi 0, %s82
      %s97 = sphi 0, %s83
      %s101 = sphi 0, %s101
      %s103 = sphi 0, %s101
      %s104 = sphi 0, %s103
      %s118 = sphi 0, %s104
      %s122 = sphi 0, %s122
      %s124 = sphi 0, %s122
      %s125 = sphi 0, %s124
      %s139 = sphi 0, %s125
      %s143 = sphi 0, %s143
      %s145 = sphi 0, %s143
      %s146 = sphi 0, %s145
      %s160 = sphi 0, %s146
      %s164 = sphi 0, %s164
      %s166 = sphi 0, %s164
      %s167 = sphi 0, %s166
      %s181 = sphi 0, %s167
      %s185 = sphi 0, %s185
      %s187 = sphi 0, %s185
      %s188 = sphi 0, %s187
      %s202 = sphi 0, %s188
      %s206 = sphi 0, %s206
      %s208 = sphi 0, %s206
      %s209 = sphi 0, %s208
      %s223 = sphi 0, %s209
      %s229 = sphi 0, %s231
      %s232 = sphi 0, %s229
      %s233 = sphi 0, %s232
      %s249 = sphi 0, %s233
    $region4: #{causal_conformer_encoder.21} parent=1 // loop_header_branch
      %28 = sbr.rel (%p26) target = $region8
    $region5: #{causal_conformer_encoder.21} parent=1 // loop_body
      %s30 = ssub.s32 %s25, 1
      %s31 = ssub.s32 %s25, 2
      %s32 = sadd.s32 %s25, 1
      %s33 = ssub.s32 %s25, %s32
      %p34 = scmp.eq.s32.totalorder %s33, 0
      %s36 = sadd.s32 %s35, 1
      %s37 = scalar_select %p34, %s35, %s36
      %p40 = pneg %p34
      %p41 = scmp.eq.s32.totalorder %s25, 1
      %p42 = por %p40, %p41
      %p43 = scmp.ne.s32.totalorder %s35, %s38
      %p44 = scmp.eq.s32.totalorder %s25, 0
      %p45 = por %p43, %p44
      %p46 = scmp.ne.s32.totalorder %s35, %s38
      %p47 = scmp.eq.s32.totalorder %s30, 1
      %p48 = por %p46, %p47
      %p49 = scmp.ne.s32.totalorder %s38, %s39
      %p50 = scmp.eq.s32.totalorder %s30, 0
      %p51 = por %p49, %p50
      %p52 = scmp.ne.s32.totalorder %s38, %s39
      %p53 = scmp.eq.s32.totalorder %s31, 1
      %p54 = por %p52, %p53
      %p56 = scmp.ne.s32.totalorder %s39, %s55
      %p57 = scmp.eq.s32.totalorder %s31, 0
      %p58 = por %p56, %p57
      %s60 = sadd.s32 %s59, 1
      %p63 = scmp.eq.s32.totalorder %s25, 1
      %p64 = scmp.ne.s32.totalorder %s59, %s61
      %p65 = scmp.eq.s32.totalorder %s25, 0
      %p66 = por %p64, %p65
      %p67 = scmp.ne.s32.totalorder %s59, %s61
      %p68 = scmp.eq.s32.totalorder %s30, 1
      %p69 = por %p67, %p68
      %p70 = scmp.ne.s32.totalorder %s61, %s62
      %p71 = scmp.eq.s32.totalorder %s30, 0
      %p72 = por %p70, %p71
      %p73 = scmp.ne.s32.totalorder %s61, %s62
      %p74 = scmp.eq.s32.totalorder %s31, 1
      %p75 = por %p73, %p74
      %p77 = scmp.ne.s32.totalorder %s62, %s76
      %p78 = scmp.eq.s32.totalorder %s31, 0
      %p79 = por %p77, %p78
      %s81 = sadd.s32 %s80, 1
      %p84 = scmp.eq.s32.totalorder %s25, 1
      %p85 = scmp.ne.s32.totalorder %s80, %s82
      %p86 = scmp.eq.s32.totalorder %s25, 0
      %p87 = por %p85, %p86
      %p88 = scmp.ne.s32.totalorder %s80, %s82
      %p89 = scmp.eq.s32.totalorder %s30, 1
      %p90 = por %p88, %p89
      %p91 = scmp.ne.s32.totalorder %s82, %s83
      %p92 = scmp.eq.s32.totalorder %s30, 0
      %p93 = por %p91, %p92
      %p94 = scmp.ne.s32.totalorder %s82, %s83
      %p95 = scmp.eq.s32.totalorder %s31, 1
      %p96 = por %p94, %p95
      %p98 = scmp.ne.s32.totalorder %s83, %s97
      %p99 = scmp.eq.s32.totalorder %s31, 0
      %p100 = por %p98, %p99
      %s102 = sadd.s32 %s101, 1
      %p105 = scmp.eq.s32.totalorder %s25, 1
      %p106 = scmp.ne.s32.totalorder %s101, %s103
      %p107 = scmp.eq.s32.totalorder %s25, 0
      %p108 = por %p106, %p107
      %p109 = scmp.ne.s32.totalorder %s101, %s103
      %p110 = scmp.eq.s32.totalorder %s30, 1
      %p111 = por %p109, %p110
      %p112 = scmp.ne.s32.totalorder %s103, %s104
      %p113 = scmp.eq.s32.totalorder %s30, 0
      %p114 = por %p112, %p113
      %p115 = scmp.ne.s32.totalorder %s103, %s104
      %p116 = scmp.eq.s32.totalorder %s31, 1
      %p117 = por %p115, %p116
      %p119 = scmp.ne.s32.totalorder %s104, %s118
      %p120 = scmp.eq.s32.totalorder %s31, 0
      %p121 = por %p119, %p120
      %s123 = sadd.s32 %s122, 1
      %p126 = scmp.eq.s32.totalorder %s25, 1
      %p127 = scmp.ne.s32.totalorder %s122, %s124
      %p128 = scmp.eq.s32.totalorder %s25, 0
      %p129 = por %p127, %p128
      %p130 = scmp.ne.s32.totalorder %s122, %s124
      %p131 = scmp.eq.s32.totalorder %s30, 1
      %p132 = por %p130, %p131
      %p133 = scmp.ne.s32.totalorder %s124, %s125
      %p134 = scmp.eq.s32.totalorder %s30, 0
      %p135 = por %p133, %p134
      %p136 = scmp.ne.s32.totalorder %s124, %s125
      %p137 = scmp.eq.s32.totalorder %s31, 1
      %p138 = por %p136, %p137
      %p140 = scmp.ne.s32.totalorder %s125, %s139
      %p141 = scmp.eq.s32.totalorder %s31, 0
      %p142 = por %p140, %p141
      %s144 = sadd.s32 %s143, 1
      %p147 = scmp.eq.s32.totalorder %s25, 1
      %p148 = scmp.ne.s32.totalorder %s143, %s145
      %p149 = scmp.eq.s32.totalorder %s25, 0
      %p150 = por %p148, %p149
      %p151 = scmp.ne.s32.totalorder %s143, %s145
      %p152 = scmp.eq.s32.totalorder %s30, 1
      %p153 = por %p151, %p152
      %p154 = scmp.ne.s32.totalorder %s145, %s146
      %p155 = scmp.eq.s32.totalorder %s30, 0
      %p156 = por %p154, %p155
      %p157 = scmp.ne.s32.totalorder %s145, %s146
      %p158 = scmp.eq.s32.totalorder %s31, 1
      %p159 = por %p157, %p158
      %p161 = scmp.ne.s32.totalorder %s146, %s160
      %p162 = scmp.eq.s32.totalorder %s31, 0
      %p163 = por %p161, %p162
      %s165 = sadd.s32 %s164, 1
      %p168 = scmp.eq.s32.totalorder %s25, 1
      %p169 = scmp.ne.s32.totalorder %s164, %s166
      %p170 = scmp.eq.s32.totalorder %s25, 0
      %p171 = por %p169, %p170
      %p172 = scmp.ne.s32.totalorder %s164, %s166
      %p173 = scmp.eq.s32.totalorder %s30, 1
      %p174 = por %p172, %p173
      %p175 = scmp.ne.s32.totalorder %s166, %s167
      %p176 = scmp.eq.s32.totalorder %s30, 0
      %p177 = por %p175, %p176
      %p178 = scmp.ne.s32.totalorder %s166, %s167
      %p179 = scmp.eq.s32.totalorder %s31, 1
      %p180 = por %p178, %p179
      %p182 = scmp.ne.s32.totalorder %s167, %s181
      %p183 = scmp.eq.s32.totalorder %s31, 0
      %p184 = por %p182, %p183
      %s186 = sadd.s32 %s185, 1
      %p189 = scmp.eq.s32.totalorder %s25, 1
      %p190 = scmp.ne.s32.totalorder %s185, %s187
      %p191 = scmp.eq.s32.totalorder %s25, 0
      %p192 = por %p190, %p191
      %p193 = scmp.ne.s32.totalorder %s185, %s187
      %p194 = scmp.eq.s32.totalorder %s30, 1
      %p195 = por %p193, %p194
      %p196 = scmp.ne.s32.totalorder %s187, %s188
      %p197 = scmp.eq.s32.totalorder %s30, 0
      %p198 = por %p196, %p197
      %p199 = scmp.ne.s32.totalorder %s187, %s188
      %p200 = scmp.eq.s32.totalorder %s31, 1
      %p201 = por %p199, %p200
      %p203 = scmp.ne.s32.totalorder %s188, %s202
      %p204 = scmp.eq.s32.totalorder %s31, 0
      %p205 = por %p203, %p204
      %s207 = sadd.s32 %s206, 1
      %p210 = scmp.eq.s32.totalorder %s25, 1
      %p211 = scmp.ne.s32.totalorder %s206, %s208
      %p212 = scmp.eq.s32.totalorder %s25, 0
      %p213 = por %p211, %p212
      %p214 = scmp.ne.s32.totalorder %s206, %s208
      %p215 = scmp.eq.s32.totalorder %s30, 1
      %p216 = por %p214, %p215
      %p217 = scmp.ne.s32.totalorder %s208, %s209
      %p218 = scmp.eq.s32.totalorder %s30, 0
      %p219 = por %p217, %p218
      %p220 = scmp.ne.s32.totalorder %s208, %s209
      %p221 = scmp.eq.s32.totalorder %s31, 1
      %p222 = por %p220, %p221
      %p224 = scmp.ne.s32.totalorder %s209, %s223
      %p225 = scmp.eq.s32.totalorder %s31, 0
      %p226 = por %p224, %p225
      %s227 = ssub.s32 %s25, %s32
      %p228 = scmp.eq.s32.totalorder %s227, 0
      %s230 = sadd.s32 %s229, 1
      %s231 = scalar_select %p228, %s229, %s230
      %p234 = pneg %p228
      %p235 = scmp.eq.s32.totalorder %s25, 1
      %p236 = por %p234, %p235
      %p237 = scmp.ne.s32.totalorder %s229, %s232
      %p238 = scmp.eq.s32.totalorder %s25, 0
      %p239 = por %p237, %p238
      %p240 = scmp.ne.s32.totalorder %s229, %s232
      %p241 = scmp.eq.s32.totalorder %s30, 1
      %p242 = por %p240, %p241
      %p243 = scmp.ne.s32.totalorder %s232, %s233
      %p244 = scmp.eq.s32.totalorder %s30, 0
      %p245 = por %p243, %p244
      %p246 = scmp.ne.s32.totalorder %s232, %s233
      %p247 = scmp.eq.s32.totalorder %s31, 1
      %p248 = por %p246, %p247
      %p250 = scmp.ne.s32.totalorder %s233, %s249
      %p251 = scmp.eq.s32.totalorder %s31, 0
      %p252 = por %p250, %p251
      %p253 = scmp.le.s32.totalorder 1, %s25
      %p254 = scmp.lt.s32.totalorder %s25, 3
      %p255 = pnand %p253, %p254
      %p256 = pneg %p255
      // Predicated region
      $region9: #{causal_conformer_encoder.21} parent=5 // pred_check
        _
      $region10: #{causal_conformer_encoder.21} parent=5 // pred_check_branch
        %258 = sbr.rel (%p255) target = $region12
      $region11: #{causal_conformer_encoder.21} parent=5 // pred_region
        %s259 = ssub.s32 %s25, 1
        // Predicated region
        $region13: #{causal_conformer_encoder.21} parent=11 // pred_check
          %p260 = pneg %p72
        $region14: #{causal_conformer_encoder.21} parent=11 // pred_check_branch
          %262 = sbr.rel (%p260) target = $region16
        $region15: #{causal_conformer_encoder.21} parent=11 // pred_region
          %s264 = ssub.s32 16, 16
          %265 = vsyncadd [#allocation6], %s264
          %s267 = sshll.u32 [#allocation5], 4
          %s268 = int_to_ptr.vmem [resolvable:$true] %s267
          %270 = dma.hbm_to_vmem [thread:$0]  %s1, 16, %s268, [#allocation6]
        $region16: #{causal_conformer_encoder.21} parent=11 // pred_fallthru
          _
        // Predicated region
        $region17: #{causal_conformer_encoder.21} parent=11 // pred_check
          %p271 = pneg %p93
        $region18: #{causal_conformer_encoder.21} parent=11 // pred_check_branch
          %273 = sbr.rel (%p271) target = $region20
        $region19: #{causal_conformer_encoder.21} parent=11 // pred_region
          %s275 = ssub.s32 16, 16
          %276 = vsyncadd [#allocation6], %s275
          %s278 = sshll.u32 [#allocation7], 4
          %s279 = int_to_ptr.vmem [resolvable:$true] %s278
          %281 = dma.hbm_to_vmem [thread:$0]  %s2, 16, %s279, [#allocation6]
        $region20: #{causal_conformer_encoder.21} parent=11 // pred_fallthru
          _
        // Predicated region
        $region21: #{causal_conformer_encoder.21} parent=11 // pred_check
          %p282 = pneg %p114
        $region22: #{causal_conformer_encoder.21} parent=11 // pred_check_branch
          %284 = sbr.rel (%p282) target = $region24
        $region23: #{causal_conformer_encoder.21} parent=11 // pred_region
          %s286 = ssub.s32 128, 128
          %287 = vsyncadd [#allocation9], %s286
          %s288 = sshll.u32 [#allocation8], 4
          %s289 = int_to_ptr.vmem [resolvable:$true] %s288
          %294 = dma.hbm_to_vmem [thread:$0]  %s3, 128, %s289, [#allocation9], 64, 64, 4
        $region24: #{causal_conformer_encoder.21} parent=11 // pred_fallthru
          _
        // Predicated region
        $region25: #{causal_conformer_encoder.21} parent=11 // pred_check
          %p295 = pneg %p135
        $region26: #{causal_conformer_encoder.21} parent=11 // pred_check_branch
          %297 = sbr.rel (%p295) target = $region28
        $region27: #{causal_conformer_encoder.21} parent=11 // pred_region
          %s299 = ssub.s32 16, 16
          %300 = vsyncadd [#allocation9], %s299
          %s302 = sshll.u32 [#allocation10], 4
          %s303 = int_to_ptr.vmem [resolvable:$true] %s302
          %305 = dma.hbm_to_vmem [thread:$0]  %s4, 16, %s303, [#allocation9]
        $region28: #{causal_conformer_encoder.21} parent=11 // pred_fallthru
          _
        // Predicated region
        $region29: #{causal_conformer_encoder.21} parent=11 // pred_check
          %p306 = pneg %p156
        $region30: #{causal_conformer_encoder.21} parent=11 // pred_check_branch
          %308 = sbr.rel (%p306) target = $region32
        $region31: #{causal_conformer_encoder.21} parent=11 // pred_region
          %s310 = ssub.s32 256, 256
          %311 = vsyncadd [#allocation12], %s310
          %s312 = sshll.u32 [#allocation11], 4
          %s313 = int_to_ptr.vmem [resolvable:$true] %s312
          %318 = dma.hbm_to_vmem [thread:$0]  %s5, 256, %s313, [#allocation12], 64, 64, 4
        $region32: #{causal_conformer_encoder.21} parent=11 // pred_fallthru
          _
        // Predicated region
        $region33: #{causal_conformer_encoder.21} parent=11 // pred_check
          %p319 = pneg %p177
        $region34: #{causal_conformer_encoder.21} parent=11 // pred_check_branch
          %321 = sbr.rel (%p319) target = $region36
        $region35: #{causal_conformer_encoder.21} parent=11 // pred_region
          %s323 = ssub.s32 16, 16
          %324 = vsyncadd [#allocation12], %s323
          %s326 = sshll.u32 [#allocation13], 4
          %s327 = int_to_ptr.vmem [resolvable:$true] %s326
          %329 = dma.hbm_to_vmem [thread:$0]  %s6, 16, %s327, [#allocation12]
        $region36: #{causal_conformer_encoder.21} parent=11 // pred_fallthru
          _
        // Predicated region
        $region37: #{causal_conformer_encoder.21} parent=11 // pred_check
          %p330 = pneg %p198
        $region38: #{causal_conformer_encoder.21} parent=11 // pred_check_branch
          %332 = sbr.rel (%p330) target = $region40
        $region39: #{causal_conformer_encoder.21} parent=11 // pred_region
          %s334 = ssub.s32 16, 16
          %335 = vsyncadd [#allocation15], %s334
          %s337 = sshll.u32 [#allocation14], 4
          %s338 = int_to_ptr.vmem [resolvable:$true] %s337
          %340 = dma.hbm_to_vmem [thread:$0]  %s7, 16, %s338, [#allocation15]
        $region40: #{causal_conformer_encoder.21} parent=11 // pred_fallthru
          _
        // Predicated region
        $region41: #{causal_conformer_encoder.21} parent=11 // pred_check
          %p341 = pneg %p219
        $region42: #{causal_conformer_encoder.21} parent=11 // pred_check_branch
          %343 = sbr.rel (%p341) target = $region44
        $region43: #{causal_conformer_encoder.21} parent=11 // pred_region
          %s345 = ssub.s32 16, 16
          %346 = vsyncadd [#allocation15], %s345
          %s348 = sshll.u32 [#allocation16], 4
          %s349 = int_to_ptr.vmem [resolvable:$true] %s348
          %351 = dma.hbm_to_vmem [thread:$0]  %s8, 16, %s349, [#allocation15]
        $region44: #{causal_conformer_encoder.21} parent=11 // pred_fallthru
          _
      $region12: #{causal_conformer_encoder.21} parent=5 // pred_fallthru
        _
      %p352 = scmp.lt.s32.totalorder %s25, 2
      // Predicated region
      $region45: #{causal_conformer_encoder.21} parent=5 // pred_check
        %p353 = pneg %p352
      $region46: #{causal_conformer_encoder.21} parent=5 // pred_check_branch
        %355 = sbr.rel (%p353) target = $region48
      $region47: #{causal_conformer_encoder.21} parent=5 // pred_region
        // Predicated region
        $region49: #{causal_conformer_encoder.21} parent=47 // pred_check
          %p356 = pneg %p45
        $region50: #{causal_conformer_encoder.21} parent=47 // pred_check_branch
          %358 = sbr.rel (%p356) target = $region52
        $region51: #{causal_conformer_encoder.21} parent=47 // pred_region
          %s359 = sand.u32 %s35, 1
          %s360 = scalar_lea.sflag [#allocation3], %s359
          %s361 = sand.u32 %s35, 1
          %s362 = smul.addr %s361, 8
          %s363 = scalar_lea.vmem [#allocation2], %s362
          %s365 = ssub.s32 128, 128
          %366 = vsyncadd %s360, %s365
          %s367 = smul.addr %s25, 128
          %s368 = scalar_lea.hbm %s0, %s367
          %s370 = sshll.u32 %s363, 4
          %s371 = int_to_ptr.vmem [resolvable:$true] %s370
          %373 = dma.hbm_to_vmem [thread:$0]  %s368, 128, %s371, %s360
        $region52: #{causal_conformer_encoder.21} parent=47 // pred_fallthru
          _
      $region48: #{causal_conformer_encoder.21} parent=5 // pred_fallthru
        _
      %p374 = scmp.le.s32.totalorder 1, %s25
      %p375 = scmp.lt.s32.totalorder %s25, 3
      %p376 = pnand %p374, %p375
      %p377 = pneg %p376
      // Predicated region
      $region53: #{causal_conformer_encoder.21} parent=5 // pred_check
        _
      $region54: #{causal_conformer_encoder.21} parent=5 // pred_check_branch
        %379 = sbr.rel (%p376) target = $region56
      $region55: #{causal_conformer_encoder.21} parent=5 // pred_region
        %s380 = ssub.s32 %s25, 1
        %s381 = sand.u32 %s38, 1
        %s382 = scalar_lea.sflag [#allocation3], %s381
        %s383 = sand.u32 %s38, 1
        %s384 = smul.addr %s383, 8
        %s385 = scalar_lea.vmem [#allocation2], %s384
        // Predicated region
        $region57: #{causal_conformer_encoder.21} parent=55 // pred_check
          %p386 = pneg %p51
        $region58: #{causal_conformer_encoder.21} parent=55 // pred_check_branch
          %388 = sbr.rel (%p386) target = $region60
        $region59: #{causal_conformer_encoder.21} parent=55 // pred_region
          %389 = dma.done %s382, 128
        $region60: #{causal_conformer_encoder.21} parent=55 // pred_fallthru
          _
        // Predicated region
        $region61: #{causal_conformer_encoder.21} parent=55 // pred_check
          %p390 = pneg %p72
        $region62: #{causal_conformer_encoder.21} parent=55 // pred_check_branch
          %392 = sbr.rel (%p390) target = $region64
        $region63: #{causal_conformer_encoder.21} parent=55 // pred_region
          %393 = dma.done [#allocation6], 16
        $region64: #{causal_conformer_encoder.21} parent=55 // pred_fallthru
          _
        // Predicated region
        $region65: #{causal_conformer_encoder.21} parent=55 // pred_check
          %p394 = pneg %p93
        $region66: #{causal_conformer_encoder.21} parent=55 // pred_check_branch
          %396 = sbr.rel (%p394) target = $region68
        $region67: #{causal_conformer_encoder.21} parent=55 // pred_region
          %397 = dma.done [#allocation6], 16
        $region68: #{causal_conformer_encoder.21} parent=55 // pred_fallthru
          _
        // Predicated region
        $region69: #{causal_conformer_encoder.21} parent=55 // pred_check
          %p398 = pneg %p114
        $region70: #{causal_conformer_encoder.21} parent=55 // pred_check_branch
          %400 = sbr.rel (%p398) target = $region72
        $region71: #{causal_conformer_encoder.21} parent=55 // pred_region
          %401 = dma.done [#allocation9], 128
        $region72: #{causal_conformer_encoder.21} parent=55 // pred_fallthru
          _
        // Predicated region
        $region73: #{causal_conformer_encoder.21} parent=55 // pred_check
          %p402 = pneg %p135
        $region74: #{causal_conformer_encoder.21} parent=55 // pred_check_branch
          %404 = sbr.rel (%p402) target = $region76
        $region75: #{causal_conformer_encoder.21} parent=55 // pred_region
          %405 = dma.done [#allocation9], 16
        $region76: #{causal_conformer_encoder.21} parent=55 // pred_fallthru
          _
        // Predicated region
        $region77: #{causal_conformer_encoder.21} parent=55 // pred_check
          %p406 = pneg %p156
        $region78: #{causal_conformer_encoder.21} parent=55 // pred_check_branch
          %408 = sbr.rel (%p406) target = $region80
        $region79: #{causal_conformer_encoder.21} parent=55 // pred_region
          %409 = dma.done [#allocation12], 256
        $region80: #{causal_conformer_encoder.21} parent=55 // pred_fallthru
          _
        // Predicated region
        $region81: #{causal_conformer_encoder.21} parent=55 // pred_check
          %p410 = pneg %p177
        $region82: #{causal_conformer_encoder.21} parent=55 // pred_check_branch
          %412 = sbr.rel (%p410) target = $region84
        $region83: #{causal_conformer_encoder.21} parent=55 // pred_region
          %413 = dma.done [#allocation12], 16
        $region84: #{causal_conformer_encoder.21} parent=55 // pred_fallthru
          _
        // Predicated region
        $region85: #{causal_conformer_encoder.21} parent=55 // pred_check
          %p414 = pneg %p198
        $region86: #{causal_conformer_encoder.21} parent=55 // pred_check_branch
          %416 = sbr.rel (%p414) target = $region88
        $region87: #{causal_conformer_encoder.21} parent=55 // pred_region
          %417 = dma.done [#allocation15], 16
        $region88: #{causal_conformer_encoder.21} parent=55 // pred_fallthru
          _
        // Predicated region
        $region89: #{causal_conformer_encoder.21} parent=55 // pred_check
          %p418 = pneg %p219
        $region90: #{causal_conformer_encoder.21} parent=55 // pred_check_branch
          %420 = sbr.rel (%p418) target = $region92
        $region91: #{causal_conformer_encoder.21} parent=55 // pred_region
          %421 = dma.done [#allocation15], 16
        $region92: #{causal_conformer_encoder.21} parent=55 // pred_fallthru
          _
        %s422 = sand.u32 %s38, 1
        %s423 = scalar_lea.sflag [#allocation3], %s422
        %s424 = sand.u32 %s38, 1
        %s425 = smul.addr %s424, 8
        %s426 = scalar_lea.vmem [#allocation2], %s425
        %p427 = pneg %p51
        %p428 = pneg %p48
        %p429 = pneg %p72
        %p430 = pneg %p69
        %p431 = pneg %p93
        %p432 = pneg %p90
        %p433 = pneg %p114
        %p434 = pneg %p111
        %p435 = pneg %p135
        %p436 = pneg %p132
        %p437 = pneg %p156
        %p438 = pneg %p153
        %p439 = pneg %p177
        %p440 = pneg %p174
        %p441 = pneg %p198
        %p442 = pneg %p195
        %p443 = pneg %p219
        %p444 = pneg %p216
        %p445 = pneg %p245
        %p446 = pneg %p242
        %s447 = sand.u32 %s232, 1
        %s448 = scalar_lea.sflag [#allocation4], %s447
        %s449 = sand.u32 %s232, 1
        %s450 = smul.addr %s449, 8
        %s451 = scalar_lea.vmem [#allocation17], %s450
        %v453 = vld [vmem:[%s385] sm:$0xff]
        %v454 = vld [vmem:[#allocation5] sm:$0x1]
        %v455 = vld [vmem:[#allocation7] sm:$0x1]
        %vm456 = vcmask 130048
        %v457 = vsel %vm456, %v453, 0.0
        %458 = vadd.xlane.f32.xlu0 %v457
        %v459 = vpop.xlane.xlu0 %458
        %v460 = vrcp.pop 16.0
        %v461 = vmul.f32 %v459, %v460
        %v462 = vsub.f32 %v453, %v461
        %v463 = vmul.f32 %v462, %v462
        %v464 = vsel %vm456, %v463, 0.0
        %465 = vadd.xlane.f32.xlu0 %v464
        %v466 = vpop.xlane.xlu0 %465
        %v467 = vmul.f32 %v466, %v460
        %v468 = vadd.f32 %v467, 1e-05
        %v469 = vrsqrt.pop %v468
        %v470 = vmul.f32 %v462, %v469
        %v472 = vlaneseq
        %v473 = vshrl.u32 %v472, 7
        %v474 = vsub.s32 0, %v473
        %v475 = vrot.slane %v454, %v474
        %v477 = vmul.f32 %v470, %v475
        %v479 = vlaneseq
        %v480 = vshrl.u32 %v479, 7
        %v481 = vsub.s32 0, %v480
        %v482 = vrot.slane %v455, %v481
        %v484 = vadd.f32 %v477, %v482
        %v485 = vld [vmem:[#allocation8] sm:$0xf]
        %v486 = vld [vmem:[#allocation8 + $0x4] sm:$0xf]
        %v487 = vpack.c.bf16 %v484, %v484
        %v488 = vld [vmem:[#allocation10] sm:$0x1]
        %v490 = vlaneseq
        %v491 = vshrl.u32 %v490, 7
        %v492 = vsub.s32 0, %v491
        %v493 = vrot.slane %v488, %v492
        %v497 = vunpack.c.l.b16 %v485
        %v498 = vunpack.c.l.b16 %v486
        %v499 = vpack.c.b16 %v498, %v497
        %v502 = vsel %vm456, %v487, 0
        %504 = vmatprep.subr.bf16.mxu0 0
        %505 = vmatpush1.bf16.msra.mxu0 %v499
        %506 = vmatprep.subr.bf16.mxu0 0
        %507 = vmatpush1.bf16.msra.mxu0 0
        %508 = vmatprep.subr.bf16.mxu0 0
        %509 = vmatpush1.bf16.msra.mxu0 0
        %510 = vmatprep.subr.bf16.mxu0 0
        %511 = vmatpush1.bf16.msra.mxu0 0
        %512 = vmatprep.subr.bf16.mxu0 0
        %513 = vmatpush1.bf16.msra.mxu0 0
        %514 = vmatprep.subr.bf16.mxu0 0
        %515 = vmatpush1.bf16.msra.mxu0 0
        %516 = vmatprep.subr.bf16.mxu0 0
        %517 = vmatpush1.bf16.msra.mxu0 0
        %518 = vmatprep.subr.bf16.mxu0 0
        %519 = vmatpush1.bf16.msra.mxu0 0
        %520 = vmatprep.subr.bf16.mxu0 0
        %521 = vmatpush1.bf16.msra.mxu0 0
        %522 = vmatprep.subr.bf16.mxu0 0
        %523 = vmatpush1.bf16.msra.mxu0 0
        %524 = vmatprep.subr.bf16.mxu0 0
        %525 = vmatpush1.bf16.msra.mxu0 0
        %526 = vmatprep.subr.bf16.mxu0 0
        %527 = vmatpush1.bf16.msra.mxu0 0
        %528 = vmatprep.subr.bf16.mxu0 0
        %529 = vmatpush1.bf16.msra.mxu0 0
        %530 = vmatprep.subr.bf16.mxu0 0
        %531 = vmatpush1.bf16.msra.mxu0 0
        %532 = vmatprep.subr.bf16.mxu0 0
        %533 = vmatpush1.bf16.msra.mxu0 0
        %534 = vmatprep.subr.bf16.mxu0 0
        %535 = vmatpush1.bf16.msra.mxu0 0
        %536 = vmatprep.mubr.bf16.mxu0 0
        %537 = vmatmul.mubr.bf16.gmra.mrb[0].mxu0 %v502
        %v538 = vpop.f32.mrb[0].mxu0
        %v539 = vadd.f32 %v493, %v538
        %v540 = vpop.f32.mrb[0].mxu0
        %v541 = vpop.f32.mrb[0].mxu0
        %v542 = vpop.f32.mrb[0].mxu0
        %543 = vdwg.mxu0
        %v544 = vxor.u32 %v539, 2147483648
        %v545 = vmul.f32 %v544, 1.442695
        %v546 = vpow.pop %v545
        %v547 = vadd.f32 %v546, 1.0
        %v548 = vrcp.pop %v547
        %v549 = vmul.f32 1.0, %v548
        %v550 = vmul.f32 %v539, %v549
        %v551 = vld [vmem:[#allocation11] sm:$0xf]
        %v552 = vld [vmem:[#allocation11 + $0x4] sm:$0xf]
        %v553 = vld [vmem:[#allocation11 + $0x8] sm:$0xf]
        %v554 = vld [vmem:[#allocation11 + $0xc] sm:$0xf]
        %v555 = vpack.c.bf16 %v550, %v550
        %v556 = vld [vmem:[#allocation13] sm:$0x1]
        %v558 = vlaneseq
        %v559 = vshrl.u32 %v558, 7
        %v560 = vsub.s32 0, %v559
        %v561 = vrot.slane %v556, %v560
        %v567 = vunpack.c.l.b16 %v551
        %v568 = vunpack.c.l.b16 %v552
        %v569 = vunpack.c.l.b16 %v553
        %v570 = vunpack.c.l.b16 %v554
        %v571 = vpack.c.b16 %v568, %v567
        %v572 = vpack.c.b16 %v570, %v569
        %vm575 = vcmask 261120
        %v577 = vsel %vm575, %v555, 0
        %579 = vmatprep.subr.bf16.mxu0 0
        %580 = vmatpush1.bf16.msra.mxu0 %v571
        %581 = vmatprep.subr.bf16.mxu0 0
        %582 = vmatpush1.bf16.msra.mxu0 %v572
        %583 = vmatprep.subr.bf16.mxu0 0
        %584 = vmatpush1.bf16.msra.mxu0 0
        %585 = vmatprep.subr.bf16.mxu0 0
        %586 = vmatpush1.bf16.msra.mxu0 0
        %587 = vmatprep.subr.bf16.mxu0 0
        %588 = vmatpush1.bf16.msra.mxu0 0
        %589 = vmatprep.subr.bf16.mxu0 0
        %590 = vmatpush1.bf16.msra.mxu0 0
        %591 = vmatprep.subr.bf16.mxu0 0
        %592 = vmatpush1.bf16.msra.mxu0 0
        %593 = vmatprep.subr.bf16.mxu0 0
        %594 = vmatpush1.bf16.msra.mxu0 0
        %595 = vmatprep.subr.bf16.mxu0 0
        %596 = vmatpush1.bf16.msra.mxu0 0
        %597 = vmatprep.subr.bf16.mxu0 0
        %598 = vmatpush1.bf16.msra.mxu0 0
        %599 = vmatprep.subr.bf16.mxu0 0
        %600 = vmatpush1.bf16.msra.mxu0 0
        %601 = vmatprep.subr.bf16.mxu0 0
        %602 = vmatpush1.bf16.msra.mxu0 0
        %603 = vmatprep.subr.bf16.mxu0 0
        %604 = vmatpush1.bf16.msra.mxu0 0
        %605 = vmatprep.subr.bf16.mxu0 0
        %606 = vmatpush1.bf16.msra.mxu0 0
        %607 = vmatprep.subr.bf16.mxu0 0
        %608 = vmatpush1.bf16.msra.mxu0 0
        %609 = vmatprep.subr.bf16.mxu0 0
        %610 = vmatpush1.bf16.msra.mxu0 0
        %611 = vmatprep.mubr.bf16.mxu0 0
        %612 = vmatmul.mubr.bf16.gmra.mrb[0].mxu0 %v577
        %v613 = vpop.f32.mrb[0].mxu0
        %v614 = vadd.f32 %v561, %v613
        %v615 = vpop.f32.mrb[0].mxu0
        %v616 = vpop.f32.mrb[0].mxu0
        %v617 = vpop.f32.mrb[0].mxu0
        %618 = vdwg.mxu0
        %v619 = vmul.f32 %v614, 0.5
        %v620 = vadd.f32 %v453, %v619
        %v621 = vld [vmem:[#allocation14] sm:$0x1]
        %v622 = vld [vmem:[#allocation16] sm:$0x1]
        %v623 = vsel %vm456, %v620, 0.0
        %624 = vadd.xlane.f32.xlu0 %v623
        %v625 = vpop.xlane.xlu0 %624
        %v626 = vmul.f32 %v625, %v460
        %v627 = vsub.f32 %v620, %v626
        %v628 = vmul.f32 %v627, %v627
        %v629 = vsel %vm456, %v628, 0.0
        %630 = vadd.xlane.f32.xlu0 %v629
        %v631 = vpop.xlane.xlu0 %630
        %v632 = vmul.f32 %v631, %v460
        %v633 = vadd.f32 %v632, 1e-05
        %v634 = vrsqrt.pop %v633
        %v635 = vmul.f32 %v627, %v634
        %v637 = vlaneseq
        %v638 = vshrl.u32 %v637, 7
        %v639 = vsub.s32 0, %v638
        %v640 = vrot.slane %v621, %v639
        %v642 = vmul.f32 %v635, %v640
        %v644 = vlaneseq
        %v645 = vshrl.u32 %v644, 7
        %v646 = vsub.s32 0, %v645
        %v647 = vrot.slane %v622, %v646
        %v649 = vadd.f32 %v642, %v647
        %650 = vst.msk [vmem:[%s451] sm:$0xff] %vm456, %v649
        %s651 = sand.u32 %s232, 1
        %s652 = scalar_lea.sflag [#allocation4], %s651
        %s653 = sand.u32 %s232, 1
        %s654 = smul.addr %s653, 8
        %s655 = scalar_lea.vmem [#allocation17], %s654
        // Predicated region
        $region93: #{causal_conformer_encoder.21} parent=55 // pred_check
          %p656 = pneg %p242
        $region94: #{causal_conformer_encoder.21} parent=55 // pred_check_branch
          %658 = sbr.rel (%p656) target = $region96
        $region95: #{causal_conformer_encoder.21} parent=55 // pred_region
          %s660 = ssub.s32 128, 128
          %661 = vsyncadd %s652, %s660
          %s662 = smul.addr %s30, 128
          %s663 = scalar_lea.hbm %s9, %s662
          %s665 = sshll.u32 %s655, 4
          %s666 = int_to_ptr.vmem [resolvable:$true] %s665
          %668 = dma.vmem_to_hbm [thread:$0]  %s666, 128, %s663, %s652
        $region96: #{causal_conformer_encoder.21} parent=55 // pred_fallthru
          _
      $region56: #{causal_conformer_encoder.21} parent=5 // pred_fallthru
        _
      %p669 = scmp.le.s32.totalorder 2, %s25
      // Predicated region
      $region97: #{causal_conformer_encoder.21} parent=5 // pred_check
        %p670 = pneg %p669
      $region98: #{causal_conformer_encoder.21} parent=5 // pred_check_branch
        %672 = sbr.rel (%p670) target = $region100
      $region99: #{causal_conformer_encoder.21} parent=5 // pred_region
        %s673 = ssub.s32 %s25, 2
        // Predicated region
        $region101: #{causal_conformer_encoder.21} parent=99 // pred_check
          %p674 = pneg %p248
        $region102: #{causal_conformer_encoder.21} parent=99 // pred_check_branch
          %676 = sbr.rel (%p674) target = $region104
        $region103: #{causal_conformer_encoder.21} parent=99 // pred_region
          %s677 = sand.u32 %s233, 1
          %s678 = scalar_lea.sflag [#allocation4], %s677
          %s679 = sand.u32 %s233, 1
          %s680 = smul.addr %s679, 8
          %s681 = scalar_lea.vmem [#allocation17], %s680
          %682 = dma.done %s678, 128
        $region104: #{causal_conformer_encoder.21} parent=99 // pred_fallthru
          _
      $region100: #{causal_conformer_encoder.21} parent=5 // pred_fallthru
        _
    $region6: #{causal_conformer_encoder.21} parent=1 // loop_footer
      %s29 = sadd.s32 1, %s25
    $region7: #{causal_conformer_encoder.21} parent=1 // loop_footer_branch
      %24 = sbr.rel target = $region3
    $region8: #{causal_conformer_encoder.21} parent=1 // loop_exit
      _
    %683 = vsyncpa [#allocation3], 1
    %s684 = scalar_lea.sflag [#allocation3], 1
    %685 = vsyncpa %s684, 1
    %686 = vsyncpa [#allocation6], 1
    %687 = vsyncpa [#allocation9], 1
    %688 = vsyncpa [#allocation12], 1
    %689 = vsyncpa [#allocation15], 1
    %690 = vsyncpa [#allocation4], 1
    %s691 = scalar_lea.sflag [#allocation4], 1
    %692 = vsyncpa %s691, 1

// kernel: causal_conformer_encoder.20
$region0: #{causal_conformer_encoder.20}
  #allocation0 [shape = 'u32[]', space=smem, size = 0x4, offset = 0x4, fixed_abs, tag = 'smem constant byte address 0x4 - core index']
  #allocation1 [shape = 'u32[144,128]{1,0:T(1,128)}', space=vmem, size = 0x12000, scoped, tag = 'internal scratch']
  #allocation2 [shape = 'f32[16,16]{1,0:T(8,128)}', space=vmem, size = 0x2000, scoped, tag = 'scratch operand']
  %s0 = inlined_call_operand.hbm [shape: f32[2,8,16], index: 0, kind: input, shape index: {}]
  %s1 = inlined_call_operand.hbm [shape: f32[1,16], index: 1, kind: input, shape index: {}]
  %s2 = inlined_call_operand.hbm [shape: f32[1,16], index: 2, kind: input, shape index: {}]
  %s3 = inlined_call_operand.hbm [shape: bf16[16,16], index: 3, kind: input, shape index: {}]
  %s4 = inlined_call_operand.hbm [shape: f32[1,16], index: 4, kind: input, shape index: {}]
  %s5 = inlined_call_operand.hbm [shape: bf16[16,16], index: 5, kind: input, shape index: {}]
  %s6 = inlined_call_operand.hbm [shape: f32[1,16], index: 6, kind: input, shape index: {}]
  %s7 = inlined_call_operand.hbm [shape: f32[3,16], index: 7, kind: input, shape index: {}]
  %s8 = inlined_call_operand.hbm [shape: f32[1,16], index: 8, kind: input, shape index: {}]
  %s9 = inlined_call_operand.hbm [shape: bf16[16,16], index: 9, kind: input, shape index: {}]
  %s10 = inlined_call_operand.hbm [shape: f32[1,16], index: 10, kind: input, shape index: {}]
  %s11 = inlined_call_operand.hbm [shape: f32[2,8,16], index: 11, kind: output, shape index: {}]
  %s12 = sld [smem:[#allocation0]]
  $region125: #{causal_conformer_encoder.20} parent=0
    _
  %s14 = ssub.s32 1, %s12
  %s15 = scalar_select 0, %s14, %s12
  $region1: #{causal_conformer_encoder.20} parent=0
    #allocation3 [shape = 'u8[8192]{0}', space=vmem, size = 0x2000, scoped, tag = 'input window, operand 0']
    #allocation4 [shape = 's32[2]{0}', space=sflag, size = 0x8, scoped, tag = 'scoped memory for causal_conformer_encoder.20']
    #allocation5 [shape = 's32[2]{0}', space=sflag, size = 0x8, scoped, tag = 'scoped memory for causal_conformer_encoder.20']
    #allocation6 [shape = 'u8[512]{0}', space=vmem, size = 0x400, scoped, tag = 'input window, operand 1, single buffered']
    #allocation7 [shape = 's32[1]{0}', space=sflag, size = 0x4, scoped, tag = 'scoped memory for causal_conformer_encoder.20']
    #allocation8 [shape = 'u8[512]{0}', space=vmem, size = 0x400, scoped, tag = 'input window, operand 2, single buffered']
    #allocation9 [shape = 'u8[4096]{0}', space=vmem, size = 0x1000, scoped, tag = 'input window, operand 3, single buffered']
    #allocation10 [shape = 's32[1]{0}', space=sflag, size = 0x4, scoped, tag = 'scoped memory for causal_conformer_encoder.20']
    #allocation11 [shape = 'u8[512]{0}', space=vmem, size = 0x400, scoped, tag = 'input window, operand 4, single buffered']
    #allocation12 [shape = 'u8[4096]{0}', space=vmem, size = 0x1000, scoped, tag = 'input window, operand 5, single buffered']
    #allocation13 [shape = 's32[1]{0}', space=sflag, size = 0x4, scoped, tag = 'scoped memory for causal_conformer_encoder.20']
    #allocation14 [shape = 'u8[512]{0}', space=vmem, size = 0x400, scoped, tag = 'input window, operand 6, single buffered']
    #allocation15 [shape = 'u8[2048]{0}', space=vmem, size = 0x800, scoped, tag = 'input window, operand 7, single buffered']
    #allocation16 [shape = 's32[1]{0}', space=sflag, size = 0x4, scoped, tag = 'scoped memory for causal_conformer_encoder.20']
    #allocation17 [shape = 'u8[512]{0}', space=vmem, size = 0x400, scoped, tag = 'input window, operand 8, single buffered']
    #allocation18 [shape = 'u8[4096]{0}', space=vmem, size = 0x1000, scoped, tag = 'input window, operand 9, single buffered']
    #allocation19 [shape = 's32[1]{0}', space=sflag, size = 0x4, scoped, tag = 'scoped memory for causal_conformer_encoder.20']
    #allocation20 [shape = 'u8[512]{0}', space=vmem, size = 0x400, scoped, tag = 'input window, operand 10, single buffered']
    #allocation21 [shape = 'u8[8192]{0}', space=vmem, size = 0x2000, scoped, tag = 'output window, operand 0']
    %16 = vsyncpa [#allocation4], 0
    %s17 = scalar_lea.sflag [#allocation4], 1
    %18 = vsyncpa %s17, 0
    %19 = vsyncpa [#allocation7], 0
    %20 = vsyncpa [#allocation10], 0
    %21 = vsyncpa [#allocation13], 0
    %22 = vsyncpa [#allocation16], 0
    %23 = vsyncpa [#allocation19], 0
    %24 = vsyncpa [#allocation5], 0
    %s25 = scalar_lea.sflag [#allocation5], 1
    %26 = vsyncpa %s25, 0
    loop: start=0, step=1, limit=4
    $region2: #{causal_conformer_encoder.20} parent=1 // loop_pre_header
      _
    $region3: #{causal_conformer_encoder.20} parent=1 // loop_header
      %s28 = sphi 0, %s32
      %p29 = scmp.ge.s32.totalorder %s28, 4
      %s35 = sphi 0, %s47
      %s36 = sphi 0, %s43
      %s37 = sphi 0, %s35
      %s38 = sphi 0, %s36
      %s39 = sphi 0, %s37
      %s40 = sphi 0, %s38
      %s52 = sphi 0, %s54
      %s55 = sphi 0, %s52
      %s56 = sphi 0, %s55
      %s72 = sphi 0, %s56
      %s76 = sphi 0, %s76
      %s78 = sphi 0, %s76
      %s79 = sphi 0, %s78
      %s93 = sphi 0, %s79
      %s97 = sphi 0, %s97
      %s99 = sphi 0, %s97
      %s100 = sphi 0, %s99
      %s114 = sphi 0, %s100
      %s118 = sphi 0, %s118
      %s120 = sphi 0, %s118
      %s121 = sphi 0, %s120
      %s135 = sphi 0, %s121
      %s139 = sphi 0, %s139
      %s141 = sphi 0, %s139
      %s142 = sphi 0, %s141
      %s156 = sphi 0, %s142
      %s160 = sphi 0, %s160
      %s162 = sphi 0, %s160
      %s163 = sphi 0, %s162
      %s177 = sphi 0, %s163
      %s181 = sphi 0, %s181
      %s183 = sphi 0, %s181
      %s184 = sphi 0, %s183
      %s198 = sphi 0, %s184
      %s202 = sphi 0, %s202
      %s204 = sphi 0, %s202
      %s205 = sphi 0, %s204
      %s219 = sphi 0, %s205
      %s223 = sphi 0, %s223
      %s225 = sphi 0, %s223
      %s226 = sphi 0, %s225
      %s240 = sphi 0, %s226
      %s244 = sphi 0, %s244
      %s246 = sphi 0, %s244
      %s247 = sphi 0, %s246
      %s261 = sphi 0, %s247
      %s265 = sphi 0, %s265
      %s267 = sphi 0, %s265
      %s268 = sphi 0, %s267
      %s282 = sphi 0, %s268
      %s290 = sphi 0, %s292
      %s293 = sphi 0, %s290
      %s294 = sphi 0, %s293
      %s310 = sphi 0, %s294
    $region4: #{causal_conformer_encoder.20} parent=1 // loop_header_branch
      %31 = sbr.rel (%p29) target = $region8
    $region5: #{causal_conformer_encoder.20} parent=1 // loop_body
      %s33 = ssub.s32 %s28, 1
      %s34 = ssub.s32 %s28, 2
      %s41 = sadd.s32 1, %s36
      %p42 = scmp.ge.s32.totalorder %s41, 1
      %s43 = scalar_select %p42, 0, %s41
      %s44 = sadd.s32 1, %s35
      %s45 = scalar_select %p42, %s44, %s35
      %p46 = scmp.ge.s32.totalorder %s45, 2
      %s47 = scalar_select %p46, 0, %s45
      %s48 = ssub.s32 %s35, %s47
      %s49 = ssub.s32 %s36, %s43
      %s50 = sor.u32 %s48, %s49
      %p51 = scmp.eq.s32.totalorder %s50, 0
      %s53 = sadd.s32 %s52, 1
      %s54 = scalar_select %p51, %s52, %s53
      %p57 = pneg %p51
      %p58 = scmp.eq.s32.totalorder %s28, 1
      %p59 = por %p57, %p58
      %p60 = scmp.ne.s32.totalorder %s52, %s55
      %p61 = scmp.eq.s32.totalorder %s28, 0
      %p62 = por %p60, %p61
      %p63 = scmp.ne.s32.totalorder %s52, %s55
      %p64 = scmp.eq.s32.totalorder %s33, 1
      %p65 = por %p63, %p64
      %p66 = scmp.ne.s32.totalorder %s55, %s56
      %p67 = scmp.eq.s32.totalorder %s33, 0
      %p68 = por %p66, %p67
      %p69 = scmp.ne.s32.totalorder %s55, %s56
      %p70 = scmp.eq.s32.totalorder %s34, 1
      %p71 = por %p69, %p70
      %p73 = scmp.ne.s32.totalorder %s56, %s72
      %p74 = scmp.eq.s32.totalorder %s34, 0
      %p75 = por %p73, %p74
      %s77 = sadd.s32 %s76, 1
      %p80 = scmp.eq.s32.totalorder %s28, 1
      %p81 = scmp.ne.s32.totalorder %s76, %s78
      %p82 = scmp.eq.s32.totalorder %s28, 0
      %p83 = por %p81, %p82
      %p84 = scmp.ne.s32.totalorder %s76, %s78
      %p85 = scmp.eq.s32.totalorder %s33, 1
      %p86 = por %p84, %p85
      %p87 = scmp.ne.s32.totalorder %s78, %s79
      %p88 = scmp.eq.s32.totalorder %s33, 0
      %p89 = por %p87, %p88
      %p90 = scmp.ne.s32.totalorder %s78, %s79
      %p91 = scmp.eq.s32.totalorder %s34, 1
      %p92 = por %p90, %p91
      %p94 = scmp.ne.s32.totalorder %s79, %s93
      %p95 = scmp.eq.s32.totalorder %s34, 0
      %p96 = por %p94, %p95
      %s98 = sadd.s32 %s97, 1
      %p101 = scmp.eq.s32.totalorder %s28, 1
      %p102 = scmp.ne.s32.totalorder %s97, %s99
      %p103 = scmp.eq.s32.totalorder %s28, 0
      %p104 = por %p102, %p103
      %p105 = scmp.ne.s32.totalorder %s97, %s99
      %p106 = scmp.eq.s32.totalorder %s33, 1
      %p107 = por %p105, %p106
      %p108 = scmp.ne.s32.totalorder %s99, %s100
      %p109 = scmp.eq.s32.totalorder %s33, 0
      %p110 = por %p108, %p109
      %p111 = scmp.ne.s32.totalorder %s99, %s100
      %p112 = scmp.eq.s32.totalorder %s34, 1
      %p113 = por %p111, %p112
      %p115 = scmp.ne.s32.totalorder %s100, %s114
      %p116 = scmp.eq.s32.totalorder %s34, 0
      %p117 = por %p115, %p116
      %s119 = sadd.s32 %s118, 1
      %p122 = scmp.eq.s32.totalorder %s28, 1
      %p123 = scmp.ne.s32.totalorder %s118, %s120
      %p124 = scmp.eq.s32.totalorder %s28, 0
      %p125 = por %p123, %p124
      %p126 = scmp.ne.s32.totalorder %s118, %s120
      %p127 = scmp.eq.s32.totalorder %s33, 1
      %p128 = por %p126, %p127
      %p129 = scmp.ne.s32.totalorder %s120, %s121
      %p130 = scmp.eq.s32.totalorder %s33, 0
      %p131 = por %p129, %p130
      %p132 = scmp.ne.s32.totalorder %s120, %s121
      %p133 = scmp.eq.s32.totalorder %s34, 1
      %p134 = por %p132, %p133
      %p136 = scmp.ne.s32.totalorder %s121, %s135
      %p137 = scmp.eq.s32.totalorder %s34, 0
      %p138 = por %p136, %p137
      %s140 = sadd.s32 %s139, 1
      %p143 = scmp.eq.s32.totalorder %s28, 1
      %p144 = scmp.ne.s32.totalorder %s139, %s141
      %p145 = scmp.eq.s32.totalorder %s28, 0
      %p146 = por %p144, %p145
      %p147 = scmp.ne.s32.totalorder %s139, %s141
      %p148 = scmp.eq.s32.totalorder %s33, 1
      %p149 = por %p147, %p148
      %p150 = scmp.ne.s32.totalorder %s141, %s142
      %p151 = scmp.eq.s32.totalorder %s33, 0
      %p152 = por %p150, %p151
      %p153 = scmp.ne.s32.totalorder %s141, %s142
      %p154 = scmp.eq.s32.totalorder %s34, 1
      %p155 = por %p153, %p154
      %p157 = scmp.ne.s32.totalorder %s142, %s156
      %p158 = scmp.eq.s32.totalorder %s34, 0
      %p159 = por %p157, %p158
      %s161 = sadd.s32 %s160, 1
      %p164 = scmp.eq.s32.totalorder %s28, 1
      %p165 = scmp.ne.s32.totalorder %s160, %s162
      %p166 = scmp.eq.s32.totalorder %s28, 0
      %p167 = por %p165, %p166
      %p168 = scmp.ne.s32.totalorder %s160, %s162
      %p169 = scmp.eq.s32.totalorder %s33, 1
      %p170 = por %p168, %p169
      %p171 = scmp.ne.s32.totalorder %s162, %s163
      %p172 = scmp.eq.s32.totalorder %s33, 0
      %p173 = por %p171, %p172
      %p174 = scmp.ne.s32.totalorder %s162, %s163
      %p175 = scmp.eq.s32.totalorder %s34, 1
      %p176 = por %p174, %p175
      %p178 = scmp.ne.s32.totalorder %s163, %s177
      %p179 = scmp.eq.s32.totalorder %s34, 0
      %p180 = por %p178, %p179
      %s182 = sadd.s32 %s181, 1
      %p185 = scmp.eq.s32.totalorder %s28, 1
      %p186 = scmp.ne.s32.totalorder %s181, %s183
      %p187 = scmp.eq.s32.totalorder %s28, 0
      %p188 = por %p186, %p187
      %p189 = scmp.ne.s32.totalorder %s181, %s183
      %p190 = scmp.eq.s32.totalorder %s33, 1
      %p191 = por %p189, %p190
      %p192 = scmp.ne.s32.totalorder %s183, %s184
      %p193 = scmp.eq.s32.totalorder %s33, 0
      %p194 = por %p192, %p193
      %p195 = scmp.ne.s32.totalorder %s183, %s184
      %p196 = scmp.eq.s32.totalorder %s34, 1
      %p197 = por %p195, %p196
      %p199 = scmp.ne.s32.totalorder %s184, %s198
      %p200 = scmp.eq.s32.totalorder %s34, 0
      %p201 = por %p199, %p200
      %s203 = sadd.s32 %s202, 1
      %p206 = scmp.eq.s32.totalorder %s28, 1
      %p207 = scmp.ne.s32.totalorder %s202, %s204
      %p208 = scmp.eq.s32.totalorder %s28, 0
      %p209 = por %p207, %p208
      %p210 = scmp.ne.s32.totalorder %s202, %s204
      %p211 = scmp.eq.s32.totalorder %s33, 1
      %p212 = por %p210, %p211
      %p213 = scmp.ne.s32.totalorder %s204, %s205
      %p214 = scmp.eq.s32.totalorder %s33, 0
      %p215 = por %p213, %p214
      %p216 = scmp.ne.s32.totalorder %s204, %s205
      %p217 = scmp.eq.s32.totalorder %s34, 1
      %p218 = por %p216, %p217
      %p220 = scmp.ne.s32.totalorder %s205, %s219
      %p221 = scmp.eq.s32.totalorder %s34, 0
      %p222 = por %p220, %p221
      %s224 = sadd.s32 %s223, 1
      %p227 = scmp.eq.s32.totalorder %s28, 1
      %p228 = scmp.ne.s32.totalorder %s223, %s225
      %p229 = scmp.eq.s32.totalorder %s28, 0
      %p230 = por %p228, %p229
      %p231 = scmp.ne.s32.totalorder %s223, %s225
      %p232 = scmp.eq.s32.totalorder %s33, 1
      %p233 = por %p231, %p232
      %p234 = scmp.ne.s32.totalorder %s225, %s226
      %p235 = scmp.eq.s32.totalorder %s33, 0
      %p236 = por %p234, %p235
      %p237 = scmp.ne.s32.totalorder %s225, %s226
      %p238 = scmp.eq.s32.totalorder %s34, 1
      %p239 = por %p237, %p238
      %p241 = scmp.ne.s32.totalorder %s226, %s240
      %p242 = scmp.eq.s32.totalorder %s34, 0
      %p243 = por %p241, %p242
      %s245 = sadd.s32 %s244, 1
      %p248 = scmp.eq.s32.totalorder %s28, 1
      %p249 = scmp.ne.s32.totalorder %s244, %s246
      %p250 = scmp.eq.s32.totalorder %s28, 0
      %p251 = por %p249, %p250
      %p252 = scmp.ne.s32.totalorder %s244, %s246
      %p253 = scmp.eq.s32.totalorder %s33, 1
      %p254 = por %p252, %p253
      %p255 = scmp.ne.s32.totalorder %s246, %s247
      %p256 = scmp.eq.s32.totalorder %s33, 0
      %p257 = por %p255, %p256
      %p258 = scmp.ne.s32.totalorder %s246, %s247
      %p259 = scmp.eq.s32.totalorder %s34, 1
      %p260 = por %p258, %p259
      %p262 = scmp.ne.s32.totalorder %s247, %s261
      %p263 = scmp.eq.s32.totalorder %s34, 0
      %p264 = por %p262, %p263
      %s266 = sadd.s32 %s265, 1
      %p269 = scmp.eq.s32.totalorder %s28, 1
      %p270 = scmp.ne.s32.totalorder %s265, %s267
      %p271 = scmp.eq.s32.totalorder %s28, 0
      %p272 = por %p270, %p271
      %p273 = scmp.ne.s32.totalorder %s265, %s267
      %p274 = scmp.eq.s32.totalorder %s33, 1
      %p275 = por %p273, %p274
      %p276 = scmp.ne.s32.totalorder %s267, %s268
      %p277 = scmp.eq.s32.totalorder %s33, 0
      %p278 = por %p276, %p277
      %p279 = scmp.ne.s32.totalorder %s267, %s268
      %p280 = scmp.eq.s32.totalorder %s34, 1
      %p281 = por %p279, %p280
      %p283 = scmp.ne.s32.totalorder %s268, %s282
      %p284 = scmp.eq.s32.totalorder %s34, 0
      %p285 = por %p283, %p284
      %s286 = ssub.s32 %s35, %s47
      %s287 = ssub.s32 %s36, %s43
      %s288 = sor.u32 %s286, %s287
      %p289 = scmp.eq.s32.totalorder %s288, 0
      %s291 = sadd.s32 %s290, 1
      %s292 = scalar_select %p289, %s290, %s291
      %p295 = pneg %p289
      %p296 = scmp.eq.s32.totalorder %s28, 1
      %p297 = por %p295, %p296
      %p298 = scmp.ne.s32.totalorder %s290, %s293
      %p299 = scmp.eq.s32.totalorder %s28, 0
      %p300 = por %p298, %p299
      %p301 = scmp.ne.s32.totalorder %s290, %s293
      %p302 = scmp.eq.s32.totalorder %s33, 1
      %p303 = por %p301, %p302
      %p304 = scmp.ne.s32.totalorder %s293, %s294
      %p305 = scmp.eq.s32.totalorder %s33, 0
      %p306 = por %p304, %p305
      %p307 = scmp.ne.s32.totalorder %s293, %s294
      %p308 = scmp.eq.s32.totalorder %s34, 1
      %p309 = por %p307, %p308
      %p311 = scmp.ne.s32.totalorder %s294, %s310
      %p312 = scmp.eq.s32.totalorder %s34, 0
      %p313 = por %p311, %p312
      %p314 = scmp.le.s32.totalorder 1, %s28
      %p315 = scmp.lt.s32.totalorder %s28, 3
      %p316 = pnand %p314, %p315
      %p317 = pneg %p316
      // Predicated region
      $region9: #{causal_conformer_encoder.20} parent=5 // pred_check
        _
      $region10: #{causal_conformer_encoder.20} parent=5 // pred_check_branch
        %319 = sbr.rel (%p316) target = $region12
      $region11: #{causal_conformer_encoder.20} parent=5 // pred_region
        %s320 = ssub.s32 %s28, 1
        // Predicated region
        $region13: #{causal_conformer_encoder.20} parent=11 // pred_check
          %p321 = pneg %p89
        $region14: #{causal_conformer_encoder.20} parent=11 // pred_check_branch
          %323 = sbr.rel (%p321) target = $region16
        $region15: #{causal_conformer_encoder.20} parent=11 // pred_region
          %s325 = ssub.s32 16, 16
          %326 = vsyncadd [#allocation7], %s325
          %s328 = sshll.u32 [#allocation6], 4
          %s329 = int_to_ptr.vmem [resolvable:$true] %s328
          %331 = dma.hbm_to_vmem [thread:$0]  %s1, 16, %s329, [#allocation7]
        $region16: #{causal_conformer_encoder.20} parent=11 // pred_fallthru
          _
        // Predicated region
        $region17: #{causal_conformer_encoder.20} parent=11 // pred_check
          %p332 = pneg %p110
        $region18: #{causal_conformer_encoder.20} parent=11 // pred_check_branch
          %334 = sbr.rel (%p332) target = $region20
        $region19: #{causal_conformer_encoder.20} parent=11 // pred_region
          %s336 = ssub.s32 16, 16
          %337 = vsyncadd [#allocation7], %s336
          %s339 = sshll.u32 [#allocation8], 4
          %s340 = int_to_ptr.vmem [resolvable:$true] %s339
          %342 = dma.hbm_to_vmem [thread:$0]  %s2, 16, %s340, [#allocation7]
        $region20: #{causal_conformer_encoder.20} parent=11 // pred_fallthru
          _
        // Predicated region
        $region21: #{causal_conformer_encoder.20} parent=11 // pred_check
          %p343 = pneg %p131
        $region22: #{causal_conformer_encoder.20} parent=11 // pred_check_branch
          %345 = sbr.rel (%p343) target = $region24
        $region23: #{causal_conformer_encoder.20} parent=11 // pred_region
          %s347 = ssub.s32 128, 128
          %348 = vsyncadd [#allocation10], %s347
          %s349 = sshll.u32 [#allocation9], 4
          %s350 = int_to_ptr.vmem [resolvable:$true] %s349
          %355 = dma.hbm_to_vmem [thread:$0]  %s3, 128, %s350, [#allocation10], 64, 64, 4
        $region24: #{causal_conformer_encoder.20} parent=11 // pred_fallthru
          _
        // Predicated region
        $region25: #{causal_conformer_encoder.20} parent=11 // pred_check
          %p356 = pneg %p152
        $region26: #{causal_conformer_encoder.20} parent=11 // pred_check_branch
          %358 = sbr.rel (%p356) target = $region28
        $region27: #{causal_conformer_encoder.20} parent=11 // pred_region
          %s360 = ssub.s32 16, 16
          %361 = vsyncadd [#allocation10], %s360
          %s363 = sshll.u32 [#allocation11], 4
          %s364 = int_to_ptr.vmem [resolvable:$true] %s363
          %366 = dma.hbm_to_vmem [thread:$0]  %s4, 16, %s364, [#allocation10]
        $region28: #{causal_conformer_encoder.20} parent=11 // pred_fallthru
          _
        // Predicated region
        $region29: #{causal_conformer_encoder.20} parent=11 // pred_check
          %p367 = pneg %p173
        $region30: #{causal_conformer_encoder.20} parent=11 // pred_check_branch
          %369 = sbr.rel (%p367) target = $region32
        $region31: #{causal_conformer_encoder.20} parent=11 // pred_region
          %s371 = ssub.s32 128, 128
          %372 = vsyncadd [#allocation13], %s371
          %s373 = sshll.u32 [#allocation12], 4
          %s374 = int_to_ptr.vmem [resolvable:$true] %s373
          %379 = dma.hbm_to_vmem [thread:$0]  %s5, 128, %s374, [#allocation13], 64, 64, 4
        $region32: #{causal_conformer_encoder.20} parent=11 // pred_fallthru
          _
        // Predicated region
        $region33: #{causal_conformer_encoder.20} parent=11 // pred_check
          %p380 = pneg %p194
        $region34: #{causal_conformer_encoder.20} parent=11 // pred_check_branch
          %382 = sbr.rel (%p380) target = $region36
        $region35: #{causal_conformer_encoder.20} parent=11 // pred_region
          %s384 = ssub.s32 16, 16
          %385 = vsyncadd [#allocation13], %s384
          %s387 = sshll.u32 [#allocation14], 4
          %s388 = int_to_ptr.vmem [resolvable:$true] %s387
          %390 = dma.hbm_to_vmem [thread:$0]  %s6, 16, %s388, [#allocation13]
        $region36: #{causal_conformer_encoder.20} parent=11 // pred_fallthru
          _
        // Predicated region
        $region37: #{causal_conformer_encoder.20} parent=11 // pred_check
          %p391 = pneg %p215
        $region38: #{causal_conformer_encoder.20} parent=11 // pred_check_branch
          %393 = sbr.rel (%p391) target = $region40
        $region39: #{causal_conformer_encoder.20} parent=11 // pred_region
          %s395 = ssub.s32 64, 64
          %396 = vsyncadd [#allocation16], %s395
          %s398 = sshll.u32 [#allocation15], 4
          %s399 = int_to_ptr.vmem [resolvable:$true] %s398
          %401 = dma.hbm_to_vmem [thread:$0]  %s7, 64, %s399, [#allocation16]
        $region40: #{causal_conformer_encoder.20} parent=11 // pred_fallthru
          _
        // Predicated region
        $region41: #{causal_conformer_encoder.20} parent=11 // pred_check
          %p402 = pneg %p236
        $region42: #{causal_conformer_encoder.20} parent=11 // pred_check_branch
          %404 = sbr.rel (%p402) target = $region44
        $region43: #{causal_conformer_encoder.20} parent=11 // pred_region
          %s406 = ssub.s32 16, 16
          %407 = vsyncadd [#allocation16], %s406
          %s409 = sshll.u32 [#allocation17], 4
          %s410 = int_to_ptr.vmem [resolvable:$true] %s409
          %412 = dma.hbm_to_vmem [thread:$0]  %s8, 16, %s410, [#allocation16]
        $region44: #{causal_conformer_encoder.20} parent=11 // pred_fallthru
          _
        // Predicated region
        $region45: #{causal_conformer_encoder.20} parent=11 // pred_check
          %p413 = pneg %p257
        $region46: #{causal_conformer_encoder.20} parent=11 // pred_check_branch
          %415 = sbr.rel (%p413) target = $region48
        $region47: #{causal_conformer_encoder.20} parent=11 // pred_region
          %s417 = ssub.s32 128, 128
          %418 = vsyncadd [#allocation19], %s417
          %s419 = sshll.u32 [#allocation18], 4
          %s420 = int_to_ptr.vmem [resolvable:$true] %s419
          %425 = dma.hbm_to_vmem [thread:$0]  %s9, 128, %s420, [#allocation19], 64, 64, 4
        $region48: #{causal_conformer_encoder.20} parent=11 // pred_fallthru
          _
        // Predicated region
        $region49: #{causal_conformer_encoder.20} parent=11 // pred_check
          %p426 = pneg %p278
        $region50: #{causal_conformer_encoder.20} parent=11 // pred_check_branch
          %428 = sbr.rel (%p426) target = $region52
        $region51: #{causal_conformer_encoder.20} parent=11 // pred_region
          %s430 = ssub.s32 16, 16
          %431 = vsyncadd [#allocation19], %s430
          %s433 = sshll.u32 [#allocation20], 4
          %s434 = int_to_ptr.vmem [resolvable:$true] %s433
          %436 = dma.hbm_to_vmem [thread:$0]  %s10, 16, %s434, [#allocation19]
        $region52: #{causal_conformer_encoder.20} parent=11 // pred_fallthru
          _
      $region12: #{causal_conformer_encoder.20} parent=5 // pred_fallthru
        _
      %p437 = scmp.lt.s32.totalorder %s28, 2
      // Predicated region
      $region53: #{causal_conformer_encoder.20} parent=5 // pred_check
        %p438 = pneg %p437
      $region54: #{causal_conformer_encoder.20} parent=5 // pred_check_branch
        %440 = sbr.rel (%p438) target = $region56
      $region55: #{causal_conformer_encoder.20} parent=5 // pred_region
        // Predicated region
        $region57: #{causal_conformer_encoder.20} parent=55 // pred_check
          %p441 = pneg %p62
        $region58: #{causal_conformer_encoder.20} parent=55 // pred_check_branch
          %443 = sbr.rel (%p441) target = $region60
        $region59: #{causal_conformer_encoder.20} parent=55 // pred_region
          %s444 = sand.u32 %s52, 1
          %s445 = scalar_lea.sflag [#allocation4], %s444
          %s446 = sand.u32 %s52, 1
          %s447 = smul.addr %s446, 8
          %s448 = scalar_lea.vmem [#allocation3], %s447
          %s450 = ssub.s32 128, 128
          %451 = vsyncadd %s445, %s450
          %s452 = sadd.s32 %s36, %s35
          %s453 = smul.addr %s452, 128
          %s454 = scalar_lea.hbm %s0, %s453
          %s456 = sshll.u32 %s448, 4
          %s457 = int_to_ptr.vmem [resolvable:$true] %s456
          %459 = dma.hbm_to_vmem [thread:$0]  %s454, 128, %s457, %s445
        $region60: #{causal_conformer_encoder.20} parent=55 // pred_fallthru
          _
      $region56: #{causal_conformer_encoder.20} parent=5 // pred_fallthru
        _
      %p460 = scmp.le.s32.totalorder 1, %s28
      %p461 = scmp.lt.s32.totalorder %s28, 3
      %p462 = pnand %p460, %p461
      %p463 = pneg %p462
      // Predicated region
      $region61: #{causal_conformer_encoder.20} parent=5 // pred_check
        _
      $region62: #{causal_conformer_encoder.20} parent=5 // pred_check_branch
        %465 = sbr.rel (%p462) target = $region64
      $region63: #{causal_conformer_encoder.20} parent=5 // pred_region
        %s466 = ssub.s32 %s28, 1
        %s467 = sand.u32 %s55, 1
        %s468 = scalar_lea.sflag [#allocation4], %s467
        %s469 = sand.u32 %s55, 1
        %s470 = smul.addr %s469, 8
        %s471 = scalar_lea.vmem [#allocation3], %s470
        // Predicated region
        $region65: #{causal_conformer_encoder.20} parent=63 // pred_check
          %p472 = pneg %p68
        $region66: #{causal_conformer_encoder.20} parent=63 // pred_check_branch
          %474 = sbr.rel (%p472) target = $region68
        $region67: #{causal_conformer_encoder.20} parent=63 // pred_region
          %475 = dma.done %s468, 128
        $region68: #{causal_conformer_encoder.20} parent=63 // pred_fallthru
          _
        // Predicated region
        $region69: #{causal_conformer_encoder.20} parent=63 // pred_check
          %p476 = pneg %p89
        $region70: #{causal_conformer_encoder.20} parent=63 // pred_check_branch
          %478 = sbr.rel (%p476) target = $region72
        $region71: #{causal_conformer_encoder.20} parent=63 // pred_region
          %479 = dma.done [#allocation7], 16
        $region72: #{causal_conformer_encoder.20} parent=63 // pred_fallthru
          _
        // Predicated region
        $region73: #{causal_conformer_encoder.20} parent=63 // pred_check
          %p480 = pneg %p110
        $region74: #{causal_conformer_encoder.20} parent=63 // pred_check_branch
          %482 = sbr.rel (%p480) target = $region76
        $region75: #{causal_conformer_encoder.20} parent=63 // pred_region
          %483 = dma.done [#allocation7], 16
        $region76: #{causal_conformer_encoder.20} parent=63 // pred_fallthru
          _
        // Predicated region
        $region77: #{causal_conformer_encoder.20} parent=63 // pred_check
          %p484 = pneg %p131
        $region78: #{causal_conformer_encoder.20} parent=63 // pred_check_branch
          %486 = sbr.rel (%p484) target = $region80
        $region79: #{causal_conformer_encoder.20} parent=63 // pred_region
          %487 = dma.done [#allocation10], 128
        $region80: #{causal_conformer_encoder.20} parent=63 // pred_fallthru
          _
        // Predicated region
        $region81: #{causal_conformer_encoder.20} parent=63 // pred_check
          %p488 = pneg %p152
        $region82: #{causal_conformer_encoder.20} parent=63 // pred_check_branch
          %490 = sbr.rel (%p488) target = $region84
        $region83: #{causal_conformer_encoder.20} parent=63 // pred_region
          %491 = dma.done [#allocation10], 16
        $region84: #{causal_conformer_encoder.20} parent=63 // pred_fallthru
          _
        // Predicated region
        $region85: #{causal_conformer_encoder.20} parent=63 // pred_check
          %p492 = pneg %p173
        $region86: #{causal_conformer_encoder.20} parent=63 // pred_check_branch
          %494 = sbr.rel (%p492) target = $region88
        $region87: #{causal_conformer_encoder.20} parent=63 // pred_region
          %495 = dma.done [#allocation13], 128
        $region88: #{causal_conformer_encoder.20} parent=63 // pred_fallthru
          _
        // Predicated region
        $region89: #{causal_conformer_encoder.20} parent=63 // pred_check
          %p496 = pneg %p194
        $region90: #{causal_conformer_encoder.20} parent=63 // pred_check_branch
          %498 = sbr.rel (%p496) target = $region92
        $region91: #{causal_conformer_encoder.20} parent=63 // pred_region
          %499 = dma.done [#allocation13], 16
        $region92: #{causal_conformer_encoder.20} parent=63 // pred_fallthru
          _
        // Predicated region
        $region93: #{causal_conformer_encoder.20} parent=63 // pred_check
          %p500 = pneg %p215
        $region94: #{causal_conformer_encoder.20} parent=63 // pred_check_branch
          %502 = sbr.rel (%p500) target = $region96
        $region95: #{causal_conformer_encoder.20} parent=63 // pred_region
          %503 = dma.done [#allocation16], 64
        $region96: #{causal_conformer_encoder.20} parent=63 // pred_fallthru
          _
        // Predicated region
        $region97: #{causal_conformer_encoder.20} parent=63 // pred_check
          %p504 = pneg %p236
        $region98: #{causal_conformer_encoder.20} parent=63 // pred_check_branch
          %506 = sbr.rel (%p504) target = $region100
        $region99: #{causal_conformer_encoder.20} parent=63 // pred_region
          %507 = dma.done [#allocation16], 16
        $region100: #{causal_conformer_encoder.20} parent=63 // pred_fallthru
          _
        // Predicated region
        $region101: #{causal_conformer_encoder.20} parent=63 // pred_check
          %p508 = pneg %p257
        $region102: #{causal_conformer_encoder.20} parent=63 // pred_check_branch
          %510 = sbr.rel (%p508) target = $region104
        $region103: #{causal_conformer_encoder.20} parent=63 // pred_region
          %511 = dma.done [#allocation19], 128
        $region104: #{causal_conformer_encoder.20} parent=63 // pred_fallthru
          _
        // Predicated region
        $region105: #{causal_conformer_encoder.20} parent=63 // pred_check
          %p512 = pneg %p278
        $region106: #{causal_conformer_encoder.20} parent=63 // pred_check_branch
          %514 = sbr.rel (%p512) target = $region108
        $region107: #{causal_conformer_encoder.20} parent=63 // pred_region
          %515 = dma.done [#allocation19], 16
        $region108: #{causal_conformer_encoder.20} parent=63 // pred_fallthru
          _
        %s516 = sand.u32 %s55, 1
        %s517 = scalar_lea.sflag [#allocation4], %s516
        %s518 = sand.u32 %s55, 1
        %s519 = smul.addr %s518, 8
        %s520 = scalar_lea.vmem [#allocation3], %s519
        %p521 = pneg %p68
        %p522 = pneg %p65
        %p523 = pneg %p89
        %p524 = pneg %p86
        %p525 = pneg %p110
        %p526 = pneg %p107
        %p527 = pneg %p131
        %p528 = pneg %p128
        %p529 = pneg %p152
        %p530 = pneg %p149
        %p531 = pneg %p173
        %p532 = pneg %p170
        %p533 = pneg %p194
        %p534 = pneg %p191
        %p535 = pneg %p215
        %p536 = pneg %p212
        %p537 = pneg %p236
        %p538 = pneg %p233
        %p539 = pneg %p257
        %p540 = pneg %p254
        %p541 = pneg %p278
        %p542 = pneg %p275
        %p543 = pneg %p306
        %p544 = pneg %p303
        %s545 = sand.u32 %s293, 1
        %s546 = scalar_lea.sflag [#allocation5], %s545
        %s547 = sand.u32 %s293, 1
        %s548 = smul.addr %s547, 8
        %s549 = scalar_lea.vmem [#allocation21], %s548
        %v551 = vld [vmem:[%s471] sm:$0xff]
        %v552 = vld [vmem:[#allocation6] sm:$0x1]
        %v553 = vld [vmem:[#allocation8] sm:$0x1]
        %vm554 = vcmask 130048
        %v555 = vsel %vm554, %v551, 0.0
        %556 = vadd.xlane.f32.xlu0 %v555
        %v557 = vpop.xlane.xlu0 %556
        %v558 = vrcp.pop 16.0
        %v559 = vmul.f32 %v557, %v558
        %v560 = vsub.f32 %v551, %v559
        %v561 = vmul.f32 %v560, %v560
        %v562 = vsel %vm554, %v561, 0.0
        %563 = vadd.xlane.f32.xlu0 %v562
        %v564 = vpop.xlane.xlu0 %563
        %v565 = vmul.f32 %v564, %v558
        %v566 = vadd.f32 %v565, 1e-05
        %v567 = vrsqrt.pop %v566
        %v568 = vmul.f32 %v560, %v567
        %v570 = vlaneseq
        %v571 = vshrl.u32 %v570, 7
        %v572 = vsub.s32 0, %v571
        %v573 = vrot.slane %v552, %v572
        %v575 = vmul.f32 %v568, %v573
        %v577 = vlaneseq
        %v578 = vshrl.u32 %v577, 7
        %v579 = vsub.s32 0, %v578
        %v580 = vrot.slane %v553, %v579
        %v582 = vadd.f32 %v575, %v580
        %v583 = vpack.c.bf16 %v582, %v582
        %v584 = vld [vmem:[#allocation9] sm:$0xf]
        %v585 = vld [vmem:[#allocation9 + $0x4] sm:$0xf]
        %v586 = vld [vmem:[#allocation11] sm:$0x1]
        %v588 = vlaneseq
        %v589 = vshrl.u32 %v588, 7
        %v590 = vsub.s32 0, %v589
        %v591 = vrot.slane %v586, %v590
        %v595 = vunpack.c.l.b16 %v584
        %v596 = vunpack.c.l.b16 %v585
        %v597 = vpack.c.b16 %v596, %v595
        %v600 = vsel %vm554, %v583, 0
        %602 = vmatprep.subr.bf16.mxu0 0
        %603 = vmatpush1.bf16.msra.mxu0 %v597
        %604 = vmatprep.subr.bf16.mxu0 0
        %605 = vmatpush1.bf16.msra.mxu0 0
        %606 = vmatprep.subr.bf16.mxu0 0
        %607 = vmatpush1.bf16.msra.mxu0 0
        %608 = vmatprep.subr.bf16.mxu0 0
        %609 = vmatpush1.bf16.msra.mxu0 0
        %610 = vmatprep.subr.bf16.mxu0 0
        %611 = vmatpush1.bf16.msra.mxu0 0
        %612 = vmatprep.subr.bf16.mxu0 0
        %613 = vmatpush1.bf16.msra.mxu0 0
        %614 = vmatprep.subr.bf16.mxu0 0
        %615 = vmatpush1.bf16.msra.mxu0 0
        %616 = vmatprep.subr.bf16.mxu0 0
        %617 = vmatpush1.bf16.msra.mxu0 0
        %618 = vmatprep.subr.bf16.mxu0 0
        %619 = vmatpush1.bf16.msra.mxu0 0
        %620 = vmatprep.subr.bf16.mxu0 0
        %621 = vmatpush1.bf16.msra.mxu0 0
        %622 = vmatprep.subr.bf16.mxu0 0
        %623 = vmatpush1.bf16.msra.mxu0 0
        %624 = vmatprep.subr.bf16.mxu0 0
        %625 = vmatpush1.bf16.msra.mxu0 0
        %626 = vmatprep.subr.bf16.mxu0 0
        %627 = vmatpush1.bf16.msra.mxu0 0
        %628 = vmatprep.subr.bf16.mxu0 0
        %629 = vmatpush1.bf16.msra.mxu0 0
        %630 = vmatprep.subr.bf16.mxu0 0
        %631 = vmatpush1.bf16.msra.mxu0 0
        %632 = vmatprep.subr.bf16.mxu0 0
        %633 = vmatpush1.bf16.msra.mxu0 0
        %634 = vmatprep.mubr.bf16.mxu0 0
        %635 = vmatmul.mubr.bf16.gmra.mrb[0].mxu0 %v600
        %v636 = vpop.f32.mrb[0].mxu0
        %v637 = vadd.f32 %v591, %v636
        %v638 = vpop.f32.mrb[0].mxu0
        %v639 = vpop.f32.mrb[0].mxu0
        %v640 = vpop.f32.mrb[0].mxu0
        %641 = vdwg.mxu0
        %v642 = vld [vmem:[#allocation12] sm:$0xf]
        %v643 = vld [vmem:[#allocation12 + $0x4] sm:$0xf]
        %v644 = vld [vmem:[#allocation14] sm:$0x1]
        %v646 = vlaneseq
        %v647 = vshrl.u32 %v646, 7
        %v648 = vsub.s32 0, %v647
        %v649 = vrot.slane %v644, %v648
        %v653 = vunpack.c.l.b16 %v642
        %v654 = vunpack.c.l.b16 %v643
        %v655 = vpack.c.b16 %v654, %v653
        %657 = vmatprep.subr.bf16.mxu0 0
        %658 = vmatpush1.bf16.msra.mxu0 %v655
        %659 = vmatprep.subr.bf16.mxu0 0
        %660 = vmatpush1.bf16.msra.mxu0 0
        %661 = vmatprep.subr.bf16.mxu0 0
        %662 = vmatpush1.bf16.msra.mxu0 0
        %663 = vmatprep.subr.bf16.mxu0 0
        %664 = vmatpush1.bf16.msra.mxu0 0
        %665 = vmatprep.subr.bf16.mxu0 0
        %666 = vmatpush1.bf16.msra.mxu0 0
        %667 = vmatprep.subr.bf16.mxu0 0
        %668 = vmatpush1.bf16.msra.mxu0 0
        %669 = vmatprep.subr.bf16.mxu0 0
        %670 = vmatpush1.bf16.msra.mxu0 0
        %671 = vmatprep.subr.bf16.mxu0 0
        %672 = vmatpush1.bf16.msra.mxu0 0
        %673 = vmatprep.subr.bf16.mxu0 0
        %674 = vmatpush1.bf16.msra.mxu0 0
        %675 = vmatprep.subr.bf16.mxu0 0
        %676 = vmatpush1.bf16.msra.mxu0 0
        %677 = vmatprep.subr.bf16.mxu0 0
        %678 = vmatpush1.bf16.msra.mxu0 0
        %679 = vmatprep.subr.bf16.mxu0 0
        %680 = vmatpush1.bf16.msra.mxu0 0
        %681 = vmatprep.subr.bf16.mxu0 0
        %682 = vmatpush1.bf16.msra.mxu0 0
        %683 = vmatprep.subr.bf16.mxu0 0
        %684 = vmatpush1.bf16.msra.mxu0 0
        %685 = vmatprep.subr.bf16.mxu0 0
        %686 = vmatpush1.bf16.msra.mxu0 0
        %687 = vmatprep.subr.bf16.mxu0 0
        %688 = vmatpush1.bf16.msra.mxu0 0
        %689 = vmatprep.mubr.bf16.mxu0 0
        %690 = vmatmul.mubr.bf16.gmra.mrb[0].mxu0 %v600
        %v691 = vpop.f32.mrb[0].mxu0
        %v692 = vadd.f32 %v649, %v691
        %v693 = vpop.f32.mrb[0].mxu0
        %v694 = vpop.f32.mrb[0].mxu0
        %v695 = vpop.f32.mrb[0].mxu0
        %696 = vdwg.mxu0
        %v697 = vxor.u32 %v692, 2147483648
        %v698 = vmul.f32 %v697, 1.442695
        %v699 = vpow.pop %v698
        %v700 = vadd.f32 %v699, 1.0
        %v701 = vrcp.pop %v700
        %v702 = vmul.f32 1.0, %v701
        %v703 = vmul.f32 %v637, %v702
        %p704 = scmp.eq.s32.totalorder %s38, 0
        // Predicated region
        $region109: #{causal_conformer_encoder.20} parent=63 // pred_check
          %p705 = pneg %p704
        $region110: #{causal_conformer_encoder.20} parent=63 // pred_check_branch
          %707 = sbr.rel (%p705) target = $region112
        $region111: #{causal_conformer_encoder.20} parent=63 // pred_region
          %708 = vst.msk [vmem:[#allocation2] sm:$0xff] %vm554, 0.0
        $region112: #{causal_conformer_encoder.20} parent=63 // pred_fallthru
          _
        %709 = vst.msk [vmem:[#allocation2 + $0x8] sm:$0xff] %vm554, %v703
        %v710 = vld [vmem:[#allocation2] sm:$0xff]
        %v711 = vld [vmem:[#allocation2 + $0x8] sm:$0xff]
        %v712 = vld [vmem:[#allocation15] sm:$0x7]
        %v713 = vrot.slane %v710, 6
        %v714 = vrot.slane %v711, 6
        %v715 = vlaneseq
        %v716 = vshrl.u32 %v715, 7
        %vm717 = vcmp.lt.s32.totalorder %v716, 2
        %v718 = vsel %vm717, %v713, %v714
        %v719 = vlaneseq
        %v720 = vshrl.u32 %v719, 7
        %v721 = vsub.s32 0, %v720
        %v722 = vrot.slane %v712, %v721
        %v723 = vmul.f32 %v722, %v718
        %v724 = vadd.f32 %v723, 0.0
        %v725 = vrot.slane %v710, 7
        %v726 = vrot.slane %v711, 7
        %vm727 = vcmp.lt.s32.totalorder %v716, 1
        %v728 = vsel %vm727, %v725, %v726
        %v729 = vlaneseq
        %v730 = vshrl.u32 %v729, 7
        %v731 = vsub.s32 1, %v730
        %v732 = vrot.slane %v712, %v731
        %v733 = vmul.f32 %v732, %v728
        %v734 = vadd.f32 %v724, %v733
        %v735 = vlaneseq
        %v736 = vshrl.u32 %v735, 7
        %v737 = vsub.s32 2, %v736
        %v738 = vrot.slane %v712, %v737
        %v739 = vmul.f32 %v738, %v711
        %v740 = vadd.f32 %v734, %v739
        %v741 = vld [vmem:[#allocation17] sm:$0x1]
        %v743 = vlaneseq
        %v744 = vshrl.u32 %v743, 7
        %v745 = vsub.s32 0, %v744
        %v746 = vrot.slane %v741, %v745
        %v748 = vadd.f32 %v740, %v746
        %v749 = vxor.u32 %v748, 2147483648
        %v750 = vmul.f32 %v749, 1.442695
        %v751 = vpow.pop %v750
        %v752 = vadd.f32 %v751, 1.0
        %v753 = vrcp.pop %v752
        %v754 = vmul.f32 1.0, %v753
        %v755 = vmul.f32 %v748, %v754
        %v756 = vpack.c.bf16 %v755, %v755
        %v757 = vld [vmem:[#allocation18] sm:$0xf]
        %v758 = vld [vmem:[#allocation18 + $0x4] sm:$0xf]
        %v759 = vld [vmem:[#allocation20] sm:$0x1]
        %v761 = vlaneseq
        %v762 = vshrl.u32 %v761, 7
        %v763 = vsub.s32 0, %v762
        %v764 = vrot.slane %v759, %v763
        %v768 = vunpack.c.l.b16 %v757
        %v769 = vunpack.c.l.b16 %v758
        %v770 = vpack.c.b16 %v769, %v768
        %v773 = vsel %vm554, %v756, 0
        %775 = vmatprep.subr.bf16.mxu0 0
        %776 = vmatpush1.bf16.msra.mxu0 %v770
        %777 = vmatprep.subr.bf16.mxu0 0
        %778 = vmatpush1.bf16.msra.mxu0 0
        %779 = vmatprep.subr.bf16.mxu0 0
        %780 = vmatpush1.bf16.msra.mxu0 0
        %781 = vmatprep.subr.bf16.mxu0 0
        %782 = vmatpush1.bf16.msra.mxu0 0
        %783 = vmatprep.subr.bf16.mxu0 0
        %784 = vmatpush1.bf16.msra.mxu0 0
        %785 = vmatprep.subr.bf16.mxu0 0
        %786 = vmatpush1.bf16.msra.mxu0 0
        %787 = vmatprep.subr.bf16.mxu0 0
        %788 = vmatpush1.bf16.msra.mxu0 0
        %789 = vmatprep.subr.bf16.mxu0 0
        %790 = vmatpush1.bf16.msra.mxu0 0
        %791 = vmatprep.subr.bf16.mxu0 0
        %792 = vmatpush1.bf16.msra.mxu0 0
        %793 = vmatprep.subr.bf16.mxu0 0
        %794 = vmatpush1.bf16.msra.mxu0 0
        %795 = vmatprep.subr.bf16.mxu0 0
        %796 = vmatpush1.bf16.msra.mxu0 0
        %797 = vmatprep.subr.bf16.mxu0 0
        %798 = vmatpush1.bf16.msra.mxu0 0
        %799 = vmatprep.subr.bf16.mxu0 0
        %800 = vmatpush1.bf16.msra.mxu0 0
        %801 = vmatprep.subr.bf16.mxu0 0
        %802 = vmatpush1.bf16.msra.mxu0 0
        %803 = vmatprep.subr.bf16.mxu0 0
        %804 = vmatpush1.bf16.msra.mxu0 0
        %805 = vmatprep.subr.bf16.mxu0 0
        %806 = vmatpush1.bf16.msra.mxu0 0
        %807 = vmatprep.mubr.bf16.mxu0 0
        %808 = vmatmul.mubr.bf16.gmra.mrb[0].mxu0 %v773
        %v809 = vpop.f32.mrb[0].mxu0
        %v810 = vadd.f32 %v764, %v809
        %v811 = vpop.f32.mrb[0].mxu0
        %v812 = vpop.f32.mrb[0].mxu0
        %v813 = vpop.f32.mrb[0].mxu0
        %814 = vdwg.mxu0
        %v815 = vadd.f32 %v551, %v810
        %816 = vst.msk [vmem:[%s549] sm:$0xff] %vm554, %v815
        %v817 = vld [vmem:[#allocation2 + $0x8] sm:$0xff]
        %818 = vst.msk [vmem:[#allocation2] sm:$0xff] %vm554, %v817
        %s819 = sand.u32 %s293, 1
        %s820 = scalar_lea.sflag [#allocation5], %s819
        %s821 = sand.u32 %s293, 1
        %s822 = smul.addr %s821, 8
        %s823 = scalar_lea.vmem [#allocation21], %s822
        // Predicated region
        $region113: #{causal_conformer_encoder.20} parent=63 // pred_check
          %p824 = pneg %p303
        $region114: #{causal_conformer_encoder.20} parent=63 // pred_check_branch
          %826 = sbr.rel (%p824) target = $region116
        $region115: #{causal_conformer_encoder.20} parent=63 // pred_region
          %s828 = ssub.s32 128, 128
          %829 = vsyncadd %s820, %s828
          %s830 = sadd.s32 %s38, %s37
          %s831 = smul.addr %s830, 128
          %s832 = scalar_lea.hbm %s11, %s831
          %s834 = sshll.u32 %s823, 4
          %s835 = int_to_ptr.vmem [resolvable:$true] %s834
          %837 = dma.vmem_to_hbm [thread:$0]  %s835, 128, %s832, %s820
        $region116: #{causal_conformer_encoder.20} parent=63 // pred_fallthru
          _
      $region64: #{causal_conformer_encoder.20} parent=5 // pred_fallthru
        _
      %p838 = scmp.le.s32.totalorder 2, %s28
      // Predicated region
      $region117: #{causal_conformer_encoder.20} parent=5 // pred_check
        %p839 = pneg %p838
      $region118: #{causal_conformer_encoder.20} parent=5 // pred_check_branch
        %841 = sbr.rel (%p839) target = $region120
      $region119: #{causal_conformer_encoder.20} parent=5 // pred_region
        %s842 = ssub.s32 %s28, 2
        // Predicated region
        $region121: #{causal_conformer_encoder.20} parent=119 // pred_check
          %p843 = pneg %p309
        $region122: #{causal_conformer_encoder.20} parent=119 // pred_check_branch
          %845 = sbr.rel (%p843) target = $region124
        $region123: #{causal_conformer_encoder.20} parent=119 // pred_region
          %s846 = sand.u32 %s294, 1
          %s847 = scalar_lea.sflag [#allocation5], %s846
          %s848 = sand.u32 %s294, 1
          %s849 = smul.addr %s848, 8
          %s850 = scalar_lea.vmem [#allocation21], %s849
          %851 = dma.done %s847, 128
        $region124: #{causal_conformer_encoder.20} parent=119 // pred_fallthru
          _
      $region120: #{causal_conformer_encoder.20} parent=5 // pred_fallthru
        _
    $region6: #{causal_conformer_encoder.20} parent=1 // loop_footer
      %s32 = sadd.s32 1, %s28
    $region7: #{causal_conformer_encoder.20} parent=1 // loop_footer_branch
      %27 = sbr.rel target = $region3
    $region8: #{causal_conformer_encoder.20} parent=1 // loop_exit
      _
    %852 = vsyncpa [#allocation4], 1
    %s853 = scalar_lea.sflag [#allocation4], 1
    %854 = vsyncpa %s853, 1
    %855 = vsyncpa [#allocation7], 1
    %856 = vsyncpa [#allocation10], 1
    %857 = vsyncpa [#allocation13], 1
    %858 = vsyncpa [#allocation16], 1
    %859 = vsyncpa [#allocation19], 1
    %860 = vsyncpa [#allocation5], 1
    %s861 = scalar_lea.sflag [#allocation5], 1
    %862 = vsyncpa %s861, 1

// kernel: causal_conformer_encoder.19
$region0: #{causal_conformer_encoder.19}
  #allocation0 [shape = 'u32[]', space=smem, size = 0x4, offset = 0x4, fixed_abs, tag = 'smem constant byte address 0x4 - core index']
  #allocation1 [shape = 'u32[144,128]{1,0:T(1,128)}', space=vmem, size = 0x12000, scoped, tag = 'internal scratch']
  #allocation2 [shape = 's32[1]{0}', space=sflag, size = 0x4, scoped, tag = 'scoped memory for causal_conformer_encoder.19']
  #allocation3 [shape = 'u8[512]{0}', space=smem, size = 0x200, scoped, tag = 'prefetched SMEM operand 0']
  %s0 = inlined_call_operand.hbm [shape: s32[2], index: 0, kind: input, shape index: {}]
  %s1 = inlined_call_operand.hbm [shape: f32[2,8,16], index: 1, kind: input, shape index: {}, may-alias: {1,2}]
  %s2 = inlined_call_operand.hbm [shape: f32[2,8,16], index: 2, kind: input, shape index: {}, may-alias: {1,2}]
  %s3 = inlined_call_operand.hbm [shape: f32[1,16], index: 3, kind: input, shape index: {}]
  %s4 = inlined_call_operand.hbm [shape: f32[1,16], index: 4, kind: input, shape index: {}]
  %s5 = inlined_call_operand.hbm [shape: bf16[2,16,8], index: 5, kind: input, shape index: {}]
  %s6 = inlined_call_operand.hbm [shape: bf16[2,16,8], index: 6, kind: input, shape index: {}]
  %s7 = inlined_call_operand.hbm [shape: bf16[2,16,8], index: 7, kind: input, shape index: {}]
  %s8 = inlined_call_operand.hbm [shape: f32[2,1,8], index: 8, kind: input, shape index: {}]
  %s9 = inlined_call_operand.hbm [shape: f32[2,1,8], index: 9, kind: input, shape index: {}]
  %s10 = inlined_call_operand.hbm [shape: f32[2,1,8], index: 10, kind: input, shape index: {}]
  %s11 = inlined_call_operand.hbm [shape: bf16[2,8,16], index: 11, kind: input, shape index: {}]
  %s12 = inlined_call_operand.hbm [shape: f32[1,16], index: 12, kind: input, shape index: {}]
  %s13 = inlined_call_operand.hbm [shape: f32[2,8,16], index: 13, kind: output, shape index: {}]
  %s14 = sld [smem:[#allocation0]]
  $region129: #{causal_conformer_encoder.19} parent=0
    _
  %s16 = ssub.s32 1, %s14
  %s17 = scalar_select 0, %s16, %s14
  %19 = dma.hbm_to_smem %s0, 16, [#allocation3], [#allocation2]
  %20 = dma.done [#allocation2], 16
  %21 = sfence
  $region1: #{causal_conformer_encoder.19} parent=0
    #allocation4 [shape = 'u8[8192]{0}', space=vmem, size = 0x2000, scoped, tag = 'input window, operand 1']
    #allocation5 [shape = 's32[2]{0}', space=sflag, size = 0x8, scoped, tag = 'scoped memory for causal_conformer_encoder.19']
    #allocation6 [shape = 's32[2]{0}', space=sflag, size = 0x8, scoped, tag = 'scoped memory for causal_conformer_encoder.19']
    #allocation7 [shape = 'u8[8192]{0}', space=vmem, size = 0x2000, scoped, tag = 'input window, operand 2']
    #allocation8 [shape = 's32[2]{0}', space=sflag, size = 0x8, scoped, tag = 'scoped memory for causal_conformer_encoder.19']
    #allocation9 [shape = 'u8[512]{0}', space=vmem, size = 0x400, scoped, tag = 'input window, operand 3, single buffered']
    #allocation10 [shape = 'u8[512]{0}', space=vmem, size = 0x400, scoped, tag = 'input window, operand 4, single buffered']
    #allocation11 [shape = 's32[1]{0}', space=sflag, size = 0x4, scoped, tag = 'scoped memory for causal_conformer_encoder.19']
    #allocation12 [shape = 'u8[8192]{0}', space=vmem, size = 0x2000, scoped, tag = 'input window, operand 5, single buffered']
    #allocation13 [shape = 'u8[8192]{0}', space=vmem, size = 0x2000, scoped, tag = 'input window, operand 6, single buffered']
    #allocation14 [shape = 's32[1]{0}', space=sflag, size = 0x4, scoped, tag = 'scoped memory for causal_conformer_encoder.19']
    #allocation15 [shape = 'u8[8192]{0}', space=vmem, size = 0x2000, scoped, tag = 'input window, operand 7, single buffered']
    #allocation16 [shape = 'u8[1024]{0}', space=vmem, size = 0x400, scoped, tag = 'input window, operand 8, single buffered']
    #allocation17 [shape = 's32[1]{0}', space=sflag, size = 0x4, scoped, tag = 'scoped memory for causal_conformer_encoder.19']
    #allocation18 [shape = 'u8[1024]{0}', space=vmem, size = 0x400, scoped, tag = 'input window, operand 9, single buffered']
    #allocation19 [shape = 'u8[1024]{0}', space=vmem, size = 0x400, scoped, tag = 'input window, operand 10, single buffered']
    #allocation20 [shape = 's32[1]{0}', space=sflag, size = 0x4, scoped, tag = 'scoped memory for causal_conformer_encoder.19']
    #allocation21 [shape = 'u8[4096]{0}', space=vmem, size = 0x1000, scoped, tag = 'input window, operand 11, single buffered']
    #allocation22 [shape = 'u8[512]{0}', space=vmem, size = 0x400, scoped, tag = 'input window, operand 12, single buffered']
    #allocation23 [shape = 's32[1]{0}', space=sflag, size = 0x4, scoped, tag = 'scoped memory for causal_conformer_encoder.19']
    #allocation24 [shape = 'u8[8192]{0}', space=vmem, size = 0x2000, scoped, tag = 'output window, operand 0']
    %22 = vsyncpa [#allocation5], 0
    %s23 = scalar_lea.sflag [#allocation5], 1
    %24 = vsyncpa %s23, 0
    %25 = vsyncpa [#allocation8], 0
    %s26 = scalar_lea.sflag [#allocation8], 1
    %27 = vsyncpa %s26, 0
    %28 = vsyncpa [#allocation11], 0
    %29 = vsyncpa [#allocation14], 0
    %30 = vsyncpa [#allocation17], 0
    %31 = vsyncpa [#allocation20], 0
    %32 = vsyncpa [#allocation23], 0
    %33 = vsyncpa [#allocation6], 0
    %s34 = scalar_lea.sflag [#allocation6], 1
    %35 = vsyncpa %s34, 0
    loop: start=0, step=1, limit=4
    $region2: #{causal_conformer_encoder.19} parent=1 // loop_pre_header
      _
    $region3: #{causal_conformer_encoder.19} parent=1 // loop_header
      %s37 = sphi 0, %s41
      %p38 = scmp.ge.s32.totalorder %s37, 4
      %s44 = sphi 0, %s56
      %s45 = sphi 0, %s52
      %s46 = sphi 0, %s44
      %s47 = sphi 0, %s45
      %s48 = sphi 0, %s46
      %s49 = sphi 0, %s47
      %s61 = sphi 0, %s63
      %s64 = sphi 0, %s61
      %s65 = sphi 0, %s64
      %s81 = sphi 0, %s65
      %s95 = sphi 0, %s97
      %s98 = sphi 0, %s95
      %s99 = sphi 0, %s98
      %s115 = sphi 0, %s99
      %s119 = sphi 0, %s119
      %s121 = sphi 0, %s119
      %s122 = sphi 0, %s121
      %s136 = sphi 0, %s122
      %s140 = sphi 0, %s140
      %s142 = sphi 0, %s140
      %s143 = sphi 0, %s142
      %s157 = sphi 0, %s143
      %s161 = sphi 0, %s161
      %s163 = sphi 0, %s161
      %s164 = sphi 0, %s163
      %s178 = sphi 0, %s164
      %s182 = sphi 0, %s182
      %s184 = sphi 0, %s182
      %s185 = sphi 0, %s184
      %s199 = sphi 0, %s185
      %s203 = sphi 0, %s203
      %s205 = sphi 0, %s203
      %s206 = sphi 0, %s205
      %s220 = sphi 0, %s206
      %s224 = sphi 0, %s224
      %s226 = sphi 0, %s224
      %s227 = sphi 0, %s226
      %s241 = sphi 0, %s227
      %s245 = sphi 0, %s245
      %s247 = sphi 0, %s245
      %s248 = sphi 0, %s247
      %s262 = sphi 0, %s248
      %s266 = sphi 0, %s266
      %s268 = sphi 0, %s266
      %s269 = sphi 0, %s268
      %s283 = sphi 0, %s269
      %s287 = sphi 0, %s287
      %s289 = sphi 0, %s287
      %s290 = sphi 0, %s289
      %s304 = sphi 0, %s290
      %s308 = sphi 0, %s308
      %s310 = sphi 0, %s308
      %s311 = sphi 0, %s310
      %s325 = sphi 0, %s311
      %s333 = sphi 0, %s335
      %s336 = sphi 0, %s333
      %s337 = sphi 0, %s336
      %s353 = sphi 0, %s337
    $region4: #{causal_conformer_encoder.19} parent=1 // loop_header_branch
      %40 = sbr.rel (%p38) target = $region8
    $region5: #{causal_conformer_encoder.19} parent=1 // loop_body
      %s42 = ssub.s32 %s37, 1
      %s43 = ssub.s32 %s37, 2
      %s50 = sadd.s32 1, %s45
      %p51 = scmp.ge.s32.totalorder %s50, 1
      %s52 = scalar_select %p51, 0, %s50
      %s53 = sadd.s32 1, %s44
      %s54 = scalar_select %p51, %s53, %s44
      %p55 = scmp.ge.s32.totalorder %s54, 2
      %s56 = scalar_select %p55, 0, %s54
      %s57 = ssub.s32 %s44, %s56
      %s58 = ssub.s32 %s45, %s52
      %s59 = sor.u32 %s57, %s58
      %p60 = scmp.eq.s32.totalorder %s59, 0
      %s62 = sadd.s32 %s61, 1
      %s63 = scalar_select %p60, %s61, %s62
      %p66 = pneg %p60
      %p67 = scmp.eq.s32.totalorder %s37, 1
      %p68 = por %p66, %p67
      %p69 = scmp.ne.s32.totalorder %s61, %s64
      %p70 = scmp.eq.s32.totalorder %s37, 0
      %p71 = por %p69, %p70
      %p72 = scmp.ne.s32.totalorder %s61, %s64
      %p73 = scmp.eq.s32.totalorder %s42, 1
      %p74 = por %p72, %p73
      %p75 = scmp.ne.s32.totalorder %s64, %s65
      %p76 = scmp.eq.s32.totalorder %s42, 0
      %p77 = por %p75, %p76
      %p78 = scmp.ne.s32.totalorder %s64, %s65
      %p79 = scmp.eq.s32.totalorder %s43, 1
      %p80 = por %p78, %p79
      %p82 = scmp.ne.s32.totalorder %s65, %s81
      %p83 = scmp.eq.s32.totalorder %s43, 0
      %p84 = por %p82, %p83
      %s85 = ssub.s32 %s45, 1
      %p86 = scmp.gt.s32.totalorder %s85, 0
      %s87 = scalar_select %p86, %s85, 0
      %s88 = ssub.s32 %s52, 1
      %p89 = scmp.gt.s32.totalorder %s88, 0
      %s90 = scalar_select %p89, %s88, 0
      %s91 = ssub.s32 %s44, %s56
      %s92 = ssub.s32 %s87, %s90
      %s93 = sor.u32 %s91, %s92
      %p94 = scmp.eq.s32.totalorder %s93, 0
      %s96 = sadd.s32 %s95, 1
      %s97 = scalar_select %p94, %s95, %s96
      %p100 = pneg %p94
      %p101 = scmp.eq.s32.totalorder %s37, 1
      %p102 = por %p100, %p101
      %p103 = scmp.ne.s32.totalorder %s95, %s98
      %p104 = scmp.eq.s32.totalorder %s37, 0
      %p105 = por %p103, %p104
      %p106 = scmp.ne.s32.totalorder %s95, %s98
      %p107 = scmp.eq.s32.totalorder %s42, 1
      %p108 = por %p106, %p107
      %p109 = scmp.ne.s32.totalorder %s98, %s99
      %p110 = scmp.eq.s32.totalorder %s42, 0
      %p111 = por %p109, %p110
      %p112 = scmp.ne.s32.totalorder %s98, %s99
      %p113 = scmp.eq.s32.totalorder %s43, 1
      %p114 = por %p112, %p113
      %p116 = scmp.ne.s32.totalorder %s99, %s115
      %p117 = scmp.eq.s32.totalorder %s43, 0
      %p118 = por %p116, %p117
      %s120 = sadd.s32 %s119, 1
      %p123 = scmp.eq.s32.totalorder %s37, 1
      %p124 = scmp.ne.s32.totalorder %s119, %s121
      %p125 = scmp.eq.s32.totalorder %s37, 0
      %p126 = por %p124, %p125
      %p127 = scmp.ne.s32.totalorder %s119, %s121
      %p128 = scmp.eq.s32.totalorder %s42, 1
      %p129 = por %p127, %p128
      %p130 = scmp.ne.s32.totalorder %s121, %s122
      %p131 = scmp.eq.s32.totalorder %s42, 0
      %p132 = por %p130, %p131
      %p133 = scmp.ne.s32.totalorder %s121, %s122
      %p134 = scmp.eq.s32.totalorder %s43, 1
      %p135 = por %p133, %p134
      %p137 = scmp.ne.s32.totalorder %s122, %s136
      %p138 = scmp.eq.s32.totalorder %s43, 0
      %p139 = por %p137, %p138
      %s141 = sadd.s32 %s140, 1
      %p144 = scmp.eq.s32.totalorder %s37, 1
      %p145 = scmp.ne.s32.totalorder %s140, %s142
      %p146 = scmp.eq.s32.totalorder %s37, 0
      %p147 = por %p145, %p146
      %p148 = scmp.ne.s32.totalorder %s140, %s142
      %p149 = scmp.eq.s32.totalorder %s42, 1
      %p150 = por %p148, %p149
      %p151 = scmp.ne.s32.totalorder %s142, %s143
      %p152 = scmp.eq.s32.totalorder %s42, 0
      %p153 = por %p151, %p152
      %p154 = scmp.ne.s32.totalorder %s142, %s143
      %p155 = scmp.eq.s32.totalorder %s43, 1
      %p156 = por %p154, %p155
      %p158 = scmp.ne.s32.totalorder %s143, %s157
      %p159 = scmp.eq.s32.totalorder %s43, 0
      %p160 = por %p158, %p159
      %s162 = sadd.s32 %s161, 1
      %p165 = scmp.eq.s32.totalorder %s37, 1
      %p166 = scmp.ne.s32.totalorder %s161, %s163
      %p167 = scmp.eq.s32.totalorder %s37, 0
      %p168 = por %p166, %p167
      %p169 = scmp.ne.s32.totalorder %s161, %s163
      %p170 = scmp.eq.s32.totalorder %s42, 1
      %p171 = por %p169, %p170
      %p172 = scmp.ne.s32.totalorder %s163, %s164
      %p173 = scmp.eq.s32.totalorder %s42, 0
      %p174 = por %p172, %p173
      %p175 = scmp.ne.s32.totalorder %s163, %s164
      %p176 = scmp.eq.s32.totalorder %s43, 1
      %p177 = por %p175, %p176
      %p179 = scmp.ne.s32.totalorder %s164, %s178
      %p180 = scmp.eq.s32.totalorder %s43, 0
      %p181 = por %p179, %p180
      %s183 = sadd.s32 %s182, 1
      %p186 = scmp.eq.s32.totalorder %s37, 1
      %p187 = scmp.ne.s32.totalorder %s182, %s184
      %p188 = scmp.eq.s32.totalorder %s37, 0
      %p189 = por %p187, %p188
      %p190 = scmp.ne.s32.totalorder %s182, %s184
      %p191 = scmp.eq.s32.totalorder %s42, 1
      %p192 = por %p190, %p191
      %p193 = scmp.ne.s32.totalorder %s184, %s185
      %p194 = scmp.eq.s32.totalorder %s42, 0
      %p195 = por %p193, %p194
      %p196 = scmp.ne.s32.totalorder %s184, %s185
      %p197 = scmp.eq.s32.totalorder %s43, 1
      %p198 = por %p196, %p197
      %p200 = scmp.ne.s32.totalorder %s185, %s199
      %p201 = scmp.eq.s32.totalorder %s43, 0
      %p202 = por %p200, %p201
      %s204 = sadd.s32 %s203, 1
      %p207 = scmp.eq.s32.totalorder %s37, 1
      %p208 = scmp.ne.s32.totalorder %s203, %s205
      %p209 = scmp.eq.s32.totalorder %s37, 0
      %p210 = por %p208, %p209
      %p211 = scmp.ne.s32.totalorder %s203, %s205
      %p212 = scmp.eq.s32.totalorder %s42, 1
      %p213 = por %p211, %p212
      %p214 = scmp.ne.s32.totalorder %s205, %s206
      %p215 = scmp.eq.s32.totalorder %s42, 0
      %p216 = por %p214, %p215
      %p217 = scmp.ne.s32.totalorder %s205, %s206
      %p218 = scmp.eq.s32.totalorder %s43, 1
      %p219 = por %p217, %p218
      %p221 = scmp.ne.s32.totalorder %s206, %s220
      %p222 = scmp.eq.s32.totalorder %s43, 0
      %p223 = por %p221, %p222
      %s225 = sadd.s32 %s224, 1
      %p228 = scmp.eq.s32.totalorder %s37, 1
      %p229 = scmp.ne.s32.totalorder %s224, %s226
      %p230 = scmp.eq.s32.totalorder %s37, 0
      %p231 = por %p229, %p230
      %p232 = scmp.ne.s32.totalorder %s224, %s226
      %p233 = scmp.eq.s32.totalorder %s42, 1
      %p234 = por %p232, %p233
      %p235 = scmp.ne.s32.totalorder %s226, %s227
      %p236 = scmp.eq.s32.totalorder %s42, 0
      %p237 = por %p235, %p236
      %p238 = scmp.ne.s32.totalorder %s226, %s227
      %p239 = scmp.eq.s32.totalorder %s43, 1
      %p240 = por %p238, %p239
      %p242 = scmp.ne.s32.totalorder %s227, %s241
      %p243 = scmp.eq.s32.totalorder %s43, 0
      %p244 = por %p242, %p243
      %s246 = sadd.s32 %s245, 1
      %p249 = scmp.eq.s32.totalorder %s37, 1
      %p250 = scmp.ne.s32.totalorder %s245, %s247
      %p251 = scmp.eq.s32.totalorder %s37, 0
      %p252 = por %p250, %p251
      %p253 = scmp.ne.s32.totalorder %s245, %s247
      %p254 = scmp.eq.s32.totalorder %s42, 1
      %p255 = por %p253, %p254
      %p256 = scmp.ne.s32.totalorder %s247, %s248
      %p257 = scmp.eq.s32.totalorder %s42, 0
      %p258 = por %p256, %p257
      %p259 = scmp.ne.s32.totalorder %s247, %s248
      %p260 = scmp.eq.s32.totalorder %s43, 1
      %p261 = por %p259, %p260
      %p263 = scmp.ne.s32.totalorder %s248, %s262
      %p264 = scmp.eq.s32.totalorder %s43, 0
      %p265 = por %p263, %p264
      %s267 = sadd.s32 %s266, 1
      %p270 = scmp.eq.s32.totalorder %s37, 1
      %p271 = scmp.ne.s32.totalorder %s266, %s268
      %p272 = scmp.eq.s32.totalorder %s37, 0
      %p273 = por %p271, %p272
      %p274 = scmp.ne.s32.totalorder %s266, %s268
      %p275 = scmp.eq.s32.totalorder %s42, 1
      %p276 = por %p274, %p275
      %p277 = scmp.ne.s32.totalorder %s268, %s269
      %p278 = scmp.eq.s32.totalorder %s42, 0
      %p279 = por %p277, %p278
      %p280 = scmp.ne.s32.totalorder %s268, %s269
      %p281 = scmp.eq.s32.totalorder %s43, 1
      %p282 = por %p280, %p281
      %p284 = scmp.ne.s32.totalorder %s269, %s283
      %p285 = scmp.eq.s32.totalorder %s43, 0
      %p286 = por %p284, %p285
      %s288 = sadd.s32 %s287, 1
      %p291 = scmp.eq.s32.totalorder %s37, 1
      %p292 = scmp.ne.s32.totalorder %s287, %s289
      %p293 = scmp.eq.s32.totalorder %s37, 0
      %p294 = por %p292, %p293
      %p295 = scmp.ne.s32.totalorder %s287, %s289
      %p296 = scmp.eq.s32.totalorder %s42, 1
      %p297 = por %p295, %p296
      %p298 = scmp.ne.s32.totalorder %s289, %s290
      %p299 = scmp.eq.s32.totalorder %s42, 0
      %p300 = por %p298, %p299
      %p301 = scmp.ne.s32.totalorder %s289, %s290
      %p302 = scmp.eq.s32.totalorder %s43, 1
      %p303 = por %p301, %p302
      %p305 = scmp.ne.s32.totalorder %s290, %s304
      %p306 = scmp.eq.s32.totalorder %s43, 0
      %p307 = por %p305, %p306
      %s309 = sadd.s32 %s308, 1
      %p312 = scmp.eq.s32.totalorder %s37, 1
      %p313 = scmp.ne.s32.totalorder %s308, %s310
      %p314 = scmp.eq.s32.totalorder %s37, 0
      %p315 = por %p313, %p314
      %p316 = scmp.ne.s32.totalorder %s308, %s310
      %p317 = scmp.eq.s32.totalorder %s42, 1
      %p318 = por %p316, %p317
      %p319 = scmp.ne.s32.totalorder %s310, %s311
      %p320 = scmp.eq.s32.totalorder %s42, 0
      %p321 = por %p319, %p320
      %p322 = scmp.ne.s32.totalorder %s310, %s311
      %p323 = scmp.eq.s32.totalorder %s43, 1
      %p324 = por %p322, %p323
      %p326 = scmp.ne.s32.totalorder %s311, %s325
      %p327 = scmp.eq.s32.totalorder %s43, 0
      %p328 = por %p326, %p327
      %s329 = ssub.s32 %s44, %s56
      %s330 = ssub.s32 %s45, %s52
      %s331 = sor.u32 %s329, %s330
      %p332 = scmp.eq.s32.totalorder %s331, 0
      %s334 = sadd.s32 %s333, 1
      %s335 = scalar_select %p332, %s333, %s334
      %p338 = pneg %p332
      %p339 = scmp.eq.s32.totalorder %s37, 1
      %p340 = por %p338, %p339
      %p341 = scmp.ne.s32.totalorder %s333, %s336
      %p342 = scmp.eq.s32.totalorder %s37, 0
      %p343 = por %p341, %p342
      %p344 = scmp.ne.s32.totalorder %s333, %s336
      %p345 = scmp.eq.s32.totalorder %s42, 1
      %p346 = por %p344, %p345
      %p347 = scmp.ne.s32.totalorder %s336, %s337
      %p348 = scmp.eq.s32.totalorder %s42, 0
      %p349 = por %p347, %p348
      %p350 = scmp.ne.s32.totalorder %s336, %s337
      %p351 = scmp.eq.s32.totalorder %s43, 1
      %p352 = por %p350, %p351
      %p354 = scmp.ne.s32.totalorder %s337, %s353
      %p355 = scmp.eq.s32.totalorder %s43, 0
      %p356 = por %p354, %p355
      %p357 = scmp.le.s32.totalorder 1, %s37
      %p358 = scmp.lt.s32.totalorder %s37, 3
      %p359 = pnand %p357, %p358
      %p360 = pneg %p359
      // Predicated region
      $region9: #{causal_conformer_encoder.19} parent=5 // pred_check
        _
      $region10: #{causal_conformer_encoder.19} parent=5 // pred_check_branch
        %362 = sbr.rel (%p359) target = $region12
      $region11: #{causal_conformer_encoder.19} parent=5 // pred_region
        %s363 = ssub.s32 %s37, 1
        // Predicated region
        $region13: #{causal_conformer_encoder.19} parent=11 // pred_check
          %p364 = pneg %p132
        $region14: #{causal_conformer_encoder.19} parent=11 // pred_check_branch
          %366 = sbr.rel (%p364) target = $region16
        $region15: #{causal_conformer_encoder.19} parent=11 // pred_region
          %s368 = ssub.s32 16, 16
          %369 = vsyncadd [#allocation8], %s368
          %s371 = sshll.u32 [#allocation9], 4
          %s372 = int_to_ptr.vmem [resolvable:$true] %s371
          %374 = dma.hbm_to_vmem [thread:$0]  %s3, 16, %s372, [#allocation8]
        $region16: #{causal_conformer_encoder.19} parent=11 // pred_fallthru
          _
        // Predicated region
        $region17: #{causal_conformer_encoder.19} parent=11 // pred_check
          %p375 = pneg %p153
        $region18: #{causal_conformer_encoder.19} parent=11 // pred_check_branch
          %377 = sbr.rel (%p375) target = $region20
        $region19: #{causal_conformer_encoder.19} parent=11 // pred_region
          %s379 = ssub.s32 16, 16
          %380 = vsyncadd [#allocation11], %s379
          %s382 = sshll.u32 [#allocation10], 4
          %s383 = int_to_ptr.vmem [resolvable:$true] %s382
          %385 = dma.hbm_to_vmem [thread:$0]  %s4, 16, %s383, [#allocation11]
        $region20: #{causal_conformer_encoder.19} parent=11 // pred_fallthru
          _
        // Predicated region
        $region21: #{causal_conformer_encoder.19} parent=11 // pred_check
          %p386 = pneg %p174
        $region22: #{causal_conformer_encoder.19} parent=11 // pred_check_branch
          %388 = sbr.rel (%p386) target = $region24
        $region23: #{causal_conformer_encoder.19} parent=11 // pred_region
          %s390 = ssub.s32 256, 256
          %391 = vsyncadd [#allocation11], %s390
          %s392 = sshll.u32 [#allocation12], 4
          %s393 = int_to_ptr.vmem [resolvable:$true] %s392
          %398 = dma.hbm_to_vmem [thread:$0]  %s5, 256, %s393, [#allocation11], 64, 64, 4
        $region24: #{causal_conformer_encoder.19} parent=11 // pred_fallthru
          _
        // Predicated region
        $region25: #{causal_conformer_encoder.19} parent=11 // pred_check
          %p399 = pneg %p195
        $region26: #{causal_conformer_encoder.19} parent=11 // pred_check_branch
          %401 = sbr.rel (%p399) target = $region28
        $region27: #{causal_conformer_encoder.19} parent=11 // pred_region
          %s403 = ssub.s32 256, 256
          %404 = vsyncadd [#allocation14], %s403
          %s405 = sshll.u32 [#allocation13], 4
          %s406 = int_to_ptr.vmem [resolvable:$true] %s405
          %411 = dma.hbm_to_vmem [thread:$0]  %s6, 256, %s406, [#allocation14], 64, 64, 4
        $region28: #{causal_conformer_encoder.19} parent=11 // pred_fallthru
          _
        // Predicated region
        $region29: #{causal_conformer_encoder.19} parent=11 // pred_check
          %p412 = pneg %p216
        $region30: #{causal_conformer_encoder.19} parent=11 // pred_check_branch
          %414 = sbr.rel (%p412) target = $region32
        $region31: #{causal_conformer_encoder.19} parent=11 // pred_region
          %s416 = ssub.s32 256, 256
          %417 = vsyncadd [#allocation14], %s416
          %s418 = sshll.u32 [#allocation15], 4
          %s419 = int_to_ptr.vmem [resolvable:$true] %s418
          %424 = dma.hbm_to_vmem [thread:$0]  %s7, 256, %s419, [#allocation14], 64, 64, 4
        $region32: #{causal_conformer_encoder.19} parent=11 // pred_fallthru
          _
        // Predicated region
        $region33: #{causal_conformer_encoder.19} parent=11 // pred_check
          %p425 = pneg %p237
        $region34: #{causal_conformer_encoder.19} parent=11 // pred_check_branch
          %427 = sbr.rel (%p425) target = $region36
        $region35: #{causal_conformer_encoder.19} parent=11 // pred_region
          %s429 = ssub.s32 32, 32
          %430 = vsyncadd [#allocation17], %s429
          %s431 = sshll.u32 [#allocation16], 4
          %s432 = int_to_ptr.vmem [resolvable:$true] %s431
          %437 = dma.hbm_to_vmem [thread:$0]  %s8, 32, %s432, [#allocation17], 16, 16, 1
        $region36: #{causal_conformer_encoder.19} parent=11 // pred_fallthru
          _
        // Predicated region
        $region37: #{causal_conformer_encoder.19} parent=11 // pred_check
          %p438 = pneg %p258
        $region38: #{causal_conformer_encoder.19} parent=11 // pred_check_branch
          %440 = sbr.rel (%p438) target = $region40
        $region39: #{causal_conformer_encoder.19} parent=11 // pred_region
          %s442 = ssub.s32 32, 32
          %443 = vsyncadd [#allocation17], %s442
          %s444 = sshll.u32 [#allocation18], 4
          %s445 = int_to_ptr.vmem [resolvable:$true] %s444
          %450 = dma.hbm_to_vmem [thread:$0]  %s9, 32, %s445, [#allocation17], 16, 16, 1
        $region40: #{causal_conformer_encoder.19} parent=11 // pred_fallthru
          _
        // Predicated region
        $region41: #{causal_conformer_encoder.19} parent=11 // pred_check
          %p451 = pneg %p279
        $region42: #{causal_conformer_encoder.19} parent=11 // pred_check_branch
          %453 = sbr.rel (%p451) target = $region44
        $region43: #{causal_conformer_encoder.19} parent=11 // pred_region
          %s455 = ssub.s32 32, 32
          %456 = vsyncadd [#allocation20], %s455
          %s457 = sshll.u32 [#allocation19], 4
          %s458 = int_to_ptr.vmem [resolvable:$true] %s457
          %463 = dma.hbm_to_vmem [thread:$0]  %s10, 32, %s458, [#allocation20], 16, 16, 1
        $region44: #{causal_conformer_encoder.19} parent=11 // pred_fallthru
          _
        // Predicated region
        $region45: #{causal_conformer_encoder.19} parent=11 // pred_check
          %p464 = pneg %p300
        $region46: #{causal_conformer_encoder.19} parent=11 // pred_check_branch
          %466 = sbr.rel (%p464) target = $region48
        $region47: #{causal_conformer_encoder.19} parent=11 // pred_region
          %s468 = ssub.s32 128, 128
          %469 = vsyncadd [#allocation20], %s468
          %s470 = sshll.u32 [#allocation21], 4
          %s471 = int_to_ptr.vmem [resolvable:$true] %s470
          %476 = dma.hbm_to_vmem [thread:$0]  %s11, 128, %s471, [#allocation20], 64, 64, 4
        $region48: #{causal_conformer_encoder.19} parent=11 // pred_fallthru
          _
        // Predicated region
        $region49: #{causal_conformer_encoder.19} parent=11 // pred_check
          %p477 = pneg %p321
        $region50: #{causal_conformer_encoder.19} parent=11 // pred_check_branch
          %479 = sbr.rel (%p477) target = $region52
        $region51: #{causal_conformer_encoder.19} parent=11 // pred_region
          %s481 = ssub.s32 16, 16
          %482 = vsyncadd [#allocation23], %s481
          %s484 = sshll.u32 [#allocation22], 4
          %s485 = int_to_ptr.vmem [resolvable:$true] %s484
          %487 = dma.hbm_to_vmem [thread:$0]  %s12, 16, %s485, [#allocation23]
        $region52: #{causal_conformer_encoder.19} parent=11 // pred_fallthru
          _
      $region12: #{causal_conformer_encoder.19} parent=5 // pred_fallthru
        _
      %p488 = scmp.lt.s32.totalorder %s37, 2
      // Predicated region
      $region53: #{causal_conformer_encoder.19} parent=5 // pred_check
        %p489 = pneg %p488
      $region54: #{causal_conformer_encoder.19} parent=5 // pred_check_branch
        %491 = sbr.rel (%p489) target = $region56
      $region55: #{causal_conformer_encoder.19} parent=5 // pred_region
        // Predicated region
        $region57: #{causal_conformer_encoder.19} parent=55 // pred_check
          %p492 = pneg %p71
        $region58: #{causal_conformer_encoder.19} parent=55 // pred_check_branch
          %494 = sbr.rel (%p492) target = $region60
        $region59: #{causal_conformer_encoder.19} parent=55 // pred_region
          %s495 = sand.u32 %s61, 1
          %s496 = scalar_lea.sflag [#allocation5], %s495
          %s497 = sand.u32 %s61, 1
          %s498 = smul.addr %s497, 8
          %s499 = scalar_lea.vmem [#allocation4], %s498
          %s501 = ssub.s32 128, 128
          %502 = vsyncadd %s496, %s501
          %s503 = sadd.s32 %s45, %s44
          %s504 = smul.addr %s503, 128
          %s505 = scalar_lea.hbm %s1, %s504
          %s507 = sshll.u32 %s499, 4
          %s508 = int_to_ptr.vmem [resolvable:$true] %s507
          %510 = dma.hbm_to_vmem [thread:$0]  %s505, 128, %s508, %s496
        $region60: #{causal_conformer_encoder.19} parent=55 // pred_fallthru
          _
        // Predicated region
        $region61: #{causal_conformer_encoder.19} parent=55 // pred_check
          %p511 = pneg %p105
        $region62: #{causal_conformer_encoder.19} parent=55 // pred_check_branch
          %513 = sbr.rel (%p511) target = $region64
        $region63: #{causal_conformer_encoder.19} parent=55 // pred_region
          %s514 = sand.u32 %s37, 1
          %s515 = scalar_lea.sflag [#allocation8], %s514
          %s516 = sand.u32 %s95, 1
          %s517 = smul.addr %s516, 8
          %s518 = scalar_lea.vmem [#allocation7], %s517
          %s519 = ssub.s32 %s45, 1
          %p520 = scmp.gt.s32.totalorder %s519, 0
          %s521 = scalar_select %p520, %s519, 0
          %s523 = ssub.s32 128, 128
          %524 = vsyncadd %s515, %s523
          %s525 = sadd.s32 %s521, %s44
          %s526 = smul.addr %s525, 128
          %s527 = scalar_lea.hbm %s2, %s526
          %s529 = sshll.u32 %s518, 4
          %s530 = int_to_ptr.vmem [resolvable:$true] %s529
          %532 = dma.hbm_to_vmem [thread:$0]  %s527, 128, %s530, %s515
        $region64: #{causal_conformer_encoder.19} parent=55 // pred_fallthru
          _
      $region56: #{causal_conformer_encoder.19} parent=5 // pred_fallthru
        _
      %p533 = scmp.le.s32.totalorder 1, %s37
      %p534 = scmp.lt.s32.totalorder %s37, 3
      %p535 = pnand %p533, %p534
      %p536 = pneg %p535
      // Predicated region
      $region65: #{causal_conformer_encoder.19} parent=5 // pred_check
        _
      $region66: #{causal_conformer_encoder.19} parent=5 // pred_check_branch
        %538 = sbr.rel (%p535) target = $region68
      $region67: #{causal_conformer_encoder.19} parent=5 // pred_region
        %s539 = ssub.s32 %s37, 1
        %s540 = sand.u32 %s64, 1
        %s541 = scalar_lea.sflag [#allocation5], %s540
        %s542 = sand.u32 %s64, 1
        %s543 = smul.addr %s542, 8
        %s544 = scalar_lea.vmem [#allocation4], %s543
        // Predicated region
        $region69: #{causal_conformer_encoder.19} parent=67 // pred_check
          %p545 = pneg %p77
        $region70: #{causal_conformer_encoder.19} parent=67 // pred_check_branch
          %547 = sbr.rel (%p545) target = $region72
        $region71: #{causal_conformer_encoder.19} parent=67 // pred_region
          %548 = dma.done %s541, 128
        $region72: #{causal_conformer_encoder.19} parent=67 // pred_fallthru
          _
        %s549 = sand.u32 %s42, 1
        %s550 = scalar_lea.sflag [#allocation8], %s549
        %s551 = sand.u32 %s98, 1
        %s552 = smul.addr %s551, 8
        %s553 = scalar_lea.vmem [#allocation7], %s552
        // Predicated region
        $region73: #{causal_conformer_encoder.19} parent=67 // pred_check
          %p554 = pneg %p111
        $region74: #{causal_conformer_encoder.19} parent=67 // pred_check_branch
          %556 = sbr.rel (%p554) target = $region76
        $region75: #{causal_conformer_encoder.19} parent=67 // pred_region
          %557 = dma.done %s550, 128
        $region76: #{causal_conformer_encoder.19} parent=67 // pred_fallthru
          _
        // Predicated region
        $region77: #{causal_conformer_encoder.19} parent=67 // pred_check
          %p558 = pneg %p132
        $region78: #{causal_conformer_encoder.19} parent=67 // pred_check_branch
          %560 = sbr.rel (%p558) target = $region80
        $region79: #{causal_conformer_encoder.19} parent=67 // pred_region
          %561 = dma.done [#allocation8], 16
        $region80: #{causal_conformer_encoder.19} parent=67 // pred_fallthru
          _
        // Predicated region
        $region81: #{causal_conformer_encoder.19} parent=67 // pred_check
          %p562 = pneg %p153
        $region82: #{causal_conformer_encoder.19} parent=67 // pred_check_branch
          %564 = sbr.rel (%p562) target = $region84
        $region83: #{causal_conformer_encoder.19} parent=67 // pred_region
          %565 = dma.done [#allocation11], 16
        $region84: #{causal_conformer_encoder.19} parent=67 // pred_fallthru
          _
        // Predicated region
        $region85: #{causal_conformer_encoder.19} parent=67 // pred_check
          %p566 = pneg %p174
        $region86: #{causal_conformer_encoder.19} parent=67 // pred_check_branch
          %568 = sbr.rel (%p566) target = $region88
        $region87: #{causal_conformer_encoder.19} parent=67 // pred_region
          %569 = dma.done [#allocation11], 256
        $region88: #{causal_conformer_encoder.19} parent=67 // pred_fallthru
          _
        // Predicated region
        $region89: #{causal_conformer_encoder.19} parent=67 // pred_check
          %p570 = pneg %p195
        $region90: #{causal_conformer_encoder.19} parent=67 // pred_check_branch
          %572 = sbr.rel (%p570) target = $region92
        $region91: #{causal_conformer_encoder.19} parent=67 // pred_region
          %573 = dma.done [#allocation14], 256
        $region92: #{causal_conformer_encoder.19} parent=67 // pred_fallthru
          _
        // Predicated region
        $region93: #{causal_conformer_encoder.19} parent=67 // pred_check
          %p574 = pneg %p216
        $region94: #{causal_conformer_encoder.19} parent=67 // pred_check_branch
          %576 = sbr.rel (%p574) target = $region96
        $region95: #{causal_conformer_encoder.19} parent=67 // pred_region
          %577 = dma.done [#allocation14], 256
        $region96: #{causal_conformer_encoder.19} parent=67 // pred_fallthru
          _
        // Predicated region
        $region97: #{causal_conformer_encoder.19} parent=67 // pred_check
          %p578 = pneg %p237
        $region98: #{causal_conformer_encoder.19} parent=67 // pred_check_branch
          %580 = sbr.rel (%p578) target = $region100
        $region99: #{causal_conformer_encoder.19} parent=67 // pred_region
          %581 = dma.done [#allocation17], 32
        $region100: #{causal_conformer_encoder.19} parent=67 // pred_fallthru
          _
        // Predicated region
        $region101: #{causal_conformer_encoder.19} parent=67 // pred_check
          %p582 = pneg %p258
        $region102: #{causal_conformer_encoder.19} parent=67 // pred_check_branch
          %584 = sbr.rel (%p582) target = $region104
        $region103: #{causal_conformer_encoder.19} parent=67 // pred_region
          %585 = dma.done [#allocation17], 32
        $region104: #{causal_conformer_encoder.19} parent=67 // pred_fallthru
          _
        // Predicated region
        $region105: #{causal_conformer_encoder.19} parent=67 // pred_check
          %p586 = pneg %p279
        $region106: #{causal_conformer_encoder.19} parent=67 // pred_check_branch
          %588 = sbr.rel (%p586) target = $region108
        $region107: #{causal_conformer_encoder.19} parent=67 // pred_region
          %589 = dma.done [#allocation20], 32
        $region108: #{causal_conformer_encoder.19} parent=67 // pred_fallthru
          _
        // Predicated region
        $region109: #{causal_conformer_encoder.19} parent=67 // pred_check
          %p590 = pneg %p300
        $region110: #{causal_conformer_encoder.19} parent=67 // pred_check_branch
          %592 = sbr.rel (%p590) target = $region112
        $region111: #{causal_conformer_encoder.19} parent=67 // pred_region
          %593 = dma.done [#allocation20], 128
        $region112: #{causal_conformer_encoder.19} parent=67 // pred_fallthru
          _
        // Predicated region
        $region113: #{causal_conformer_encoder.19} parent=67 // pred_check
          %p594 = pneg %p321
        $region114: #{causal_conformer_encoder.19} parent=67 // pred_check_branch
          %596 = sbr.rel (%p594) target = $region116
        $region115: #{causal_conformer_encoder.19} parent=67 // pred_region
          %597 = dma.done [#allocation23], 16
        $region116: #{causal_conformer_encoder.19} parent=67 // pred_fallthru
          _
        %s598 = sand.u32 %s64, 1
        %s599 = scalar_lea.sflag [#allocation5], %s598
        %s600 = sand.u32 %s64, 1
        %s601 = smul.addr %s600, 8
        %s602 = scalar_lea.vmem [#allocation4], %s601
        %p603 = pneg %p77
        %p604 = pneg %p74
        %s605 = sand.u32 %s42, 1
        %s606 = scalar_lea.sflag [#allocation8], %s605
        %s607 = sand.u32 %s98, 1
        %s608 = smul.addr %s607, 8
        %s609 = scalar_lea.vmem [#allocation7], %s608
        %p610 = pneg %p111
        %p611 = pneg %p108
        %p612 = pneg %p132
        %p613 = pneg %p129
        %p614 = pneg %p153
        %p615 = pneg %p150
        %p616 = pneg %p174
        %p617 = pneg %p171
        %p618 = pneg %p195
        %p619 = pneg %p192
        %p620 = pneg %p216
        %p621 = pneg %p213
        %p622 = pneg %p237
        %p623 = pneg %p234
        %p624 = pneg %p258
        %p625 = pneg %p255
        %p626 = pneg %p279
        %p627 = pneg %p276
        %p628 = pneg %p300
        %p629 = pneg %p297
        %p630 = pneg %p321
        %p631 = pneg %p318
        %p632 = pneg %p349
        %p633 = pneg %p346
        %s634 = sand.u32 %s336, 1
        %s635 = scalar_lea.sflag [#allocation6], %s634
        %s636 = sand.u32 %s336, 1
        %s637 = smul.addr %s636, 8
        %s638 = scalar_lea.vmem [#allocation24], %s637
        %s639 = ssub.s32 %s47, 1
        %p640 = scmp.gt.s32.totalorder %s639, 0
        %s641 = scalar_select %p640, %s639, 0
        %s643 = sld [smem:[#allocation3 + %s46]]
        %s644 = smul.u32 %s47, 8
        %v645 = vld [vmem:[%s544] sm:$0xff]
        %v646 = vld [vmem:[#allocation9] sm:$0x1]
        %v647 = vld [vmem:[#allocation10] sm:$0x1]
        %vm648 = vcmask 130048
        %v649 = vsel %vm648, %v645, 0.0
        %650 = vadd.xlane.f32.xlu0 %v649
        %v651 = vpop.xlane.xlu0 %650
        %v652 = vrcp.pop 16.0
        %v653 = vmul.f32 %v651, %v652
        %v654 = vsub.f32 %v645, %v653
        %v655 = vmul.f32 %v654, %v654
        %v656 = vsel %vm648, %v655, 0.0
        %657 = vadd.xlane.f32.xlu0 %v656
        %v658 = vpop.xlane.xlu0 %657
        %v659 = vmul.f32 %v658, %v652
        %v660 = vadd.f32 %v659, 1e-05
        %v661 = vrsqrt.pop %v660
        %v662 = vmul.f32 %v654, %v661
        %v664 = vlaneseq
        %v665 = vshrl.u32 %v664, 7
        %v666 = vsub.s32 0, %v665
        %v667 = vrot.slane %v646, %v666
        %v669 = vmul.f32 %v662, %v667
        %v671 = vlaneseq
        %v672 = vshrl.u32 %v671, 7
        %v673 = vsub.s32 0, %v672
        %v674 = vrot.slane %v647, %v673
        %v676 = vadd.f32 %v669, %v674
        %v677 = vpack.c.bf16 %v676, %v676
        %v678 = vld [vmem:[%s553] sm:$0xff]
        %v679 = vsel %vm648, %v678, 0.0
        %680 = vadd.xlane.f32.xlu0 %v679
        %v681 = vpop.xlane.xlu0 %680
        %v682 = vmul.f32 %v681, %v652
        %v683 = vsub.f32 %v678, %v682
        %v684 = vmul.f32 %v683, %v683
        %v685 = vsel %vm648, %v684, 0.0
        %686 = vadd.xlane.f32.xlu0 %v685
        %v687 = vpop.xlane.xlu0 %686
        %v688 = vmul.f32 %v687, %v652
        %v689 = vadd.f32 %v688, 1e-05
        %v690 = vrsqrt.pop %v689
        %v691 = vmul.f32 %v683, %v690
        %v692 = vmul.f32 %v691, %v667
        %v693 = vadd.f32 %v692, %v674
        %v694 = vpack.c.bf16 %v693, %v693
        %v695 = vld [vmem:[#allocation12] sm:$0xf]
        %v696 = vld [vmem:[#allocation12 + $0x4] sm:$0xf]
        %v697 = vld [vmem:[#allocation12 + $0x8] sm:$0xf]
        %v698 = vld [vmem:[#allocation12 + $0xc] sm:$0xf]
        %v699 = vld [vmem:[#allocation16] sm:$0x1]
        %v700 = vld [vmem:[#allocation16 + $0x1] sm:$0x1]
        %v703 = vlaneseq
        %v704 = vshrl.u32 %v703, 7
        %v705 = vsub.s32 0, %v704
        %v706 = vrot.slane %v699, %v705
        %v707 = vlaneseq
        %v708 = vshrl.u32 %v707, 7
        %v709 = vsub.s32 0, %v708
        %v710 = vrot.slane %v700, %v709
        %v715 = vunpack.c.l.b16 %v695
        %v716 = vunpack.c.l.b16 %v696
        %v717 = vpack.c.b16 %v716, %v715
        %v720 = vsel %vm648, %v677, 0
        %722 = vmatprep.subr.bf16.mxu0 0
        %723 = vmatpush1.bf16.msra.mxu0 %v717
        %724 = vmatprep.subr.bf16.mxu0 0
        %725 = vmatpush1.bf16.msra.mxu0 0
        %726 = vmatprep.subr.bf16.mxu0 0
        %727 = vmatpush1.bf16.msra.mxu0 0
        %728 = vmatprep.subr.bf16.mxu0 0
        %729 = vmatpush1.bf16.msra.mxu0 0
        %730 = vmatprep.subr.bf16.mxu0 0
        %731 = vmatpush1.bf16.msra.mxu0 0
        %732 = vmatprep.subr.bf16.mxu0 0
        %733 = vmatpush1.bf16.msra.mxu0 0
        %734 = vmatprep.subr.bf16.mxu0 0
        %735 = vmatpush1.bf16.msra.mxu0 0
        %736 = vmatprep.subr.bf16.mxu0 0
        %737 = vmatpush1.bf16.msra.mxu0 0
        %738 = vmatprep.subr.bf16.mxu0 0
        %739 = vmatpush1.bf16.msra.mxu0 0
        %740 = vmatprep.subr.bf16.mxu0 0
        %741 = vmatpush1.bf16.msra.mxu0 0
        %742 = vmatprep.subr.bf16.mxu0 0
        %743 = vmatpush1.bf16.msra.mxu0 0
        %744 = vmatprep.subr.bf16.mxu0 0
        %745 = vmatpush1.bf16.msra.mxu0 0
        %746 = vmatprep.subr.bf16.mxu0 0
        %747 = vmatpush1.bf16.msra.mxu0 0
        %748 = vmatprep.subr.bf16.mxu0 0
        %749 = vmatpush1.bf16.msra.mxu0 0
        %750 = vmatprep.subr.bf16.mxu0 0
        %751 = vmatpush1.bf16.msra.mxu0 0
        %752 = vmatprep.subr.bf16.mxu0 0
        %753 = vmatpush1.bf16.msra.mxu0 0
        %754 = vmatprep.mubr.bf16.mxu0 0
        %755 = vmatmul.mubr.bf16.gmra.mrb[0].mxu0 %v720
        %v756 = vpop.f32.mrb[0].mxu0
        %v757 = vadd.f32 %v706, %v756
        %v758 = vpop.f32.mrb[0].mxu0
        %v759 = vpop.f32.mrb[0].mxu0
        %v760 = vpop.f32.mrb[0].mxu0
        %761 = vdwg.mxu0
        %v764 = vunpack.c.l.b16 %v697
        %v765 = vunpack.c.l.b16 %v698
        %v766 = vpack.c.b16 %v765, %v764
        %768 = vmatprep.subr.bf16.mxu0 0
        %769 = vmatpush1.bf16.msra.mxu0 %v766
        %770 = vmatprep.subr.bf16.mxu0 0
        %771 = vmatpush1.bf16.msra.mxu0 0
        %772 = vmatprep.subr.bf16.mxu0 0
        %773 = vmatpush1.bf16.msra.mxu0 0
        %774 = vmatprep.subr.bf16.mxu0 0
        %775 = vmatpush1.bf16.msra.mxu0 0
        %776 = vmatprep.subr.bf16.mxu0 0
        %777 = vmatpush1.bf16.msra.mxu0 0
        %778 = vmatprep.subr.bf16.mxu0 0
        %779 = vmatpush1.bf16.msra.mxu0 0
        %780 = vmatprep.subr.bf16.mxu0 0
        %781 = vmatpush1.bf16.msra.mxu0 0
        %782 = vmatprep.subr.bf16.mxu0 0
        %783 = vmatpush1.bf16.msra.mxu0 0
        %784 = vmatprep.subr.bf16.mxu0 0
        %785 = vmatpush1.bf16.msra.mxu0 0
        %786 = vmatprep.subr.bf16.mxu0 0
        %787 = vmatpush1.bf16.msra.mxu0 0
        %788 = vmatprep.subr.bf16.mxu0 0
        %789 = vmatpush1.bf16.msra.mxu0 0
        %790 = vmatprep.subr.bf16.mxu0 0
        %791 = vmatpush1.bf16.msra.mxu0 0
        %792 = vmatprep.subr.bf16.mxu0 0
        %793 = vmatpush1.bf16.msra.mxu0 0
        %794 = vmatprep.subr.bf16.mxu0 0
        %795 = vmatpush1.bf16.msra.mxu0 0
        %796 = vmatprep.subr.bf16.mxu0 0
        %797 = vmatpush1.bf16.msra.mxu0 0
        %798 = vmatprep.subr.bf16.mxu0 0
        %799 = vmatpush1.bf16.msra.mxu0 0
        %800 = vmatprep.mubr.bf16.mxu0 0
        %801 = vmatmul.mubr.bf16.gmra.mrb[0].mxu0 %v720
        %v802 = vpop.f32.mrb[0].mxu0
        %v803 = vadd.f32 %v710, %v802
        %v804 = vpop.f32.mrb[0].mxu0
        %v805 = vpop.f32.mrb[0].mxu0
        %v806 = vpop.f32.mrb[0].mxu0
        %807 = vdwg.mxu0
        %v808 = vld [vmem:[#allocation13] sm:$0xf]
        %v809 = vld [vmem:[#allocation13 + $0x4] sm:$0xf]
        %v810 = vld [vmem:[#allocation13 + $0x8] sm:$0xf]
        %v811 = vld [vmem:[#allocation13 + $0xc] sm:$0xf]
        %v812 = vld [vmem:[#allocation18] sm:$0x1]
        %v813 = vld [vmem:[#allocation18 + $0x1] sm:$0x1]
        %v816 = vlaneseq
        %v817 = vshrl.u32 %v816, 7
        %v818 = vsub.s32 0, %v817
        %v819 = vrot.slane %v812, %v818
        %v820 = vlaneseq
        %v821 = vshrl.u32 %v820, 7
        %v822 = vsub.s32 0, %v821
        %v823 = vrot.slane %v813, %v822
        %v828 = vunpack.c.l.b16 %v808
        %v829 = vunpack.c.l.b16 %v809
        %v830 = vpack.c.b16 %v829, %v828
        %832 = vmatprep.subr.bf16.mxu0 0
        %833 = vmatpush1.bf16.msra.mxu0 %v830
        %834 = vmatprep.subr.bf16.mxu0 0
        %835 = vmatpush1.bf16.msra.mxu0 0
        %836 = vmatprep.subr.bf16.mxu0 0
        %837 = vmatpush1.bf16.msra.mxu0 0
        %838 = vmatprep.subr.bf16.mxu0 0
        %839 = vmatpush1.bf16.msra.mxu0 0
        %840 = vmatprep.subr.bf16.mxu0 0
        %841 = vmatpush1.bf16.msra.mxu0 0
        %842 = vmatprep.subr.bf16.mxu0 0
        %843 = vmatpush1.bf16.msra.mxu0 0
        %844 = vmatprep.subr.bf16.mxu0 0
        %845 = vmatpush1.bf16.msra.mxu0 0
        %846 = vmatprep.subr.bf16.mxu0 0
        %847 = vmatpush1.bf16.msra.mxu0 0
        %848 = vmatprep.subr.bf16.mxu0 0
        %849 = vmatpush1.bf16.msra.mxu0 0
        %850 = vmatprep.subr.bf16.mxu0 0
        %851 = vmatpush1.bf16.msra.mxu0 0
        %852 = vmatprep.subr.bf16.mxu0 0
        %853 = vmatpush1.bf16.msra.mxu0 0
        %854 = vmatprep.subr.bf16.mxu0 0
        %855 = vmatpush1.bf16.msra.mxu0 0
        %856 = vmatprep.subr.bf16.mxu0 0
        %857 = vmatpush1.bf16.msra.mxu0 0
        %858 = vmatprep.subr.bf16.mxu0 0
        %859 = vmatpush1.bf16.msra.mxu0 0
        %860 = vmatprep.subr.bf16.mxu0 0
        %861 = vmatpush1.bf16.msra.mxu0 0
        %862 = vmatprep.subr.bf16.mxu0 0
        %863 = vmatpush1.bf16.msra.mxu0 0
        %864 = vmatprep.mubr.bf16.mxu0 0
        %865 = vmatmul.mubr.bf16.gmra.mrb[0].mxu0 %v720
        %v866 = vpop.f32.mrb[0].mxu0
        %v867 = vadd.f32 %v819, %v866
        %v868 = vpop.f32.mrb[0].mxu0
        %v869 = vpop.f32.mrb[0].mxu0
        %v870 = vpop.f32.mrb[0].mxu0
        %871 = vdwg.mxu0
        %v874 = vunpack.c.l.b16 %v810
        %v875 = vunpack.c.l.b16 %v811
        %v876 = vpack.c.b16 %v875, %v874
        %878 = vmatprep.subr.bf16.mxu0 0
        %879 = vmatpush1.bf16.msra.mxu0 %v876
        %880 = vmatprep.subr.bf16.mxu0 0
        %881 = vmatpush1.bf16.msra.mxu0 0
        %882 = vmatprep.subr.bf16.mxu0 0
        %883 = vmatpush1.bf16.msra.mxu0 0
        %884 = vmatprep.subr.bf16.mxu0 0
        %885 = vmatpush1.bf16.msra.mxu0 0
        %886 = vmatprep.subr.bf16.mxu0 0
        %887 = vmatpush1.bf16.msra.mxu0 0
        %888 = vmatprep.subr.bf16.mxu0 0
        %889 = vmatpush1.bf16.msra.mxu0 0
        %890 = vmatprep.subr.bf16.mxu0 0
        %891 = vmatpush1.bf16.msra.mxu0 0
        %892 = vmatprep.subr.bf16.mxu0 0
        %893 = vmatpush1.bf16.msra.mxu0 0
        %894 = vmatprep.subr.bf16.mxu0 0
        %895 = vmatpush1.bf16.msra.mxu0 0
        %896 = vmatprep.subr.bf16.mxu0 0
        %897 = vmatpush1.bf16.msra.mxu0 0
        %898 = vmatprep.subr.bf16.mxu0 0
        %899 = vmatpush1.bf16.msra.mxu0 0
        %900 = vmatprep.subr.bf16.mxu0 0
        %901 = vmatpush1.bf16.msra.mxu0 0
        %902 = vmatprep.subr.bf16.mxu0 0
        %903 = vmatpush1.bf16.msra.mxu0 0
        %904 = vmatprep.subr.bf16.mxu0 0
        %905 = vmatpush1.bf16.msra.mxu0 0
        %906 = vmatprep.subr.bf16.mxu0 0
        %907 = vmatpush1.bf16.msra.mxu0 0
        %908 = vmatprep.subr.bf16.mxu0 0
        %909 = vmatpush1.bf16.msra.mxu0 0
        %910 = vmatprep.mubr.bf16.mxu0 0
        %911 = vmatmul.mubr.bf16.gmra.mrb[0].mxu0 %v720
        %v912 = vpop.f32.mrb[0].mxu0
        %v913 = vadd.f32 %v823, %v912
        %v914 = vpop.f32.mrb[0].mxu0
        %v915 = vpop.f32.mrb[0].mxu0
        %v916 = vpop.f32.mrb[0].mxu0
        %917 = vdwg.mxu0
        %v918 = vld [vmem:[#allocation15] sm:$0xf]
        %v919 = vld [vmem:[#allocation15 + $0x4] sm:$0xf]
        %v920 = vld [vmem:[#allocation15 + $0x8] sm:$0xf]
        %v921 = vld [vmem:[#allocation15 + $0xc] sm:$0xf]
        %v922 = vld [vmem:[#allocation19] sm:$0x1]
        %v923 = vld [vmem:[#allocation19 + $0x1] sm:$0x1]
        %v926 = vlaneseq
        %v927 = vshrl.u32 %v926, 7
        %v928 = vsub.s32 0, %v927
        %v929 = vrot.slane %v922, %v928
        %v930 = vlaneseq
        %v931 = vshrl.u32 %v930, 7
        %v932 = vsub.s32 0, %v931
        %v933 = vrot.slane %v923, %v932
        %v938 = vunpack.c.l.b16 %v918
        %v939 = vunpack.c.l.b16 %v919
        %v940 = vpack.c.b16 %v939, %v938
        %942 = vmatprep.subr.bf16.mxu0 0
        %943 = vmatpush1.bf16.msra.mxu0 %v940
        %944 = vmatprep.subr.bf16.mxu0 0
        %945 = vmatpush1.bf16.msra.mxu0 0
        %946 = vmatprep.subr.bf16.mxu0 0
        %947 = vmatpush1.bf16.msra.mxu0 0
        %948 = vmatprep.subr.bf16.mxu0 0
        %949 = vmatpush1.bf16.msra.mxu0 0
        %950 = vmatprep.subr.bf16.mxu0 0
        %951 = vmatpush1.bf16.msra.mxu0 0
        %952 = vmatprep.subr.bf16.mxu0 0
        %953 = vmatpush1.bf16.msra.mxu0 0
        %954 = vmatprep.subr.bf16.mxu0 0
        %955 = vmatpush1.bf16.msra.mxu0 0
        %956 = vmatprep.subr.bf16.mxu0 0
        %957 = vmatpush1.bf16.msra.mxu0 0
        %958 = vmatprep.subr.bf16.mxu0 0
        %959 = vmatpush1.bf16.msra.mxu0 0
        %960 = vmatprep.subr.bf16.mxu0 0
        %961 = vmatpush1.bf16.msra.mxu0 0
        %962 = vmatprep.subr.bf16.mxu0 0
        %963 = vmatpush1.bf16.msra.mxu0 0
        %964 = vmatprep.subr.bf16.mxu0 0
        %965 = vmatpush1.bf16.msra.mxu0 0
        %966 = vmatprep.subr.bf16.mxu0 0
        %967 = vmatpush1.bf16.msra.mxu0 0
        %968 = vmatprep.subr.bf16.mxu0 0
        %969 = vmatpush1.bf16.msra.mxu0 0
        %970 = vmatprep.subr.bf16.mxu0 0
        %971 = vmatpush1.bf16.msra.mxu0 0
        %972 = vmatprep.subr.bf16.mxu0 0
        %973 = vmatpush1.bf16.msra.mxu0 0
        %974 = vmatprep.mubr.bf16.mxu0 0
        %975 = vmatmul.mubr.bf16.gmra.mrb[0].mxu0 %v720
        %v976 = vpop.f32.mrb[0].mxu0
        %v977 = vadd.f32 %v929, %v976
        %v978 = vpop.f32.mrb[0].mxu0
        %v979 = vpop.f32.mrb[0].mxu0
        %v980 = vpop.f32.mrb[0].mxu0
        %981 = vdwg.mxu0
        %v984 = vunpack.c.l.b16 %v920
        %v985 = vunpack.c.l.b16 %v921
        %v986 = vpack.c.b16 %v985, %v984
        %988 = vmatprep.subr.bf16.mxu0 0
        %989 = vmatpush1.bf16.msra.mxu0 %v986
        %990 = vmatprep.subr.bf16.mxu0 0
        %991 = vmatpush1.bf16.msra.mxu0 0
        %992 = vmatprep.subr.bf16.mxu0 0
        %993 = vmatpush1.bf16.msra.mxu0 0
        %994 = vmatprep.subr.bf16.mxu0 0
        %995 = vmatpush1.bf16.msra.mxu0 0
        %996 = vmatprep.subr.bf16.mxu0 0
        %997 = vmatpush1.bf16.msra.mxu0 0
        %998 = vmatprep.subr.bf16.mxu0 0
        %999 = vmatpush1.bf16.msra.mxu0 0
        %1000 = vmatprep.subr.bf16.mxu0 0
        %1001 = vmatpush1.bf16.msra.mxu0 0
        %1002 = vmatprep.subr.bf16.mxu0 0
        %1003 = vmatpush1.bf16.msra.mxu0 0
        %1004 = vmatprep.subr.bf16.mxu0 0
        %1005 = vmatpush1.bf16.msra.mxu0 0
        %1006 = vmatprep.subr.bf16.mxu0 0
        %1007 = vmatpush1.bf16.msra.mxu0 0
        %1008 = vmatprep.subr.bf16.mxu0 0
        %1009 = vmatpush1.bf16.msra.mxu0 0
        %1010 = vmatprep.subr.bf16.mxu0 0
        %1011 = vmatpush1.bf16.msra.mxu0 0
        %1012 = vmatprep.subr.bf16.mxu0 0
        %1013 = vmatpush1.bf16.msra.mxu0 0
        %1014 = vmatprep.subr.bf16.mxu0 0
        %1015 = vmatpush1.bf16.msra.mxu0 0
        %1016 = vmatprep.subr.bf16.mxu0 0
        %1017 = vmatpush1.bf16.msra.mxu0 0
        %1018 = vmatprep.subr.bf16.mxu0 0
        %1019 = vmatpush1.bf16.msra.mxu0 0
        %1020 = vmatprep.mubr.bf16.mxu0 0
        %1021 = vmatmul.mubr.bf16.gmra.mrb[0].mxu0 %v720
        %v1022 = vpop.f32.mrb[0].mxu0
        %v1023 = vadd.f32 %v933, %v1022
        %v1024 = vpop.f32.mrb[0].mxu0
        %v1025 = vpop.f32.mrb[0].mxu0
        %v1026 = vpop.f32.mrb[0].mxu0
        %1027 = vdwg.mxu0
        %v1028 = vld [vmem:[#allocation13] sm:$0xf]
        %v1029 = vld [vmem:[#allocation13 + $0x4] sm:$0xf]
        %v1030 = vld [vmem:[#allocation13 + $0x8] sm:$0xf]
        %v1031 = vld [vmem:[#allocation13 + $0xc] sm:$0xf]
        %v1032 = vld [vmem:[#allocation18] sm:$0x1]
        %v1033 = vld [vmem:[#allocation18 + $0x1] sm:$0x1]
        %v1036 = vlaneseq
        %v1037 = vshrl.u32 %v1036, 7
        %v1038 = vsub.s32 0, %v1037
        %v1039 = vrot.slane %v1032, %v1038
        %v1040 = vlaneseq
        %v1041 = vshrl.u32 %v1040, 7
        %v1042 = vsub.s32 0, %v1041
        %v1043 = vrot.slane %v1033, %v1042
        %v1048 = vunpack.c.l.b16 %v1028
        %v1049 = vunpack.c.l.b16 %v1029
        %v1050 = vpack.c.b16 %v1049, %v1048
        %v1053 = vsel %vm648, %v694, 0
        %1055 = vmatprep.subr.bf16.mxu0 0
        %1056 = vmatpush1.bf16.msra.mxu0 %v1050
        %1057 = vmatprep.subr.bf16.mxu0 0
        %1058 = vmatpush1.bf16.msra.mxu0 0
        %1059 = vmatprep.subr.bf16.mxu0 0
        %1060 = vmatpush1.bf16.msra.mxu0 0
        %1061 = vmatprep.subr.bf16.mxu0 0
        %1062 = vmatpush1.bf16.msra.mxu0 0
        %1063 = vmatprep.subr.bf16.mxu0 0
        %1064 = vmatpush1.bf16.msra.mxu0 0
        %1065 = vmatprep.subr.bf16.mxu0 0
        %1066 = vmatpush1.bf16.msra.mxu0 0
        %1067 = vmatprep.subr.bf16.mxu0 0
        %1068 = vmatpush1.bf16.msra.mxu0 0
        %1069 = vmatprep.subr.bf16.mxu0 0
        %1070 = vmatpush1.bf16.msra.mxu0 0
        %1071 = vmatprep.subr.bf16.mxu0 0
        %1072 = vmatpush1.bf16.msra.mxu0 0
        %1073 = vmatprep.subr.bf16.mxu0 0
        %1074 = vmatpush1.bf16.msra.mxu0 0
        %1075 = vmatprep.subr.bf16.mxu0 0
        %1076 = vmatpush1.bf16.msra.mxu0 0
        %1077 = vmatprep.subr.bf16.mxu0 0
        %1078 = vmatpush1.bf16.msra.mxu0 0
        %1079 = vmatprep.subr.bf16.mxu0 0
        %1080 = vmatpush1.bf16.msra.mxu0 0
        %1081 = vmatprep.subr.bf16.mxu0 0
        %1082 = vmatpush1.bf16.msra.mxu0 0
        %1083 = vmatprep.subr.bf16.mxu0 0
        %1084 = vmatpush1.bf16.msra.mxu0 0
        %1085 = vmatprep.subr.bf16.mxu0 0
        %1086 = vmatpush1.bf16.msra.mxu0 0
        %1087 = vmatprep.mubr.bf16.mxu0 0
        %1088 = vmatmul.mubr.bf16.gmra.mrb[0].mxu0 %v1053
        %v1089 = vpop.f32.mrb[0].mxu0
        %v1090 = vadd.f32 %v1039, %v1089
        %v1091 = vpop.f32.mrb[0].mxu0
        %v1092 = vpop.f32.mrb[0].mxu0
        %v1093 = vpop.f32.mrb[0].mxu0
        %1094 = vdwg.mxu0
        %v1097 = vunpack.c.l.b16 %v1030
        %v1098 = vunpack.c.l.b16 %v1031
        %v1099 = vpack.c.b16 %v1098, %v1097
        %1101 = vmatprep.subr.bf16.mxu0 0
        %1102 = vmatpush1.bf16.msra.mxu0 %v1099
        %1103 = vmatprep.subr.bf16.mxu0 0
        %1104 = vmatpush1.bf16.msra.mxu0 0
        %1105 = vmatprep.subr.bf16.mxu0 0
        %1106 = vmatpush1.bf16.msra.mxu0 0
        %1107 = vmatprep.subr.bf16.mxu0 0
        %1108 = vmatpush1.bf16.msra.mxu0 0
        %1109 = vmatprep.subr.bf16.mxu0 0
        %1110 = vmatpush1.bf16.msra.mxu0 0
        %1111 = vmatprep.subr.bf16.mxu0 0
        %1112 = vmatpush1.bf16.msra.mxu0 0
        %1113 = vmatprep.subr.bf16.mxu0 0
        %1114 = vmatpush1.bf16.msra.mxu0 0
        %1115 = vmatprep.subr.bf16.mxu0 0
        %1116 = vmatpush1.bf16.msra.mxu0 0
        %1117 = vmatprep.subr.bf16.mxu0 0
        %1118 = vmatpush1.bf16.msra.mxu0 0
        %1119 = vmatprep.subr.bf16.mxu0 0
        %1120 = vmatpush1.bf16.msra.mxu0 0
        %1121 = vmatprep.subr.bf16.mxu0 0
        %1122 = vmatpush1.bf16.msra.mxu0 0
        %1123 = vmatprep.subr.bf16.mxu0 0
        %1124 = vmatpush1.bf16.msra.mxu0 0
        %1125 = vmatprep.subr.bf16.mxu0 0
        %1126 = vmatpush1.bf16.msra.mxu0 0
        %1127 = vmatprep.subr.bf16.mxu0 0
        %1128 = vmatpush1.bf16.msra.mxu0 0
        %1129 = vmatprep.subr.bf16.mxu0 0
        %1130 = vmatpush1.bf16.msra.mxu0 0
        %1131 = vmatprep.subr.bf16.mxu0 0
        %1132 = vmatpush1.bf16.msra.mxu0 0
        %1133 = vmatprep.mubr.bf16.mxu0 0
        %1134 = vmatmul.mubr.bf16.gmra.mrb[0].mxu0 %v1053
        %v1135 = vpop.f32.mrb[0].mxu0
        %v1136 = vadd.f32 %v1043, %v1135
        %v1137 = vpop.f32.mrb[0].mxu0
        %v1138 = vpop.f32.mrb[0].mxu0
        %v1139 = vpop.f32.mrb[0].mxu0
        %1140 = vdwg.mxu0
        %v1141 = vld [vmem:[#allocation15] sm:$0xf]
        %v1142 = vld [vmem:[#allocation15 + $0x4] sm:$0xf]
        %v1143 = vld [vmem:[#allocation15 + $0x8] sm:$0xf]
        %v1144 = vld [vmem:[#allocation15 + $0xc] sm:$0xf]
        %v1145 = vld [vmem:[#allocation19] sm:$0x1]
        %v1146 = vld [vmem:[#allocation19 + $0x1] sm:$0x1]
        %v1149 = vlaneseq
        %v1150 = vshrl.u32 %v1149, 7
        %v1151 = vsub.s32 0, %v1150
        %v1152 = vrot.slane %v1145, %v1151
        %v1153 = vlaneseq
        %v1154 = vshrl.u32 %v1153, 7
        %v1155 = vsub.s32 0, %v1154
        %v1156 = vrot.slane %v1146, %v1155
        %v1161 = vunpack.c.l.b16 %v1141
        %v1162 = vunpack.c.l.b16 %v1142
        %v1163 = vpack.c.b16 %v1162, %v1161
        %1165 = vmatprep.subr.bf16.mxu0 0
        %1166 = vmatpush1.bf16.msra.mxu0 %v1163
        %1167 = vmatprep.subr.bf16.mxu0 0
        %1168 = vmatpush1.bf16.msra.mxu0 0
        %1169 = vmatprep.subr.bf16.mxu0 0
        %1170 = vmatpush1.bf16.msra.mxu0 0
        %1171 = vmatprep.subr.bf16.mxu0 0
        %1172 = vmatpush1.bf16.msra.mxu0 0
        %1173 = vmatprep.subr.bf16.mxu0 0
        %1174 = vmatpush1.bf16.msra.mxu0 0
        %1175 = vmatprep.subr.bf16.mxu0 0
        %1176 = vmatpush1.bf16.msra.mxu0 0
        %1177 = vmatprep.subr.bf16.mxu0 0
        %1178 = vmatpush1.bf16.msra.mxu0 0
        %1179 = vmatprep.subr.bf16.mxu0 0
        %1180 = vmatpush1.bf16.msra.mxu0 0
        %1181 = vmatprep.subr.bf16.mxu0 0
        %1182 = vmatpush1.bf16.msra.mxu0 0
        %1183 = vmatprep.subr.bf16.mxu0 0
        %1184 = vmatpush1.bf16.msra.mxu0 0
        %1185 = vmatprep.subr.bf16.mxu0 0
        %1186 = vmatpush1.bf16.msra.mxu0 0
        %1187 = vmatprep.subr.bf16.mxu0 0
        %1188 = vmatpush1.bf16.msra.mxu0 0
        %1189 = vmatprep.subr.bf16.mxu0 0
        %1190 = vmatpush1.bf16.msra.mxu0 0
        %1191 = vmatprep.subr.bf16.mxu0 0
        %1192 = vmatpush1.bf16.msra.mxu0 0
        %1193 = vmatprep.subr.bf16.mxu0 0
        %1194 = vmatpush1.bf16.msra.mxu0 0
        %1195 = vmatprep.subr.bf16.mxu0 0
        %1196 = vmatpush1.bf16.msra.mxu0 0
        %1197 = vmatprep.mubr.bf16.mxu0 0
        %1198 = vmatmul.mubr.bf16.gmra.mrb[0].mxu0 %v1053
        %v1199 = vpop.f32.mrb[0].mxu0
        %v1200 = vadd.f32 %v1152, %v1199
        %v1201 = vpop.f32.mrb[0].mxu0
        %v1202 = vpop.f32.mrb[0].mxu0
        %v1203 = vpop.f32.mrb[0].mxu0
        %1204 = vdwg.mxu0
        %v1207 = vunpack.c.l.b16 %v1143
        %v1208 = vunpack.c.l.b16 %v1144
        %v1209 = vpack.c.b16 %v1208, %v1207
        %1211 = vmatprep.subr.bf16.mxu0 0
        %1212 = vmatpush1.bf16.msra.mxu0 %v1209
        %1213 = vmatprep.subr.bf16.mxu0 0
        %1214 = vmatpush1.bf16.msra.mxu0 0
        %1215 = vmatprep.subr.bf16.mxu0 0
        %1216 = vmatpush1.bf16.msra.mxu0 0
        %1217 = vmatprep.subr.bf16.mxu0 0
        %1218 = vmatpush1.bf16.msra.mxu0 0
        %1219 = vmatprep.subr.bf16.mxu0 0
        %1220 = vmatpush1.bf16.msra.mxu0 0
        %1221 = vmatprep.subr.bf16.mxu0 0
        %1222 = vmatpush1.bf16.msra.mxu0 0
        %1223 = vmatprep.subr.bf16.mxu0 0
        %1224 = vmatpush1.bf16.msra.mxu0 0
        %1225 = vmatprep.subr.bf16.mxu0 0
        %1226 = vmatpush1.bf16.msra.mxu0 0
        %1227 = vmatprep.subr.bf16.mxu0 0
        %1228 = vmatpush1.bf16.msra.mxu0 0
        %1229 = vmatprep.subr.bf16.mxu0 0
        %1230 = vmatpush1.bf16.msra.mxu0 0
        %1231 = vmatprep.subr.bf16.mxu0 0
        %1232 = vmatpush1.bf16.msra.mxu0 0
        %1233 = vmatprep.subr.bf16.mxu0 0
        %1234 = vmatpush1.bf16.msra.mxu0 0
        %1235 = vmatprep.subr.bf16.mxu0 0
        %1236 = vmatpush1.bf16.msra.mxu0 0
        %1237 = vmatprep.subr.bf16.mxu0 0
        %1238 = vmatpush1.bf16.msra.mxu0 0
        %1239 = vmatprep.subr.bf16.mxu0 0
        %1240 = vmatpush1.bf16.msra.mxu0 0
        %1241 = vmatprep.subr.bf16.mxu0 0
        %1242 = vmatpush1.bf16.msra.mxu0 0
        %1243 = vmatprep.mubr.bf16.mxu0 0
        %1244 = vmatmul.mubr.bf16.gmra.mrb[0].mxu0 %v1053
        %v1245 = vpop.f32.mrb[0].mxu0
        %v1246 = vadd.f32 %v1156, %v1245
        %v1247 = vpop.f32.mrb[0].mxu0
        %v1248 = vpop.f32.mrb[0].mxu0
        %v1249 = vpop.f32.mrb[0].mxu0
        %1250 = vdwg.mxu0
        %v1251 = vpack.c.bf16 %v757, %v757
        %v1252 = vpack.c.bf16 %v803, %v803
        %v1253 = vpack.c.bf16 %v867, %v1090
        %v1254 = vpack.c.bf16 %v913, %v1136
        %v1255 = vlaneseq
        %v1256 = vshrl.u32 %v1255, 7
        %v1257 = vstv %s644
        %v1258 = vadd.s32 %v1257, %v1256
        %s1259 = ssub.s32 %s644, 8
        %v1260 = vlaneseq
        %v1261 = vand.u32 %v1260, 127
        %v1262 = vstv %s1259
        %v1263 = vadd.s32 %v1262, %v1261
        %vm1264 = vcmp.ge.s32.totalorder %v1263, 0
        %vm1265 = vcmp.le.s32.totalorder %v1263, %v1258
        %vm1266 = vmand %vm1264, %vm1265
        %v1267 = vsub.s32 %v1258, 4
        %vm1268 = vcmp.ge.s32.totalorder %v1263, %v1267
        %vm1269 = vmand %vm1266, %vm1268
        %v1270 = vstv %s643
        %vm1271 = vcmp.lt.s32.totalorder %v1263, %v1270
        %vm1272 = vmand %vm1269, %vm1271
        %v1273 = vsel %vm1272, 0.0, -1e+09
        %vm1274 = vcmask 64512
        %v1276 = vsel %vm1274, %v1251, 0
        %v1279 = vsel %vm1274, %v1253, 0
        %1281 = vmatprep.subr.bf16.mxu0 0
        %1282 = vmatpush1.bf16.xpose.msra.mxu0 %v1279
        %1283 = vmatprep.subr.bf16.mxu0 0
        %1284 = vmatpush1.bf16.xpose.msra.mxu0 0
        %1285 = vmatprep.subr.bf16.mxu0 0
        %1286 = vmatpush1.bf16.xpose.msra.mxu0 0
        %1287 = vmatprep.subr.bf16.mxu0 0
        %1288 = vmatpush1.bf16.xpose.msra.mxu0 0
        %1289 = vmatprep.subr.bf16.mxu0 0
        %1290 = vmatpush1.bf16.xpose.msra.mxu0 0
        %1291 = vmatprep.subr.bf16.mxu0 0
        %1292 = vmatpush1.bf16.xpose.msra.mxu0 0
        %1293 = vmatprep.subr.bf16.mxu0 0
        %1294 = vmatpush1.bf16.xpose.msra.mxu0 0
        %1295 = vmatprep.subr.bf16.mxu0 0
        %1296 = vmatpush1.bf16.xpose.msra.mxu0 0
        %1297 = vmatprep.subr.bf16.mxu0 0
        %1298 = vmatpush1.bf16.xpose.msra.mxu0 0
        %1299 = vmatprep.subr.bf16.mxu0 0
        %1300 = vmatpush1.bf16.xpose.msra.mxu0 0
        %1301 = vmatprep.subr.bf16.mxu0 0
        %1302 = vmatpush1.bf16.xpose.msra.mxu0 0
        %1303 = vmatprep.subr.bf16.mxu0 0
        %1304 = vmatpush1.bf16.xpose.msra.mxu0 0
        %1305 = vmatprep.subr.bf16.mxu0 0
        %1306 = vmatpush1.bf16.xpose.msra.mxu0 0
        %1307 = vmatprep.subr.bf16.mxu0 0
        %1308 = vmatpush1.bf16.xpose.msra.mxu0 0
        %1309 = vmatprep.subr.bf16.mxu0 0
        %1310 = vmatpush1.bf16.xpose.msra.mxu0 0
        %1311 = vmatprep.subr.bf16.mxu0 0
        %1312 = vmatpush1.bf16.xpose.msra.mxu0 0
        %1313 = vmatprep.mubr.bf16.mxu0 0
        %1314 = vmatmul.mubr.bf16.gmra.mrb[0].mxu0 %v1276
        %v1315 = vpop.f32.mrb[0].mxu0
        %v1316 = vadd.f32 %v1273, %v1315
        %v1317 = vpop.f32.mrb[0].mxu0
        %v1318 = vpop.f32.mrb[0].mxu0
        %v1319 = vpop.f32.mrb[0].mxu0
        %1320 = vdwg.mxu0
        %v1322 = vsel %vm1274, %v1252, 0
        %v1325 = vsel %vm1274, %v1254, 0
        %1327 = vmatprep.subr.bf16.mxu0 0
        %1328 = vmatpush1.bf16.xpose.msra.mxu0 %v1325
        %1329 = vmatprep.subr.bf16.mxu0 0
        %1330 = vmatpush1.bf16.xpose.msra.mxu0 0
        %1331 = vmatprep.subr.bf16.mxu0 0
        %1332 = vmatpush1.bf16.xpose.msra.mxu0 0
        %1333 = vmatprep.subr.bf16.mxu0 0
        %1334 = vmatpush1.bf16.xpose.msra.mxu0 0
        %1335 = vmatprep.subr.bf16.mxu0 0
        %1336 = vmatpush1.bf16.xpose.msra.mxu0 0
        %1337 = vmatprep.subr.bf16.mxu0 0
        %1338 = vmatpush1.bf16.xpose.msra.mxu0 0
        %1339 = vmatprep.subr.bf16.mxu0 0
        %1340 = vmatpush1.bf16.xpose.msra.mxu0 0
        %1341 = vmatprep.subr.bf16.mxu0 0
        %1342 = vmatpush1.bf16.xpose.msra.mxu0 0
        %1343 = vmatprep.subr.bf16.mxu0 0
        %1344 = vmatpush1.bf16.xpose.msra.mxu0 0
        %1345 = vmatprep.subr.bf16.mxu0 0
        %1346 = vmatpush1.bf16.xpose.msra.mxu0 0
        %1347 = vmatprep.subr.bf16.mxu0 0
        %1348 = vmatpush1.bf16.xpose.msra.mxu0 0
        %1349 = vmatprep.subr.bf16.mxu0 0
        %1350 = vmatpush1.bf16.xpose.msra.mxu0 0
        %1351 = vmatprep.subr.bf16.mxu0 0
        %1352 = vmatpush1.bf16.xpose.msra.mxu0 0
        %1353 = vmatprep.subr.bf16.mxu0 0
        %1354 = vmatpush1.bf16.xpose.msra.mxu0 0
        %1355 = vmatprep.subr.bf16.mxu0 0
        %1356 = vmatpush1.bf16.xpose.msra.mxu0 0
        %1357 = vmatprep.subr.bf16.mxu0 0
        %1358 = vmatpush1.bf16.xpose.msra.mxu0 0
        %1359 = vmatprep.mubr.bf16.mxu0 0
        %1360 = vmatmul.mubr.bf16.gmra.mrb[0].mxu0 %v1322
        %v1361 = vpop.f32.mrb[0].mxu0
        %v1362 = vadd.f32 %v1273, %v1361
        %v1363 = vpop.f32.mrb[0].mxu0
        %v1364 = vpop.f32.mrb[0].mxu0
        %v1365 = vpop.f32.mrb[0].mxu0
        %1366 = vdwg.mxu0
        %v1367 = vsel %vm648, %v1316, -inf
        %1368 = vmax.xlane.f32.xlu0 %v1367
        %v1369 = vpop.xlane.xlu0 %1368
        %v1370 = vsel %vm648, %v1362, -inf
        %1371 = vmax.xlane.f32.xlu0 %v1370
        %v1372 = vpop.xlane.xlu0 %1371
        %v1373 = vsub.f32 %v1316, %v1369
        %v1374 = vsub.f32 %v1362, %v1372
        %v1375 = vmul.f32 %v1373, 1.442695
        %v1376 = vpow.pop %v1375
        %v1377 = vmul.f32 %v1374, 1.442695
        %v1378 = vpow.pop %v1377
        %v1379 = vsel %vm648, %v1376, 0.0
        %1380 = vadd.xlane.f32.xlu0 %v1379
        %v1381 = vpop.xlane.xlu0 %1380
        %v1382 = vsel %vm648, %v1378, 0.0
        %1383 = vadd.xlane.f32.xlu0 %v1382
        %v1384 = vpop.xlane.xlu0 %1383
        %v1385 = vrcp.pop %v1381
        %v1386 = vmul.f32 1.0, %v1385
        %v1387 = vrcp.pop %v1384
        %v1388 = vmul.f32 1.0, %v1387
        %v1389 = vmul.f32 %v1376, %v1386
        %v1390 = vmul.f32 %v1378, %v1388
        %v1391 = vpack.c.bf16 %v1389, %v1389
        %v1392 = vpack.c.bf16 %v1390, %v1390
        %v1393 = vpack.c.bf16 %v977, %v1200
        %v1394 = vpack.c.bf16 %v1023, %v1246
        %v1396 = vsel %vm648, %v1391, 0
        %1398 = vmatprep.subr.bf16.mxu0 0
        %1399 = vmatpush1.bf16.msra.mxu0 %v1393
        %1400 = vmatprep.subr.bf16.mxu0 0
        %1401 = vmatpush1.bf16.msra.mxu0 0
        %1402 = vmatprep.subr.bf16.mxu0 0
        %1403 = vmatpush1.bf16.msra.mxu0 0
        %1404 = vmatprep.subr.bf16.mxu0 0
        %1405 = vmatpush1.bf16.msra.mxu0 0
        %1406 = vmatprep.subr.bf16.mxu0 0
        %1407 = vmatpush1.bf16.msra.mxu0 0
        %1408 = vmatprep.subr.bf16.mxu0 0
        %1409 = vmatpush1.bf16.msra.mxu0 0
        %1410 = vmatprep.subr.bf16.mxu0 0
        %1411 = vmatpush1.bf16.msra.mxu0 0
        %1412 = vmatprep.subr.bf16.mxu0 0
        %1413 = vmatpush1.bf16.msra.mxu0 0
        %1414 = vmatprep.subr.bf16.mxu0 0
        %1415 = vmatpush1.bf16.msra.mxu0 0
        %1416 = vmatprep.subr.bf16.mxu0 0
        %1417 = vmatpush1.bf16.msra.mxu0 0
        %1418 = vmatprep.subr.bf16.mxu0 0
        %1419 = vmatpush1.bf16.msra.mxu0 0
        %1420 = vmatprep.subr.bf16.mxu0 0
        %1421 = vmatpush1.bf16.msra.mxu0 0
        %1422 = vmatprep.subr.bf16.mxu0 0
        %1423 = vmatpush1.bf16.msra.mxu0 0
        %1424 = vmatprep.subr.bf16.mxu0 0
        %1425 = vmatpush1.bf16.msra.mxu0 0
        %1426 = vmatprep.subr.bf16.mxu0 0
        %1427 = vmatpush1.bf16.msra.mxu0 0
        %1428 = vmatprep.subr.bf16.mxu0 0
        %1429 = vmatpush1.bf16.msra.mxu0 0
        %1430 = vmatprep.mubr.bf16.mxu0 0
        %1431 = vmatmul.mubr.bf16.gmra.mrb[0].mxu0 %v1396
        %v1432 = vpop.f32.mrb[0].mxu0
        %v1433 = vadd.f32 0.0, %v1432
        %v1434 = vpop.f32.mrb[0].mxu0
        %v1435 = vpop.f32.mrb[0].mxu0
        %v1436 = vpop.f32.mrb[0].mxu0
        %1437 = vdwg.mxu0
        %v1439 = vsel %vm648, %v1392, 0
        %1441 = vmatprep.subr.bf16.mxu0 0
        %1442 = vmatpush1.bf16.msra.mxu0 %v1394
        %1443 = vmatprep.subr.bf16.mxu0 0
        %1444 = vmatpush1.bf16.msra.mxu0 0
        %1445 = vmatprep.subr.bf16.mxu0 0
        %1446 = vmatpush1.bf16.msra.mxu0 0
        %1447 = vmatprep.subr.bf16.mxu0 0
        %1448 = vmatpush1.bf16.msra.mxu0 0
        %1449 = vmatprep.subr.bf16.mxu0 0
        %1450 = vmatpush1.bf16.msra.mxu0 0
        %1451 = vmatprep.subr.bf16.mxu0 0
        %1452 = vmatpush1.bf16.msra.mxu0 0
        %1453 = vmatprep.subr.bf16.mxu0 0
        %1454 = vmatpush1.bf16.msra.mxu0 0
        %1455 = vmatprep.subr.bf16.mxu0 0
        %1456 = vmatpush1.bf16.msra.mxu0 0
        %1457 = vmatprep.subr.bf16.mxu0 0
        %1458 = vmatpush1.bf16.msra.mxu0 0
        %1459 = vmatprep.subr.bf16.mxu0 0
        %1460 = vmatpush1.bf16.msra.mxu0 0
        %1461 = vmatprep.subr.bf16.mxu0 0
        %1462 = vmatpush1.bf16.msra.mxu0 0
        %1463 = vmatprep.subr.bf16.mxu0 0
        %1464 = vmatpush1.bf16.msra.mxu0 0
        %1465 = vmatprep.subr.bf16.mxu0 0
        %1466 = vmatpush1.bf16.msra.mxu0 0
        %1467 = vmatprep.subr.bf16.mxu0 0
        %1468 = vmatpush1.bf16.msra.mxu0 0
        %1469 = vmatprep.subr.bf16.mxu0 0
        %1470 = vmatpush1.bf16.msra.mxu0 0
        %1471 = vmatprep.subr.bf16.mxu0 0
        %1472 = vmatpush1.bf16.msra.mxu0 0
        %1473 = vmatprep.mubr.bf16.mxu0 0
        %1474 = vmatmul.mubr.bf16.gmra.mrb[0].mxu0 %v1439
        %v1475 = vpop.f32.mrb[0].mxu0
        %v1476 = vadd.f32 0.0, %v1475
        %v1477 = vpop.f32.mrb[0].mxu0
        %v1478 = vpop.f32.mrb[0].mxu0
        %v1479 = vpop.f32.mrb[0].mxu0
        %1480 = vdwg.mxu0
        %v1481 = vpack.c.bf16 %v1433, %v1433
        %v1482 = vpack.c.bf16 %v1476, %v1476
        %v1483 = vld [vmem:[#allocation21] sm:$0xf]
        %v1484 = vld [vmem:[#allocation21 + $0x4] sm:$0xf]
        %v1486 = vsel %vm1274, %v1481, 0
        %vm1488 = vcmask 1043456
        %v1490 = vsel %vm1488, %v1483, 0
        %1492 = vmatprep.subr.bf16.mxu0 0
        %1493 = vmatpush1.bf16.msra.mxu0 %v1490
        %1494 = vmatprep.subr.bf16.mxu0 0
        %1495 = vmatpush1.bf16.msra.mxu0 0
        %1496 = vmatprep.subr.bf16.mxu0 0
        %1497 = vmatpush1.bf16.msra.mxu0 0
        %1498 = vmatprep.subr.bf16.mxu0 0
        %1499 = vmatpush1.bf16.msra.mxu0 0
        %1500 = vmatprep.subr.bf16.mxu0 0
        %1501 = vmatpush1.bf16.msra.mxu0 0
        %1502 = vmatprep.subr.bf16.mxu0 0
        %1503 = vmatpush1.bf16.msra.mxu0 0
        %1504 = vmatprep.subr.bf16.mxu0 0
        %1505 = vmatpush1.bf16.msra.mxu0 0
        %1506 = vmatprep.subr.bf16.mxu0 0
        %1507 = vmatpush1.bf16.msra.mxu0 0
        %1508 = vmatprep.subr.bf16.mxu0 0
        %1509 = vmatpush1.bf16.msra.mxu0 0
        %1510 = vmatprep.subr.bf16.mxu0 0
        %1511 = vmatpush1.bf16.msra.mxu0 0
        %1512 = vmatprep.subr.bf16.mxu0 0
        %1513 = vmatpush1.bf16.msra.mxu0 0
        %1514 = vmatprep.subr.bf16.mxu0 0
        %1515 = vmatpush1.bf16.msra.mxu0 0
        %1516 = vmatprep.subr.bf16.mxu0 0
        %1517 = vmatpush1.bf16.msra.mxu0 0
        %1518 = vmatprep.subr.bf16.mxu0 0
        %1519 = vmatpush1.bf16.msra.mxu0 0
        %1520 = vmatprep.subr.bf16.mxu0 0
        %1521 = vmatpush1.bf16.msra.mxu0 0
        %1522 = vmatprep.subr.bf16.mxu0 0
        %1523 = vmatpush1.bf16.msra.mxu0 0
        %1524 = vmatprep.mubr.bf16.mxu0 0
        %1525 = vmatmul.mubr.bf16.gmra.mrb[0].mxu0 %v1486
        %v1526 = vpop.f32.mrb[0].mxu0
        %v1527 = vadd.f32 0.0, %v1526
        %v1528 = vpop.f32.mrb[0].mxu0
        %v1529 = vpop.f32.mrb[0].mxu0
        %v1530 = vpop.f32.mrb[0].mxu0
        %1531 = vdwg.mxu0
        %v1533 = vsel %vm1274, %v1482, 0
        %v1536 = vsel %vm1488, %v1484, 0
        %1538 = vmatprep.subr.bf16.mxu0 0
        %1539 = vmatpush1.bf16.msra.mxu0 %v1536
        %1540 = vmatprep.subr.bf16.mxu0 0
        %1541 = vmatpush1.bf16.msra.mxu0 0
        %1542 = vmatprep.subr.bf16.mxu0 0
        %1543 = vmatpush1.bf16.msra.mxu0 0
        %1544 = vmatprep.subr.bf16.mxu0 0
        %1545 = vmatpush1.bf16.msra.mxu0 0
        %1546 = vmatprep.subr.bf16.mxu0 0
        %1547 = vmatpush1.bf16.msra.mxu0 0
        %1548 = vmatprep.subr.bf16.mxu0 0
        %1549 = vmatpush1.bf16.msra.mxu0 0
        %1550 = vmatprep.subr.bf16.mxu0 0
        %1551 = vmatpush1.bf16.msra.mxu0 0
        %1552 = vmatprep.subr.bf16.mxu0 0
        %1553 = vmatpush1.bf16.msra.mxu0 0
        %1554 = vmatprep.subr.bf16.mxu0 0
        %1555 = vmatpush1.bf16.msra.mxu0 0
        %1556 = vmatprep.subr.bf16.mxu0 0
        %1557 = vmatpush1.bf16.msra.mxu0 0
        %1558 = vmatprep.subr.bf16.mxu0 0
        %1559 = vmatpush1.bf16.msra.mxu0 0
        %1560 = vmatprep.subr.bf16.mxu0 0
        %1561 = vmatpush1.bf16.msra.mxu0 0
        %1562 = vmatprep.subr.bf16.mxu0 0
        %1563 = vmatpush1.bf16.msra.mxu0 0
        %1564 = vmatprep.subr.bf16.mxu0 0
        %1565 = vmatpush1.bf16.msra.mxu0 0
        %1566 = vmatprep.subr.bf16.mxu0 0
        %1567 = vmatpush1.bf16.msra.mxu0 0
        %1568 = vmatprep.subr.bf16.mxu0 0
        %1569 = vmatpush1.bf16.msra.mxu0 0
        %1570 = vmatprep.mubr.bf16.mxu0 0
        %1571 = vmatmul.mubr.bf16.gmra.mrb[0].mxu0 %v1533
        %v1572 = vpop.f32.mrb[0].mxu0
        %v1573 = vadd.f32 0.0, %v1572
        %v1574 = vpop.f32.mrb[0].mxu0
        %v1575 = vpop.f32.mrb[0].mxu0
        %v1576 = vpop.f32.mrb[0].mxu0
        %1577 = vdwg.mxu0
        %v1578 = vsel %vm648, %v1527, 0.0
        %v1579 = vsel %vm648, %v1573, 0.0
        %v1580 = vadd.f32 %v1578, %v1579
        %v1581 = vld [vmem:[#allocation22] sm:$0x1]
        %v1583 = vlaneseq
        %v1584 = vshrl.u32 %v1583, 7
        %v1585 = vsub.s32 0, %v1584
        %v1586 = vrot.slane %v1581, %v1585
        %v1588 = vadd.f32 %v1580, %v1586
        %vm1589 = vcmp.lt.s32.totalorder %v1258, %v1270
        %v1590 = vsel %vm1589, 1, 0
        %vm1591 = vcmp.eq.s32.totalorder %v1590, 1
        %v1592 = vsel %vm1591, %v1588, 0.0
        %v1593 = vadd.f32 %v645, %v1592
        %1594 = vst.msk [vmem:[%s638] sm:$0xff] %vm648, %v1593
        %s1595 = sand.u32 %s336, 1
        %s1596 = scalar_lea.sflag [#allocation6], %s1595
        %s1597 = sand.u32 %s336, 1
        %s1598 = smul.addr %s1597, 8
        %s1599 = scalar_lea.vmem [#allocation24], %s1598
        // Predicated region
        $region117: #{causal_conformer_encoder.19} parent=67 // pred_check
          %p1600 = pneg %p346
        $region118: #{causal_conformer_encoder.19} parent=67 // pred_check_branch
          %1602 = sbr.rel (%p1600) target = $region120
        $region119: #{causal_conformer_encoder.19} parent=67 // pred_region
          %s1604 = ssub.s32 128, 128
          %1605 = vsyncadd %s1596, %s1604
          %s1606 = sadd.s32 %s47, %s46
          %s1607 = smul.addr %s1606, 128
          %s1608 = scalar_lea.hbm %s13, %s1607
          %s1610 = sshll.u32 %s1599, 4
          %s1611 = int_to_ptr.vmem [resolvable:$true] %s1610
          %1613 = dma.vmem_to_hbm [thread:$0]  %s1611, 128, %s1608, %s1596
        $region120: #{causal_conformer_encoder.19} parent=67 // pred_fallthru
          _
      $region68: #{causal_conformer_encoder.19} parent=5 // pred_fallthru
        _
      %p1614 = scmp.le.s32.totalorder 2, %s37
      // Predicated region
      $region121: #{causal_conformer_encoder.19} parent=5 // pred_check
        %p1615 = pneg %p1614
      $region122: #{causal_conformer_encoder.19} parent=5 // pred_check_branch
        %1617 = sbr.rel (%p1615) target = $region124
      $region123: #{causal_conformer_encoder.19} parent=5 // pred_region
        %s1618 = ssub.s32 %s37, 2
        // Predicated region
        $region125: #{causal_conformer_encoder.19} parent=123 // pred_check
          %p1619 = pneg %p352
        $region126: #{causal_conformer_encoder.19} parent=123 // pred_check_branch
          %1621 = sbr.rel (%p1619) target = $region128
        $region127: #{causal_conformer_encoder.19} parent=123 // pred_region
          %s1622 = sand.u32 %s337, 1
          %s1623 = scalar_lea.sflag [#allocation6], %s1622
          %s1624 = sand.u32 %s337, 1
          %s1625 = smul.addr %s1624, 8
          %s1626 = scalar_lea.vmem [#allocation24], %s1625
          %1627 = dma.done %s1623, 128
        $region128: #{causal_conformer_encoder.19} parent=123 // pred_fallthru
          _
      $region124: #{causal_conformer_encoder.19} parent=5 // pred_fallthru
        _
    $region6: #{causal_conformer_encoder.19} parent=1 // loop_footer
      %s41 = sadd.s32 1, %s37
    $region7: #{causal_conformer_encoder.19} parent=1 // loop_footer_branch
      %36 = sbr.rel target = $region3
    $region8: #{causal_conformer_encoder.19} parent=1 // loop_exit
      _
    %1628 = vsyncpa [#allocation5], 1
    %s1629 = scalar_lea.sflag [#allocation5], 1
    %1630 = vsyncpa %s1629, 1
    %1631 = vsyncpa [#allocation8], 1
    %s1632 = scalar_lea.sflag [#allocation8], 1
    %1633 = vsyncpa %s1632, 1
    %1634 = vsyncpa [#allocation11], 1
    %1635 = vsyncpa [#allocation14], 1
    %1636 = vsyncpa [#allocation17], 1
    %1637 = vsyncpa [#allocation20], 1
    %1638 = vsyncpa [#allocation23], 1
    %1639 = vsyncpa [#allocation6], 1
    %s1640 = scalar_lea.sflag [#allocation6], 1
    %1641 = vsyncpa %s1640, 1

</llo_original>
